<compile_context>
chip_gen: v7x
topology: tpu7x:2x2x1
jax: 0.10.0
libtpu: 0.0.40
codegen_flags: <defaults>
</compile_context>

<pallas_src>
import functools

import jax
import jax.numpy as jnp
import numpy as np
from jax.experimental import pallas as pl
from jax.experimental.pallas import tpu as pltpu

EPS = 1e-5
LANE = 128
SUBLANE = 8


def _round_up(x, m):
    return (x + m - 1) // m * m


# ----------------------------- Pallas kernels -----------------------------

def _conv3x3_kernel(x_ref, w_ref, scale_ref, shift_ref, mask_ref,
                    y_ref, sum_ref, ssq_ref, xbuf_ref,
                    *, H, W, apply_prologue):
    """(optional fused BN+ReLU prologue) -> 3x3 conv as 9 per-tap MXU dots over the
    column-padded flat layout -> per-grid-step partial BN statistics.

    Layout: padded rows of width Wp = W+2 stacked contiguously; flat position
    p = r*Wp + c.  Real pixel (i, j) sits at p = base + i*Wp + j with base = Wp+1.
    Every 3x3 tap is a contiguous slab of L = H*Wp rows at static offset
    base + (kh-1)*Wp + (kw-1) — a plain offset load, no shifts, no reshapes.

    x_ref     : (1, R, Cp_in)      bf16  column-padded flat input (R >= (H+2)*Wp+2)
    w_ref     : (9, Cp_in, Cp_out) bf16  per-tap weight slabs (k = kh*3 + kw)
    scale_ref : (1, Cp_in)         f32   previous layer's BN scale  (prologue)
    shift_ref : (1, Cp_in)         f32   previous layer's BN shift  (prologue)
    mask_ref  : (R, 1)             f32   1.0 at real-pixel positions, else 0.0
    y_ref     : (1, R, Cp_out)     bf16  pre-BN conv output, same padded layout
    sum_ref   : (1, 1, Cp_out)     f32   per-step channel sums   (real pixels only)
    ssq_ref   : (1, 1, Cp_out)     f32   per-step channel sums of squares
    xbuf_ref  : (R, Cp_in)         bf16  scratch for the fused prologue result
    """
    Wp = W + 2
    base = Wp + 1
    L = H * Wp
    R = y_ref.shape[1]
    cp_out = y_ref.shape[-1]

    # Fused BN-apply + ReLU of the previous layer (layer-2 only).  The mask
    # re-zeroes the pad positions (ReLU(shift) != 0 there otherwise), preserving
    # the implicit zero padding the tap reads rely on.
    if apply_prologue:
        act = jnp.maximum(x_ref[0].astype(jnp.float32) * scale_ref[...]
                          + shift_ref[...], 0.0)
        xbuf_ref[...] = (act * mask_ref[...]).astype(jnp.bfloat16)

    def tap(off):
        if apply_prologue:
            return xbuf_ref[pl.ds(off, L), :]
        return x_ref[0, pl.ds(off, L), :]

    # 9 per-tap lane-dense MXU dots (K = Cp_in), f32 accumulation.
    # TODO(synk): on v6e/v7x group each kernel row's 3 taps into one K=3*Cp dot.
    acc = None
    for kh in range(3):
        for kw in range(3):
            d = jnp.dot(tap(base + (kh - 1) * Wp + (kw - 1)),
                        w_ref[kh * 3 + kw],
                        preferred_element_type=jnp.float32)
            acc = d if acc is None else acc + d

    # Zero the pad-column positions: keeps BN stats exact and keeps the output
    # buffer a valid zero-padded input for the next conv.
    acc = acc * mask_ref[pl.ds(base, L), :]

    # Store the slab + border-only zeroing of the head/tail rows (the next
    # stage's taps read those rows; the interior is fully overwritten anyway).
    y_ref[0, pl.ds(base, L), :] = acc.astype(y_ref.dtype)
    y_ref[0, pl.ds(0, base), :] = jnp.zeros((base, cp_out), y_ref.dtype)
    y_ref[0, pl.ds(base + L, R - base - L), :] = jnp.zeros(
        (R - base - L, cp_out), y_ref.dtype)

    # Per-grid-step partial BN statistics (reduced over the batch in JAX glue).
    # TODO(synk): E[x^2]-E[x]^2 in f32 can cancel for large means; switch to a
    #             shifted/Welford reduction before running on real activations.
    sum_ref[...] = jnp.sum(acc, axis=0)[None, None, :]
    ssq_ref[...] = jnp.sum(acc * acc, axis=0)[None, None, :]


def _bn_relu_kernel(y_ref, scale_ref, shift_ref, o_ref, *, H, W):
    """Final BN-apply + ReLU, emitted channel-major (lanes = the H*(W+2) slab) so
    the NCHW output is a reshape + static slice in the wrapper; the channel dim is
    padded to a multiple of 8 so the store is never sublane-masked."""
    Wp = W + 2
    base = Wp + 1
    L = H * Wp
    co_pad = o_ref.shape[1]
    act = jnp.maximum(
        y_ref[0, pl.ds(base, L), :].astype(jnp.float32) * scale_ref[...]
        + shift_ref[...], 0.0)                               # (L, Cp)
    o_ref[...] = jnp.transpose(act, (1, 0))[:co_pad][None]   # (1, co_pad, L)


# ------------------------------ pallas_call wrappers ------------------------

def _conv3x3(x_flat, w_taps, scale, shift, mask, *, H, W, apply_prologue):
    """x_flat: (N, R, Cp_in) bf16 -> (y, partial_sums, partial_sumsqs)."""
    N, R, cp_in = x_flat.shape
    cp_out = w_taps.shape[-1]
    kernel = functools.partial(_conv3x3_kernel, H=H, W=W,
                               apply_prologue=apply_prologue)
    return pl.pallas_call(
        kernel,
        out_shape=(jax.ShapeDtypeStruct((N, R, cp_out), jnp.bfloat16),
                   jax.ShapeDtypeStruct((N, 1, cp_out), jnp.float32),
                   jax.ShapeDtypeStruct((N, 1, cp_out), jnp.float32)),
        grid=(N,),
        in_specs=[
            pl.BlockSpec((1, R, cp_in), lambda n: (n, 0, 0)),
            pl.BlockSpec((9, cp_in, cp_out), lambda n: (0, 0, 0)),
            pl.BlockSpec((1, cp_in), lambda n: (0, 0)),
            pl.BlockSpec((1, cp_in), lambda n: (0, 0)),
            pl.BlockSpec((R, 1), lambda n: (0, 0)),
        ],
        out_specs=(
            pl.BlockSpec((1, R, cp_out), lambda n: (n, 0, 0)),
            pl.BlockSpec((1, 1, cp_out), lambda n: (n, 0, 0)),
            pl.BlockSpec((1, 1, cp_out), lambda n: (n, 0, 0)),
        ),
        scratch_shapes=[pltpu.VMEM((R, cp_in), jnp.bfloat16)],  # prologue buffer
        # Per-step partial stats -> no resident accumulator -> the batch axis is
        # safely "parallel" (v7x 2-TC sharding).
        compiler_params=pltpu.CompilerParams(
            dimension_semantics=("parallel",),
            vmem_limit_bytes=32 * 1024 * 1024),
    )(x_flat, w_taps, scale, shift, mask)


def _bn_relu_to_nchw(y_flat, scale, shift, *, co_pad, H, W):
    """y_flat: (N, R, Cp) bf16 -> (N, co_pad, H*(W+2)) f32 (channel-major)."""
    N, R, cp = y_flat.shape
    L = H * (W + 2)
    kernel = functools.partial(_bn_relu_kernel, H=H, W=W)
    return pl.pallas_call(
        kernel,
        out_shape=jax.ShapeDtypeStruct((N, co_pad, L), jnp.float32),
        grid=(N,),
        in_specs=[
            pl.BlockSpec((1, R, cp), lambda n: (n, 0, 0)),
            pl.BlockSpec((1, cp), lambda n: (0, 0)),
            pl.BlockSpec((1, cp), lambda n: (0, 0)),
        ],
        out_specs=pl.BlockSpec((1, co_pad, L), lambda n: (n, 0, 0)),
        compiler_params=pltpu.CompilerParams(
            dimension_semantics=("parallel",),
            vmem_limit_bytes=32 * 1024 * 1024),
    )(y_flat, scale, shift)


# ------------------------------ JAX glue -----------------------------------

def _prep_conv_weights(w_oihw, cp_in, cp_out):
    """OIHW weights -> (9, Cp_in, Cp_out) bf16 per-tap slabs (zero-padded)."""
    co, cin = w_oihw.shape[0], w_oihw.shape[1]
    w_k = jnp.transpose(w_oihw.astype(jnp.float32), (2, 3, 1, 0)).reshape(9, cin, co)
    w_k = jnp.pad(w_k, ((0, 0), (0, cp_in - cin), (0, cp_out - co)))
    return w_k.astype(jnp.bfloat16)


def _bn_scale_shift(sums, ssqs, gamma, beta, count, co, cp):
    """Partial per-step stats -> per-channel BN scale/shift, padded to cp.
    Stats are reduced and sliced to the REAL channels before the rsqrt; padded
    channels get scale=shift=0 so they stay exactly zero downstream."""
    s = jnp.sum(sums, axis=0)[0, :co]
    q = jnp.sum(ssqs, axis=0)[0, :co]
    mean = s / count
    var = q / count - mean * mean                 # biased batch variance
    inv_std = jax.lax.rsqrt(var + EPS)
    scale = gamma.astype(jnp.float32) * inv_std
    shift = beta.astype(jnp.float32) - mean * scale
    scale = jnp.pad(scale, (0, cp - co)).reshape(1, cp)
    shift = jnp.pad(shift, (0, cp - co)).reshape(1, cp)
    return scale, shift


@jax.jit
def double_conv(x_nchw, params):
    """Pallas implementation of DoubleConv.forward (training-mode BN).
    Input/output are NCHW f32, matching the PyTorch module."""
    (w1, _b1, g1, be1), (w2, _b2, g2, be2) = params
    N, Cin, H, W = x_nchw.shape
    Co = w1.shape[0]
    Wp = W + 2
    P = (H + 2) * Wp
    R = _round_up(P + 2, SUBLANE)          # +2: the (+1,+1) tap overruns P by 2 rows
    cp_in = _round_up(Cin, LANE)
    cp_mid = _round_up(Co, LANE)
    cp_out = _round_up(Co, LANE)
    co_pad = _round_up(Co, SUBLANE)
    count = jnp.float32(N * H * W)

    # Single boundary layout change: NCHW -> column-padded flat, lane-dense bf16.
    # TODO(synk): for Cin << LANE pack 9*Cin into one 128-lane contraction instead
    #             of lane-padding channels; moot for real channel counts >= 128.
    x = jnp.transpose(x_nchw, (0, 2, 3, 1)).astype(jnp.float32)
    x = jnp.pad(x, ((0, 0), (1, 1), (1, 1), (0, cp_in - Cin)))   # (N, H+2, Wp, cp_in)
    x = x.reshape(N, P, cp_in)
    x = jnp.pad(x, ((0, 0), (0, R - P), (0, 0))).astype(jnp.bfloat16)

    # Real-pixel mask in the same flat layout (trace-time constant, tiny input).
    m2 = np.zeros((H + 2, Wp), np.float32)
    m2[1:H + 1, 1:W + 1] = 1.0
    mask_np = np.zeros((R, 1), np.float32)
    mask_np[:P, 0] = m2.reshape(-1)
    mask = jnp.asarray(mask_np)

    # Conv bias dropped: cancels exactly under training-mode (batch-stat) BN.
    w1_taps = _prep_conv_weights(w1, cp_in, cp_mid)
    w2_taps = _prep_conv_weights(w2, cp_mid, cp_out)

    ident_scale = jnp.ones((1, cp_in), jnp.float32)
    ident_shift = jnp.zeros((1, cp_in), jnp.float32)

    # conv1 (+ per-step partial BN statistics)
    y1, s1, q1 = _conv3x3(x, w1_taps, ident_scale, ident_shift, mask,
                          H=H, W=W, apply_prologue=False)
    scale1, shift1 = _bn_scale_shift(s1, q1, g1, be1, count, Co, cp_mid)

    # conv2 with BN1-apply + ReLU fused into its input prologue
    y2, s2, q2 = _conv3x3(y1, w2_taps, scale1, shift1, mask,
                          H=H, W=W, apply_prologue=True)
    scale2, shift2 = _bn_scale_shift(s2, q2, g2, be2, count, Co, cp_out)

    # final BN2 + ReLU, channel-major; NCHW is a reshape + static slice.
    out = _bn_relu_to_nchw(y2, scale2, shift2, co_pad=co_pad, H=H, W=W)
    return out.reshape(N, co_pad, H, Wp)[:, :Co, :, :W]


# --------------------------- pure-JAX references ----------------------------

def _reference(x_nchw, params):
    """Pure-f32 PyTorch-semantics reference (training-mode BN, with conv bias)."""
    out = x_nchw.astype(jnp.float32)
    for (w, b, gamma, beta) in params:
        y = jax.lax.conv_general_dilated(
            out, w.astype(jnp.float32), (1, 1), ((1, 1), (1, 1)),
            dimension_numbers=('NCHW', 'OIHW', 'NCHW'),
            precision=jax.lax.Precision.HIGHEST)
        y = y + b.astype(jnp.float32)[None, :, None, None]
        mean = y.mean(axis=(0, 2, 3), keepdims=True)
        var = y.var(axis=(0, 2, 3), keepdims=True)          # biased (training BN)
        out = jnp.maximum((y - mean) * jax.lax.rsqrt(var + EPS)
                          * gamma[None, :, None, None]
                          + beta[None, :, None, None], 0.0)
    return out


def _reference_emulated(x_nchw, params):
    """Mirrors the kernel's numerics: bf16 conv inputs / weights / stored
    activations (f32 accumulation), f32 BN stats, conv bias folded away (it
    cancels exactly under batch-stat BN)."""
    def q(a):
        return a.astype(jnp.bfloat16).astype(jnp.float32)

    n_layers = len(params)
    a = q(x_nchw.astype(jnp.float32))
    for idx, (w, _b, gamma, beta) in enumerate(params):
        y = jax.lax.conv_general_dilated(
            a, q(w.astype(jnp.float32)), (1, 1), ((1, 1), (1, 1)),
            dimension_numbers=('NCHW', 'OIHW', 'NCHW'),
            precision=jax.lax.Precision.HIGHEST)
        mean = y.mean(axis=(0, 2, 3), keepdims=True)
        var = y.var(axis=(0, 2, 3), keepdims=True)
        scale = gamma[None, :, None, None] * jax.lax.rsqrt(var + EPS)
        shift = beta[None, :, None, None] - mean * scale
        act = jnp.maximum(q(y) * scale + shift, 0.0)
        a = q(act) if idx + 1 < n_layers else act
    return a


# --------------------------------- main -------------------------------------

if __name__ == "__main__":
    N, IN_CH, OUT_CH, H, W = 2, 4, 8, 16, 16

    key = jax.random.PRNGKey(0)
    k1, k2, k3, k4, kx = jax.random.split(key, 5)

    # Deterministic synthetic parameters (shapes from DoubleConv.__init__).
    w1 = 0.1 * jax.random.normal(k1, (OUT_CH, IN_CH, 3, 3), jnp.float32)
    b1 = 0.1 * jax.random.normal(k2, (OUT_CH,), jnp.float32)
    g1 = jnp.ones((OUT_CH,), jnp.float32)       # BatchNorm2d default weight
    be1 = jnp.zeros((OUT_CH,), jnp.float32)     # BatchNorm2d default bias

    w2 = 0.1 * jax.random.normal(k3, (OUT_CH, OUT_CH, 3, 3), jnp.float32)
    b2 = 0.1 * jax.random.normal(k4, (OUT_CH,), jnp.float32)
    g2 = jnp.ones((OUT_CH,), jnp.float32)
    be2 = jnp.zeros((OUT_CH,), jnp.float32)

    params = ((w1, b1, g1, be1), (w2, b2, g2, be2))

    x = jax.random.normal(kx, (N, IN_CH, H, W), jnp.float32)   # NCHW, like PyTorch

    out = jax.block_until_ready(double_conv(x, params))
    assert out.shape == (N, OUT_CH, H, W), out.shape

    # Tight check vs a reference that mirrors the kernel's bf16 quantization points
    # (only accumulation-order differences remain).
    ref_emu = jax.block_until_ready(_reference_emulated(x, params))
    np.testing.assert_allclose(np.asarray(out), np.asarray(ref_emu),
                               rtol=5e-3, atol=5e-3)

    # Sanity check vs the pure-f32 PyTorch-semantics reference (loose tolerance
    # accounts for the intentional bf16 quantization of the MXU operands).
    ref_f32 = jax.block_until_ready(_reference(x, params))
    np.testing.assert_allclose(np.asarray(out), np.asarray(ref_f32),
                               rtol=1e-1, atol=1e-1)

    print("KERNEL_OK")
</pallas_src>

<mosaic_0001>
module attributes {stable_mosaic.version = 11 : i64} {
  func.func @_conv3x3_kernel(%arg0: i32, %arg1: memref<1x328x128xbf16, #tpu.memory_space<vmem>>, %arg2: memref<9x128x128xbf16, #tpu.memory_space<vmem>>, %arg3: memref<1x128xf32, #tpu.memory_space<vmem>>, %arg4: memref<1x128xf32, #tpu.memory_space<vmem>>, %arg5: memref<328x1xf32, #tpu.memory_space<vmem>>, %arg6: memref<1x328x128xbf16, #tpu.memory_space<vmem>>, %arg7: memref<1x1x128xf32, #tpu.memory_space<vmem>>, %arg8: memref<1x1x128xf32, #tpu.memory_space<vmem>>, %arg9: memref<328x128xbf16, #tpu.memory_space<vmem>>) attributes {dimension_semantics = [#tpu.dimension_semantics<parallel>], iteration_bounds = array<i64: 2>, scalar_prefetch = 0 : i64, scratch_operands = 1 : i64, tpu.core_type = #tpu.core_type<tc>, window_params = [{transform_indices = @transform_0, window_bounds = array<i64: 1, 328, 128>}, {pipeline_mode = #tpu.pipeline_mode<synchronous>, transform_indices = @transform_1, window_bounds = array<i64: 9, 128, 128>}, {pipeline_mode = #tpu.pipeline_mode<synchronous>, transform_indices = @transform_2, window_bounds = array<i64: 1, 128>}, {pipeline_mode = #tpu.pipeline_mode<synchronous>, transform_indices = @transform_3, window_bounds = array<i64: 1, 128>}, {pipeline_mode = #tpu.pipeline_mode<synchronous>, transform_indices = @transform_4, window_bounds = array<i64: 328, 1>}, {transform_indices = @transform_5, window_bounds = array<i64: 1, 328, 128>}, {transform_indices = @transform_6, window_bounds = array<i64: 1, 1, 128>}, {transform_indices = @transform_7, window_bounds = array<i64: 1, 1, 128>}]} {
    %c0 = arith.constant 0 : index
    %c0_0 = arith.constant 0 : index
    %c0_1 = arith.constant 0 : index
    %0 = vector.load %arg1[%c0, %c0_0, %c0_1] : memref<1x328x128xbf16, #tpu.memory_space<vmem>>, vector<1x288x128xbf16>
    %1 = vector.shape_cast %0 : vector<1x288x128xbf16> to vector<288x128xbf16>
    %c0_2 = arith.constant 0 : index
    %c0_3 = arith.constant 0 : index
    %c0_4 = arith.constant 0 : index
    %2 = vector.load %arg2[%c0_2, %c0_3, %c0_4] : memref<9x128x128xbf16, #tpu.memory_space<vmem>>, vector<1x128x128xbf16>
    %3 = vector.shape_cast %2 : vector<1x128x128xbf16> to vector<128x128xbf16>
    %cst = arith.constant dense<0.000000e+00> : vector<288x128xf32>
    %4 = tpu.matmul %1, %3, %cst {dimension_numbers = #tpu.dot_dimension_numbers<[1], [0], [0], [1], [0, 0, 1, 1], [], []>} : vector<288x128xbf16>, vector<128x128xbf16>, vector<288x128xf32> -> vector<288x128xf32>
    %c0_5 = arith.constant 0 : index
    %c1 = arith.constant 1 : index
    %c0_6 = arith.constant 0 : index
    %5 = vector.load %arg1[%c0_5, %c1, %c0_6] : memref<1x328x128xbf16, #tpu.memory_space<vmem>>, vector<1x288x128xbf16>
    %6 = vector.shape_cast %5 : vector<1x288x128xbf16> to vector<288x128xbf16>
    %c1_7 = arith.constant 1 : index
    %c0_8 = arith.constant 0 : index
    %c0_9 = arith.constant 0 : index
    %7 = vector.load %arg2[%c1_7, %c0_8, %c0_9] : memref<9x128x128xbf16, #tpu.memory_space<vmem>>, vector<1x128x128xbf16>
    %8 = vector.shape_cast %7 : vector<1x128x128xbf16> to vector<128x128xbf16>
    %cst_10 = arith.constant dense<0.000000e+00> : vector<288x128xf32>
    %9 = tpu.matmul %6, %8, %cst_10 {dimension_numbers = #tpu.dot_dimension_numbers<[1], [0], [0], [1], [0, 0, 1, 1], [], []>} : vector<288x128xbf16>, vector<128x128xbf16>, vector<288x128xf32> -> vector<288x128xf32>
    %10 = arith.addf %4, %9 : vector<288x128xf32>
    %c0_11 = arith.constant 0 : index
    %c2 = arith.constant 2 : index
    %c0_12 = arith.constant 0 : index
    %11 = vector.load %arg1[%c0_11, %c2, %c0_12] : memref<1x328x128xbf16, #tpu.memory_space<vmem>>, vector<1x288x128xbf16>
    %12 = vector.shape_cast %11 : vector<1x288x128xbf16> to vector<288x128xbf16>
    %c2_13 = arith.constant 2 : index
    %c0_14 = arith.constant 0 : index
    %c0_15 = arith.constant 0 : index
    %13 = vector.load %arg2[%c2_13, %c0_14, %c0_15] : memref<9x128x128xbf16, #tpu.memory_space<vmem>>, vector<1x128x128xbf16>
    %14 = vector.shape_cast %13 : vector<1x128x128xbf16> to vector<128x128xbf16>
    %cst_16 = arith.constant dense<0.000000e+00> : vector<288x128xf32>
    %15 = tpu.matmul %12, %14, %cst_16 {dimension_numbers = #tpu.dot_dimension_numbers<[1], [0], [0], [1], [0, 0, 1, 1], [], []>} : vector<288x128xbf16>, vector<128x128xbf16>, vector<288x128xf32> -> vector<288x128xf32>
    %16 = arith.addf %10, %15 : vector<288x128xf32>
    %c0_17 = arith.constant 0 : index
    %c18 = arith.constant 18 : index
    %c0_18 = arith.constant 0 : index
    %17 = vector.load %arg1[%c0_17, %c18, %c0_18] : memref<1x328x128xbf16, #tpu.memory_space<vmem>>, vector<1x288x128xbf16>
    %18 = vector.shape_cast %17 : vector<1x288x128xbf16> to vector<288x128xbf16>
    %c3 = arith.constant 3 : index
    %c0_19 = arith.constant 0 : index
    %c0_20 = arith.constant 0 : index
    %19 = vector.load %arg2[%c3, %c0_19, %c0_20] : memref<9x128x128xbf16, #tpu.memory_space<vmem>>, vector<1x128x128xbf16>
    %20 = vector.shape_cast %19 : vector<1x128x128xbf16> to vector<128x128xbf16>
    %cst_21 = arith.constant dense<0.000000e+00> : vector<288x128xf32>
    %21 = tpu.matmul %18, %20, %cst_21 {dimension_numbers = #tpu.dot_dimension_numbers<[1], [0], [0], [1], [0, 0, 1, 1], [], []>} : vector<288x128xbf16>, vector<128x128xbf16>, vector<288x128xf32> -> vector<288x128xf32>
    %22 = arith.addf %16, %21 : vector<288x128xf32>
    %c0_22 = arith.constant 0 : index
    %c19 = arith.constant 19 : index
    %c0_23 = arith.constant 0 : index
    %23 = vector.load %arg1[%c0_22, %c19, %c0_23] : memref<1x328x128xbf16, #tpu.memory_space<vmem>>, vector<1x288x128xbf16>
    %24 = vector.shape_cast %23 : vector<1x288x128xbf16> to vector<288x128xbf16>
    %c4 = arith.constant 4 : index
    %c0_24 = arith.constant 0 : index
    %c0_25 = arith.constant 0 : index
    %25 = vector.load %arg2[%c4, %c0_24, %c0_25] : memref<9x128x128xbf16, #tpu.memory_space<vmem>>, vector<1x128x128xbf16>
    %26 = vector.shape_cast %25 : vector<1x128x128xbf16> to vector<128x128xbf16>
    %cst_26 = arith.constant dense<0.000000e+00> : vector<288x128xf32>
    %27 = tpu.matmul %24, %26, %cst_26 {dimension_numbers = #tpu.dot_dimension_numbers<[1], [0], [0], [1], [0, 0, 1, 1], [], []>} : vector<288x128xbf16>, vector<128x128xbf16>, vector<288x128xf32> -> vector<288x128xf32>
    %28 = arith.addf %22, %27 : vector<288x128xf32>
    %c0_27 = arith.constant 0 : index
    %c20 = arith.constant 20 : index
    %c0_28 = arith.constant 0 : index
    %29 = vector.load %arg1[%c0_27, %c20, %c0_28] : memref<1x328x128xbf16, #tpu.memory_space<vmem>>, vector<1x288x128xbf16>
    %30 = vector.shape_cast %29 : vector<1x288x128xbf16> to vector<288x128xbf16>
    %c5 = arith.constant 5 : index
    %c0_29 = arith.constant 0 : index
    %c0_30 = arith.constant 0 : index
    %31 = vector.load %arg2[%c5, %c0_29, %c0_30] : memref<9x128x128xbf16, #tpu.memory_space<vmem>>, vector<1x128x128xbf16>
    %32 = vector.shape_cast %31 : vector<1x128x128xbf16> to vector<128x128xbf16>
    %cst_31 = arith.constant dense<0.000000e+00> : vector<288x128xf32>
    %33 = tpu.matmul %30, %32, %cst_31 {dimension_numbers = #tpu.dot_dimension_numbers<[1], [0], [0], [1], [0, 0, 1, 1], [], []>} : vector<288x128xbf16>, vector<128x128xbf16>, vector<288x128xf32> -> vector<288x128xf32>
    %34 = arith.addf %28, %33 : vector<288x128xf32>
    %c0_32 = arith.constant 0 : index
    %c36 = arith.constant 36 : index
    %c0_33 = arith.constant 0 : index
    %35 = vector.load %arg1[%c0_32, %c36, %c0_33] : memref<1x328x128xbf16, #tpu.memory_space<vmem>>, vector<1x288x128xbf16>
    %36 = vector.shape_cast %35 : vector<1x288x128xbf16> to vector<288x128xbf16>
    %c6 = arith.constant 6 : index
    %c0_34 = arith.constant 0 : index
    %c0_35 = arith.constant 0 : index
    %37 = vector.load %arg2[%c6, %c0_34, %c0_35] : memref<9x128x128xbf16, #tpu.memory_space<vmem>>, vector<1x128x128xbf16>
    %38 = vector.shape_cast %37 : vector<1x128x128xbf16> to vector<128x128xbf16>
    %cst_36 = arith.constant dense<0.000000e+00> : vector<288x128xf32>
    %39 = tpu.matmul %36, %38, %cst_36 {dimension_numbers = #tpu.dot_dimension_numbers<[1], [0], [0], [1], [0, 0, 1, 1], [], []>} : vector<288x128xbf16>, vector<128x128xbf16>, vector<288x128xf32> -> vector<288x128xf32>
    %40 = arith.addf %34, %39 : vector<288x128xf32>
    %c0_37 = arith.constant 0 : index
    %c37 = arith.constant 37 : index
    %c0_38 = arith.constant 0 : index
    %41 = vector.load %arg1[%c0_37, %c37, %c0_38] : memref<1x328x128xbf16, #tpu.memory_space<vmem>>, vector<1x288x128xbf16>
    %42 = vector.shape_cast %41 : vector<1x288x128xbf16> to vector<288x128xbf16>
    %c7 = arith.constant 7 : index
    %c0_39 = arith.constant 0 : index
    %c0_40 = arith.constant 0 : index
    %43 = vector.load %arg2[%c7, %c0_39, %c0_40] : memref<9x128x128xbf16, #tpu.memory_space<vmem>>, vector<1x128x128xbf16>
    %44 = vector.shape_cast %43 : vector<1x128x128xbf16> to vector<128x128xbf16>
    %cst_41 = arith.constant dense<0.000000e+00> : vector<288x128xf32>
    %45 = tpu.matmul %42, %44, %cst_41 {dimension_numbers = #tpu.dot_dimension_numbers<[1], [0], [0], [1], [0, 0, 1, 1], [], []>} : vector<288x128xbf16>, vector<128x128xbf16>, vector<288x128xf32> -> vector<288x128xf32>
    %46 = arith.addf %40, %45 : vector<288x128xf32>
    %c0_42 = arith.constant 0 : index
    %c38 = arith.constant 38 : index
    %c0_43 = arith.constant 0 : index
    %47 = vector.load %arg1[%c0_42, %c38, %c0_43] : memref<1x328x128xbf16, #tpu.memory_space<vmem>>, vector<1x288x128xbf16>
    %48 = vector.shape_cast %47 : vector<1x288x128xbf16> to vector<288x128xbf16>
    %c8 = arith.constant 8 : index
    %c0_44 = arith.constant 0 : index
    %c0_45 = arith.constant 0 : index
    %49 = vector.load %arg2[%c8, %c0_44, %c0_45] : memref<9x128x128xbf16, #tpu.memory_space<vmem>>, vector<1x128x128xbf16>
    %50 = vector.shape_cast %49 : vector<1x128x128xbf16> to vector<128x128xbf16>
    %cst_46 = arith.constant dense<0.000000e+00> : vector<288x128xf32>
    %51 = tpu.matmul %48, %50, %cst_46 {dimension_numbers = #tpu.dot_dimension_numbers<[1], [0], [0], [1], [0, 0, 1, 1], [], []>} : vector<288x128xbf16>, vector<128x128xbf16>, vector<288x128xf32> -> vector<288x128xf32>
    %52 = arith.addf %46, %51 : vector<288x128xf32>
    %c19_47 = arith.constant 19 : index
    %c0_48 = arith.constant 0 : index
    %53 = vector.load %arg5[%c19_47, %c0_48] : memref<328x1xf32, #tpu.memory_space<vmem>>, vector<288x1xf32>
    %54 = vector.broadcast %53 : vector<288x1xf32> to vector<288x128xf32>
    %55 = arith.mulf %52, %54 : vector<288x128xf32>
    %56 = arith.truncf %55 : vector<288x128xf32> to vector<288x128xbf16>
    %c0_49 = arith.constant 0 : index
    %c19_50 = arith.constant 19 : index
    %c0_51 = arith.constant 0 : index
    %57 = vector.load %arg6[%c0_49, %c19_50, %c0_51] : memref<1x328x128xbf16, #tpu.memory_space<vmem>>, vector<1x288x128xbf16>
    %58 = vector.shape_cast %57 : vector<1x288x128xbf16> to vector<288x128xbf16>
    %59 = vector.shape_cast %56 : vector<288x128xbf16> to vector<1x288x128xbf16>
    tpu.vector_store %arg6[%c0_49, %c19_50, %c0_51], %59 {strides = array<i32>} : memref<1x328x128xbf16, #tpu.memory_space<vmem>>, vector<1x288x128xbf16>,
    %cst_52 = arith.constant 0.000000e+00 : bf16
    %60 = vector.broadcast %cst_52 : bf16 to vector<19x128xbf16>
    %c0_53 = arith.constant 0 : index
    %c0_54 = arith.constant 0 : index
    %c0_55 = arith.constant 0 : index
    %61 = vector.load %arg6[%c0_53, %c0_54, %c0_55] : memref<1x328x128xbf16, #tpu.memory_space<vmem>>, vector<1x19x128xbf16>
    %62 = vector.shape_cast %61 : vector<1x19x128xbf16> to vector<19x128xbf16>
    %63 = vector.shape_cast %60 : vector<19x128xbf16> to vector<1x19x128xbf16>
    tpu.vector_store %arg6[%c0_53, %c0_54, %c0_55], %63 {strides = array<i32>} : memref<1x328x128xbf16, #tpu.memory_space<vmem>>, vector<1x19x128xbf16>,
    %cst_56 = arith.constant 0.000000e+00 : bf16
    %64 = vector.broadcast %cst_56 : bf16 to vector<21x128xbf16>
    %c0_57 = arith.constant 0 : index
    %c307 = arith.constant 307 : index
    %c0_58 = arith.constant 0 : index
    %65 = vector.load %arg6[%c0_57, %c307, %c0_58] : memref<1x328x128xbf16, #tpu.memory_space<vmem>>, vector<1x21x128xbf16>
    %66 = vector.shape_cast %65 : vector<1x21x128xbf16> to vector<21x128xbf16>
    %67 = vector.shape_cast %64 : vector<21x128xbf16> to vector<1x21x128xbf16>
    tpu.vector_store %arg6[%c0_57, %c307, %c0_58], %67 {strides = array<i32>} : memref<1x328x128xbf16, #tpu.memory_space<vmem>>, vector<1x21x128xbf16>,
    %cst_59 = arith.constant dense<0.000000e+00> : vector<128xf32>
    %68 = vector.multi_reduction <add>, %55, %cst_59 [0] : vector<288x128xf32> to vector<128xf32>
    %69 = vector.shape_cast %68 : vector<128xf32> to vector<1x1x128xf32>
    %c0_60 = arith.constant 0 : index
    %c0_61 = arith.constant 0 : index
    %c0_62 = arith.constant 0 : index
    %70 = vector.load %arg7[%c0_60, %c0_61, %c0_62] : memref<1x1x128xf32, #tpu.memory_space<vmem>>, vector<1x1x128xf32>
    tpu.vector_store %arg7[%c0_60, %c0_61, %c0_62], %69 {strides = array<i32>} : memref<1x1x128xf32, #tpu.memory_space<vmem>>, vector<1x1x128xf32>,
    %71 = arith.mulf %55, %55 : vector<288x128xf32>
    %cst_63 = arith.constant dense<0.000000e+00> : vector<128xf32>
    %72 = vector.multi_reduction <add>, %71, %cst_63 [0] : vector<288x128xf32> to vector<128xf32>
    %73 = vector.shape_cast %72 : vector<128xf32> to vector<1x1x128xf32>
    %c0_64 = arith.constant 0 : index
    %c0_65 = arith.constant 0 : index
    %c0_66 = arith.constant 0 : index
    %74 = vector.load %arg8[%c0_64, %c0_65, %c0_66] : memref<1x1x128xf32, #tpu.memory_space<vmem>>, vector<1x1x128xf32>
    tpu.vector_store %arg8[%c0_64, %c0_65, %c0_66], %73 {strides = array<i32>} : memref<1x1x128xf32, #tpu.memory_space<vmem>>, vector<1x1x128xf32>,
    return
  }
  func.func @transform_0(%arg0: i32) -> (i32, i32, i32) {
    %c0_i32 = arith.constant 0 : i32
    %c0_i32_0 = arith.constant 0 : i32
    %c0_i32_1 = arith.constant 0 : i32
    return %arg0, %c0_i32, %c0_i32_0 : i32, i32, i32
  }
  func.func @transform_1(%arg0: i32) -> (i32, i32, i32) {
    %c0_i32 = arith.constant 0 : i32
    %c0_i32_0 = arith.constant 0 : i32
    %c0_i32_1 = arith.constant 0 : i32
    %c0_i32_2 = arith.constant 0 : i32
    return %c0_i32, %c0_i32_0, %c0_i32_1 : i32, i32, i32
  }
  func.func @transform_2(%arg0: i32) -> (i32, i32) {
    %c0_i32 = arith.constant 0 : i32
    %c0_i32_0 = arith.constant 0 : i32
    %c0_i32_1 = arith.constant 0 : i32
    return %c0_i32, %c0_i32_0 : i32, i32
  }
  func.func @transform_3(%arg0: i32) -> (i32, i32) {
    %c0_i32 = arith.constant 0 : i32
    %c0_i32_0 = arith.constant 0 : i32
    %c0_i32_1 = arith.constant 0 : i32
    return %c0_i32, %c0_i32_0 : i32, i32
  }
  func.func @transform_4(%arg0: i32) -> (i32, i32) {
    %c0_i32 = arith.constant 0 : i32
    %c0_i32_0 = arith.constant 0 : i32
    %c0_i32_1 = arith.constant 0 : i32
    return %c0_i32, %c0_i32_0 : i32, i32
  }
  func.func @transform_5(%arg0: i32) -> (i32, i32, i32) {
    %c0_i32 = arith.constant 0 : i32
    %c0_i32_0 = arith.constant 0 : i32
    %c0_i32_1 = arith.constant 0 : i32
    return %arg0, %c0_i32, %c0_i32_0 : i32, i32, i32
  }
  func.func @transform_6(%arg0: i32) -> (i32, i32, i32) {
    %c0_i32 = arith.constant 0 : i32
    %c0_i32_0 = arith.constant 0 : i32
    %c0_i32_1 = arith.constant 0 : i32
    return %arg0, %c0_i32, %c0_i32_0 : i32, i32, i32
  }
  func.func @transform_7(%arg0: i32) -> (i32, i32, i32) {
    %c0_i32 = arith.constant 0 : i32
    %c0_i32_0 = arith.constant 0 : i32
    %c0_i32_1 = arith.constant 0 : i32
    return %arg0, %c0_i32, %c0_i32_0 : i32, i32, i32
  }
}

module attributes {stable_mosaic.version = 11 : i64} {
  func.func @_conv3x3_kernel(%arg0: i32, %arg1: memref<1x328x128xbf16, #tpu.memory_space<vmem>>, %arg2: memref<9x128x128xbf16, #tpu.memory_space<vmem>>, %arg3: memref<1x128xf32, #tpu.memory_space<vmem>>, %arg4: memref<1x128xf32, #tpu.memory_space<vmem>>, %arg5: memref<328x1xf32, #tpu.memory_space<vmem>>, %arg6: memref<1x328x128xbf16, #tpu.memory_space<vmem>>, %arg7: memref<1x1x128xf32, #tpu.memory_space<vmem>>, %arg8: memref<1x1x128xf32, #tpu.memory_space<vmem>>, %arg9: memref<328x128xbf16, #tpu.memory_space<vmem>>) attributes {dimension_semantics = [#tpu.dimension_semantics<parallel>], iteration_bounds = array<i64: 2>, scalar_prefetch = 0 : i64, scratch_operands = 1 : i64, tpu.core_type = #tpu.core_type<tc>, window_params = [{transform_indices = @transform_0, window_bounds = array<i64: 1, 328, 128>}, {pipeline_mode = #tpu.pipeline_mode<synchronous>, transform_indices = @transform_1, window_bounds = array<i64: 9, 128, 128>}, {pipeline_mode = #tpu.pipeline_mode<synchronous>, transform_indices = @transform_2, window_bounds = array<i64: 1, 128>}, {pipeline_mode = #tpu.pipeline_mode<synchronous>, transform_indices = @transform_3, window_bounds = array<i64: 1, 128>}, {pipeline_mode = #tpu.pipeline_mode<synchronous>, transform_indices = @transform_4, window_bounds = array<i64: 328, 1>}, {transform_indices = @transform_5, window_bounds = array<i64: 1, 328, 128>}, {transform_indices = @transform_6, window_bounds = array<i64: 1, 1, 128>}, {transform_indices = @transform_7, window_bounds = array<i64: 1, 1, 128>}]} {
    %c0 = arith.constant 0 : index
    %c0_0 = arith.constant 0 : index
    %c0_1 = arith.constant 0 : index
    %0 = vector.load %arg1[%c0, %c0_0, %c0_1] : memref<1x328x128xbf16, #tpu.memory_space<vmem>>, vector<1x328x128xbf16>
    %1 = vector.shape_cast %0 : vector<1x328x128xbf16> to vector<328x128xbf16>
    %2 = arith.extf %1 : vector<328x128xbf16> to vector<328x128xf32>
    %c0_2 = arith.constant 0 : index
    %c0_3 = arith.constant 0 : index
    %3 = vector.load %arg3[%c0_2, %c0_3] : memref<1x128xf32, #tpu.memory_space<vmem>>, vector<1x128xf32>
    %4 = vector.broadcast %3 : vector<1x128xf32> to vector<328x128xf32>
    %5 = arith.mulf %2, %4 : vector<328x128xf32>
    %c0_4 = arith.constant 0 : index
    %c0_5 = arith.constant 0 : index
    %6 = vector.load %arg4[%c0_4, %c0_5] : memref<1x128xf32, #tpu.memory_space<vmem>>, vector<1x128xf32>
    %7 = vector.broadcast %6 : vector<1x128xf32> to vector<328x128xf32>
    %8 = arith.addf %5, %7 : vector<328x128xf32>
    %cst = arith.constant 0.000000e+00 : f32
    %9 = vector.broadcast %cst : f32 to vector<328x128xf32>
    %10 = arith.maximumf %8, %9 : vector<328x128xf32>
    %c0_6 = arith.constant 0 : index
    %c0_7 = arith.constant 0 : index
    %11 = vector.load %arg5[%c0_6, %c0_7] : memref<328x1xf32, #tpu.memory_space<vmem>>, vector<328x1xf32>
    %12 = vector.broadcast %11 : vector<328x1xf32> to vector<328x128xf32>
    %13 = arith.mulf %10, %12 : vector<328x128xf32>
    %14 = arith.truncf %13 : vector<328x128xf32> to vector<328x128xbf16>
    %c0_8 = arith.constant 0 : index
    %c0_9 = arith.constant 0 : index
    %15 = vector.load %arg9[%c0_8, %c0_9] : memref<328x128xbf16, #tpu.memory_space<vmem>>, vector<328x128xbf16>
    tpu.vector_store %arg9[%c0_8, %c0_9], %14 {strides = array<i32>} : memref<328x128xbf16, #tpu.memory_space<vmem>>, vector<328x128xbf16>,
    %c0_10 = arith.constant 0 : index
    %c0_11 = arith.constant 0 : index
    %16 = vector.load %arg9[%c0_10, %c0_11] : memref<328x128xbf16, #tpu.memory_space<vmem>>, vector<288x128xbf16>
    %c0_12 = arith.constant 0 : index
    %c0_13 = arith.constant 0 : index
    %c0_14 = arith.constant 0 : index
    %17 = vector.load %arg2[%c0_12, %c0_13, %c0_14] : memref<9x128x128xbf16, #tpu.memory_space<vmem>>, vector<1x128x128xbf16>
    %18 = vector.shape_cast %17 : vector<1x128x128xbf16> to vector<128x128xbf16>
    %cst_15 = arith.constant dense<0.000000e+00> : vector<288x128xf32>
    %19 = tpu.matmul %16, %18, %cst_15 {dimension_numbers = #tpu.dot_dimension_numbers<[1], [0], [0], [1], [0, 0, 1, 1], [], []>} : vector<288x128xbf16>, vector<128x128xbf16>, vector<288x128xf32> -> vector<288x128xf32>
    %c1 = arith.constant 1 : index
    %c0_16 = arith.constant 0 : index
    %20 = vector.load %arg9[%c1, %c0_16] : memref<328x128xbf16, #tpu.memory_space<vmem>>, vector<288x128xbf16>
    %c1_17 = arith.constant 1 : index
    %c0_18 = arith.constant 0 : index
    %c0_19 = arith.constant 0 : index
    %21 = vector.load %arg2[%c1_17, %c0_18, %c0_19] : memref<9x128x128xbf16, #tpu.memory_space<vmem>>, vector<1x128x128xbf16>
    %22 = vector.shape_cast %21 : vector<1x128x128xbf16> to vector<128x128xbf16>
    %cst_20 = arith.constant dense<0.000000e+00> : vector<288x128xf32>
    %23 = tpu.matmul %20, %22, %cst_20 {dimension_numbers = #tpu.dot_dimension_numbers<[1], [0], [0], [1], [0, 0, 1, 1], [], []>} : vector<288x128xbf16>, vector<128x128xbf16>, vector<288x128xf32> -> vector<288x128xf32>
    %24 = arith.addf %19, %23 : vector<288x128xf32>
    %c2 = arith.constant 2 : index
    %c0_21 = arith.constant 0 : index
    %25 = vector.load %arg9[%c2, %c0_21] : memref<328x128xbf16, #tpu.memory_space<vmem>>, vector<288x128xbf16>
    %c2_22 = arith.constant 2 : index
    %c0_23 = arith.constant 0 : index
    %c0_24 = arith.constant 0 : index
    %26 = vector.load %arg2[%c2_22, %c0_23, %c0_24] : memref<9x128x128xbf16, #tpu.memory_space<vmem>>, vector<1x128x128xbf16>
    %27 = vector.shape_cast %26 : vector<1x128x128xbf16> to vector<128x128xbf16>
    %cst_25 = arith.constant dense<0.000000e+00> : vector<288x128xf32>
    %28 = tpu.matmul %25, %27, %cst_25 {dimension_numbers = #tpu.dot_dimension_numbers<[1], [0], [0], [1], [0, 0, 1, 1], [], []>} : vector<288x128xbf16>, vector<128x128xbf16>, vector<288x128xf32> -> vector<288x128xf32>
    %29 = arith.addf %24, %28 : vector<288x128xf32>
    %c18 = arith.constant 18 : index
    %c0_26 = arith.constant 0 : index
    %30 = vector.load %arg9[%c18, %c0_26] : memref<328x128xbf16, #tpu.memory_space<vmem>>, vector<288x128xbf16>
    %c3 = arith.constant 3 : index
    %c0_27 = arith.constant 0 : index
    %c0_28 = arith.constant 0 : index
    %31 = vector.load %arg2[%c3, %c0_27, %c0_28] : memref<9x128x128xbf16, #tpu.memory_space<vmem>>, vector<1x128x128xbf16>
    %32 = vector.shape_cast %31 : vector<1x128x128xbf16> to vector<128x128xbf16>
    %cst_29 = arith.constant dense<0.000000e+00> : vector<288x128xf32>
    %33 = tpu.matmul %30, %32, %cst_29 {dimension_numbers = #tpu.dot_dimension_numbers<[1], [0], [0], [1], [0, 0, 1, 1], [], []>} : vector<288x128xbf16>, vector<128x128xbf16>, vector<288x128xf32> -> vector<288x128xf32>
    %34 = arith.addf %29, %33 : vector<288x128xf32>
    %c19 = arith.constant 19 : index
    %c0_30 = arith.constant 0 : index
    %35 = vector.load %arg9[%c19, %c0_30] : memref<328x128xbf16, #tpu.memory_space<vmem>>, vector<288x128xbf16>
    %c4 = arith.constant 4 : index
    %c0_31 = arith.constant 0 : index
    %c0_32 = arith.constant 0 : index
    %36 = vector.load %arg2[%c4, %c0_31, %c0_32] : memref<9x128x128xbf16, #tpu.memory_space<vmem>>, vector<1x128x128xbf16>
    %37 = vector.shape_cast %36 : vector<1x128x128xbf16> to vector<128x128xbf16>
    %cst_33 = arith.constant dense<0.000000e+00> : vector<288x128xf32>
    %38 = tpu.matmul %35, %37, %cst_33 {dimension_numbers = #tpu.dot_dimension_numbers<[1], [0], [0], [1], [0, 0, 1, 1], [], []>} : vector<288x128xbf16>, vector<128x128xbf16>, vector<288x128xf32> -> vector<288x128xf32>
    %39 = arith.addf %34, %38 : vector<288x128xf32>
    %c20 = arith.constant 20 : index
    %c0_34 = arith.constant 0 : index
    %40 = vector.load %arg9[%c20, %c0_34] : memref<328x128xbf16, #tpu.memory_space<vmem>>, vector<288x128xbf16>
    %c5 = arith.constant 5 : index
    %c0_35 = arith.constant 0 : index
    %c0_36 = arith.constant 0 : index
    %41 = vector.load %arg2[%c5, %c0_35, %c0_36] : memref<9x128x128xbf16, #tpu.memory_space<vmem>>, vector<1x128x128xbf16>
    %42 = vector.shape_cast %41 : vector<1x128x128xbf16> to vector<128x128xbf16>
    %cst_37 = arith.constant dense<0.000000e+00> : vector<288x128xf32>
    %43 = tpu.matmul %40, %42, %cst_37 {dimension_numbers = #tpu.dot_dimension_numbers<[1], [0], [0], [1], [0, 0, 1, 1], [], []>} : vector<288x128xbf16>, vector<128x128xbf16>, vector<288x128xf32> -> vector<288x128xf32>
    %44 = arith.addf %39, %43 : vector<288x128xf32>
    %c36 = arith.constant 36 : index
    %c0_38 = arith.constant 0 : index
    %45 = vector.load %arg9[%c36, %c0_38] : memref<328x128xbf16, #tpu.memory_space<vmem>>, vector<288x128xbf16>
    %c6 = arith.constant 6 : index
    %c0_39 = arith.constant 0 : index
    %c0_40 = arith.constant 0 : index
    %46 = vector.load %arg2[%c6, %c0_39, %c0_40] : memref<9x128x128xbf16, #tpu.memory_space<vmem>>, vector<1x128x128xbf16>
    %47 = vector.shape_cast %46 : vector<1x128x128xbf16> to vector<128x128xbf16>
    %cst_41 = arith.constant dense<0.000000e+00> : vector<288x128xf32>
    %48 = tpu.matmul %45, %47, %cst_41 {dimension_numbers = #tpu.dot_dimension_numbers<[1], [0], [0], [1], [0, 0, 1, 1], [], []>} : vector<288x128xbf16>, vector<128x128xbf16>, vector<288x128xf32> -> vector<288x128xf32>
    %49 = arith.addf %44, %48 : vector<288x128xf32>
    %c37 = arith.constant 37 : index
    %c0_42 = arith.constant 0 : index
    %50 = vector.load %arg9[%c37, %c0_42] : memref<328x128xbf16, #tpu.memory_space<vmem>>, vector<288x128xbf16>
    %c7 = arith.constant 7 : index
    %c0_43 = arith.constant 0 : index
    %c0_44 = arith.constant 0 : index
    %51 = vector.load %arg2[%c7, %c0_43, %c0_44] : memref<9x128x128xbf16, #tpu.memory_space<vmem>>, vector<1x128x128xbf16>
    %52 = vector.shape_cast %51 : vector<1x128x128xbf16> to vector<128x128xbf16>
    %cst_45 = arith.constant dense<0.000000e+00> : vector<288x128xf32>
    %53 = tpu.matmul %50, %52, %cst_45 {dimension_numbers = #tpu.dot_dimension_numbers<[1], [0], [0], [1], [0, 0, 1, 1], [], []>} : vector<288x128xbf16>, vector<128x128xbf16>, vector<288x128xf32> -> vector<288x128xf32>
    %54 = arith.addf %49, %53 : vector<288x128xf32>
    %c38 = arith.constant 38 : index
    %c0_46 = arith.constant 0 : index
    %55 = vector.load %arg9[%c38, %c0_46] : memref<328x128xbf16, #tpu.memory_space<vmem>>, vector<288x128xbf16>
    %c8 = arith.constant 8 : index
    %c0_47 = arith.constant 0 : index
    %c0_48 = arith.constant 0 : index
    %56 = vector.load %arg2[%c8, %c0_47, %c0_48] : memref<9x128x128xbf16, #tpu.memory_space<vmem>>, vector<1x128x128xbf16>
    %57 = vector.shape_cast %56 : vector<1x128x128xbf16> to vector<128x128xbf16>
    %cst_49 = arith.constant dense<0.000000e+00> : vector<288x128xf32>
    %58 = tpu.matmul %55, %57, %cst_49 {dimension_numbers = #tpu.dot_dimension_numbers<[1], [0], [0], [1], [0, 0, 1, 1], [], []>} : vector<288x128xbf16>, vector<128x128xbf16>, vector<288x128xf32> -> vector<288x128xf32>
    %59 = arith.addf %54, %58 : vector<288x128xf32>
    %c19_50 = arith.constant 19 : index
    %c0_51 = arith.constant 0 : index
    %60 = vector.load %arg5[%c19_50, %c0_51] : memref<328x1xf32, #tpu.memory_space<vmem>>, vector<288x1xf32>
    %61 = vector.broadcast %60 : vector<288x1xf32> to vector<288x128xf32>
    %62 = arith.mulf %59, %61 : vector<288x128xf32>
    %63 = arith.truncf %62 : vector<288x128xf32> to vector<288x128xbf16>
    %c0_52 = arith.constant 0 : index
    %c19_53 = arith.constant 19 : index
    %c0_54 = arith.constant 0 : index
    %64 = vector.load %arg6[%c0_52, %c19_53, %c0_54] : memref<1x328x128xbf16, #tpu.memory_space<vmem>>, vector<1x288x128xbf16>
    %65 = vector.shape_cast %64 : vector<1x288x128xbf16> to vector<288x128xbf16>
    %66 = vector.shape_cast %63 : vector<288x128xbf16> to vector<1x288x128xbf16>
    tpu.vector_store %arg6[%c0_52, %c19_53, %c0_54], %66 {strides = array<i32>} : memref<1x328x128xbf16, #tpu.memory_space<vmem>>, vector<1x288x128xbf16>,
    %cst_55 = arith.constant 0.000000e+00 : bf16
    %67 = vector.broadcast %cst_55 : bf16 to vector<19x128xbf16>
    %c0_56 = arith.constant 0 : index
    %c0_57 = arith.constant 0 : index
    %c0_58 = arith.constant 0 : index
    %68 = vector.load %arg6[%c0_56, %c0_57, %c0_58] : memref<1x328x128xbf16, #tpu.memory_space<vmem>>, vector<1x19x128xbf16>
    %69 = vector.shape_cast %68 : vector<1x19x128xbf16> to vector<19x128xbf16>
    %70 = vector.shape_cast %67 : vector<19x128xbf16> to vector<1x19x128xbf16>
    tpu.vector_store %arg6[%c0_56, %c0_57, %c0_58], %70 {strides = array<i32>} : memref<1x328x128xbf16, #tpu.memory_space<vmem>>, vector<1x19x128xbf16>,
    %cst_59 = arith.constant 0.000000e+00 : bf16
    %71 = vector.broadcast %cst_59 : bf16 to vector<21x128xbf16>
    %c0_60 = arith.constant 0 : index
    %c307 = arith.constant 307 : index
    %c0_61 = arith.constant 0 : index
    %72 = vector.load %arg6[%c0_60, %c307, %c0_61] : memref<1x328x128xbf16, #tpu.memory_space<vmem>>, vector<1x21x128xbf16>
    %73 = vector.shape_cast %72 : vector<1x21x128xbf16> to vector<21x128xbf16>
    %74 = vector.shape_cast %71 : vector<21x128xbf16> to vector<1x21x128xbf16>
    tpu.vector_store %arg6[%c0_60, %c307, %c0_61], %74 {strides = array<i32>} : memref<1x328x128xbf16, #tpu.memory_space<vmem>>, vector<1x21x128xbf16>,
    %cst_62 = arith.constant dense<0.000000e+00> : vector<128xf32>
    %75 = vector.multi_reduction <add>, %62, %cst_62 [0] : vector<288x128xf32> to vector<128xf32>
    %76 = vector.shape_cast %75 : vector<128xf32> to vector<1x1x128xf32>
    %c0_63 = arith.constant 0 : index
    %c0_64 = arith.constant 0 : index
    %c0_65 = arith.constant 0 : index
    %77 = vector.load %arg7[%c0_63, %c0_64, %c0_65] : memref<1x1x128xf32, #tpu.memory_space<vmem>>, vector<1x1x128xf32>
    tpu.vector_store %arg7[%c0_63, %c0_64, %c0_65], %76 {strides = array<i32>} : memref<1x1x128xf32, #tpu.memory_space<vmem>>, vector<1x1x128xf32>,
    %78 = arith.mulf %62, %62 : vector<288x128xf32>
    %cst_66 = arith.constant dense<0.000000e+00> : vector<128xf32>
    %79 = vector.multi_reduction <add>, %78, %cst_66 [0] : vector<288x128xf32> to vector<128xf32>
    %80 = vector.shape_cast %79 : vector<128xf32> to vector<1x1x128xf32>
    %c0_67 = arith.constant 0 : index
    %c0_68 = arith.constant 0 : index
    %c0_69 = arith.constant 0 : index
    %81 = vector.load %arg8[%c0_67, %c0_68, %c0_69] : memref<1x1x128xf32, #tpu.memory_space<vmem>>, vector<1x1x128xf32>
    tpu.vector_store %arg8[%c0_67, %c0_68, %c0_69], %80 {strides = array<i32>} : memref<1x1x128xf32, #tpu.memory_space<vmem>>, vector<1x1x128xf32>,
    return
  }
  func.func @transform_0(%arg0: i32) -> (i32, i32, i32) {
    %c0_i32 = arith.constant 0 : i32
    %c0_i32_0 = arith.constant 0 : i32
    %c0_i32_1 = arith.constant 0 : i32
    return %arg0, %c0_i32, %c0_i32_0 : i32, i32, i32
  }
  func.func @transform_1(%arg0: i32) -> (i32, i32, i32) {
    %c0_i32 = arith.constant 0 : i32
    %c0_i32_0 = arith.constant 0 : i32
    %c0_i32_1 = arith.constant 0 : i32
    %c0_i32_2 = arith.constant 0 : i32
    return %c0_i32, %c0_i32_0, %c0_i32_1 : i32, i32, i32
  }
  func.func @transform_2(%arg0: i32) -> (i32, i32) {
    %c0_i32 = arith.constant 0 : i32
    %c0_i32_0 = arith.constant 0 : i32
    %c0_i32_1 = arith.constant 0 : i32
    return %c0_i32, %c0_i32_0 : i32, i32
  }
  func.func @transform_3(%arg0: i32) -> (i32, i32) {
    %c0_i32 = arith.constant 0 : i32
    %c0_i32_0 = arith.constant 0 : i32
    %c0_i32_1 = arith.constant 0 : i32
    return %c0_i32, %c0_i32_0 : i32, i32
  }
  func.func @transform_4(%arg0: i32) -> (i32, i32) {
    %c0_i32 = arith.constant 0 : i32
    %c0_i32_0 = arith.constant 0 : i32
    %c0_i32_1 = arith.constant 0 : i32
    return %c0_i32, %c0_i32_0 : i32, i32
  }
  func.func @transform_5(%arg0: i32) -> (i32, i32, i32) {
    %c0_i32 = arith.constant 0 : i32
    %c0_i32_0 = arith.constant 0 : i32
    %c0_i32_1 = arith.constant 0 : i32
    return %arg0, %c0_i32, %c0_i32_0 : i32, i32, i32
  }
  func.func @transform_6(%arg0: i32) -> (i32, i32, i32) {
    %c0_i32 = arith.constant 0 : i32
    %c0_i32_0 = arith.constant 0 : i32
    %c0_i32_1 = arith.constant 0 : i32
    return %arg0, %c0_i32, %c0_i32_0 : i32, i32, i32
  }
  func.func @transform_7(%arg0: i32) -> (i32, i32, i32) {
    %c0_i32 = arith.constant 0 : i32
    %c0_i32_0 = arith.constant 0 : i32
    %c0_i32_1 = arith.constant 0 : i32
    return %arg0, %c0_i32, %c0_i32_0 : i32, i32, i32
  }
}

module attributes {stable_mosaic.version = 11 : i64} {
  func.func @_bn_relu_kernel(%arg0: i32, %arg1: memref<1x328x128xbf16, #tpu.memory_space<vmem>>, %arg2: memref<1x128xf32, #tpu.memory_space<vmem>>, %arg3: memref<1x128xf32, #tpu.memory_space<vmem>>, %arg4: memref<1x8x288xf32, #tpu.memory_space<vmem>>) attributes {dimension_semantics = [#tpu.dimension_semantics<parallel>], iteration_bounds = array<i64: 2>, scalar_prefetch = 0 : i64, scratch_operands = 0 : i64, tpu.core_type = #tpu.core_type<tc>, window_params = [{transform_indices = @transform_0, window_bounds = array<i64: 1, 328, 128>}, {pipeline_mode = #tpu.pipeline_mode<synchronous>, transform_indices = @transform_1, window_bounds = array<i64: 1, 128>}, {pipeline_mode = #tpu.pipeline_mode<synchronous>, transform_indices = @transform_2, window_bounds = array<i64: 1, 128>}, {transform_indices = @transform_3, window_bounds = array<i64: 1, 8, 288>}]} {
    %c0 = arith.constant 0 : index
    %c19 = arith.constant 19 : index
    %c0_0 = arith.constant 0 : index
    %0 = vector.load %arg1[%c0, %c19, %c0_0] : memref<1x328x128xbf16, #tpu.memory_space<vmem>>, vector<1x288x128xbf16>
    %1 = vector.shape_cast %0 : vector<1x288x128xbf16> to vector<288x128xbf16>
    %2 = arith.extf %1 : vector<288x128xbf16> to vector<288x128xf32>
    %c0_1 = arith.constant 0 : index
    %c0_2 = arith.constant 0 : index
    %3 = vector.load %arg2[%c0_1, %c0_2] : memref<1x128xf32, #tpu.memory_space<vmem>>, vector<1x128xf32>
    %4 = vector.broadcast %3 : vector<1x128xf32> to vector<288x128xf32>
    %5 = arith.mulf %2, %4 : vector<288x128xf32>
    %c0_3 = arith.constant 0 : index
    %c0_4 = arith.constant 0 : index
    %6 = vector.load %arg3[%c0_3, %c0_4] : memref<1x128xf32, #tpu.memory_space<vmem>>, vector<1x128xf32>
    %7 = vector.broadcast %6 : vector<1x128xf32> to vector<288x128xf32>
    %8 = arith.addf %5, %7 : vector<288x128xf32>
    %cst = arith.constant 0.000000e+00 : f32
    %9 = vector.broadcast %cst : f32 to vector<288x128xf32>
    %10 = arith.maximumf %8, %9 : vector<288x128xf32>
    %11 = tpu.transpose %10, [1, 0] : vector<288x128xf32> -> vector<128x288xf32>
    %12 = vector.extract_strided_slice %11 {offsets = [0, 0], sizes = [8, 288], strides = [1, 1]} : vector<128x288xf32> to vector<8x288xf32>
    %13 = vector.shape_cast %12 : vector<8x288xf32> to vector<1x8x288xf32>
    %c0_5 = arith.constant 0 : index
    %c0_6 = arith.constant 0 : index
    %c0_7 = arith.constant 0 : index
    %14 = vector.load %arg4[%c0_5, %c0_6, %c0_7] : memref<1x8x288xf32, #tpu.memory_space<vmem>>, vector<1x8x288xf32>
    tpu.vector_store %arg4[%c0_5, %c0_6, %c0_7], %13 {strides = array<i32>} : memref<1x8x288xf32, #tpu.memory_space<vmem>>, vector<1x8x288xf32>,
    return
  }
  func.func @transform_0(%arg0: i32) -> (i32, i32, i32) {
    %c0_i32 = arith.constant 0 : i32
    %c0_i32_0 = arith.constant 0 : i32
    %c0_i32_1 = arith.constant 0 : i32
    return %arg0, %c0_i32, %c0_i32_0 : i32, i32, i32
  }
  func.func @transform_1(%arg0: i32) -> (i32, i32) {
    %c0_i32 = arith.constant 0 : i32
    %c0_i32_0 = arith.constant 0 : i32
    %c0_i32_1 = arith.constant 0 : i32
    return %c0_i32, %c0_i32_0 : i32, i32
  }
  func.func @transform_2(%arg0: i32) -> (i32, i32) {
    %c0_i32 = arith.constant 0 : i32
    %c0_i32_0 = arith.constant 0 : i32
    %c0_i32_1 = arith.constant 0 : i32
    return %c0_i32, %c0_i32_0 : i32, i32
  }
  func.func @transform_3(%arg0: i32) -> (i32, i32, i32) {
    %c0_i32 = arith.constant 0 : i32
    %c0_i32_0 = arith.constant 0 : i32
    %c0_i32_1 = arith.constant 0 : i32
    return %arg0, %c0_i32, %c0_i32_0 : i32, i32, i32
  }
}

</mosaic_0001>

<llo_original>
// kernel: double_conv.5
$region0: #{double_conv.5}
  #allocation0 [shape = 'u32[]', space=smem, size = 0x4, offset = 0x4, fixed_abs, tag = 'smem constant byte address 0x4 - core index']
  #allocation1 [shape = 'u32[144,128]{1,0:T(1,128)}', space=vmem, size = 0x12000, scoped, tag = 'internal scratch']
  %s0 = inlined_call_operand.vmem [shape: bf16[2,328,128], index: 0, kind: input, shape index: {}]
  %s1 = inlined_call_operand.vmem [shape: f32[1,128], index: 1, kind: input, shape index: {}]
  %s2 = inlined_call_operand.vmem [shape: f32[1,128], index: 2, kind: input, shape index: {}]
  %s3 = inlined_call_operand.vmem [shape: f32[2,8,288], index: 3, kind: output, shape index: {}]
  %s4 = sld [smem:[#allocation0]]
  $region45: #{double_conv.5} parent=0
    _
  %s6 = ssub.s32 1, %s4
  %s7 = scalar_select 0, %s6, %s4
  loop: start=0, step=1, limit=4
  $region2: #{double_conv.5} parent=0 // loop_pre_header
    _
  $region3: #{double_conv.5} parent=0 // loop_header
    %s9 = sphi 0, %s13
    %p10 = scmp.ge.s32.totalorder %s9, 4
    %s19 = sphi 0, %s21
    %s22 = sphi 0, %s19
    %s23 = sphi 0, %s22
    %s39 = sphi 0, %s23
    %s43 = sphi 0, %s43
    %s45 = sphi 0, %s43
    %s46 = sphi 0, %s45
    %s60 = sphi 0, %s46
    %s64 = sphi 0, %s64
    %s66 = sphi 0, %s64
    %s67 = sphi 0, %s66
    %s81 = sphi 0, %s67
    %s87 = sphi 0, %s89
    %s90 = sphi 0, %s87
    %s91 = sphi 0, %s90
    %s107 = sphi 0, %s91
  $region4: #{double_conv.5} parent=0 // loop_header_branch
    %12 = sbr.rel (%p10) target = $region8
  $region5: #{double_conv.5} parent=0 // loop_body
    %s14 = ssub.s32 %s9, 1
    %s15 = ssub.s32 %s9, 2
    %s16 = sadd.s32 %s9, 1
    %s17 = ssub.s32 %s9, %s16
    %p18 = scmp.eq.s32.totalorder %s17, 0
    %s20 = sadd.s32 %s19, 1
    %s21 = scalar_select %p18, %s19, %s20
    %p24 = pneg %p18
    %p25 = scmp.eq.s32.totalorder %s9, 1
    %p26 = por %p24, %p25
    %p27 = scmp.ne.s32.totalorder %s19, %s22
    %p28 = scmp.eq.s32.totalorder %s9, 0
    %p29 = por %p27, %p28
    %p30 = scmp.ne.s32.totalorder %s19, %s22
    %p31 = scmp.eq.s32.totalorder %s14, 1
    %p32 = por %p30, %p31
    %p33 = scmp.ne.s32.totalorder %s22, %s23
    %p34 = scmp.eq.s32.totalorder %s14, 0
    %p35 = por %p33, %p34
    %p36 = scmp.ne.s32.totalorder %s22, %s23
    %p37 = scmp.eq.s32.totalorder %s15, 1
    %p38 = por %p36, %p37
    %p40 = scmp.ne.s32.totalorder %s23, %s39
    %p41 = scmp.eq.s32.totalorder %s15, 0
    %p42 = por %p40, %p41
    %s44 = sadd.s32 %s43, 1
    %p47 = scmp.eq.s32.totalorder %s9, 1
    %p48 = scmp.ne.s32.totalorder %s43, %s45
    %p49 = scmp.eq.s32.totalorder %s9, 0
    %p50 = por %p48, %p49
    %p51 = scmp.ne.s32.totalorder %s43, %s45
    %p52 = scmp.eq.s32.totalorder %s14, 1
    %p53 = por %p51, %p52
    %p54 = scmp.ne.s32.totalorder %s45, %s46
    %p55 = scmp.eq.s32.totalorder %s14, 0
    %p56 = por %p54, %p55
    %p57 = scmp.ne.s32.totalorder %s45, %s46
    %p58 = scmp.eq.s32.totalorder %s15, 1
    %p59 = por %p57, %p58
    %p61 = scmp.ne.s32.totalorder %s46, %s60
    %p62 = scmp.eq.s32.totalorder %s15, 0
    %p63 = por %p61, %p62
    %s65 = sadd.s32 %s64, 1
    %p68 = scmp.eq.s32.totalorder %s9, 1
    %p69 = scmp.ne.s32.totalorder %s64, %s66
    %p70 = scmp.eq.s32.totalorder %s9, 0
    %p71 = por %p69, %p70
    %p72 = scmp.ne.s32.totalorder %s64, %s66
    %p73 = scmp.eq.s32.totalorder %s14, 1
    %p74 = por %p72, %p73
    %p75 = scmp.ne.s32.totalorder %s66, %s67
    %p76 = scmp.eq.s32.totalorder %s14, 0
    %p77 = por %p75, %p76
    %p78 = scmp.ne.s32.totalorder %s66, %s67
    %p79 = scmp.eq.s32.totalorder %s15, 1
    %p80 = por %p78, %p79
    %p82 = scmp.ne.s32.totalorder %s67, %s81
    %p83 = scmp.eq.s32.totalorder %s15, 0
    %p84 = por %p82, %p83
    %s85 = ssub.s32 %s9, %s16
    %p86 = scmp.eq.s32.totalorder %s85, 0
    %s88 = sadd.s32 %s87, 1
    %s89 = scalar_select %p86, %s87, %s88
    %p92 = pneg %p86
    %p93 = scmp.eq.s32.totalorder %s9, 1
    %p94 = por %p92, %p93
    %p95 = scmp.ne.s32.totalorder %s87, %s90
    %p96 = scmp.eq.s32.totalorder %s9, 0
    %p97 = por %p95, %p96
    %p98 = scmp.ne.s32.totalorder %s87, %s90
    %p99 = scmp.eq.s32.totalorder %s14, 1
    %p100 = por %p98, %p99
    %p101 = scmp.ne.s32.totalorder %s90, %s91
    %p102 = scmp.eq.s32.totalorder %s14, 0
    %p103 = por %p101, %p102
    %p104 = scmp.ne.s32.totalorder %s90, %s91
    %p105 = scmp.eq.s32.totalorder %s15, 1
    %p106 = por %p104, %p105
    %p108 = scmp.ne.s32.totalorder %s91, %s107
    %p109 = scmp.eq.s32.totalorder %s15, 0
    %p110 = por %p108, %p109
    %p111 = scmp.le.s32.totalorder 1, %s9
    %p112 = scmp.lt.s32.totalorder %s9, 3
    %p113 = pnand %p111, %p112
    %p114 = pneg %p113
    // Predicated region
    $region9: #{double_conv.5} parent=5 // pred_check
      _
    $region10: #{double_conv.5} parent=5 // pred_check_branch
      %116 = sbr.rel (%p113) target = $region12
    $region11: #{double_conv.5} parent=5 // pred_region
      %s117 = ssub.s32 %s9, 1
      // Predicated region
      $region13: #{double_conv.5} parent=11 // pred_check
        %p118 = pneg %p56
      $region14: #{double_conv.5} parent=11 // pred_check_branch
        %120 = sbr.rel (%p118) target = $region16
      $region15: #{double_conv.5} parent=11 // pred_region
        _
      $region16: #{double_conv.5} parent=11 // pred_fallthru
        _
      // Predicated region
      $region17: #{double_conv.5} parent=11 // pred_check
        %p121 = pneg %p77
      $region18: #{double_conv.5} parent=11 // pred_check_branch
        %123 = sbr.rel (%p121) target = $region20
      $region19: #{double_conv.5} parent=11 // pred_region
        _
      $region20: #{double_conv.5} parent=11 // pred_fallthru
        _
    $region12: #{double_conv.5} parent=5 // pred_fallthru
      _
    %p124 = scmp.lt.s32.totalorder %s9, 2
    // Predicated region
    $region21: #{double_conv.5} parent=5 // pred_check
      %p125 = pneg %p124
    $region22: #{double_conv.5} parent=5 // pred_check_branch
      %127 = sbr.rel (%p125) target = $region24
    $region23: #{double_conv.5} parent=5 // pred_region
      // Predicated region
      $region25: #{double_conv.5} parent=23 // pred_check
        %p128 = pneg %p29
      $region26: #{double_conv.5} parent=23 // pred_check_branch
        %130 = sbr.rel (%p128) target = $region28
      $region27: #{double_conv.5} parent=23 // pred_region
        %p131 = scmp.lt.s32.totalorder %s9, 1
        %s132 = scalar_select %p131, %s9, 1
        %s133 = smul.addr %s132, 41
        %s134 = smul.addr %s133, 4
        %s135 = scalar_lea.vmem %s0, %s134
      $region28: #{double_conv.5} parent=23 // pred_fallthru
        _
    $region24: #{double_conv.5} parent=5 // pred_fallthru
      _
    %p136 = scmp.le.s32.totalorder 1, %s9
    %p137 = scmp.lt.s32.totalorder %s9, 3
    %p138 = pnand %p136, %p137
    %p139 = pneg %p138
    // Predicated region
    $region29: #{double_conv.5} parent=5 // pred_check
      _
    $region30: #{double_conv.5} parent=5 // pred_check_branch
      %141 = sbr.rel (%p138) target = $region32
    $region31: #{double_conv.5} parent=5 // pred_region
      %s142 = ssub.s32 %s9, 1
      %p143 = scmp.lt.s32.totalorder %s14, 1
      %s144 = scalar_select %p143, %s14, 1
      %s145 = smul.addr %s144, 41
      %s146 = smul.addr %s145, 4
      %s147 = scalar_lea.vmem %s0, %s146
      %p148 = pneg %p35
      %p149 = pneg %p32
      %p150 = pneg %p56
      %p151 = pneg %p53
      %p152 = pneg %p77
      %p153 = pneg %p74
      %p154 = pneg %p103
      %p155 = pneg %p100
      %p156 = scmp.lt.s32.totalorder %s14, 1
      %s157 = scalar_select %p156, %s14, 1
      %s158 = smul.addr %s157, 3
      %s159 = smul.addr %s158, 8
      %s160 = scalar_lea.vmem %s3, %s159
      %p161 = scmp.lt.s32.totalorder %s14, 1
      %s162 = scalar_select %p161, %s14, 1
      %s163 = smul.addr %s162, 41
      %s164 = smul.addr %s163, 4
      %s165 = scalar_lea.vmem %s0, %s164
      %p166 = scmp.lt.s32.totalorder %s14, 1
      %s167 = scalar_select %p166, %s14, 1
      %s168 = smul.addr %s167, 3
      %s169 = smul.addr %s168, 8
      %s170 = scalar_lea.vmem %s3, %s169
      %v171 = vld [vmem:[%s165 + $0x8] sm:$0xe]
      %v172 = vld [vmem:[%s165 + $0xc] sm:$0xf]
      %v173 = vld [vmem:[%s165 + $0x10] sm:$0xf]
      %v174 = vld [vmem:[%s165 + $0x14] sm:$0xf]
      %v175 = vld [vmem:[%s165 + $0x18] sm:$0xf]
      %v176 = vld [vmem:[%s165 + $0x1c] sm:$0xf]
      %v177 = vld [vmem:[%s165 + $0x20] sm:$0xf]
      %v178 = vld [vmem:[%s165 + $0x24] sm:$0xf]
      %v179 = vld [vmem:[%s165 + $0x28] sm:$0xf]
      %v180 = vld [vmem:[%s165 + $0x2c] sm:$0xf]
      %v181 = vld [vmem:[%s165 + $0x30] sm:$0xf]
      %v182 = vld [vmem:[%s165 + $0x34] sm:$0xf]
      %v183 = vld [vmem:[%s165 + $0x38] sm:$0xf]
      %v184 = vld [vmem:[%s165 + $0x3c] sm:$0xf]
      %v185 = vld [vmem:[%s165 + $0x40] sm:$0xf]
      %v186 = vld [vmem:[%s165 + $0x44] sm:$0xf]
      %v187 = vld [vmem:[%s165 + $0x48] sm:$0xf]
      %v188 = vld [vmem:[%s165 + $0x4c] sm:$0xf]
      %v189 = vld [vmem:[%s165 + $0x50] sm:$0xf]
      %v190 = vld [vmem:[%s165 + $0x54] sm:$0xf]
      %v191 = vld [vmem:[%s165 + $0x58] sm:$0xf]
      %v192 = vld [vmem:[%s165 + $0x5c] sm:$0xf]
      %v193 = vld [vmem:[%s165 + $0x60] sm:$0xf]
      %v194 = vld [vmem:[%s165 + $0x64] sm:$0xf]
      %v195 = vld [vmem:[%s165 + $0x68] sm:$0xf]
      %v196 = vld [vmem:[%s165 + $0x6c] sm:$0xf]
      %v197 = vld [vmem:[%s165 + $0x70] sm:$0xf]
      %v198 = vld [vmem:[%s165 + $0x74] sm:$0xf]
      %v199 = vld [vmem:[%s165 + $0x78] sm:$0xf]
      %v200 = vld [vmem:[%s165 + $0x7c] sm:$0xf]
      %v201 = vld [vmem:[%s165 + $0x80] sm:$0xf]
      %v202 = vld [vmem:[%s165 + $0x84] sm:$0xf]
      %v203 = vld [vmem:[%s165 + $0x88] sm:$0xf]
      %v204 = vld [vmem:[%s165 + $0x8c] sm:$0xf]
      %v205 = vld [vmem:[%s165 + $0x90] sm:$0xf]
      %v206 = vld [vmem:[%s165 + $0x94] sm:$0xf]
      %v207 = vld [vmem:[%s165 + $0x98] sm:$0x3]
      %v208 = vunpack.c.l.bf16 %v171
      %v209 = vunpack.c.l.bf16 %v172
      %v210 = vunpack.c.l.bf16 %v173
      %v211 = vunpack.c.l.bf16 %v174
      %v212 = vunpack.c.l.bf16 %v175
      %v213 = vunpack.c.l.bf16 %v176
      %v214 = vunpack.c.l.bf16 %v177
      %v215 = vunpack.c.l.bf16 %v178
      %v216 = vunpack.c.l.bf16 %v179
      %v217 = vunpack.c.l.bf16 %v180
      %v218 = vunpack.c.l.bf16 %v181
      %v219 = vunpack.c.l.bf16 %v182
      %v220 = vunpack.c.l.bf16 %v183
      %v221 = vunpack.c.l.bf16 %v184
      %v222 = vunpack.c.l.bf16 %v185
      %v223 = vunpack.c.l.bf16 %v186
      %v224 = vunpack.c.l.bf16 %v187
      %v225 = vunpack.c.l.bf16 %v188
      %v226 = vunpack.c.l.bf16 %v189
      %v227 = vunpack.c.l.bf16 %v190
      %v228 = vunpack.c.l.bf16 %v191
      %v229 = vunpack.c.l.bf16 %v192
      %v230 = vunpack.c.l.bf16 %v193
      %v231 = vunpack.c.l.bf16 %v194
      %v232 = vunpack.c.l.bf16 %v195
      %v233 = vunpack.c.l.bf16 %v196
      %v234 = vunpack.c.l.bf16 %v197
      %v235 = vunpack.c.l.bf16 %v198
      %v236 = vunpack.c.l.bf16 %v199
      %v237 = vunpack.c.l.bf16 %v200
      %v238 = vunpack.c.l.bf16 %v201
      %v239 = vunpack.c.l.bf16 %v202
      %v240 = vunpack.c.l.bf16 %v203
      %v241 = vunpack.c.l.bf16 %v204
      %v242 = vunpack.c.l.bf16 %v205
      %v243 = vunpack.c.l.bf16 %v206
      %v244 = vunpack.c.l.bf16 %v207
      %v245 = vld [vmem:[%s1] sm:$0x1]
      %v247 = vlaneseq
      %v248 = vshrl.u32 %v247, 7
      %v249 = vsub.s32 0, %v248
      %v250 = vrot.slane %v245, %v249
      %v252 = vmul.f32 %v208, %v250
      %v253 = vmul.f32 %v209, %v250
      %v254 = vmul.f32 %v210, %v250
      %v255 = vmul.f32 %v211, %v250
      %v256 = vmul.f32 %v212, %v250
      %v257 = vmul.f32 %v213, %v250
      %v258 = vmul.f32 %v214, %v250
      %v259 = vmul.f32 %v215, %v250
      %v260 = vmul.f32 %v216, %v250
      %v261 = vmul.f32 %v217, %v250
      %v262 = vmul.f32 %v218, %v250
      %v263 = vmul.f32 %v219, %v250
      %v264 = vmul.f32 %v220, %v250
      %v265 = vmul.f32 %v221, %v250
      %v266 = vmul.f32 %v222, %v250
      %v267 = vmul.f32 %v223, %v250
      %v268 = vmul.f32 %v224, %v250
      %v269 = vmul.f32 %v225, %v250
      %v270 = vmul.f32 %v226, %v250
      %v271 = vmul.f32 %v227, %v250
      %v272 = vmul.f32 %v228, %v250
      %v273 = vmul.f32 %v229, %v250
      %v274 = vmul.f32 %v230, %v250
      %v275 = vmul.f32 %v231, %v250
      %v276 = vmul.f32 %v232, %v250
      %v277 = vmul.f32 %v233, %v250
      %v278 = vmul.f32 %v234, %v250
      %v279 = vmul.f32 %v235, %v250
      %v280 = vmul.f32 %v236, %v250
      %v281 = vmul.f32 %v237, %v250
      %v282 = vmul.f32 %v238, %v250
      %v283 = vmul.f32 %v239, %v250
      %v284 = vmul.f32 %v240, %v250
      %v285 = vmul.f32 %v241, %v250
      %v286 = vmul.f32 %v242, %v250
      %v287 = vmul.f32 %v243, %v250
      %v288 = vmul.f32 %v244, %v250
      %v289 = vld [vmem:[%s2] sm:$0x1]
      %v291 = vlaneseq
      %v292 = vshrl.u32 %v291, 7
      %v293 = vsub.s32 0, %v292
      %v294 = vrot.slane %v289, %v293
      %v296 = vadd.f32 %v252, %v294
      %v297 = vadd.f32 %v253, %v294
      %v298 = vadd.f32 %v254, %v294
      %v299 = vadd.f32 %v255, %v294
      %v300 = vadd.f32 %v256, %v294
      %v301 = vadd.f32 %v257, %v294
      %v302 = vadd.f32 %v258, %v294
      %v303 = vadd.f32 %v259, %v294
      %v304 = vadd.f32 %v260, %v294
      %v305 = vadd.f32 %v261, %v294
      %v306 = vadd.f32 %v262, %v294
      %v307 = vadd.f32 %v263, %v294
      %v308 = vadd.f32 %v264, %v294
      %v309 = vadd.f32 %v265, %v294
      %v310 = vadd.f32 %v266, %v294
      %v311 = vadd.f32 %v267, %v294
      %v312 = vadd.f32 %v268, %v294
      %v313 = vadd.f32 %v269, %v294
      %v314 = vadd.f32 %v270, %v294
      %v315 = vadd.f32 %v271, %v294
      %v316 = vadd.f32 %v272, %v294
      %v317 = vadd.f32 %v273, %v294
      %v318 = vadd.f32 %v274, %v294
      %v319 = vadd.f32 %v275, %v294
      %v320 = vadd.f32 %v276, %v294
      %v321 = vadd.f32 %v277, %v294
      %v322 = vadd.f32 %v278, %v294
      %v323 = vadd.f32 %v279, %v294
      %v324 = vadd.f32 %v280, %v294
      %v325 = vadd.f32 %v281, %v294
      %v326 = vadd.f32 %v282, %v294
      %v327 = vadd.f32 %v283, %v294
      %v328 = vadd.f32 %v284, %v294
      %v329 = vadd.f32 %v285, %v294
      %v330 = vadd.f32 %v286, %v294
      %v331 = vadd.f32 %v287, %v294
      %v332 = vadd.f32 %v288, %v294
      %v333 = vmax.f32 %v296, 0.0
      %v334 = vmax.f32 %v297, 0.0
      %v335 = vmax.f32 %v298, 0.0
      %v336 = vmax.f32 %v299, 0.0
      %v337 = vmax.f32 %v300, 0.0
      %v338 = vmax.f32 %v301, 0.0
      %v339 = vmax.f32 %v302, 0.0
      %v340 = vmax.f32 %v303, 0.0
      %v341 = vmax.f32 %v304, 0.0
      %v342 = vmax.f32 %v305, 0.0
      %v343 = vmax.f32 %v306, 0.0
      %v344 = vmax.f32 %v307, 0.0
      %v345 = vmax.f32 %v308, 0.0
      %v346 = vmax.f32 %v309, 0.0
      %v347 = vmax.f32 %v310, 0.0
      %v348 = vmax.f32 %v311, 0.0
      %v349 = vmax.f32 %v312, 0.0
      %v350 = vmax.f32 %v313, 0.0
      %v351 = vmax.f32 %v314, 0.0
      %v352 = vmax.f32 %v315, 0.0
      %v353 = vmax.f32 %v316, 0.0
      %v354 = vmax.f32 %v317, 0.0
      %v355 = vmax.f32 %v318, 0.0
      %v356 = vmax.f32 %v319, 0.0
      %v357 = vmax.f32 %v320, 0.0
      %v358 = vmax.f32 %v321, 0.0
      %v359 = vmax.f32 %v322, 0.0
      %v360 = vmax.f32 %v323, 0.0
      %v361 = vmax.f32 %v324, 0.0
      %v362 = vmax.f32 %v325, 0.0
      %v363 = vmax.f32 %v326, 0.0
      %v364 = vmax.f32 %v327, 0.0
      %v365 = vmax.f32 %v328, 0.0
      %v366 = vmax.f32 %v329, 0.0
      %v367 = vmax.f32 %v330, 0.0
      %v368 = vmax.f32 %v331, 0.0
      %v369 = vmax.f32 %v332, 0.0
      %vm407 = vcmask 1044480
      %v408 = vrot.slane %v333, 3
      %v409 = vrot.slane %v334, 3
      %v410 = vsel %vm407, %v408, %v409
      %v411 = vrot.slane %v335, 3
      %v412 = vsel %vm407, %v409, %v411
      %v413 = vrot.slane %v336, 3
      %v414 = vsel %vm407, %v411, %v413
      %v415 = vrot.slane %v337, 3
      %v416 = vsel %vm407, %v413, %v415
      %v417 = vrot.slane %v338, 3
      %v418 = vsel %vm407, %v415, %v417
      %v419 = vrot.slane %v339, 3
      %v420 = vsel %vm407, %v417, %v419
      %v421 = vrot.slane %v340, 3
      %v422 = vsel %vm407, %v419, %v421
      %v423 = vrot.slane %v341, 3
      %v424 = vsel %vm407, %v421, %v423
      %v425 = vrot.slane %v342, 3
      %v426 = vsel %vm407, %v423, %v425
      %v427 = vrot.slane %v343, 3
      %v428 = vsel %vm407, %v425, %v427
      %v429 = vrot.slane %v344, 3
      %v430 = vsel %vm407, %v427, %v429
      %v431 = vrot.slane %v345, 3
      %v432 = vsel %vm407, %v429, %v431
      %v433 = vrot.slane %v346, 3
      %v434 = vsel %vm407, %v431, %v433
      %v435 = vrot.slane %v347, 3
      %v436 = vsel %vm407, %v433, %v435
      %v437 = vrot.slane %v348, 3
      %v438 = vsel %vm407, %v435, %v437
      %v439 = vrot.slane %v349, 3
      %v440 = vsel %vm407, %v437, %v439
      %v441 = vrot.slane %v350, 3
      %v442 = vsel %vm407, %v439, %v441
      %v443 = vrot.slane %v351, 3
      %v444 = vsel %vm407, %v441, %v443
      %v445 = vrot.slane %v352, 3
      %v446 = vsel %vm407, %v443, %v445
      %v447 = vrot.slane %v353, 3
      %v448 = vsel %vm407, %v445, %v447
      %v449 = vrot.slane %v354, 3
      %v450 = vsel %vm407, %v447, %v449
      %v451 = vrot.slane %v355, 3
      %v452 = vsel %vm407, %v449, %v451
      %v453 = vrot.slane %v356, 3
      %v454 = vsel %vm407, %v451, %v453
      %v455 = vrot.slane %v357, 3
      %v456 = vsel %vm407, %v453, %v455
      %v457 = vrot.slane %v358, 3
      %v458 = vsel %vm407, %v455, %v457
      %v459 = vrot.slane %v359, 3
      %v460 = vsel %vm407, %v457, %v459
      %v461 = vrot.slane %v360, 3
      %v462 = vsel %vm407, %v459, %v461
      %v463 = vrot.slane %v361, 3
      %v464 = vsel %vm407, %v461, %v463
      %v465 = vrot.slane %v362, 3
      %v466 = vsel %vm407, %v463, %v465
      %v467 = vrot.slane %v363, 3
      %v468 = vsel %vm407, %v465, %v467
      %v469 = vrot.slane %v364, 3
      %v470 = vsel %vm407, %v467, %v469
      %v471 = vrot.slane %v365, 3
      %v472 = vsel %vm407, %v469, %v471
      %v473 = vrot.slane %v366, 3
      %v474 = vsel %vm407, %v471, %v473
      %v475 = vrot.slane %v367, 3
      %v476 = vsel %vm407, %v473, %v475
      %v477 = vrot.slane %v368, 3
      %v478 = vsel %vm407, %v475, %v477
      %v479 = vrot.slane %v369, 3
      %v480 = vsel %vm407, %v477, %v479
      %517 = vxpose.xlu0.b32.start [1/16] %v410, 128
      %518 = vxpose.xlu0.b32.cont [2/16] %v412, 128
      %519 = vxpose.xlu0.b32.cont [3/16] %v414, 128
      %520 = vxpose.xlu0.b32.cont [4/16] %v416, 128
      %521 = vxpose.xlu0.b32.cont [5/16] %v418, 128
      %522 = vxpose.xlu0.b32.cont [6/16] %v420, 128
      %523 = vxpose.xlu0.b32.cont [7/16] %v422, 128
      %524 = vxpose.xlu0.b32.cont [8/16] %v424, 128
      %525 = vxpose.xlu0.b32.cont [9/16] %v426, 128
      %526 = vxpose.xlu0.b32.cont [10/16] %v428, 128
      %527 = vxpose.xlu0.b32.cont [11/16] %v430, 128
      %528 = vxpose.xlu0.b32.cont [12/16] %v432, 128
      %529 = vxpose.xlu0.b32.cont [13/16] %v434, 128
      %530 = vxpose.xlu0.b32.cont [14/16] %v436, 128
      %531 = vxpose.xlu0.b32.cont [15/16] %v438, 128
      %532 = vxpose.xlu0.b32.end [16/16] %v440, 128
      %v533 = vpop.trf.xlu0
      %v534 = vpop.trf.xlu0
      %v535 = vpop.trf.xlu0
      %v536 = vpop.trf.xlu0
      %v537 = vpop.trf.xlu0
      %v538 = vpop.trf.xlu0
      %v539 = vpop.trf.xlu0
      %v540 = vpop.trf.xlu0
      %v541 = vpop.trf.xlu0
      %v542 = vpop.trf.xlu0
      %v543 = vpop.trf.xlu0
      %v544 = vpop.trf.xlu0
      %v545 = vpop.trf.xlu0
      %v546 = vpop.trf.xlu0
      %v547 = vpop.trf.xlu0
      %v548 = vpop.trf.xlu0
      %549 = vxpose.xlu0.b32.start [1/16] %v442, 128
      %550 = vxpose.xlu0.b32.cont [2/16] %v444, 128
      %551 = vxpose.xlu0.b32.cont [3/16] %v446, 128
      %552 = vxpose.xlu0.b32.cont [4/16] %v448, 128
      %553 = vxpose.xlu0.b32.cont [5/16] %v450, 128
      %554 = vxpose.xlu0.b32.cont [6/16] %v452, 128
      %555 = vxpose.xlu0.b32.cont [7/16] %v454, 128
      %556 = vxpose.xlu0.b32.cont [8/16] %v456, 128
      %557 = vxpose.xlu0.b32.cont [9/16] %v458, 128
      %558 = vxpose.xlu0.b32.cont [10/16] %v460, 128
      %559 = vxpose.xlu0.b32.cont [11/16] %v462, 128
      %560 = vxpose.xlu0.b32.cont [12/16] %v464, 128
      %561 = vxpose.xlu0.b32.cont [13/16] %v466, 128
      %562 = vxpose.xlu0.b32.cont [14/16] %v468, 128
      %563 = vxpose.xlu0.b32.cont [15/16] %v470, 128
      %564 = vxpose.xlu0.b32.end [16/16] %v472, 128
      %v565 = vpop.trf.xlu0
      %v566 = vpop.trf.xlu0
      %v567 = vpop.trf.xlu0
      %v568 = vpop.trf.xlu0
      %v569 = vpop.trf.xlu0
      %v570 = vpop.trf.xlu0
      %v571 = vpop.trf.xlu0
      %v572 = vpop.trf.xlu0
      %v573 = vpop.trf.xlu0
      %v574 = vpop.trf.xlu0
      %v575 = vpop.trf.xlu0
      %v576 = vpop.trf.xlu0
      %v577 = vpop.trf.xlu0
      %v578 = vpop.trf.xlu0
      %v579 = vpop.trf.xlu0
      %v580 = vpop.trf.xlu0
      %581 = vxpose.xlu0.b32.start [1/16] %v474, 128
      %582 = vxpose.xlu0.b32.cont [2/16] %v476, 128
      %583 = vxpose.xlu0.b32.cont [3/16] %v478, 128
      %584 = vxpose.xlu0.b32.cont [4/16] %v480, 128
      %585 = vxpose.xlu0.b32.cont [5/16] 0.0, 128
      %586 = vxpose.xlu0.b32.cont [6/16] 0.0, 128
      %587 = vxpose.xlu0.b32.cont [7/16] 0.0, 128
      %588 = vxpose.xlu0.b32.cont [8/16] 0.0, 128
      %589 = vxpose.xlu0.b32.cont [9/16] 0.0, 128
      %590 = vxpose.xlu0.b32.cont [10/16] 0.0, 128
      %591 = vxpose.xlu0.b32.cont [11/16] 0.0, 128
      %592 = vxpose.xlu0.b32.cont [12/16] 0.0, 128
      %593 = vxpose.xlu0.b32.cont [13/16] 0.0, 128
      %594 = vxpose.xlu0.b32.cont [14/16] 0.0, 128
      %595 = vxpose.xlu0.b32.cont [15/16] 0.0, 128
      %596 = vxpose.xlu0.b32.end [16/16] 0.0, 128
      %v597 = vpop.trf.xlu0
      %v598 = vpop.trf.xlu0
      %v599 = vpop.trf.xlu0
      %v600 = vpop.trf.xlu0
      %v601 = vpop.trf.xlu0
      %v602 = vpop.trf.xlu0
      %v603 = vpop.trf.xlu0
      %v604 = vpop.trf.xlu0
      %v605 = vpop.trf.xlu0
      %v606 = vpop.trf.xlu0
      %v607 = vpop.trf.xlu0
      %v608 = vpop.trf.xlu0
      %v609 = vpop.trf.xlu0
      %v610 = vpop.trf.xlu0
      %v611 = vpop.trf.xlu0
      %v612 = vpop.trf.xlu0
      %613 = vst [vmem:[%s170] sm:$0xff] %v533
      %614 = vst [vmem:[%s170 + $0x8] sm:$0xff] %v565
      %vm615 = vcmask 261120
      %616 = vst.msk [vmem:[%s170 + $0x10] sm:$0xff] %vm615, %v597
      %p617 = scmp.lt.s32.totalorder %s14, 1
      %s618 = scalar_select %p617, %s14, 1
      %s619 = smul.addr %s618, 3
      %s620 = smul.addr %s619, 8
      %s621 = scalar_lea.vmem %s3, %s620
      // Predicated region
      $region33: #{double_conv.5} parent=31 // pred_check
        %p622 = pneg %p100
      $region34: #{double_conv.5} parent=31 // pred_check_branch
        %624 = sbr.rel (%p622) target = $region36
      $region35: #{double_conv.5} parent=31 // pred_region
        _
      $region36: #{double_conv.5} parent=31 // pred_fallthru
        _
    $region32: #{double_conv.5} parent=5 // pred_fallthru
      _
    %p625 = scmp.le.s32.totalorder 2, %s9
    // Predicated region
    $region37: #{double_conv.5} parent=5 // pred_check
      %p626 = pneg %p625
    $region38: #{double_conv.5} parent=5 // pred_check_branch
      %628 = sbr.rel (%p626) target = $region40
    $region39: #{double_conv.5} parent=5 // pred_region
      %s629 = ssub.s32 %s9, 2
      // Predicated region
      $region41: #{double_conv.5} parent=39 // pred_check
        %p630 = pneg %p106
      $region42: #{double_conv.5} parent=39 // pred_check_branch
        %632 = sbr.rel (%p630) target = $region44
      $region43: #{double_conv.5} parent=39 // pred_region
        %p633 = scmp.lt.s32.totalorder %s15, 1
        %s634 = scalar_select %p633, %s15, 1
        %s635 = smul.addr %s634, 3
        %s636 = smul.addr %s635, 8
        %s637 = scalar_lea.vmem %s3, %s636
      $region44: #{double_conv.5} parent=39 // pred_fallthru
        _
    $region40: #{double_conv.5} parent=5 // pred_fallthru
      _
  $region6: #{double_conv.5} parent=0 // loop_footer
    %s13 = sadd.s32 1, %s9
  $region7: #{double_conv.5} parent=0 // loop_footer_branch
    %8 = sbr.rel target = $region3
  $region8: #{double_conv.5} parent=0 // loop_exit
    _

// kernel: double_conv.3
$region0: #{double_conv.3}
  #allocation0 [shape = 'u32[]', space=smem, size = 0x4, offset = 0x4, fixed_abs, tag = 'smem constant byte address 0x4 - core index']
  #allocation1 [shape = 'u32[144,128]{1,0:T(1,128)}', space=vmem, size = 0x12000, scoped, tag = 'internal scratch']
  #allocation2 [shape = 'bf16[328,128]{1,0:T(8,128)(2,1)}', space=vmem, size = 0x14800, scoped, tag = 'scratch operand']
  %s0 = inlined_call_operand.vmem [shape: bf16[2,328,128], index: 0, kind: input, shape index: {}]
  %s1 = inlined_call_operand.vmem [shape: bf16[9,128,128], index: 1, kind: input, shape index: {}]
  %s2 = inlined_call_operand.vmem [shape: f32[1,128], index: 2, kind: input, shape index: {}]
  %s3 = inlined_call_operand.vmem [shape: f32[1,128], index: 3, kind: input, shape index: {}]
  %s4 = inlined_call_operand.vmem [shape: f32[328,1], index: 4, kind: input, shape index: {}]
  %s5 = inlined_call_operand.vmem [shape: bf16[2,328,128], index: 5, kind: output, shape index: {0}]
  %s6 = inlined_call_operand.vmem [shape: f32[2,1,128], index: 6, kind: output, shape index: {1}]
  %s7 = inlined_call_operand.vmem [shape: f32[2,1,128], index: 7, kind: output, shape index: {2}]
  %8 = xla_tuple %s5, %s6, %s7
  %s9 = sld [smem:[#allocation0]]
  $region69: #{double_conv.3} parent=0
    _
  %s11 = ssub.s32 1, %s9
  %s12 = scalar_select 0, %s11, %s9
  loop: start=0, step=1, limit=4
  $region2: #{double_conv.3} parent=0 // loop_pre_header
    _
  $region3: #{double_conv.3} parent=0 // loop_header
    %s14 = sphi 0, %s18
    %p15 = scmp.ge.s32.totalorder %s14, 4
    %s24 = sphi 0, %s26
    %s27 = sphi 0, %s24
    %s28 = sphi 0, %s27
    %s44 = sphi 0, %s28
    %s48 = sphi 0, %s48
    %s50 = sphi 0, %s48
    %s51 = sphi 0, %s50
    %s65 = sphi 0, %s51
    %s69 = sphi 0, %s69
    %s71 = sphi 0, %s69
    %s72 = sphi 0, %s71
    %s86 = sphi 0, %s72
    %s90 = sphi 0, %s90
    %s92 = sphi 0, %s90
    %s93 = sphi 0, %s92
    %s107 = sphi 0, %s93
    %s111 = sphi 0, %s111
    %s113 = sphi 0, %s111
    %s114 = sphi 0, %s113
    %s128 = sphi 0, %s114
    %s134 = sphi 0, %s136
    %s137 = sphi 0, %s134
    %s138 = sphi 0, %s137
    %s154 = sphi 0, %s138
    %s160 = sphi 0, %s162
    %s163 = sphi 0, %s160
    %s164 = sphi 0, %s163
    %s180 = sphi 0, %s164
    %s186 = sphi 0, %s188
    %s189 = sphi 0, %s186
    %s190 = sphi 0, %s189
    %s206 = sphi 0, %s190
  $region4: #{double_conv.3} parent=0 // loop_header_branch
    %17 = sbr.rel (%p15) target = $region8
  $region5: #{double_conv.3} parent=0 // loop_body
    %s19 = ssub.s32 %s14, 1
    %s20 = ssub.s32 %s14, 2
    %s21 = sadd.s32 %s14, 1
    %s22 = ssub.s32 %s14, %s21
    %p23 = scmp.eq.s32.totalorder %s22, 0
    %s25 = sadd.s32 %s24, 1
    %s26 = scalar_select %p23, %s24, %s25
    %p29 = pneg %p23
    %p30 = scmp.eq.s32.totalorder %s14, 1
    %p31 = por %p29, %p30
    %p32 = scmp.ne.s32.totalorder %s24, %s27
    %p33 = scmp.eq.s32.totalorder %s14, 0
    %p34 = por %p32, %p33
    %p35 = scmp.ne.s32.totalorder %s24, %s27
    %p36 = scmp.eq.s32.totalorder %s19, 1
    %p37 = por %p35, %p36
    %p38 = scmp.ne.s32.totalorder %s27, %s28
    %p39 = scmp.eq.s32.totalorder %s19, 0
    %p40 = por %p38, %p39
    %p41 = scmp.ne.s32.totalorder %s27, %s28
    %p42 = scmp.eq.s32.totalorder %s20, 1
    %p43 = por %p41, %p42
    %p45 = scmp.ne.s32.totalorder %s28, %s44
    %p46 = scmp.eq.s32.totalorder %s20, 0
    %p47 = por %p45, %p46
    %s49 = sadd.s32 %s48, 1
    %p52 = scmp.eq.s32.totalorder %s14, 1
    %p53 = scmp.ne.s32.totalorder %s48, %s50
    %p54 = scmp.eq.s32.totalorder %s14, 0
    %p55 = por %p53, %p54
    %p56 = scmp.ne.s32.totalorder %s48, %s50
    %p57 = scmp.eq.s32.totalorder %s19, 1
    %p58 = por %p56, %p57
    %p59 = scmp.ne.s32.totalorder %s50, %s51
    %p60 = scmp.eq.s32.totalorder %s19, 0
    %p61 = por %p59, %p60
    %p62 = scmp.ne.s32.totalorder %s50, %s51
    %p63 = scmp.eq.s32.totalorder %s20, 1
    %p64 = por %p62, %p63
    %p66 = scmp.ne.s32.totalorder %s51, %s65
    %p67 = scmp.eq.s32.totalorder %s20, 0
    %p68 = por %p66, %p67
    %s70 = sadd.s32 %s69, 1
    %p73 = scmp.eq.s32.totalorder %s14, 1
    %p74 = scmp.ne.s32.totalorder %s69, %s71
    %p75 = scmp.eq.s32.totalorder %s14, 0
    %p76 = por %p74, %p75
    %p77 = scmp.ne.s32.totalorder %s69, %s71
    %p78 = scmp.eq.s32.totalorder %s19, 1
    %p79 = por %p77, %p78
    %p80 = scmp.ne.s32.totalorder %s71, %s72
    %p81 = scmp.eq.s32.totalorder %s19, 0
    %p82 = por %p80, %p81
    %p83 = scmp.ne.s32.totalorder %s71, %s72
    %p84 = scmp.eq.s32.totalorder %s20, 1
    %p85 = por %p83, %p84
    %p87 = scmp.ne.s32.totalorder %s72, %s86
    %p88 = scmp.eq.s32.totalorder %s20, 0
    %p89 = por %p87, %p88
    %s91 = sadd.s32 %s90, 1
    %p94 = scmp.eq.s32.totalorder %s14, 1
    %p95 = scmp.ne.s32.totalorder %s90, %s92
    %p96 = scmp.eq.s32.totalorder %s14, 0
    %p97 = por %p95, %p96
    %p98 = scmp.ne.s32.totalorder %s90, %s92
    %p99 = scmp.eq.s32.totalorder %s19, 1
    %p100 = por %p98, %p99
    %p101 = scmp.ne.s32.totalorder %s92, %s93
    %p102 = scmp.eq.s32.totalorder %s19, 0
    %p103 = por %p101, %p102
    %p104 = scmp.ne.s32.totalorder %s92, %s93
    %p105 = scmp.eq.s32.totalorder %s20, 1
    %p106 = por %p104, %p105
    %p108 = scmp.ne.s32.totalorder %s93, %s107
    %p109 = scmp.eq.s32.totalorder %s20, 0
    %p110 = por %p108, %p109
    %s112 = sadd.s32 %s111, 1
    %p115 = scmp.eq.s32.totalorder %s14, 1
    %p116 = scmp.ne.s32.totalorder %s111, %s113
    %p117 = scmp.eq.s32.totalorder %s14, 0
    %p118 = por %p116, %p117
    %p119 = scmp.ne.s32.totalorder %s111, %s113
    %p120 = scmp.eq.s32.totalorder %s19, 1
    %p121 = por %p119, %p120
    %p122 = scmp.ne.s32.totalorder %s113, %s114
    %p123 = scmp.eq.s32.totalorder %s19, 0
    %p124 = por %p122, %p123
    %p125 = scmp.ne.s32.totalorder %s113, %s114
    %p126 = scmp.eq.s32.totalorder %s20, 1
    %p127 = por %p125, %p126
    %p129 = scmp.ne.s32.totalorder %s114, %s128
    %p130 = scmp.eq.s32.totalorder %s20, 0
    %p131 = por %p129, %p130
    %s132 = ssub.s32 %s14, %s21
    %p133 = scmp.eq.s32.totalorder %s132, 0
    %s135 = sadd.s32 %s134, 1
    %s136 = scalar_select %p133, %s134, %s135
    %p139 = pneg %p133
    %p140 = scmp.eq.s32.totalorder %s14, 1
    %p141 = por %p139, %p140
    %p142 = scmp.ne.s32.totalorder %s134, %s137
    %p143 = scmp.eq.s32.totalorder %s14, 0
    %p144 = por %p142, %p143
    %p145 = scmp.ne.s32.totalorder %s134, %s137
    %p146 = scmp.eq.s32.totalorder %s19, 1
    %p147 = por %p145, %p146
    %p148 = scmp.ne.s32.totalorder %s137, %s138
    %p149 = scmp.eq.s32.totalorder %s19, 0
    %p150 = por %p148, %p149
    %p151 = scmp.ne.s32.totalorder %s137, %s138
    %p152 = scmp.eq.s32.totalorder %s20, 1
    %p153 = por %p151, %p152
    %p155 = scmp.ne.s32.totalorder %s138, %s154
    %p156 = scmp.eq.s32.totalorder %s20, 0
    %p157 = por %p155, %p156
    %s158 = ssub.s32 %s14, %s21
    %p159 = scmp.eq.s32.totalorder %s158, 0
    %s161 = sadd.s32 %s160, 1
    %s162 = scalar_select %p159, %s160, %s161
    %p165 = pneg %p159
    %p166 = scmp.eq.s32.totalorder %s14, 1
    %p167 = por %p165, %p166
    %p168 = scmp.ne.s32.totalorder %s160, %s163
    %p169 = scmp.eq.s32.totalorder %s14, 0
    %p170 = por %p168, %p169
    %p171 = scmp.ne.s32.totalorder %s160, %s163
    %p172 = scmp.eq.s32.totalorder %s19, 1
    %p173 = por %p171, %p172
    %p174 = scmp.ne.s32.totalorder %s163, %s164
    %p175 = scmp.eq.s32.totalorder %s19, 0
    %p176 = por %p174, %p175
    %p177 = scmp.ne.s32.totalorder %s163, %s164
    %p178 = scmp.eq.s32.totalorder %s20, 1
    %p179 = por %p177, %p178
    %p181 = scmp.ne.s32.totalorder %s164, %s180
    %p182 = scmp.eq.s32.totalorder %s20, 0
    %p183 = por %p181, %p182
    %s184 = ssub.s32 %s14, %s21
    %p185 = scmp.eq.s32.totalorder %s184, 0
    %s187 = sadd.s32 %s186, 1
    %s188 = scalar_select %p185, %s186, %s187
    %p191 = pneg %p185
    %p192 = scmp.eq.s32.totalorder %s14, 1
    %p193 = por %p191, %p192
    %p194 = scmp.ne.s32.totalorder %s186, %s189
    %p195 = scmp.eq.s32.totalorder %s14, 0
    %p196 = por %p194, %p195
    %p197 = scmp.ne.s32.totalorder %s186, %s189
    %p198 = scmp.eq.s32.totalorder %s19, 1
    %p199 = por %p197, %p198
    %p200 = scmp.ne.s32.totalorder %s189, %s190
    %p201 = scmp.eq.s32.totalorder %s19, 0
    %p202 = por %p200, %p201
    %p203 = scmp.ne.s32.totalorder %s189, %s190
    %p204 = scmp.eq.s32.totalorder %s20, 1
    %p205 = por %p203, %p204
    %p207 = scmp.ne.s32.totalorder %s190, %s206
    %p208 = scmp.eq.s32.totalorder %s20, 0
    %p209 = por %p207, %p208
    %p210 = scmp.le.s32.totalorder 1, %s14
    %p211 = scmp.lt.s32.totalorder %s14, 3
    %p212 = pnand %p210, %p211
    %p213 = pneg %p212
    // Predicated region
    $region9: #{double_conv.3} parent=5 // pred_check
      _
    $region10: #{double_conv.3} parent=5 // pred_check_branch
      %215 = sbr.rel (%p212) target = $region12
    $region11: #{double_conv.3} parent=5 // pred_region
      %s216 = ssub.s32 %s14, 1
      // Predicated region
      $region13: #{double_conv.3} parent=11 // pred_check
        %p217 = pneg %p61
      $region14: #{double_conv.3} parent=11 // pred_check_branch
        %219 = sbr.rel (%p217) target = $region16
      $region15: #{double_conv.3} parent=11 // pred_region
        _
      $region16: #{double_conv.3} parent=11 // pred_fallthru
        _
      // Predicated region
      $region17: #{double_conv.3} parent=11 // pred_check
        %p220 = pneg %p82
      $region18: #{double_conv.3} parent=11 // pred_check_branch
        %222 = sbr.rel (%p220) target = $region20
      $region19: #{double_conv.3} parent=11 // pred_region
        _
      $region20: #{double_conv.3} parent=11 // pred_fallthru
        _
      // Predicated region
      $region21: #{double_conv.3} parent=11 // pred_check
        %p223 = pneg %p103
      $region22: #{double_conv.3} parent=11 // pred_check_branch
        %225 = sbr.rel (%p223) target = $region24
      $region23: #{double_conv.3} parent=11 // pred_region
        _
      $region24: #{double_conv.3} parent=11 // pred_fallthru
        _
      // Predicated region
      $region25: #{double_conv.3} parent=11 // pred_check
        %p226 = pneg %p124
      $region26: #{double_conv.3} parent=11 // pred_check_branch
        %228 = sbr.rel (%p226) target = $region28
      $region27: #{double_conv.3} parent=11 // pred_region
        _
      $region28: #{double_conv.3} parent=11 // pred_fallthru
        _
    $region12: #{double_conv.3} parent=5 // pred_fallthru
      _
    %p229 = scmp.lt.s32.totalorder %s14, 2
    // Predicated region
    $region29: #{double_conv.3} parent=5 // pred_check
      %p230 = pneg %p229
    $region30: #{double_conv.3} parent=5 // pred_check_branch
      %232 = sbr.rel (%p230) target = $region32
    $region31: #{double_conv.3} parent=5 // pred_region
      // Predicated region
      $region33: #{double_conv.3} parent=31 // pred_check
        %p233 = pneg %p34
      $region34: #{double_conv.3} parent=31 // pred_check_branch
        %235 = sbr.rel (%p233) target = $region36
      $region35: #{double_conv.3} parent=31 // pred_region
        %p236 = scmp.lt.s32.totalorder %s14, 1
        %s237 = scalar_select %p236, %s14, 1
        %s238 = smul.addr %s237, 41
        %s239 = smul.addr %s238, 4
        %s240 = scalar_lea.vmem %s0, %s239
      $region36: #{double_conv.3} parent=31 // pred_fallthru
        _
    $region32: #{double_conv.3} parent=5 // pred_fallthru
      _
    %p241 = scmp.le.s32.totalorder 1, %s14
    %p242 = scmp.lt.s32.totalorder %s14, 3
    %p243 = pnand %p241, %p242
    %p244 = pneg %p243
    // Predicated region
    $region37: #{double_conv.3} parent=5 // pred_check
      _
    $region38: #{double_conv.3} parent=5 // pred_check_branch
      %246 = sbr.rel (%p243) target = $region40
    $region39: #{double_conv.3} parent=5 // pred_region
      %s247 = ssub.s32 %s14, 1
      %p248 = scmp.lt.s32.totalorder %s19, 1
      %s249 = scalar_select %p248, %s19, 1
      %s250 = smul.addr %s249, 41
      %s251 = smul.addr %s250, 4
      %s252 = scalar_lea.vmem %s0, %s251
      %p253 = pneg %p40
      %p254 = pneg %p37
      %p255 = pneg %p61
      %p256 = pneg %p58
      %p257 = pneg %p82
      %p258 = pneg %p79
      %p259 = pneg %p103
      %p260 = pneg %p100
      %p261 = pneg %p124
      %p262 = pneg %p121
      %p263 = pneg %p150
      %p264 = pneg %p147
      %p265 = scmp.lt.s32.totalorder %s19, 1
      %s266 = scalar_select %p265, %s19, 1
      %s267 = smul.addr %s266, 41
      %s268 = smul.addr %s267, 4
      %s269 = scalar_lea.vmem %s5, %s268
      %p270 = pneg %p176
      %p271 = pneg %p173
      %p272 = scmp.lt.s32.totalorder %s19, 1
      %s273 = scalar_select %p272, %s19, 1
      %s274 = scalar_lea.vmem %s6, %s273
      %p275 = pneg %p202
      %p276 = pneg %p199
      %p277 = scmp.lt.s32.totalorder %s19, 1
      %s278 = scalar_select %p277, %s19, 1
      %s279 = scalar_lea.vmem %s7, %s278
      %p280 = scmp.lt.s32.totalorder %s19, 1
      %s281 = scalar_select %p280, %s19, 1
      %s282 = smul.addr %s281, 41
      %s283 = smul.addr %s282, 4
      %s284 = scalar_lea.vmem %s0, %s283
      %p285 = scmp.lt.s32.totalorder %s19, 1
      %s286 = scalar_select %p285, %s19, 1
      %s287 = smul.addr %s286, 41
      %s288 = smul.addr %s287, 4
      %s289 = scalar_lea.vmem %s5, %s288
      %p290 = scmp.lt.s32.totalorder %s19, 1
      %s291 = scalar_select %p290, %s19, 1
      %s292 = scalar_lea.vmem %s6, %s291
      %p293 = scmp.lt.s32.totalorder %s19, 1
      %s294 = scalar_select %p293, %s19, 1
      %s295 = scalar_lea.vmem %s7, %s294
      %v297 = vld [vmem:[%s284] sm:$0xf]
      %v298 = vld [vmem:[%s284 + $0x4] sm:$0xf]
      %v299 = vld [vmem:[%s284 + $0x8] sm:$0xf]
      %v300 = vld [vmem:[%s284 + $0xc] sm:$0xf]
      %v301 = vld [vmem:[%s284 + $0x10] sm:$0xf]
      %v302 = vld [vmem:[%s284 + $0x14] sm:$0xf]
      %v303 = vld [vmem:[%s284 + $0x18] sm:$0xf]
      %v304 = vld [vmem:[%s284 + $0x1c] sm:$0xf]
      %v305 = vld [vmem:[%s284 + $0x20] sm:$0xf]
      %v306 = vld [vmem:[%s284 + $0x24] sm:$0xf]
      %v307 = vld [vmem:[%s284 + $0x28] sm:$0xf]
      %v308 = vld [vmem:[%s284 + $0x2c] sm:$0xf]
      %v309 = vld [vmem:[%s284 + $0x30] sm:$0xf]
      %v310 = vld [vmem:[%s284 + $0x34] sm:$0xf]
      %v311 = vld [vmem:[%s284 + $0x38] sm:$0xf]
      %v312 = vld [vmem:[%s284 + $0x3c] sm:$0xf]
      %v313 = vld [vmem:[%s284 + $0x40] sm:$0xf]
      %v314 = vld [vmem:[%s284 + $0x44] sm:$0xf]
      %v315 = vld [vmem:[%s284 + $0x48] sm:$0xf]
      %v316 = vld [vmem:[%s284 + $0x4c] sm:$0xf]
      %v317 = vld [vmem:[%s284 + $0x50] sm:$0xf]
      %v318 = vld [vmem:[%s284 + $0x54] sm:$0xf]
      %v319 = vld [vmem:[%s284 + $0x58] sm:$0xf]
      %v320 = vld [vmem:[%s284 + $0x5c] sm:$0xf]
      %v321 = vld [vmem:[%s284 + $0x60] sm:$0xf]
      %v322 = vld [vmem:[%s284 + $0x64] sm:$0xf]
      %v323 = vld [vmem:[%s284 + $0x68] sm:$0xf]
      %v324 = vld [vmem:[%s284 + $0x6c] sm:$0xf]
      %v325 = vld [vmem:[%s284 + $0x70] sm:$0xf]
      %v326 = vld [vmem:[%s284 + $0x74] sm:$0xf]
      %v327 = vld [vmem:[%s284 + $0x78] sm:$0xf]
      %v328 = vld [vmem:[%s284 + $0x7c] sm:$0xf]
      %v329 = vld [vmem:[%s284 + $0x80] sm:$0xf]
      %v330 = vld [vmem:[%s284 + $0x84] sm:$0xf]
      %v331 = vld [vmem:[%s284 + $0x88] sm:$0xf]
      %v332 = vld [vmem:[%s284 + $0x8c] sm:$0xf]
      %v333 = vld [vmem:[%s1] sm:$0xf]
      %v334 = vld [vmem:[%s1 + $0x4] sm:$0xf]
      %v335 = vld [vmem:[%s1 + $0x8] sm:$0xf]
      %v336 = vld [vmem:[%s1 + $0xc] sm:$0xf]
      %v337 = vld [vmem:[%s1 + $0x10] sm:$0xf]
      %v338 = vld [vmem:[%s1 + $0x14] sm:$0xf]
      %v339 = vld [vmem:[%s1 + $0x18] sm:$0xf]
      %v340 = vld [vmem:[%s1 + $0x1c] sm:$0xf]
      %v341 = vld [vmem:[%s1 + $0x20] sm:$0xf]
      %v342 = vld [vmem:[%s1 + $0x24] sm:$0xf]
      %v343 = vld [vmem:[%s1 + $0x28] sm:$0xf]
      %v344 = vld [vmem:[%s1 + $0x2c] sm:$0xf]
      %v345 = vld [vmem:[%s1 + $0x30] sm:$0xf]
      %v346 = vld [vmem:[%s1 + $0x34] sm:$0xf]
      %v347 = vld [vmem:[%s1 + $0x38] sm:$0xf]
      %v348 = vld [vmem:[%s1 + $0x3c] sm:$0xf]
      %v349 = vld [vmem:[%s284 + $0x90] sm:$0x1]
      %s350 = scalar_lea.vmem %s1, 64
      %v351 = vld [vmem:[%s350] sm:$0xf]
      %v352 = vld [vmem:[%s350 + $0x4] sm:$0xf]
      %v353 = vld [vmem:[%s350 + $0x8] sm:$0xf]
      %v354 = vld [vmem:[%s350 + $0xc] sm:$0xf]
      %v355 = vld [vmem:[%s350 + $0x10] sm:$0xf]
      %v356 = vld [vmem:[%s350 + $0x14] sm:$0xf]
      %v357 = vld [vmem:[%s350 + $0x18] sm:$0xf]
      %v358 = vld [vmem:[%s350 + $0x1c] sm:$0xf]
      %v359 = vld [vmem:[%s350 + $0x20] sm:$0xf]
      %v360 = vld [vmem:[%s350 + $0x24] sm:$0xf]
      %v361 = vld [vmem:[%s350 + $0x28] sm:$0xf]
      %v362 = vld [vmem:[%s350 + $0x2c] sm:$0xf]
      %v363 = vld [vmem:[%s350 + $0x30] sm:$0xf]
      %v364 = vld [vmem:[%s350 + $0x34] sm:$0xf]
      %v365 = vld [vmem:[%s350 + $0x38] sm:$0xf]
      %v366 = vld [vmem:[%s350 + $0x3c] sm:$0xf]
      %v404 = vunpack.c.l.b16 %v297
      %v405 = vunpack.c.l.b16 %v298
      %v406 = vunpack.c.l.b16 %v299
      %v407 = vunpack.c.l.b16 %v300
      %v408 = vunpack.c.l.b16 %v301
      %v409 = vunpack.c.l.b16 %v302
      %v410 = vunpack.c.l.b16 %v303
      %v411 = vunpack.c.l.b16 %v304
      %v412 = vunpack.c.l.b16 %v305
      %v413 = vunpack.c.l.b16 %v306
      %v414 = vunpack.c.l.b16 %v307
      %v415 = vunpack.c.l.b16 %v308
      %v416 = vunpack.c.l.b16 %v309
      %v417 = vunpack.c.l.b16 %v310
      %v418 = vunpack.c.l.b16 %v311
      %v419 = vunpack.c.l.b16 %v312
      %v420 = vunpack.c.l.b16 %v313
      %v421 = vunpack.c.l.b16 %v314
      %v422 = vunpack.c.l.b16 %v315
      %v423 = vunpack.c.l.b16 %v316
      %v424 = vunpack.c.l.b16 %v317
      %v425 = vunpack.c.l.b16 %v318
      %v426 = vunpack.c.l.b16 %v319
      %v427 = vunpack.c.l.b16 %v320
      %v428 = vunpack.c.l.b16 %v321
      %v429 = vunpack.c.l.b16 %v322
      %v430 = vunpack.c.l.b16 %v323
      %v431 = vunpack.c.l.b16 %v324
      %v432 = vunpack.c.l.b16 %v325
      %v433 = vunpack.c.l.b16 %v326
      %v434 = vunpack.c.l.b16 %v327
      %v435 = vunpack.c.l.b16 %v328
      %v436 = vunpack.c.l.b16 %v329
      %v437 = vunpack.c.l.b16 %v330
      %v438 = vunpack.c.l.b16 %v331
      %v439 = vunpack.c.l.b16 %v332
      %v440 = vunpack.c.l.b16 %v349
      %v441 = vpack.c.b16 %v405, %v404
      %v442 = vpack.c.b16 %v407, %v406
      %v443 = vpack.c.b16 %v409, %v408
      %v444 = vpack.c.b16 %v411, %v410
      %v445 = vpack.c.b16 %v413, %v412
      %v446 = vpack.c.b16 %v415, %v414
      %v447 = vpack.c.b16 %v417, %v416
      %v448 = vpack.c.b16 %v419, %v418
      %v449 = vpack.c.b16 %v421, %v420
      %v450 = vpack.c.b16 %v423, %v422
      %v451 = vpack.c.b16 %v425, %v424
      %v452 = vpack.c.b16 %v427, %v426
      %v453 = vpack.c.b16 %v429, %v428
      %v454 = vpack.c.b16 %v431, %v430
      %v455 = vpack.c.b16 %v433, %v432
      %v456 = vpack.c.b16 %v435, %v434
      %v457 = vpack.c.b16 %v437, %v436
      %v458 = vpack.c.b16 %v439, %v438
      %v459 = vpack.c.b16 %v440, %v440
      %vm460 = vsmask.f32 7424
      %v462 = vshrl.u32 %v441, 16
      %v464 = vshll.u32 %v441, 16
      %v466 = vrot.slane %v464, 1
      %v467 = vor.u32 %v462, %v466
      %v469 = vshll.u32 %v442, 16
      %v471 = vrot.slane %v469, 1
      %v472 = vsel %vm460, %v467, %v471
      %v473 = vshrl.u32 %v442, 16
      %v475 = vor.u32 %v473, %v471
      %v477 = vshll.u32 %v443, 16
      %v479 = vrot.slane %v477, 1
      %v480 = vsel %vm460, %v475, %v479
      %v481 = vshrl.u32 %v443, 16
      %v483 = vor.u32 %v481, %v479
      %v485 = vshll.u32 %v444, 16
      %v487 = vrot.slane %v485, 1
      %v488 = vsel %vm460, %v483, %v487
      %v489 = vshrl.u32 %v444, 16
      %v491 = vor.u32 %v489, %v487
      %v493 = vshll.u32 %v445, 16
      %v495 = vrot.slane %v493, 1
      %v496 = vsel %vm460, %v491, %v495
      %v497 = vshrl.u32 %v445, 16
      %v499 = vor.u32 %v497, %v495
      %v501 = vshll.u32 %v446, 16
      %v503 = vrot.slane %v501, 1
      %v504 = vsel %vm460, %v499, %v503
      %v505 = vshrl.u32 %v446, 16
      %v507 = vor.u32 %v505, %v503
      %v509 = vshll.u32 %v447, 16
      %v511 = vrot.slane %v509, 1
      %v512 = vsel %vm460, %v507, %v511
      %v513 = vshrl.u32 %v447, 16
      %v515 = vor.u32 %v513, %v511
      %v517 = vshll.u32 %v448, 16
      %v519 = vrot.slane %v517, 1
      %v520 = vsel %vm460, %v515, %v519
      %v521 = vshrl.u32 %v448, 16
      %v523 = vor.u32 %v521, %v519
      %v525 = vshll.u32 %v449, 16
      %v527 = vrot.slane %v525, 1
      %v528 = vsel %vm460, %v523, %v527
      %v529 = vshrl.u32 %v449, 16
      %v531 = vor.u32 %v529, %v527
      %v533 = vshll.u32 %v450, 16
      %v535 = vrot.slane %v533, 1
      %v536 = vsel %vm460, %v531, %v535
      %v537 = vshrl.u32 %v450, 16
      %v539 = vor.u32 %v537, %v535
      %v541 = vshll.u32 %v451, 16
      %v543 = vrot.slane %v541, 1
      %v544 = vsel %vm460, %v539, %v543
      %v545 = vshrl.u32 %v451, 16
      %v547 = vor.u32 %v545, %v543
      %v549 = vshll.u32 %v452, 16
      %v551 = vrot.slane %v549, 1
      %v552 = vsel %vm460, %v547, %v551
      %v553 = vshrl.u32 %v452, 16
      %v555 = vor.u32 %v553, %v551
      %v557 = vshll.u32 %v453, 16
      %v559 = vrot.slane %v557, 1
      %v560 = vsel %vm460, %v555, %v559
      %v561 = vshrl.u32 %v453, 16
      %v563 = vor.u32 %v561, %v559
      %v565 = vshll.u32 %v454, 16
      %v567 = vrot.slane %v565, 1
      %v568 = vsel %vm460, %v563, %v567
      %v569 = vshrl.u32 %v454, 16
      %v571 = vor.u32 %v569, %v567
      %v573 = vshll.u32 %v455, 16
      %v575 = vrot.slane %v573, 1
      %v576 = vsel %vm460, %v571, %v575
      %v577 = vshrl.u32 %v455, 16
      %v579 = vor.u32 %v577, %v575
      %v581 = vshll.u32 %v456, 16
      %v583 = vrot.slane %v581, 1
      %v584 = vsel %vm460, %v579, %v583
      %v585 = vshrl.u32 %v456, 16
      %v587 = vor.u32 %v585, %v583
      %v589 = vshll.u32 %v457, 16
      %v591 = vrot.slane %v589, 1
      %v592 = vsel %vm460, %v587, %v591
      %v593 = vshrl.u32 %v457, 16
      %v595 = vor.u32 %v593, %v591
      %v597 = vshll.u32 %v458, 16
      %v599 = vrot.slane %v597, 1
      %v600 = vsel %vm460, %v595, %v599
      %v601 = vshrl.u32 %v458, 16
      %v603 = vor.u32 %v601, %v599
      %v605 = vshll.u32 %v459, 16
      %v607 = vrot.slane %v605, 1
      %v608 = vsel %vm460, %v603, %v607
      %v643 = vunpack.c.l.b16 %v351
      %v644 = vunpack.c.l.b16 %v352
      %v645 = vunpack.c.l.b16 %v353
      %v646 = vunpack.c.l.b16 %v354
      %v647 = vunpack.c.l.b16 %v355
      %v648 = vunpack.c.l.b16 %v356
      %v649 = vunpack.c.l.b16 %v357
      %v650 = vunpack.c.l.b16 %v358
      %v651 = vunpack.c.l.b16 %v359
      %v652 = vunpack.c.l.b16 %v360
      %v653 = vunpack.c.l.b16 %v361
      %v654 = vunpack.c.l.b16 %v362
      %v655 = vunpack.c.l.b16 %v363
      %v656 = vunpack.c.l.b16 %v364
      %v657 = vunpack.c.l.b16 %v365
      %v658 = vunpack.c.l.b16 %v366
      %v659 = vpack.c.b16 %v644, %v643
      %v660 = vpack.c.b16 %v646, %v645
      %v661 = vpack.c.b16 %v648, %v647
      %v662 = vpack.c.b16 %v650, %v649
      %v663 = vpack.c.b16 %v652, %v651
      %v664 = vpack.c.b16 %v654, %v653
      %v665 = vpack.c.b16 %v656, %v655
      %v666 = vpack.c.b16 %v658, %v657
      %675 = vmatprep.subr.bf16.mxu0 0
      %676 = vmatpush1.bf16.msra.mxu0 %v659
      %677 = vmatprep.subr.bf16.mxu0 0
      %678 = vmatpush1.bf16.msra.mxu0 %v660
      %679 = vmatprep.subr.bf16.mxu0 0
      %680 = vmatpush1.bf16.msra.mxu0 %v661
      %681 = vmatprep.subr.bf16.mxu0 0
      %682 = vmatpush1.bf16.msra.mxu0 %v662
      %683 = vmatprep.subr.bf16.mxu0 0
      %684 = vmatpush1.bf16.msra.mxu0 %v663
      %685 = vmatprep.subr.bf16.mxu0 0
      %686 = vmatpush1.bf16.msra.mxu0 %v664
      %687 = vmatprep.subr.bf16.mxu0 0
      %688 = vmatpush1.bf16.msra.mxu0 %v665
      %689 = vmatprep.subr.bf16.mxu0 0
      %690 = vmatpush1.bf16.msra.mxu0 %v666
      %691 = vmatprep.subr.bf16.mxu0 0
      %692 = vmatpush1.bf16.msra.mxu0 0
      %693 = vmatprep.subr.bf16.mxu0 0
      %694 = vmatpush1.bf16.msra.mxu0 0
      %695 = vmatprep.subr.bf16.mxu0 0
      %696 = vmatpush1.bf16.msra.mxu0 0
      %697 = vmatprep.subr.bf16.mxu0 0
      %698 = vmatpush1.bf16.msra.mxu0 0
      %699 = vmatprep.subr.bf16.mxu0 0
      %700 = vmatpush1.bf16.msra.mxu0 0
      %701 = vmatprep.subr.bf16.mxu0 0
      %702 = vmatpush1.bf16.msra.mxu0 0
      %703 = vmatprep.subr.bf16.mxu0 0
      %704 = vmatpush1.bf16.msra.mxu0 0
      %705 = vmatprep.subr.bf16.mxu0 0
      %706 = vmatpush1.bf16.msra.mxu0 0
      %707 = vmatprep.mubr.bf16.mxu0 0
      %708 = vmatmul.mubr.bf16.gmra.mrb[0].mxu0 %v472
      %v709 = vpop.f32.mrb[0].mxu0
      %v710 = vadd.f32 0.0, %v709
      %v711 = vpop.f32.mrb[0].mxu0
      %v712 = vpop.f32.mrb[0].mxu0
      %v713 = vadd.f32 0.0, %v712
      %v714 = vpop.f32.mrb[0].mxu0
      %715 = vmatprep.mubr.bf16.mxu0 0
      %716 = vmatmul.mubr.bf16.gmra.mrb[0].mxu0 %v480
      %v717 = vpop.f32.mrb[0].mxu0
      %v718 = vadd.f32 0.0, %v717
      %v719 = vpop.f32.mrb[0].mxu0
      %v720 = vpop.f32.mrb[0].mxu0
      %v721 = vadd.f32 0.0, %v720
      %v722 = vpop.f32.mrb[0].mxu0
      %723 = vmatprep.mubr.bf16.mxu0 0
      %724 = vmatmul.mubr.bf16.gmra.mrb[0].mxu0 %v488
      %v725 = vpop.f32.mrb[0].mxu0
      %v726 = vadd.f32 0.0, %v725
      %v727 = vpop.f32.mrb[0].mxu0
      %v728 = vpop.f32.mrb[0].mxu0
      %v729 = vadd.f32 0.0, %v728
      %v730 = vpop.f32.mrb[0].mxu0
      %731 = vmatprep.mubr.bf16.mxu0 0
      %732 = vmatmul.mubr.bf16.gmra.mrb[0].mxu0 %v496
      %v733 = vpop.f32.mrb[0].mxu0
      %v734 = vadd.f32 0.0, %v733
      %v735 = vpop.f32.mrb[0].mxu0
      %v736 = vpop.f32.mrb[0].mxu0
      %v737 = vadd.f32 0.0, %v736
      %v738 = vpop.f32.mrb[0].mxu0
      %739 = vmatprep.mubr.bf16.mxu0 0
      %740 = vmatmul.mubr.bf16.gmra.mrb[0].mxu0 %v504
      %v741 = vpop.f32.mrb[0].mxu0
      %v742 = vadd.f32 0.0, %v741
      %v743 = vpop.f32.mrb[0].mxu0
      %v744 = vpop.f32.mrb[0].mxu0
      %v745 = vadd.f32 0.0, %v744
      %v746 = vpop.f32.mrb[0].mxu0
      %747 = vmatprep.mubr.bf16.mxu0 0
      %748 = vmatmul.mubr.bf16.gmra.mrb[0].mxu0 %v512
      %v749 = vpop.f32.mrb[0].mxu0
      %v750 = vadd.f32 0.0, %v749
      %v751 = vpop.f32.mrb[0].mxu0
      %v752 = vpop.f32.mrb[0].mxu0
      %v753 = vadd.f32 0.0, %v752
      %v754 = vpop.f32.mrb[0].mxu0
      %755 = vmatprep.mubr.bf16.mxu0 0
      %756 = vmatmul.mubr.bf16.gmra.mrb[0].mxu0 %v520
      %v757 = vpop.f32.mrb[0].mxu0
      %v758 = vadd.f32 0.0, %v757
      %v759 = vpop.f32.mrb[0].mxu0
      %v760 = vpop.f32.mrb[0].mxu0
      %v761 = vadd.f32 0.0, %v760
      %v762 = vpop.f32.mrb[0].mxu0
      %763 = vmatprep.mubr.bf16.mxu0 0
      %764 = vmatmul.mubr.bf16.gmra.mrb[0].mxu0 %v528
      %v765 = vpop.f32.mrb[0].mxu0
      %v766 = vadd.f32 0.0, %v765
      %v767 = vpop.f32.mrb[0].mxu0
      %v768 = vpop.f32.mrb[0].mxu0
      %v769 = vadd.f32 0.0, %v768
      %v770 = vpop.f32.mrb[0].mxu0
      %771 = vmatprep.mubr.bf16.mxu0 0
      %772 = vmatmul.mubr.bf16.gmra.mrb[0].mxu0 %v536
      %v773 = vpop.f32.mrb[0].mxu0
      %v774 = vadd.f32 0.0, %v773
      %v775 = vpop.f32.mrb[0].mxu0
      %v776 = vpop.f32.mrb[0].mxu0
      %v777 = vadd.f32 0.0, %v776
      %v778 = vpop.f32.mrb[0].mxu0
      %779 = vmatprep.mubr.bf16.mxu0 0
      %780 = vmatmul.mubr.bf16.gmra.mrb[0].mxu0 %v544
      %v781 = vpop.f32.mrb[0].mxu0
      %v782 = vadd.f32 0.0, %v781
      %v783 = vpop.f32.mrb[0].mxu0
      %v784 = vpop.f32.mrb[0].mxu0
      %v785 = vadd.f32 0.0, %v784
      %v786 = vpop.f32.mrb[0].mxu0
      %787 = vmatprep.mubr.bf16.mxu0 0
      %788 = vmatmul.mubr.bf16.gmra.mrb[0].mxu0 %v552
      %v789 = vpop.f32.mrb[0].mxu0
      %v790 = vadd.f32 0.0, %v789
      %v791 = vpop.f32.mrb[0].mxu0
      %v792 = vpop.f32.mrb[0].mxu0
      %v793 = vadd.f32 0.0, %v792
      %v794 = vpop.f32.mrb[0].mxu0
      %795 = vmatprep.mubr.bf16.mxu0 0
      %796 = vmatmul.mubr.bf16.gmra.mrb[0].mxu0 %v560
      %v797 = vpop.f32.mrb[0].mxu0
      %v798 = vadd.f32 0.0, %v797
      %v799 = vpop.f32.mrb[0].mxu0
      %v800 = vpop.f32.mrb[0].mxu0
      %v801 = vadd.f32 0.0, %v800
      %v802 = vpop.f32.mrb[0].mxu0
      %803 = vmatprep.mubr.bf16.mxu0 0
      %804 = vmatmul.mubr.bf16.gmra.mrb[0].mxu0 %v568
      %v805 = vpop.f32.mrb[0].mxu0
      %v806 = vadd.f32 0.0, %v805
      %v807 = vpop.f32.mrb[0].mxu0
      %v808 = vpop.f32.mrb[0].mxu0
      %v809 = vadd.f32 0.0, %v808
      %v810 = vpop.f32.mrb[0].mxu0
      %811 = vmatprep.mubr.bf16.mxu0 0
      %812 = vmatmul.mubr.bf16.gmra.mrb[0].mxu0 %v576
      %v813 = vpop.f32.mrb[0].mxu0
      %v814 = vadd.f32 0.0, %v813
      %v815 = vpop.f32.mrb[0].mxu0
      %v816 = vpop.f32.mrb[0].mxu0
      %v817 = vadd.f32 0.0, %v816
      %v818 = vpop.f32.mrb[0].mxu0
      %819 = vmatprep.mubr.bf16.mxu0 0
      %820 = vmatmul.mubr.bf16.gmra.mrb[0].mxu0 %v584
      %v821 = vpop.f32.mrb[0].mxu0
      %v822 = vadd.f32 0.0, %v821
      %v823 = vpop.f32.mrb[0].mxu0
      %v824 = vpop.f32.mrb[0].mxu0
      %v825 = vadd.f32 0.0, %v824
      %v826 = vpop.f32.mrb[0].mxu0
      %827 = vmatprep.mubr.bf16.mxu0 0
      %828 = vmatmul.mubr.bf16.gmra.mrb[0].mxu0 %v592
      %v829 = vpop.f32.mrb[0].mxu0
      %v830 = vadd.f32 0.0, %v829
      %v831 = vpop.f32.mrb[0].mxu0
      %v832 = vpop.f32.mrb[0].mxu0
      %v833 = vadd.f32 0.0, %v832
      %v834 = vpop.f32.mrb[0].mxu0
      %835 = vmatprep.mubr.bf16.mxu0 0
      %836 = vmatmul.mubr.bf16.gmra.mrb[0].mxu0 %v600
      %v837 = vpop.f32.mrb[0].mxu0
      %v838 = vadd.f32 0.0, %v837
      %v839 = vpop.f32.mrb[0].mxu0
      %v840 = vpop.f32.mrb[0].mxu0
      %v841 = vadd.f32 0.0, %v840
      %v842 = vpop.f32.mrb[0].mxu0
      %843 = vmatprep.mubr.bf16.mxu0 0
      %844 = vmatmul.mubr.bf16.gmra.mrb[0].mxu0 %v608
      %v845 = vpop.f32.mrb[0].mxu0
      %v846 = vadd.f32 0.0, %v845
      %v847 = vpop.f32.mrb[0].mxu0
      %v848 = vpop.f32.mrb[0].mxu0
      %v849 = vadd.f32 0.0, %v848
      %v850 = vpop.f32.mrb[0].mxu0
      %851 = vdwg.mxu0
      %v886 = vunpack.c.l.b16 %v333
      %v887 = vunpack.c.l.b16 %v334
      %v888 = vunpack.c.l.b16 %v335
      %v889 = vunpack.c.l.b16 %v336
      %v890 = vunpack.c.l.b16 %v337
      %v891 = vunpack.c.l.b16 %v338
      %v892 = vunpack.c.l.b16 %v339
      %v893 = vunpack.c.l.b16 %v340
      %v894 = vunpack.c.l.b16 %v341
      %v895 = vunpack.c.l.b16 %v342
      %v896 = vunpack.c.l.b16 %v343
      %v897 = vunpack.c.l.b16 %v344
      %v898 = vunpack.c.l.b16 %v345
      %v899 = vunpack.c.l.b16 %v346
      %v900 = vunpack.c.l.b16 %v347
      %v901 = vunpack.c.l.b16 %v348
      %v902 = vpack.c.b16 %v887, %v886
      %v903 = vpack.c.b16 %v889, %v888
      %v904 = vpack.c.b16 %v891, %v890
      %v905 = vpack.c.b16 %v893, %v892
      %v906 = vpack.c.b16 %v895, %v894
      %v907 = vpack.c.b16 %v897, %v896
      %v908 = vpack.c.b16 %v899, %v898
      %v909 = vpack.c.b16 %v901, %v900
      %918 = vmatprep.subr.bf16.mxu0 0
      %919 = vmatpush1.bf16.msra.mxu0 %v902
      %920 = vmatprep.subr.bf16.mxu0 0
      %921 = vmatpush1.bf16.msra.mxu0 %v903
      %922 = vmatprep.subr.bf16.mxu0 0
      %923 = vmatpush1.bf16.msra.mxu0 %v904
      %924 = vmatprep.subr.bf16.mxu0 0
      %925 = vmatpush1.bf16.msra.mxu0 %v905
      %926 = vmatprep.subr.bf16.mxu0 0
      %927 = vmatpush1.bf16.msra.mxu0 %v906
      %928 = vmatprep.subr.bf16.mxu0 0
      %929 = vmatpush1.bf16.msra.mxu0 %v907
      %930 = vmatprep.subr.bf16.mxu0 0
      %931 = vmatpush1.bf16.msra.mxu0 %v908
      %932 = vmatprep.subr.bf16.mxu0 0
      %933 = vmatpush1.bf16.msra.mxu0 %v909
      %934 = vmatprep.subr.bf16.mxu0 0
      %935 = vmatpush1.bf16.msra.mxu0 0
      %936 = vmatprep.subr.bf16.mxu0 0
      %937 = vmatpush1.bf16.msra.mxu0 0
      %938 = vmatprep.subr.bf16.mxu0 0
      %939 = vmatpush1.bf16.msra.mxu0 0
      %940 = vmatprep.subr.bf16.mxu0 0
      %941 = vmatpush1.bf16.msra.mxu0 0
      %942 = vmatprep.subr.bf16.mxu0 0
      %943 = vmatpush1.bf16.msra.mxu0 0
      %944 = vmatprep.subr.bf16.mxu0 0
      %945 = vmatpush1.bf16.msra.mxu0 0
      %946 = vmatprep.subr.bf16.mxu0 0
      %947 = vmatpush1.bf16.msra.mxu0 0
      %948 = vmatprep.subr.bf16.mxu0 0
      %949 = vmatpush1.bf16.msra.mxu0 0
      %950 = vmatprep.mubr.bf16.mxu0 0
      %951 = vmatmul.mubr.bf16.gmra.mrb[0].mxu0 %v441
      %v952 = vpop.f32.mrb[0].mxu0
      %v953 = vadd.f32 %v710, %v952
      %v954 = vpop.f32.mrb[0].mxu0
      %v955 = vpop.f32.mrb[0].mxu0
      %v956 = vadd.f32 %v713, %v955
      %v957 = vpop.f32.mrb[0].mxu0
      %958 = vmatprep.mubr.bf16.mxu0 0
      %959 = vmatmul.mubr.bf16.gmra.mrb[0].mxu0 %v442
      %v960 = vpop.f32.mrb[0].mxu0
      %v961 = vadd.f32 %v718, %v960
      %v962 = vpop.f32.mrb[0].mxu0
      %v963 = vpop.f32.mrb[0].mxu0
      %v964 = vadd.f32 %v721, %v963
      %v965 = vpop.f32.mrb[0].mxu0
      %966 = vmatprep.mubr.bf16.mxu0 0
      %967 = vmatmul.mubr.bf16.gmra.mrb[0].mxu0 %v443
      %v968 = vpop.f32.mrb[0].mxu0
      %v969 = vadd.f32 %v726, %v968
      %v970 = vpop.f32.mrb[0].mxu0
      %v971 = vpop.f32.mrb[0].mxu0
      %v972 = vadd.f32 %v729, %v971
      %v973 = vpop.f32.mrb[0].mxu0
      %974 = vmatprep.mubr.bf16.mxu0 0
      %975 = vmatmul.mubr.bf16.gmra.mrb[0].mxu0 %v444
      %v976 = vpop.f32.mrb[0].mxu0
      %v977 = vadd.f32 %v734, %v976
      %v978 = vpop.f32.mrb[0].mxu0
      %v979 = vpop.f32.mrb[0].mxu0
      %v980 = vadd.f32 %v737, %v979
      %v981 = vpop.f32.mrb[0].mxu0
      %982 = vmatprep.mubr.bf16.mxu0 0
      %983 = vmatmul.mubr.bf16.gmra.mrb[0].mxu0 %v445
      %v984 = vpop.f32.mrb[0].mxu0
      %v985 = vadd.f32 %v742, %v984
      %v986 = vpop.f32.mrb[0].mxu0
      %v987 = vpop.f32.mrb[0].mxu0
      %v988 = vadd.f32 %v745, %v987
      %v989 = vpop.f32.mrb[0].mxu0
      %990 = vmatprep.mubr.bf16.mxu0 0
      %991 = vmatmul.mubr.bf16.gmra.mrb[0].mxu0 %v446
      %v992 = vpop.f32.mrb[0].mxu0
      %v993 = vadd.f32 %v750, %v992
      %v994 = vpop.f32.mrb[0].mxu0
      %v995 = vpop.f32.mrb[0].mxu0
      %v996 = vadd.f32 %v753, %v995
      %v997 = vpop.f32.mrb[0].mxu0
      %998 = vmatprep.mubr.bf16.mxu0 0
      %999 = vmatmul.mubr.bf16.gmra.mrb[0].mxu0 %v447
      %v1000 = vpop.f32.mrb[0].mxu0
      %v1001 = vadd.f32 %v758, %v1000
      %v1002 = vpop.f32.mrb[0].mxu0
      %v1003 = vpop.f32.mrb[0].mxu0
      %v1004 = vadd.f32 %v761, %v1003
      %v1005 = vpop.f32.mrb[0].mxu0
      %1006 = vmatprep.mubr.bf16.mxu0 0
      %1007 = vmatmul.mubr.bf16.gmra.mrb[0].mxu0 %v448
      %v1008 = vpop.f32.mrb[0].mxu0
      %v1009 = vadd.f32 %v766, %v1008
      %v1010 = vpop.f32.mrb[0].mxu0
      %v1011 = vpop.f32.mrb[0].mxu0
      %v1012 = vadd.f32 %v769, %v1011
      %v1013 = vpop.f32.mrb[0].mxu0
      %1014 = vmatprep.mubr.bf16.mxu0 0
      %1015 = vmatmul.mubr.bf16.gmra.mrb[0].mxu0 %v449
      %v1016 = vpop.f32.mrb[0].mxu0
      %v1017 = vadd.f32 %v774, %v1016
      %v1018 = vpop.f32.mrb[0].mxu0
      %v1019 = vpop.f32.mrb[0].mxu0
      %v1020 = vadd.f32 %v777, %v1019
      %v1021 = vpop.f32.mrb[0].mxu0
      %1022 = vmatprep.mubr.bf16.mxu0 0
      %1023 = vmatmul.mubr.bf16.gmra.mrb[0].mxu0 %v450
      %v1024 = vpop.f32.mrb[0].mxu0
      %v1025 = vadd.f32 %v782, %v1024
      %v1026 = vpop.f32.mrb[0].mxu0
      %v1027 = vpop.f32.mrb[0].mxu0
      %v1028 = vadd.f32 %v785, %v1027
      %v1029 = vpop.f32.mrb[0].mxu0
      %1030 = vmatprep.mubr.bf16.mxu0 0
      %1031 = vmatmul.mubr.bf16.gmra.mrb[0].mxu0 %v451
      %v1032 = vpop.f32.mrb[0].mxu0
      %v1033 = vadd.f32 %v790, %v1032
      %v1034 = vpop.f32.mrb[0].mxu0
      %v1035 = vpop.f32.mrb[0].mxu0
      %v1036 = vadd.f32 %v793, %v1035
      %v1037 = vpop.f32.mrb[0].mxu0
      %1038 = vmatprep.mubr.bf16.mxu0 0
      %1039 = vmatmul.mubr.bf16.gmra.mrb[0].mxu0 %v452
      %v1040 = vpop.f32.mrb[0].mxu0
      %v1041 = vadd.f32 %v798, %v1040
      %v1042 = vpop.f32.mrb[0].mxu0
      %v1043 = vpop.f32.mrb[0].mxu0
      %v1044 = vadd.f32 %v801, %v1043
      %v1045 = vpop.f32.mrb[0].mxu0
      %1046 = vmatprep.mubr.bf16.mxu0 0
      %1047 = vmatmul.mubr.bf16.gmra.mrb[0].mxu0 %v453
      %v1048 = vpop.f32.mrb[0].mxu0
      %v1049 = vadd.f32 %v806, %v1048
      %v1050 = vpop.f32.mrb[0].mxu0
      %v1051 = vpop.f32.mrb[0].mxu0
      %v1052 = vadd.f32 %v809, %v1051
      %v1053 = vpop.f32.mrb[0].mxu0
      %1054 = vmatprep.mubr.bf16.mxu0 0
      %1055 = vmatmul.mubr.bf16.gmra.mrb[0].mxu0 %v454
      %v1056 = vpop.f32.mrb[0].mxu0
      %v1057 = vadd.f32 %v814, %v1056
      %v1058 = vpop.f32.mrb[0].mxu0
      %v1059 = vpop.f32.mrb[0].mxu0
      %v1060 = vadd.f32 %v817, %v1059
      %v1061 = vpop.f32.mrb[0].mxu0
      %1062 = vmatprep.mubr.bf16.mxu0 0
      %1063 = vmatmul.mubr.bf16.gmra.mrb[0].mxu0 %v455
      %v1064 = vpop.f32.mrb[0].mxu0
      %v1065 = vadd.f32 %v822, %v1064
      %v1066 = vpop.f32.mrb[0].mxu0
      %v1067 = vpop.f32.mrb[0].mxu0
      %v1068 = vadd.f32 %v825, %v1067
      %v1069 = vpop.f32.mrb[0].mxu0
      %1070 = vmatprep.mubr.bf16.mxu0 0
      %1071 = vmatmul.mubr.bf16.gmra.mrb[0].mxu0 %v456
      %v1072 = vpop.f32.mrb[0].mxu0
      %v1073 = vadd.f32 %v830, %v1072
      %v1074 = vpop.f32.mrb[0].mxu0
      %v1075 = vpop.f32.mrb[0].mxu0
      %v1076 = vadd.f32 %v833, %v1075
      %v1077 = vpop.f32.mrb[0].mxu0
      %1078 = vmatprep.mubr.bf16.mxu0 0
      %1079 = vmatmul.mubr.bf16.gmra.mrb[0].mxu0 %v457
      %v1080 = vpop.f32.mrb[0].mxu0
      %v1081 = vadd.f32 %v838, %v1080
      %v1082 = vpop.f32.mrb[0].mxu0
      %v1083 = vpop.f32.mrb[0].mxu0
      %v1084 = vadd.f32 %v841, %v1083
      %v1085 = vpop.f32.mrb[0].mxu0
      %1086 = vmatprep.mubr.bf16.mxu0 0
      %1087 = vmatmul.mubr.bf16.gmra.mrb[0].mxu0 %v458
      %v1088 = vpop.f32.mrb[0].mxu0
      %v1089 = vadd.f32 %v846, %v1088
      %v1090 = vpop.f32.mrb[0].mxu0
      %v1091 = vpop.f32.mrb[0].mxu0
      %v1092 = vadd.f32 %v849, %v1091
      %v1093 = vpop.f32.mrb[0].mxu0
      %1094 = vdwg.mxu0
      %v1095 = vld [vmem:[%s284] sm:$0xe]
      %s1096 = scalar_lea.vmem %s1, 128
      %v1097 = vld [vmem:[%s1096] sm:$0xf]
      %v1098 = vld [vmem:[%s1096 + $0x4] sm:$0xf]
      %v1099 = vld [vmem:[%s1096 + $0x8] sm:$0xf]
      %v1100 = vld [vmem:[%s1096 + $0xc] sm:$0xf]
      %v1101 = vld [vmem:[%s1096 + $0x10] sm:$0xf]
      %v1102 = vld [vmem:[%s1096 + $0x14] sm:$0xf]
      %v1103 = vld [vmem:[%s1096 + $0x18] sm:$0xf]
      %v1104 = vld [vmem:[%s1096 + $0x1c] sm:$0xf]
      %v1105 = vld [vmem:[%s1096 + $0x20] sm:$0xf]
      %v1106 = vld [vmem:[%s1096 + $0x24] sm:$0xf]
      %v1107 = vld [vmem:[%s1096 + $0x28] sm:$0xf]
      %v1108 = vld [vmem:[%s1096 + $0x2c] sm:$0xf]
      %v1109 = vld [vmem:[%s1096 + $0x30] sm:$0xf]
      %v1110 = vld [vmem:[%s1096 + $0x34] sm:$0xf]
      %v1111 = vld [vmem:[%s1096 + $0x38] sm:$0xf]
      %v1112 = vld [vmem:[%s1096 + $0x3c] sm:$0xf]
      %v1114 = vunpack.c.l.b16 %v1095
      %v1115 = vpack.c.b16 %v405, %v1114
      %vm1116 = vcmask 1046528
      %v1117 = vrot.slane %v1115, 1
      %v1118 = vrot.slane %v442, 1
      %v1119 = vsel %vm1116, %v1117, %v1118
      %v1120 = vrot.slane %v443, 1
      %v1121 = vsel %vm1116, %v1118, %v1120
      %v1122 = vrot.slane %v444, 1
      %v1123 = vsel %vm1116, %v1120, %v1122
      %v1124 = vrot.slane %v445, 1
      %v1125 = vsel %vm1116, %v1122, %v1124
      %v1126 = vrot.slane %v446, 1
      %v1127 = vsel %vm1116, %v1124, %v1126
      %v1128 = vrot.slane %v447, 1
      %v1129 = vsel %vm1116, %v1126, %v1128
      %v1130 = vrot.slane %v448, 1
      %v1131 = vsel %vm1116, %v1128, %v1130
      %v1132 = vrot.slane %v449, 1
      %v1133 = vsel %vm1116, %v1130, %v1132
      %v1134 = vrot.slane %v450, 1
      %v1135 = vsel %vm1116, %v1132, %v1134
      %v1136 = vrot.slane %v451, 1
      %v1137 = vsel %vm1116, %v1134, %v1136
      %v1138 = vrot.slane %v452, 1
      %v1139 = vsel %vm1116, %v1136, %v1138
      %v1140 = vrot.slane %v453, 1
      %v1141 = vsel %vm1116, %v1138, %v1140
      %v1142 = vrot.slane %v454, 1
      %v1143 = vsel %vm1116, %v1140, %v1142
      %v1144 = vrot.slane %v455, 1
      %v1145 = vsel %vm1116, %v1142, %v1144
      %v1146 = vrot.slane %v456, 1
      %v1147 = vsel %vm1116, %v1144, %v1146
      %v1148 = vrot.slane %v457, 1
      %v1149 = vsel %vm1116, %v1146, %v1148
      %v1150 = vrot.slane %v458, 1
      %v1151 = vsel %vm1116, %v1148, %v1150
      %v1152 = vrot.slane %v459, 1
      %v1153 = vsel %vm1116, %v1150, %v1152
      %v1188 = vunpack.c.l.b16 %v1097
      %v1189 = vunpack.c.l.b16 %v1098
      %v1190 = vunpack.c.l.b16 %v1099
      %v1191 = vunpack.c.l.b16 %v1100
      %v1192 = vunpack.c.l.b16 %v1101
      %v1193 = vunpack.c.l.b16 %v1102
      %v1194 = vunpack.c.l.b16 %v1103
      %v1195 = vunpack.c.l.b16 %v1104
      %v1196 = vunpack.c.l.b16 %v1105
      %v1197 = vunpack.c.l.b16 %v1106
      %v1198 = vunpack.c.l.b16 %v1107
      %v1199 = vunpack.c.l.b16 %v1108
      %v1200 = vunpack.c.l.b16 %v1109
      %v1201 = vunpack.c.l.b16 %v1110
      %v1202 = vunpack.c.l.b16 %v1111
      %v1203 = vunpack.c.l.b16 %v1112
      %v1204 = vpack.c.b16 %v1189, %v1188
      %v1205 = vpack.c.b16 %v1191, %v1190
      %v1206 = vpack.c.b16 %v1193, %v1192
      %v1207 = vpack.c.b16 %v1195, %v1194
      %v1208 = vpack.c.b16 %v1197, %v1196
      %v1209 = vpack.c.b16 %v1199, %v1198
      %v1210 = vpack.c.b16 %v1201, %v1200
      %v1211 = vpack.c.b16 %v1203, %v1202
      %1220 = vmatprep.subr.bf16.mxu0 0
      %1221 = vmatpush1.bf16.msra.mxu0 %v1204
      %1222 = vmatprep.subr.bf16.mxu0 0
      %1223 = vmatpush1.bf16.msra.mxu0 %v1205
      %1224 = vmatprep.subr.bf16.mxu0 0
      %1225 = vmatpush1.bf16.msra.mxu0 %v1206
      %1226 = vmatprep.subr.bf16.mxu0 0
      %1227 = vmatpush1.bf16.msra.mxu0 %v1207
      %1228 = vmatprep.subr.bf16.mxu0 0
      %1229 = vmatpush1.bf16.msra.mxu0 %v1208
      %1230 = vmatprep.subr.bf16.mxu0 0
      %1231 = vmatpush1.bf16.msra.mxu0 %v1209
      %1232 = vmatprep.subr.bf16.mxu0 0
      %1233 = vmatpush1.bf16.msra.mxu0 %v1210
      %1234 = vmatprep.subr.bf16.mxu0 0
      %1235 = vmatpush1.bf16.msra.mxu0 %v1211
      %1236 = vmatprep.subr.bf16.mxu0 0
      %1237 = vmatpush1.bf16.msra.mxu0 0
      %1238 = vmatprep.subr.bf16.mxu0 0
      %1239 = vmatpush1.bf16.msra.mxu0 0
      %1240 = vmatprep.subr.bf16.mxu0 0
      %1241 = vmatpush1.bf16.msra.mxu0 0
      %1242 = vmatprep.subr.bf16.mxu0 0
      %1243 = vmatpush1.bf16.msra.mxu0 0
      %1244 = vmatprep.subr.bf16.mxu0 0
      %1245 = vmatpush1.bf16.msra.mxu0 0
      %1246 = vmatprep.subr.bf16.mxu0 0
      %1247 = vmatpush1.bf16.msra.mxu0 0
      %1248 = vmatprep.subr.bf16.mxu0 0
      %1249 = vmatpush1.bf16.msra.mxu0 0
      %1250 = vmatprep.subr.bf16.mxu0 0
      %1251 = vmatpush1.bf16.msra.mxu0 0
      %1252 = vmatprep.mubr.bf16.mxu0 0
      %1253 = vmatmul.mubr.bf16.gmra.mrb[0].mxu0 %v1119
      %v1254 = vpop.f32.mrb[0].mxu0
      %v1255 = vadd.f32 0.0, %v1254
      %v1256 = vpop.f32.mrb[0].mxu0
      %v1257 = vpop.f32.mrb[0].mxu0
      %v1258 = vadd.f32 0.0, %v1257
      %v1259 = vpop.f32.mrb[0].mxu0
      %1260 = vmatprep.mubr.bf16.mxu0 0
      %1261 = vmatmul.mubr.bf16.gmra.mrb[0].mxu0 %v1121
      %v1262 = vpop.f32.mrb[0].mxu0
      %v1263 = vadd.f32 0.0, %v1262
      %v1264 = vpop.f32.mrb[0].mxu0
      %v1265 = vpop.f32.mrb[0].mxu0
      %v1266 = vadd.f32 0.0, %v1265
      %v1267 = vpop.f32.mrb[0].mxu0
      %1268 = vmatprep.mubr.bf16.mxu0 0
      %1269 = vmatmul.mubr.bf16.gmra.mrb[0].mxu0 %v1123
      %v1270 = vpop.f32.mrb[0].mxu0
      %v1271 = vadd.f32 0.0, %v1270
      %v1272 = vpop.f32.mrb[0].mxu0
      %v1273 = vpop.f32.mrb[0].mxu0
      %v1274 = vadd.f32 0.0, %v1273
      %v1275 = vpop.f32.mrb[0].mxu0
      %1276 = vmatprep.mubr.bf16.mxu0 0
      %1277 = vmatmul.mubr.bf16.gmra.mrb[0].mxu0 %v1125
      %v1278 = vpop.f32.mrb[0].mxu0
      %v1279 = vadd.f32 0.0, %v1278
      %v1280 = vpop.f32.mrb[0].mxu0
      %v1281 = vpop.f32.mrb[0].mxu0
      %v1282 = vadd.f32 0.0, %v1281
      %v1283 = vpop.f32.mrb[0].mxu0
      %1284 = vmatprep.mubr.bf16.mxu0 0
      %1285 = vmatmul.mubr.bf16.gmra.mrb[0].mxu0 %v1127
      %v1286 = vpop.f32.mrb[0].mxu0
      %v1287 = vadd.f32 0.0, %v1286
      %v1288 = vpop.f32.mrb[0].mxu0
      %v1289 = vpop.f32.mrb[0].mxu0
      %v1290 = vadd.f32 0.0, %v1289
      %v1291 = vpop.f32.mrb[0].mxu0
      %1292 = vmatprep.mubr.bf16.mxu0 0
      %1293 = vmatmul.mubr.bf16.gmra.mrb[0].mxu0 %v1129
      %v1294 = vpop.f32.mrb[0].mxu0
      %v1295 = vadd.f32 0.0, %v1294
      %v1296 = vpop.f32.mrb[0].mxu0
      %v1297 = vpop.f32.mrb[0].mxu0
      %v1298 = vadd.f32 0.0, %v1297
      %v1299 = vpop.f32.mrb[0].mxu0
      %1300 = vmatprep.mubr.bf16.mxu0 0
      %1301 = vmatmul.mubr.bf16.gmra.mrb[0].mxu0 %v1131
      %v1302 = vpop.f32.mrb[0].mxu0
      %v1303 = vadd.f32 0.0, %v1302
      %v1304 = vpop.f32.mrb[0].mxu0
      %v1305 = vpop.f32.mrb[0].mxu0
      %v1306 = vadd.f32 0.0, %v1305
      %v1307 = vpop.f32.mrb[0].mxu0
      %1308 = vmatprep.mubr.bf16.mxu0 0
      %1309 = vmatmul.mubr.bf16.gmra.mrb[0].mxu0 %v1133
      %v1310 = vpop.f32.mrb[0].mxu0
      %v1311 = vadd.f32 0.0, %v1310
      %v1312 = vpop.f32.mrb[0].mxu0
      %v1313 = vpop.f32.mrb[0].mxu0
      %v1314 = vadd.f32 0.0, %v1313
      %v1315 = vpop.f32.mrb[0].mxu0
      %1316 = vmatprep.mubr.bf16.mxu0 0
      %1317 = vmatmul.mubr.bf16.gmra.mrb[0].mxu0 %v1135
      %v1318 = vpop.f32.mrb[0].mxu0
      %v1319 = vadd.f32 0.0, %v1318
      %v1320 = vpop.f32.mrb[0].mxu0
      %v1321 = vpop.f32.mrb[0].mxu0
      %v1322 = vadd.f32 0.0, %v1321
      %v1323 = vpop.f32.mrb[0].mxu0
      %1324 = vmatprep.mubr.bf16.mxu0 0
      %1325 = vmatmul.mubr.bf16.gmra.mrb[0].mxu0 %v1137
      %v1326 = vpop.f32.mrb[0].mxu0
      %v1327 = vadd.f32 0.0, %v1326
      %v1328 = vpop.f32.mrb[0].mxu0
      %v1329 = vpop.f32.mrb[0].mxu0
      %v1330 = vadd.f32 0.0, %v1329
      %v1331 = vpop.f32.mrb[0].mxu0
      %1332 = vmatprep.mubr.bf16.mxu0 0
      %1333 = vmatmul.mubr.bf16.gmra.mrb[0].mxu0 %v1139
      %v1334 = vpop.f32.mrb[0].mxu0
      %v1335 = vadd.f32 0.0, %v1334
      %v1336 = vpop.f32.mrb[0].mxu0
      %v1337 = vpop.f32.mrb[0].mxu0
      %v1338 = vadd.f32 0.0, %v1337
      %v1339 = vpop.f32.mrb[0].mxu0
      %1340 = vmatprep.mubr.bf16.mxu0 0
      %1341 = vmatmul.mubr.bf16.gmra.mrb[0].mxu0 %v1141
      %v1342 = vpop.f32.mrb[0].mxu0
      %v1343 = vadd.f32 0.0, %v1342
      %v1344 = vpop.f32.mrb[0].mxu0
      %v1345 = vpop.f32.mrb[0].mxu0
      %v1346 = vadd.f32 0.0, %v1345
      %v1347 = vpop.f32.mrb[0].mxu0
      %1348 = vmatprep.mubr.bf16.mxu0 0
      %1349 = vmatmul.mubr.bf16.gmra.mrb[0].mxu0 %v1143
      %v1350 = vpop.f32.mrb[0].mxu0
      %v1351 = vadd.f32 0.0, %v1350
      %v1352 = vpop.f32.mrb[0].mxu0
      %v1353 = vpop.f32.mrb[0].mxu0
      %v1354 = vadd.f32 0.0, %v1353
      %v1355 = vpop.f32.mrb[0].mxu0
      %1356 = vmatprep.mubr.bf16.mxu0 0
      %1357 = vmatmul.mubr.bf16.gmra.mrb[0].mxu0 %v1145
      %v1358 = vpop.f32.mrb[0].mxu0
      %v1359 = vadd.f32 0.0, %v1358
      %v1360 = vpop.f32.mrb[0].mxu0
      %v1361 = vpop.f32.mrb[0].mxu0
      %v1362 = vadd.f32 0.0, %v1361
      %v1363 = vpop.f32.mrb[0].mxu0
      %1364 = vmatprep.mubr.bf16.mxu0 0
      %1365 = vmatmul.mubr.bf16.gmra.mrb[0].mxu0 %v1147
      %v1366 = vpop.f32.mrb[0].mxu0
      %v1367 = vadd.f32 0.0, %v1366
      %v1368 = vpop.f32.mrb[0].mxu0
      %v1369 = vpop.f32.mrb[0].mxu0
      %v1370 = vadd.f32 0.0, %v1369
      %v1371 = vpop.f32.mrb[0].mxu0
      %1372 = vmatprep.mubr.bf16.mxu0 0
      %1373 = vmatmul.mubr.bf16.gmra.mrb[0].mxu0 %v1149
      %v1374 = vpop.f32.mrb[0].mxu0
      %v1375 = vadd.f32 0.0, %v1374
      %v1376 = vpop.f32.mrb[0].mxu0
      %v1377 = vpop.f32.mrb[0].mxu0
      %v1378 = vadd.f32 0.0, %v1377
      %v1379 = vpop.f32.mrb[0].mxu0
      %1380 = vmatprep.mubr.bf16.mxu0 0
      %1381 = vmatmul.mubr.bf16.gmra.mrb[0].mxu0 %v1151
      %v1382 = vpop.f32.mrb[0].mxu0
      %v1383 = vadd.f32 0.0, %v1382
      %v1384 = vpop.f32.mrb[0].mxu0
      %v1385 = vpop.f32.mrb[0].mxu0
      %v1386 = vadd.f32 0.0, %v1385
      %v1387 = vpop.f32.mrb[0].mxu0
      %1388 = vmatprep.mubr.bf16.mxu0 0
      %1389 = vmatmul.mubr.bf16.gmra.mrb[0].mxu0 %v1153
      %v1390 = vpop.f32.mrb[0].mxu0
      %v1391 = vadd.f32 0.0, %v1390
      %v1392 = vpop.f32.mrb[0].mxu0
      %v1393 = vpop.f32.mrb[0].mxu0
      %v1394 = vadd.f32 0.0, %v1393
      %v1395 = vpop.f32.mrb[0].mxu0
      %1396 = vdwg.mxu0
      %v1397 = vadd.f32 %v953, %v1255
      %v1398 = vadd.f32 %v956, %v1258
      %v1399 = vadd.f32 %v961, %v1263
      %v1400 = vadd.f32 %v964, %v1266
      %v1401 = vadd.f32 %v969, %v1271
      %v1402 = vadd.f32 %v972, %v1274
      %v1403 = vadd.f32 %v977, %v1279
      %v1404 = vadd.f32 %v980, %v1282
      %v1405 = vadd.f32 %v985, %v1287
      %v1406 = vadd.f32 %v988, %v1290
      %v1407 = vadd.f32 %v993, %v1295
      %v1408 = vadd.f32 %v996, %v1298
      %v1409 = vadd.f32 %v1001, %v1303
      %v1410 = vadd.f32 %v1004, %v1306
      %v1411 = vadd.f32 %v1009, %v1311
      %v1412 = vadd.f32 %v1012, %v1314
      %v1413 = vadd.f32 %v1017, %v1319
      %v1414 = vadd.f32 %v1020, %v1322
      %v1415 = vadd.f32 %v1025, %v1327
      %v1416 = vadd.f32 %v1028, %v1330
      %v1417 = vadd.f32 %v1033, %v1335
      %v1418 = vadd.f32 %v1036, %v1338
      %v1419 = vadd.f32 %v1041, %v1343
      %v1420 = vadd.f32 %v1044, %v1346
      %v1421 = vadd.f32 %v1049, %v1351
      %v1422 = vadd.f32 %v1052, %v1354
      %v1423 = vadd.f32 %v1057, %v1359
      %v1424 = vadd.f32 %v1060, %v1362
      %v1425 = vadd.f32 %v1065, %v1367
      %v1426 = vadd.f32 %v1068, %v1370
      %v1427 = vadd.f32 %v1073, %v1375
      %v1428 = vadd.f32 %v1076, %v1378
      %v1429 = vadd.f32 %v1081, %v1383
      %v1430 = vadd.f32 %v1084, %v1386
      %v1431 = vadd.f32 %v1089, %v1391
      %v1432 = vadd.f32 %v1092, %v1394
      %v1433 = vld [vmem:[%s284 + $0x8] sm:$0xe]
      %v1434 = vld [vmem:[%s284 + $0xc] sm:$0xf]
      %v1435 = vld [vmem:[%s284 + $0x10] sm:$0xf]
      %v1436 = vld [vmem:[%s284 + $0x14] sm:$0xf]
      %v1437 = vld [vmem:[%s284 + $0x18] sm:$0xf]
      %v1438 = vld [vmem:[%s284 + $0x1c] sm:$0xf]
      %v1439 = vld [vmem:[%s284 + $0x20] sm:$0xf]
      %v1440 = vld [vmem:[%s284 + $0x24] sm:$0xf]
      %v1441 = vld [vmem:[%s284 + $0x28] sm:$0xf]
      %v1442 = vld [vmem:[%s284 + $0x2c] sm:$0xf]
      %v1443 = vld [vmem:[%s284 + $0x30] sm:$0xf]
      %v1444 = vld [vmem:[%s284 + $0x34] sm:$0xf]
      %v1445 = vld [vmem:[%s284 + $0x38] sm:$0xf]
      %v1446 = vld [vmem:[%s284 + $0x3c] sm:$0xf]
      %v1447 = vld [vmem:[%s284 + $0x40] sm:$0xf]
      %v1448 = vld [vmem:[%s284 + $0x44] sm:$0xf]
      %v1449 = vld [vmem:[%s284 + $0x48] sm:$0xf]
      %v1450 = vld [vmem:[%s284 + $0x4c] sm:$0xf]
      %v1451 = vld [vmem:[%s284 + $0x50] sm:$0xf]
      %v1452 = vld [vmem:[%s284 + $0x54] sm:$0xf]
      %v1453 = vld [vmem:[%s284 + $0x58] sm:$0xf]
      %v1454 = vld [vmem:[%s284 + $0x5c] sm:$0xf]
      %v1455 = vld [vmem:[%s284 + $0x60] sm:$0xf]
      %v1456 = vld [vmem:[%s284 + $0x64] sm:$0xf]
      %v1457 = vld [vmem:[%s284 + $0x68] sm:$0xf]
      %v1458 = vld [vmem:[%s284 + $0x6c] sm:$0xf]
      %v1459 = vld [vmem:[%s284 + $0x70] sm:$0xf]
      %v1460 = vld [vmem:[%s284 + $0x74] sm:$0xf]
      %v1461 = vld [vmem:[%s284 + $0x78] sm:$0xf]
      %v1462 = vld [vmem:[%s284 + $0x7c] sm:$0xf]
      %v1463 = vld [vmem:[%s284 + $0x80] sm:$0xf]
      %v1464 = vld [vmem:[%s284 + $0x84] sm:$0xf]
      %v1465 = vld [vmem:[%s284 + $0x88] sm:$0xf]
      %v1466 = vld [vmem:[%s284 + $0x8c] sm:$0xf]
      %v1467 = vld [vmem:[%s284 + $0x90] sm:$0xf]
      %v1468 = vld [vmem:[%s284 + $0x94] sm:$0xf]
      %v1469 = vld [vmem:[%s284 + $0x98] sm:$0x1]
      %s1470 = scalar_lea.vmem %s1, 192
      %v1471 = vld [vmem:[%s1470] sm:$0xf]
      %v1472 = vld [vmem:[%s1470 + $0x4] sm:$0xf]
      %v1473 = vld [vmem:[%s1470 + $0x8] sm:$0xf]
      %v1474 = vld [vmem:[%s1470 + $0xc] sm:$0xf]
      %v1475 = vld [vmem:[%s1470 + $0x10] sm:$0xf]
      %v1476 = vld [vmem:[%s1470 + $0x14] sm:$0xf]
      %v1477 = vld [vmem:[%s1470 + $0x18] sm:$0xf]
      %v1478 = vld [vmem:[%s1470 + $0x1c] sm:$0xf]
      %v1479 = vld [vmem:[%s1470 + $0x20] sm:$0xf]
      %v1480 = vld [vmem:[%s1470 + $0x24] sm:$0xf]
      %v1481 = vld [vmem:[%s1470 + $0x28] sm:$0xf]
      %v1482 = vld [vmem:[%s1470 + $0x2c] sm:$0xf]
      %v1483 = vld [vmem:[%s1470 + $0x30] sm:$0xf]
      %v1484 = vld [vmem:[%s1470 + $0x34] sm:$0xf]
      %v1485 = vld [vmem:[%s1470 + $0x38] sm:$0xf]
      %v1486 = vld [vmem:[%s1470 + $0x3c] sm:$0xf]
      %v1524 = vunpack.c.l.b16 %v1433
      %v1525 = vunpack.c.l.b16 %v1434
      %v1526 = vunpack.c.l.b16 %v1435
      %v1527 = vunpack.c.l.b16 %v1436
      %v1528 = vunpack.c.l.b16 %v1437
      %v1529 = vunpack.c.l.b16 %v1438
      %v1530 = vunpack.c.l.b16 %v1439
      %v1531 = vunpack.c.l.b16 %v1440
      %v1532 = vunpack.c.l.b16 %v1441
      %v1533 = vunpack.c.l.b16 %v1442
      %v1534 = vunpack.c.l.b16 %v1443
      %v1535 = vunpack.c.l.b16 %v1444
      %v1536 = vunpack.c.l.b16 %v1445
      %v1537 = vunpack.c.l.b16 %v1446
      %v1538 = vunpack.c.l.b16 %v1447
      %v1539 = vunpack.c.l.b16 %v1448
      %v1540 = vunpack.c.l.b16 %v1449
      %v1541 = vunpack.c.l.b16 %v1450
      %v1542 = vunpack.c.l.b16 %v1451
      %v1543 = vunpack.c.l.b16 %v1452
      %v1544 = vunpack.c.l.b16 %v1453
      %v1545 = vunpack.c.l.b16 %v1454
      %v1546 = vunpack.c.l.b16 %v1455
      %v1547 = vunpack.c.l.b16 %v1456
      %v1548 = vunpack.c.l.b16 %v1457
      %v1549 = vunpack.c.l.b16 %v1458
      %v1550 = vunpack.c.l.b16 %v1459
      %v1551 = vunpack.c.l.b16 %v1460
      %v1552 = vunpack.c.l.b16 %v1461
      %v1553 = vunpack.c.l.b16 %v1462
      %v1554 = vunpack.c.l.b16 %v1463
      %v1555 = vunpack.c.l.b16 %v1464
      %v1556 = vunpack.c.l.b16 %v1465
      %v1557 = vunpack.c.l.b16 %v1466
      %v1558 = vunpack.c.l.b16 %v1467
      %v1559 = vunpack.c.l.b16 %v1468
      %v1560 = vunpack.c.l.b16 %v1469
      %v1561 = vpack.c.b16 %v1525, %v1524
      %v1562 = vpack.c.b16 %v1527, %v1526
      %v1563 = vpack.c.b16 %v1529, %v1528
      %v1564 = vpack.c.b16 %v1531, %v1530
      %v1565 = vpack.c.b16 %v1533, %v1532
      %v1566 = vpack.c.b16 %v1535, %v1534
      %v1567 = vpack.c.b16 %v1537, %v1536
      %v1568 = vpack.c.b16 %v1539, %v1538
      %v1569 = vpack.c.b16 %v1541, %v1540
      %v1570 = vpack.c.b16 %v1543, %v1542
      %v1571 = vpack.c.b16 %v1545, %v1544
      %v1572 = vpack.c.b16 %v1547, %v1546
      %v1573 = vpack.c.b16 %v1549, %v1548
      %v1574 = vpack.c.b16 %v1551, %v1550
      %v1575 = vpack.c.b16 %v1553, %v1552
      %v1576 = vpack.c.b16 %v1555, %v1554
      %v1577 = vpack.c.b16 %v1557, %v1556
      %v1578 = vpack.c.b16 %v1559, %v1558
      %v1579 = vpack.c.b16 %v1560, %v1560
      %v1580 = vrot.slane %v1561, 1
      %v1581 = vrot.slane %v1562, 1
      %v1582 = vsel %vm1116, %v1580, %v1581
      %v1583 = vrot.slane %v1563, 1
      %v1584 = vsel %vm1116, %v1581, %v1583
      %v1585 = vrot.slane %v1564, 1
      %v1586 = vsel %vm1116, %v1583, %v1585
      %v1587 = vrot.slane %v1565, 1
      %v1588 = vsel %vm1116, %v1585, %v1587
      %v1589 = vrot.slane %v1566, 1
      %v1590 = vsel %vm1116, %v1587, %v1589
      %v1591 = vrot.slane %v1567, 1
      %v1592 = vsel %vm1116, %v1589, %v1591
      %v1593 = vrot.slane %v1568, 1
      %v1594 = vsel %vm1116, %v1591, %v1593
      %v1595 = vrot.slane %v1569, 1
      %v1596 = vsel %vm1116, %v1593, %v1595
      %v1597 = vrot.slane %v1570, 1
      %v1598 = vsel %vm1116, %v1595, %v1597
      %v1599 = vrot.slane %v1571, 1
      %v1600 = vsel %vm1116, %v1597, %v1599
      %v1601 = vrot.slane %v1572, 1
      %v1602 = vsel %vm1116, %v1599, %v1601
      %v1603 = vrot.slane %v1573, 1
      %v1604 = vsel %vm1116, %v1601, %v1603
      %v1605 = vrot.slane %v1574, 1
      %v1606 = vsel %vm1116, %v1603, %v1605
      %v1607 = vrot.slane %v1575, 1
      %v1608 = vsel %vm1116, %v1605, %v1607
      %v1609 = vrot.slane %v1576, 1
      %v1610 = vsel %vm1116, %v1607, %v1609
      %v1611 = vrot.slane %v1577, 1
      %v1612 = vsel %vm1116, %v1609, %v1611
      %v1613 = vrot.slane %v1578, 1
      %v1614 = vsel %vm1116, %v1611, %v1613
      %v1615 = vrot.slane %v1579, 1
      %v1616 = vsel %vm1116, %v1613, %v1615
      %v1651 = vunpack.c.l.b16 %v1471
      %v1652 = vunpack.c.l.b16 %v1472
      %v1653 = vunpack.c.l.b16 %v1473
      %v1654 = vunpack.c.l.b16 %v1474
      %v1655 = vunpack.c.l.b16 %v1475
      %v1656 = vunpack.c.l.b16 %v1476
      %v1657 = vunpack.c.l.b16 %v1477
      %v1658 = vunpack.c.l.b16 %v1478
      %v1659 = vunpack.c.l.b16 %v1479
      %v1660 = vunpack.c.l.b16 %v1480
      %v1661 = vunpack.c.l.b16 %v1481
      %v1662 = vunpack.c.l.b16 %v1482
      %v1663 = vunpack.c.l.b16 %v1483
      %v1664 = vunpack.c.l.b16 %v1484
      %v1665 = vunpack.c.l.b16 %v1485
      %v1666 = vunpack.c.l.b16 %v1486
      %v1667 = vpack.c.b16 %v1652, %v1651
      %v1668 = vpack.c.b16 %v1654, %v1653
      %v1669 = vpack.c.b16 %v1656, %v1655
      %v1670 = vpack.c.b16 %v1658, %v1657
      %v1671 = vpack.c.b16 %v1660, %v1659
      %v1672 = vpack.c.b16 %v1662, %v1661
      %v1673 = vpack.c.b16 %v1664, %v1663
      %v1674 = vpack.c.b16 %v1666, %v1665
      %1683 = vmatprep.subr.bf16.mxu0 0
      %1684 = vmatpush1.bf16.msra.mxu0 %v1667
      %1685 = vmatprep.subr.bf16.mxu0 0
      %1686 = vmatpush1.bf16.msra.mxu0 %v1668
      %1687 = vmatprep.subr.bf16.mxu0 0
      %1688 = vmatpush1.bf16.msra.mxu0 %v1669
      %1689 = vmatprep.subr.bf16.mxu0 0
      %1690 = vmatpush1.bf16.msra.mxu0 %v1670
      %1691 = vmatprep.subr.bf16.mxu0 0
      %1692 = vmatpush1.bf16.msra.mxu0 %v1671
      %1693 = vmatprep.subr.bf16.mxu0 0
      %1694 = vmatpush1.bf16.msra.mxu0 %v1672
      %1695 = vmatprep.subr.bf16.mxu0 0
      %1696 = vmatpush1.bf16.msra.mxu0 %v1673
      %1697 = vmatprep.subr.bf16.mxu0 0
      %1698 = vmatpush1.bf16.msra.mxu0 %v1674
      %1699 = vmatprep.subr.bf16.mxu0 0
      %1700 = vmatpush1.bf16.msra.mxu0 0
      %1701 = vmatprep.subr.bf16.mxu0 0
      %1702 = vmatpush1.bf16.msra.mxu0 0
      %1703 = vmatprep.subr.bf16.mxu0 0
      %1704 = vmatpush1.bf16.msra.mxu0 0
      %1705 = vmatprep.subr.bf16.mxu0 0
      %1706 = vmatpush1.bf16.msra.mxu0 0
      %1707 = vmatprep.subr.bf16.mxu0 0
      %1708 = vmatpush1.bf16.msra.mxu0 0
      %1709 = vmatprep.subr.bf16.mxu0 0
      %1710 = vmatpush1.bf16.msra.mxu0 0
      %1711 = vmatprep.subr.bf16.mxu0 0
      %1712 = vmatpush1.bf16.msra.mxu0 0
      %1713 = vmatprep.subr.bf16.mxu0 0
      %1714 = vmatpush1.bf16.msra.mxu0 0
      %1715 = vmatprep.mubr.bf16.mxu0 0
      %1716 = vmatmul.mubr.bf16.gmra.mrb[0].mxu0 %v1582
      %v1717 = vpop.f32.mrb[0].mxu0
      %v1718 = vadd.f32 0.0, %v1717
      %v1719 = vpop.f32.mrb[0].mxu0
      %v1720 = vpop.f32.mrb[0].mxu0
      %v1721 = vadd.f32 0.0, %v1720
      %v1722 = vpop.f32.mrb[0].mxu0
      %1723 = vmatprep.mubr.bf16.mxu0 0
      %1724 = vmatmul.mubr.bf16.gmra.mrb[0].mxu0 %v1584
      %v1725 = vpop.f32.mrb[0].mxu0
      %v1726 = vadd.f32 0.0, %v1725
      %v1727 = vpop.f32.mrb[0].mxu0
      %v1728 = vpop.f32.mrb[0].mxu0
      %v1729 = vadd.f32 0.0, %v1728
      %v1730 = vpop.f32.mrb[0].mxu0
      %1731 = vmatprep.mubr.bf16.mxu0 0
      %1732 = vmatmul.mubr.bf16.gmra.mrb[0].mxu0 %v1586
      %v1733 = vpop.f32.mrb[0].mxu0
      %v1734 = vadd.f32 0.0, %v1733
      %v1735 = vpop.f32.mrb[0].mxu0
      %v1736 = vpop.f32.mrb[0].mxu0
      %v1737 = vadd.f32 0.0, %v1736
      %v1738 = vpop.f32.mrb[0].mxu0
      %1739 = vmatprep.mubr.bf16.mxu0 0
      %1740 = vmatmul.mubr.bf16.gmra.mrb[0].mxu0 %v1588
      %v1741 = vpop.f32.mrb[0].mxu0
      %v1742 = vadd.f32 0.0, %v1741
      %v1743 = vpop.f32.mrb[0].mxu0
      %v1744 = vpop.f32.mrb[0].mxu0
      %v1745 = vadd.f32 0.0, %v1744
      %v1746 = vpop.f32.mrb[0].mxu0
      %1747 = vmatprep.mubr.bf16.mxu0 0
      %1748 = vmatmul.mubr.bf16.gmra.mrb[0].mxu0 %v1590
      %v1749 = vpop.f32.mrb[0].mxu0
      %v1750 = vadd.f32 0.0, %v1749
      %v1751 = vpop.f32.mrb[0].mxu0
      %v1752 = vpop.f32.mrb[0].mxu0
      %v1753 = vadd.f32 0.0, %v1752
      %v1754 = vpop.f32.mrb[0].mxu0
      %1755 = vmatprep.mubr.bf16.mxu0 0
      %1756 = vmatmul.mubr.bf16.gmra.mrb[0].mxu0 %v1592
      %v1757 = vpop.f32.mrb[0].mxu0
      %v1758 = vadd.f32 0.0, %v1757
      %v1759 = vpop.f32.mrb[0].mxu0
      %v1760 = vpop.f32.mrb[0].mxu0
      %v1761 = vadd.f32 0.0, %v1760
      %v1762 = vpop.f32.mrb[0].mxu0
      %1763 = vmatprep.mubr.bf16.mxu0 0
      %1764 = vmatmul.mubr.bf16.gmra.mrb[0].mxu0 %v1594
      %v1765 = vpop.f32.mrb[0].mxu0
      %v1766 = vadd.f32 0.0, %v1765
      %v1767 = vpop.f32.mrb[0].mxu0
      %v1768 = vpop.f32.mrb[0].mxu0
      %v1769 = vadd.f32 0.0, %v1768
      %v1770 = vpop.f32.mrb[0].mxu0
      %1771 = vmatprep.mubr.bf16.mxu0 0
      %1772 = vmatmul.mubr.bf16.gmra.mrb[0].mxu0 %v1596
      %v1773 = vpop.f32.mrb[0].mxu0
      %v1774 = vadd.f32 0.0, %v1773
      %v1775 = vpop.f32.mrb[0].mxu0
      %v1776 = vpop.f32.mrb[0].mxu0
      %v1777 = vadd.f32 0.0, %v1776
      %v1778 = vpop.f32.mrb[0].mxu0
      %1779 = vmatprep.mubr.bf16.mxu0 0
      %1780 = vmatmul.mubr.bf16.gmra.mrb[0].mxu0 %v1598
      %v1781 = vpop.f32.mrb[0].mxu0
      %v1782 = vadd.f32 0.0, %v1781
      %v1783 = vpop.f32.mrb[0].mxu0
      %v1784 = vpop.f32.mrb[0].mxu0
      %v1785 = vadd.f32 0.0, %v1784
      %v1786 = vpop.f32.mrb[0].mxu0
      %1787 = vmatprep.mubr.bf16.mxu0 0
      %1788 = vmatmul.mubr.bf16.gmra.mrb[0].mxu0 %v1600
      %v1789 = vpop.f32.mrb[0].mxu0
      %v1790 = vadd.f32 0.0, %v1789
      %v1791 = vpop.f32.mrb[0].mxu0
      %v1792 = vpop.f32.mrb[0].mxu0
      %v1793 = vadd.f32 0.0, %v1792
      %v1794 = vpop.f32.mrb[0].mxu0
      %1795 = vmatprep.mubr.bf16.mxu0 0
      %1796 = vmatmul.mubr.bf16.gmra.mrb[0].mxu0 %v1602
      %v1797 = vpop.f32.mrb[0].mxu0
      %v1798 = vadd.f32 0.0, %v1797
      %v1799 = vpop.f32.mrb[0].mxu0
      %v1800 = vpop.f32.mrb[0].mxu0
      %v1801 = vadd.f32 0.0, %v1800
      %v1802 = vpop.f32.mrb[0].mxu0
      %1803 = vmatprep.mubr.bf16.mxu0 0
      %1804 = vmatmul.mubr.bf16.gmra.mrb[0].mxu0 %v1604
      %v1805 = vpop.f32.mrb[0].mxu0
      %v1806 = vadd.f32 0.0, %v1805
      %v1807 = vpop.f32.mrb[0].mxu0
      %v1808 = vpop.f32.mrb[0].mxu0
      %v1809 = vadd.f32 0.0, %v1808
      %v1810 = vpop.f32.mrb[0].mxu0
      %1811 = vmatprep.mubr.bf16.mxu0 0
      %1812 = vmatmul.mubr.bf16.gmra.mrb[0].mxu0 %v1606
      %v1813 = vpop.f32.mrb[0].mxu0
      %v1814 = vadd.f32 0.0, %v1813
      %v1815 = vpop.f32.mrb[0].mxu0
      %v1816 = vpop.f32.mrb[0].mxu0
      %v1817 = vadd.f32 0.0, %v1816
      %v1818 = vpop.f32.mrb[0].mxu0
      %1819 = vmatprep.mubr.bf16.mxu0 0
      %1820 = vmatmul.mubr.bf16.gmra.mrb[0].mxu0 %v1608
      %v1821 = vpop.f32.mrb[0].mxu0
      %v1822 = vadd.f32 0.0, %v1821
      %v1823 = vpop.f32.mrb[0].mxu0
      %v1824 = vpop.f32.mrb[0].mxu0
      %v1825 = vadd.f32 0.0, %v1824
      %v1826 = vpop.f32.mrb[0].mxu0
      %1827 = vmatprep.mubr.bf16.mxu0 0
      %1828 = vmatmul.mubr.bf16.gmra.mrb[0].mxu0 %v1610
      %v1829 = vpop.f32.mrb[0].mxu0
      %v1830 = vadd.f32 0.0, %v1829
      %v1831 = vpop.f32.mrb[0].mxu0
      %v1832 = vpop.f32.mrb[0].mxu0
      %v1833 = vadd.f32 0.0, %v1832
      %v1834 = vpop.f32.mrb[0].mxu0
      %1835 = vmatprep.mubr.bf16.mxu0 0
      %1836 = vmatmul.mubr.bf16.gmra.mrb[0].mxu0 %v1612
      %v1837 = vpop.f32.mrb[0].mxu0
      %v1838 = vadd.f32 0.0, %v1837
      %v1839 = vpop.f32.mrb[0].mxu0
      %v1840 = vpop.f32.mrb[0].mxu0
      %v1841 = vadd.f32 0.0, %v1840
      %v1842 = vpop.f32.mrb[0].mxu0
      %1843 = vmatprep.mubr.bf16.mxu0 0
      %1844 = vmatmul.mubr.bf16.gmra.mrb[0].mxu0 %v1614
      %v1845 = vpop.f32.mrb[0].mxu0
      %v1846 = vadd.f32 0.0, %v1845
      %v1847 = vpop.f32.mrb[0].mxu0
      %v1848 = vpop.f32.mrb[0].mxu0
      %v1849 = vadd.f32 0.0, %v1848
      %v1850 = vpop.f32.mrb[0].mxu0
      %1851 = vmatprep.mubr.bf16.mxu0 0
      %1852 = vmatmul.mubr.bf16.gmra.mrb[0].mxu0 %v1616
      %v1853 = vpop.f32.mrb[0].mxu0
      %v1854 = vadd.f32 0.0, %v1853
      %v1855 = vpop.f32.mrb[0].mxu0
      %v1856 = vpop.f32.mrb[0].mxu0
      %v1857 = vadd.f32 0.0, %v1856
      %v1858 = vpop.f32.mrb[0].mxu0
      %1859 = vdwg.mxu0
      %v1860 = vadd.f32 %v1397, %v1718
      %v1861 = vadd.f32 %v1398, %v1721
      %v1862 = vadd.f32 %v1399, %v1726
      %v1863 = vadd.f32 %v1400, %v1729
      %v1864 = vadd.f32 %v1401, %v1734
      %v1865 = vadd.f32 %v1402, %v1737
      %v1866 = vadd.f32 %v1403, %v1742
      %v1867 = vadd.f32 %v1404, %v1745
      %v1868 = vadd.f32 %v1405, %v1750
      %v1869 = vadd.f32 %v1406, %v1753
      %v1870 = vadd.f32 %v1407, %v1758
      %v1871 = vadd.f32 %v1408, %v1761
      %v1872 = vadd.f32 %v1409, %v1766
      %v1873 = vadd.f32 %v1410, %v1769
      %v1874 = vadd.f32 %v1411, %v1774
      %v1875 = vadd.f32 %v1412, %v1777
      %v1876 = vadd.f32 %v1413, %v1782
      %v1877 = vadd.f32 %v1414, %v1785
      %v1878 = vadd.f32 %v1415, %v1790
      %v1879 = vadd.f32 %v1416, %v1793
      %v1880 = vadd.f32 %v1417, %v1798
      %v1881 = vadd.f32 %v1418, %v1801
      %v1882 = vadd.f32 %v1419, %v1806
      %v1883 = vadd.f32 %v1420, %v1809
      %v1884 = vadd.f32 %v1421, %v1814
      %v1885 = vadd.f32 %v1422, %v1817
      %v1886 = vadd.f32 %v1423, %v1822
      %v1887 = vadd.f32 %v1424, %v1825
      %v1888 = vadd.f32 %v1425, %v1830
      %v1889 = vadd.f32 %v1426, %v1833
      %v1890 = vadd.f32 %v1427, %v1838
      %v1891 = vadd.f32 %v1428, %v1841
      %v1892 = vadd.f32 %v1429, %v1846
      %v1893 = vadd.f32 %v1430, %v1849
      %v1894 = vadd.f32 %v1431, %v1854
      %v1895 = vadd.f32 %v1432, %v1857
      %v1896 = vld [vmem:[%s284 + $0x98] sm:$0x3]
      %s1897 = scalar_lea.vmem %s1, 256
      %v1898 = vld [vmem:[%s1897] sm:$0xf]
      %v1899 = vld [vmem:[%s1897 + $0x4] sm:$0xf]
      %v1900 = vld [vmem:[%s1897 + $0x8] sm:$0xf]
      %v1901 = vld [vmem:[%s1897 + $0xc] sm:$0xf]
      %v1902 = vld [vmem:[%s1897 + $0x10] sm:$0xf]
      %v1903 = vld [vmem:[%s1897 + $0x14] sm:$0xf]
      %v1904 = vld [vmem:[%s1897 + $0x18] sm:$0xf]
      %v1905 = vld [vmem:[%s1897 + $0x1c] sm:$0xf]
      %v1906 = vld [vmem:[%s1897 + $0x20] sm:$0xf]
      %v1907 = vld [vmem:[%s1897 + $0x24] sm:$0xf]
      %v1908 = vld [vmem:[%s1897 + $0x28] sm:$0xf]
      %v1909 = vld [vmem:[%s1897 + $0x2c] sm:$0xf]
      %v1910 = vld [vmem:[%s1897 + $0x30] sm:$0xf]
      %v1911 = vld [vmem:[%s1897 + $0x34] sm:$0xf]
      %v1912 = vld [vmem:[%s1897 + $0x38] sm:$0xf]
      %v1913 = vld [vmem:[%s1897 + $0x3c] sm:$0xf]
      %v1915 = vunpack.c.l.b16 %v1896
      %v1916 = vpack.c.b16 %v1915, %v1915
      %vm1917 = vsmask.f32 6400
      %v1919 = vshrl.u32 %v1561, 16
      %v1921 = vrot.slane %v1919, 1
      %v1922 = vshll.u32 %v1561, 16
      %v1924 = vrot.slane %v1922, 2
      %v1925 = vor.u32 %v1921, %v1924
      %v1927 = vshrl.u32 %v1562, 16
      %v1929 = vrot.slane %v1927, 1
      %v1930 = vshll.u32 %v1562, 16
      %v1932 = vrot.slane %v1930, 2
      %v1933 = vor.u32 %v1929, %v1932
      %v1934 = vsel %vm1917, %v1925, %v1933
      %v1936 = vshrl.u32 %v1563, 16
      %v1938 = vrot.slane %v1936, 1
      %v1939 = vshll.u32 %v1563, 16
      %v1941 = vrot.slane %v1939, 2
      %v1942 = vor.u32 %v1938, %v1941
      %v1943 = vsel %vm1917, %v1933, %v1942
      %v1945 = vshrl.u32 %v1564, 16
      %v1947 = vrot.slane %v1945, 1
      %v1948 = vshll.u32 %v1564, 16
      %v1950 = vrot.slane %v1948, 2
      %v1951 = vor.u32 %v1947, %v1950
      %v1952 = vsel %vm1917, %v1942, %v1951
      %v1954 = vshrl.u32 %v1565, 16
      %v1956 = vrot.slane %v1954, 1
      %v1957 = vshll.u32 %v1565, 16
      %v1959 = vrot.slane %v1957, 2
      %v1960 = vor.u32 %v1956, %v1959
      %v1961 = vsel %vm1917, %v1951, %v1960
      %v1963 = vshrl.u32 %v1566, 16
      %v1965 = vrot.slane %v1963, 1
      %v1966 = vshll.u32 %v1566, 16
      %v1968 = vrot.slane %v1966, 2
      %v1969 = vor.u32 %v1965, %v1968
      %v1970 = vsel %vm1917, %v1960, %v1969
      %v1972 = vshrl.u32 %v1567, 16
      %v1974 = vrot.slane %v1972, 1
      %v1975 = vshll.u32 %v1567, 16
      %v1977 = vrot.slane %v1975, 2
      %v1978 = vor.u32 %v1974, %v1977
      %v1979 = vsel %vm1917, %v1969, %v1978
      %v1981 = vshrl.u32 %v1568, 16
      %v1983 = vrot.slane %v1981, 1
      %v1984 = vshll.u32 %v1568, 16
      %v1986 = vrot.slane %v1984, 2
      %v1987 = vor.u32 %v1983, %v1986
      %v1988 = vsel %vm1917, %v1978, %v1987
      %v1990 = vshrl.u32 %v1569, 16
      %v1992 = vrot.slane %v1990, 1
      %v1993 = vshll.u32 %v1569, 16
      %v1995 = vrot.slane %v1993, 2
      %v1996 = vor.u32 %v1992, %v1995
      %v1997 = vsel %vm1917, %v1987, %v1996
      %v1999 = vshrl.u32 %v1570, 16
      %v2001 = vrot.slane %v1999, 1
      %v2002 = vshll.u32 %v1570, 16
      %v2004 = vrot.slane %v2002, 2
      %v2005 = vor.u32 %v2001, %v2004
      %v2006 = vsel %vm1917, %v1996, %v2005
      %v2008 = vshrl.u32 %v1571, 16
      %v2010 = vrot.slane %v2008, 1
      %v2011 = vshll.u32 %v1571, 16
      %v2013 = vrot.slane %v2011, 2
      %v2014 = vor.u32 %v2010, %v2013
      %v2015 = vsel %vm1917, %v2005, %v2014
      %v2017 = vshrl.u32 %v1572, 16
      %v2019 = vrot.slane %v2017, 1
      %v2020 = vshll.u32 %v1572, 16
      %v2022 = vrot.slane %v2020, 2
      %v2023 = vor.u32 %v2019, %v2022
      %v2024 = vsel %vm1917, %v2014, %v2023
      %v2026 = vshrl.u32 %v1573, 16
      %v2028 = vrot.slane %v2026, 1
      %v2029 = vshll.u32 %v1573, 16
      %v2031 = vrot.slane %v2029, 2
      %v2032 = vor.u32 %v2028, %v2031
      %v2033 = vsel %vm1917, %v2023, %v2032
      %v2035 = vshrl.u32 %v1574, 16
      %v2037 = vrot.slane %v2035, 1
      %v2038 = vshll.u32 %v1574, 16
      %v2040 = vrot.slane %v2038, 2
      %v2041 = vor.u32 %v2037, %v2040
      %v2042 = vsel %vm1917, %v2032, %v2041
      %v2044 = vshrl.u32 %v1575, 16
      %v2046 = vrot.slane %v2044, 1
      %v2047 = vshll.u32 %v1575, 16
      %v2049 = vrot.slane %v2047, 2
      %v2050 = vor.u32 %v2046, %v2049
      %v2051 = vsel %vm1917, %v2041, %v2050
      %v2053 = vshrl.u32 %v1576, 16
      %v2055 = vrot.slane %v2053, 1
      %v2056 = vshll.u32 %v1576, 16
      %v2058 = vrot.slane %v2056, 2
      %v2059 = vor.u32 %v2055, %v2058
      %v2060 = vsel %vm1917, %v2050, %v2059
      %v2062 = vshrl.u32 %v1577, 16
      %v2064 = vrot.slane %v2062, 1
      %v2065 = vshll.u32 %v1577, 16
      %v2067 = vrot.slane %v2065, 2
      %v2068 = vor.u32 %v2064, %v2067
      %v2069 = vsel %vm1917, %v2059, %v2068
      %v2071 = vshrl.u32 %v1578, 16
      %v2073 = vrot.slane %v2071, 1
      %v2074 = vshll.u32 %v1578, 16
      %v2076 = vrot.slane %v2074, 2
      %v2077 = vor.u32 %v2073, %v2076
      %v2078 = vsel %vm1917, %v2068, %v2077
      %v2080 = vshrl.u32 %v1916, 16
      %v2082 = vrot.slane %v2080, 1
      %v2083 = vshll.u32 %v1916, 16
      %v2085 = vrot.slane %v2083, 2
      %v2086 = vor.u32 %v2082, %v2085
      %v2087 = vsel %vm1917, %v2077, %v2086
      %v2122 = vunpack.c.l.b16 %v1898
      %v2123 = vunpack.c.l.b16 %v1899
      %v2124 = vunpack.c.l.b16 %v1900
      %v2125 = vunpack.c.l.b16 %v1901
      %v2126 = vunpack.c.l.b16 %v1902
      %v2127 = vunpack.c.l.b16 %v1903
      %v2128 = vunpack.c.l.b16 %v1904
      %v2129 = vunpack.c.l.b16 %v1905
      %v2130 = vunpack.c.l.b16 %v1906
      %v2131 = vunpack.c.l.b16 %v1907
      %v2132 = vunpack.c.l.b16 %v1908
      %v2133 = vunpack.c.l.b16 %v1909
      %v2134 = vunpack.c.l.b16 %v1910
      %v2135 = vunpack.c.l.b16 %v1911
      %v2136 = vunpack.c.l.b16 %v1912
      %v2137 = vunpack.c.l.b16 %v1913
      %v2138 = vpack.c.b16 %v2123, %v2122
      %v2139 = vpack.c.b16 %v2125, %v2124
      %v2140 = vpack.c.b16 %v2127, %v2126
      %v2141 = vpack.c.b16 %v2129, %v2128
      %v2142 = vpack.c.b16 %v2131, %v2130
      %v2143 = vpack.c.b16 %v2133, %v2132
      %v2144 = vpack.c.b16 %v2135, %v2134
      %v2145 = vpack.c.b16 %v2137, %v2136
      %2154 = vmatprep.subr.bf16.mxu0 0
      %2155 = vmatpush1.bf16.msra.mxu0 %v2138
      %2156 = vmatprep.subr.bf16.mxu0 0
      %2157 = vmatpush1.bf16.msra.mxu0 %v2139
      %2158 = vmatprep.subr.bf16.mxu0 0
      %2159 = vmatpush1.bf16.msra.mxu0 %v2140
      %2160 = vmatprep.subr.bf16.mxu0 0
      %2161 = vmatpush1.bf16.msra.mxu0 %v2141
      %2162 = vmatprep.subr.bf16.mxu0 0
      %2163 = vmatpush1.bf16.msra.mxu0 %v2142
      %2164 = vmatprep.subr.bf16.mxu0 0
      %2165 = vmatpush1.bf16.msra.mxu0 %v2143
      %2166 = vmatprep.subr.bf16.mxu0 0
      %2167 = vmatpush1.bf16.msra.mxu0 %v2144
      %2168 = vmatprep.subr.bf16.mxu0 0
      %2169 = vmatpush1.bf16.msra.mxu0 %v2145
      %2170 = vmatprep.subr.bf16.mxu0 0
      %2171 = vmatpush1.bf16.msra.mxu0 0
      %2172 = vmatprep.subr.bf16.mxu0 0
      %2173 = vmatpush1.bf16.msra.mxu0 0
      %2174 = vmatprep.subr.bf16.mxu0 0
      %2175 = vmatpush1.bf16.msra.mxu0 0
      %2176 = vmatprep.subr.bf16.mxu0 0
      %2177 = vmatpush1.bf16.msra.mxu0 0
      %2178 = vmatprep.subr.bf16.mxu0 0
      %2179 = vmatpush1.bf16.msra.mxu0 0
      %2180 = vmatprep.subr.bf16.mxu0 0
      %2181 = vmatpush1.bf16.msra.mxu0 0
      %2182 = vmatprep.subr.bf16.mxu0 0
      %2183 = vmatpush1.bf16.msra.mxu0 0
      %2184 = vmatprep.subr.bf16.mxu0 0
      %2185 = vmatpush1.bf16.msra.mxu0 0
      %2186 = vmatprep.mubr.bf16.mxu0 0
      %2187 = vmatmul.mubr.bf16.gmra.mrb[0].mxu0 %v1934
      %v2188 = vpop.f32.mrb[0].mxu0
      %v2189 = vadd.f32 0.0, %v2188
      %v2190 = vpop.f32.mrb[0].mxu0
      %v2191 = vpop.f32.mrb[0].mxu0
      %v2192 = vadd.f32 0.0, %v2191
      %v2193 = vpop.f32.mrb[0].mxu0
      %2194 = vmatprep.mubr.bf16.mxu0 0
      %2195 = vmatmul.mubr.bf16.gmra.mrb[0].mxu0 %v1943
      %v2196 = vpop.f32.mrb[0].mxu0
      %v2197 = vadd.f32 0.0, %v2196
      %v2198 = vpop.f32.mrb[0].mxu0
      %v2199 = vpop.f32.mrb[0].mxu0
      %v2200 = vadd.f32 0.0, %v2199
      %v2201 = vpop.f32.mrb[0].mxu0
      %2202 = vmatprep.mubr.bf16.mxu0 0
      %2203 = vmatmul.mubr.bf16.gmra.mrb[0].mxu0 %v1952
      %v2204 = vpop.f32.mrb[0].mxu0
      %v2205 = vadd.f32 0.0, %v2204
      %v2206 = vpop.f32.mrb[0].mxu0
      %v2207 = vpop.f32.mrb[0].mxu0
      %v2208 = vadd.f32 0.0, %v2207
      %v2209 = vpop.f32.mrb[0].mxu0
      %2210 = vmatprep.mubr.bf16.mxu0 0
      %2211 = vmatmul.mubr.bf16.gmra.mrb[0].mxu0 %v1961
      %v2212 = vpop.f32.mrb[0].mxu0
      %v2213 = vadd.f32 0.0, %v2212
      %v2214 = vpop.f32.mrb[0].mxu0
      %v2215 = vpop.f32.mrb[0].mxu0
      %v2216 = vadd.f32 0.0, %v2215
      %v2217 = vpop.f32.mrb[0].mxu0
      %2218 = vmatprep.mubr.bf16.mxu0 0
      %2219 = vmatmul.mubr.bf16.gmra.mrb[0].mxu0 %v1970
      %v2220 = vpop.f32.mrb[0].mxu0
      %v2221 = vadd.f32 0.0, %v2220
      %v2222 = vpop.f32.mrb[0].mxu0
      %v2223 = vpop.f32.mrb[0].mxu0
      %v2224 = vadd.f32 0.0, %v2223
      %v2225 = vpop.f32.mrb[0].mxu0
      %2226 = vmatprep.mubr.bf16.mxu0 0
      %2227 = vmatmul.mubr.bf16.gmra.mrb[0].mxu0 %v1979
      %v2228 = vpop.f32.mrb[0].mxu0
      %v2229 = vadd.f32 0.0, %v2228
      %v2230 = vpop.f32.mrb[0].mxu0
      %v2231 = vpop.f32.mrb[0].mxu0
      %v2232 = vadd.f32 0.0, %v2231
      %v2233 = vpop.f32.mrb[0].mxu0
      %2234 = vmatprep.mubr.bf16.mxu0 0
      %2235 = vmatmul.mubr.bf16.gmra.mrb[0].mxu0 %v1988
      %v2236 = vpop.f32.mrb[0].mxu0
      %v2237 = vadd.f32 0.0, %v2236
      %v2238 = vpop.f32.mrb[0].mxu0
      %v2239 = vpop.f32.mrb[0].mxu0
      %v2240 = vadd.f32 0.0, %v2239
      %v2241 = vpop.f32.mrb[0].mxu0
      %2242 = vmatprep.mubr.bf16.mxu0 0
      %2243 = vmatmul.mubr.bf16.gmra.mrb[0].mxu0 %v1997
      %v2244 = vpop.f32.mrb[0].mxu0
      %v2245 = vadd.f32 0.0, %v2244
      %v2246 = vpop.f32.mrb[0].mxu0
      %v2247 = vpop.f32.mrb[0].mxu0
      %v2248 = vadd.f32 0.0, %v2247
      %v2249 = vpop.f32.mrb[0].mxu0
      %2250 = vmatprep.mubr.bf16.mxu0 0
      %2251 = vmatmul.mubr.bf16.gmra.mrb[0].mxu0 %v2006
      %v2252 = vpop.f32.mrb[0].mxu0
      %v2253 = vadd.f32 0.0, %v2252
      %v2254 = vpop.f32.mrb[0].mxu0
      %v2255 = vpop.f32.mrb[0].mxu0
      %v2256 = vadd.f32 0.0, %v2255
      %v2257 = vpop.f32.mrb[0].mxu0
      %2258 = vmatprep.mubr.bf16.mxu0 0
      %2259 = vmatmul.mubr.bf16.gmra.mrb[0].mxu0 %v2015
      %v2260 = vpop.f32.mrb[0].mxu0
      %v2261 = vadd.f32 0.0, %v2260
      %v2262 = vpop.f32.mrb[0].mxu0
      %v2263 = vpop.f32.mrb[0].mxu0
      %v2264 = vadd.f32 0.0, %v2263
      %v2265 = vpop.f32.mrb[0].mxu0
      %2266 = vmatprep.mubr.bf16.mxu0 0
      %2267 = vmatmul.mubr.bf16.gmra.mrb[0].mxu0 %v2024
      %v2268 = vpop.f32.mrb[0].mxu0
      %v2269 = vadd.f32 0.0, %v2268
      %v2270 = vpop.f32.mrb[0].mxu0
      %v2271 = vpop.f32.mrb[0].mxu0
      %v2272 = vadd.f32 0.0, %v2271
      %v2273 = vpop.f32.mrb[0].mxu0
      %2274 = vmatprep.mubr.bf16.mxu0 0
      %2275 = vmatmul.mubr.bf16.gmra.mrb[0].mxu0 %v2033
      %v2276 = vpop.f32.mrb[0].mxu0
      %v2277 = vadd.f32 0.0, %v2276
      %v2278 = vpop.f32.mrb[0].mxu0
      %v2279 = vpop.f32.mrb[0].mxu0
      %v2280 = vadd.f32 0.0, %v2279
      %v2281 = vpop.f32.mrb[0].mxu0
      %2282 = vmatprep.mubr.bf16.mxu0 0
      %2283 = vmatmul.mubr.bf16.gmra.mrb[0].mxu0 %v2042
      %v2284 = vpop.f32.mrb[0].mxu0
      %v2285 = vadd.f32 0.0, %v2284
      %v2286 = vpop.f32.mrb[0].mxu0
      %v2287 = vpop.f32.mrb[0].mxu0
      %v2288 = vadd.f32 0.0, %v2287
      %v2289 = vpop.f32.mrb[0].mxu0
      %2290 = vmatprep.mubr.bf16.mxu0 0
      %2291 = vmatmul.mubr.bf16.gmra.mrb[0].mxu0 %v2051
      %v2292 = vpop.f32.mrb[0].mxu0
      %v2293 = vadd.f32 0.0, %v2292
      %v2294 = vpop.f32.mrb[0].mxu0
      %v2295 = vpop.f32.mrb[0].mxu0
      %v2296 = vadd.f32 0.0, %v2295
      %v2297 = vpop.f32.mrb[0].mxu0
      %2298 = vmatprep.mubr.bf16.mxu0 0
      %2299 = vmatmul.mubr.bf16.gmra.mrb[0].mxu0 %v2060
      %v2300 = vpop.f32.mrb[0].mxu0
      %v2301 = vadd.f32 0.0, %v2300
      %v2302 = vpop.f32.mrb[0].mxu0
      %v2303 = vpop.f32.mrb[0].mxu0
      %v2304 = vadd.f32 0.0, %v2303
      %v2305 = vpop.f32.mrb[0].mxu0
      %2306 = vmatprep.mubr.bf16.mxu0 0
      %2307 = vmatmul.mubr.bf16.gmra.mrb[0].mxu0 %v2069
      %v2308 = vpop.f32.mrb[0].mxu0
      %v2309 = vadd.f32 0.0, %v2308
      %v2310 = vpop.f32.mrb[0].mxu0
      %v2311 = vpop.f32.mrb[0].mxu0
      %v2312 = vadd.f32 0.0, %v2311
      %v2313 = vpop.f32.mrb[0].mxu0
      %2314 = vmatprep.mubr.bf16.mxu0 0
      %2315 = vmatmul.mubr.bf16.gmra.mrb[0].mxu0 %v2078
      %v2316 = vpop.f32.mrb[0].mxu0
      %v2317 = vadd.f32 0.0, %v2316
      %v2318 = vpop.f32.mrb[0].mxu0
      %v2319 = vpop.f32.mrb[0].mxu0
      %v2320 = vadd.f32 0.0, %v2319
      %v2321 = vpop.f32.mrb[0].mxu0
      %2322 = vmatprep.mubr.bf16.mxu0 0
      %2323 = vmatmul.mubr.bf16.gmra.mrb[0].mxu0 %v2087
      %v2324 = vpop.f32.mrb[0].mxu0
      %v2325 = vadd.f32 0.0, %v2324
      %v2326 = vpop.f32.mrb[0].mxu0
      %v2327 = vpop.f32.mrb[0].mxu0
      %v2328 = vadd.f32 0.0, %v2327
      %v2329 = vpop.f32.mrb[0].mxu0
      %2330 = vdwg.mxu0
      %v2331 = vadd.f32 %v1860, %v2189
      %v2332 = vadd.f32 %v1861, %v2192
      %v2333 = vadd.f32 %v1862, %v2197
      %v2334 = vadd.f32 %v1863, %v2200
      %v2335 = vadd.f32 %v1864, %v2205
      %v2336 = vadd.f32 %v1865, %v2208
      %v2337 = vadd.f32 %v1866, %v2213
      %v2338 = vadd.f32 %v1867, %v2216
      %v2339 = vadd.f32 %v1868, %v2221
      %v2340 = vadd.f32 %v1869, %v2224
      %v2341 = vadd.f32 %v1870, %v2229
      %v2342 = vadd.f32 %v1871, %v2232
      %v2343 = vadd.f32 %v1872, %v2237
      %v2344 = vadd.f32 %v1873, %v2240
      %v2345 = vadd.f32 %v1874, %v2245
      %v2346 = vadd.f32 %v1875, %v2248
      %v2347 = vadd.f32 %v1876, %v2253
      %v2348 = vadd.f32 %v1877, %v2256
      %v2349 = vadd.f32 %v1878, %v2261
      %v2350 = vadd.f32 %v1879, %v2264
      %v2351 = vadd.f32 %v1880, %v2269
      %v2352 = vadd.f32 %v1881, %v2272
      %v2353 = vadd.f32 %v1882, %v2277
      %v2354 = vadd.f32 %v1883, %v2280
      %v2355 = vadd.f32 %v1884, %v2285
      %v2356 = vadd.f32 %v1885, %v2288
      %v2357 = vadd.f32 %v1886, %v2293
      %v2358 = vadd.f32 %v1887, %v2296
      %v2359 = vadd.f32 %v1888, %v2301
      %v2360 = vadd.f32 %v1889, %v2304
      %v2361 = vadd.f32 %v1890, %v2309
      %v2362 = vadd.f32 %v1891, %v2312
      %v2363 = vadd.f32 %v1892, %v2317
      %v2364 = vadd.f32 %v1893, %v2320
      %v2365 = vadd.f32 %v1894, %v2325
      %v2366 = vadd.f32 %v1895, %v2328
      %v2367 = vld [vmem:[%s284 + $0x8] sm:$0xc]
      %s2368 = scalar_lea.vmem %s1, 320
      %v2369 = vld [vmem:[%s2368] sm:$0xf]
      %v2370 = vld [vmem:[%s2368 + $0x4] sm:$0xf]
      %v2371 = vld [vmem:[%s2368 + $0x8] sm:$0xf]
      %v2372 = vld [vmem:[%s2368 + $0xc] sm:$0xf]
      %v2373 = vld [vmem:[%s2368 + $0x10] sm:$0xf]
      %v2374 = vld [vmem:[%s2368 + $0x14] sm:$0xf]
      %v2375 = vld [vmem:[%s2368 + $0x18] sm:$0xf]
      %v2376 = vld [vmem:[%s2368 + $0x1c] sm:$0xf]
      %v2377 = vld [vmem:[%s2368 + $0x20] sm:$0xf]
      %v2378 = vld [vmem:[%s2368 + $0x24] sm:$0xf]
      %v2379 = vld [vmem:[%s2368 + $0x28] sm:$0xf]
      %v2380 = vld [vmem:[%s2368 + $0x2c] sm:$0xf]
      %v2381 = vld [vmem:[%s2368 + $0x30] sm:$0xf]
      %v2382 = vld [vmem:[%s2368 + $0x34] sm:$0xf]
      %v2383 = vld [vmem:[%s2368 + $0x38] sm:$0xf]
      %v2384 = vld [vmem:[%s2368 + $0x3c] sm:$0xf]
      %v2386 = vunpack.c.l.b16 %v2367
      %v2387 = vpack.c.b16 %v1525, %v2386
      %vm2388 = vcmask 1045504
      %v2389 = vrot.slane %v2387, 2
      %v2390 = vrot.slane %v1562, 2
      %v2391 = vsel %vm2388, %v2389, %v2390
      %v2392 = vrot.slane %v1563, 2
      %v2393 = vsel %vm2388, %v2390, %v2392
      %v2394 = vrot.slane %v1564, 2
      %v2395 = vsel %vm2388, %v2392, %v2394
      %v2396 = vrot.slane %v1565, 2
      %v2397 = vsel %vm2388, %v2394, %v2396
      %v2398 = vrot.slane %v1566, 2
      %v2399 = vsel %vm2388, %v2396, %v2398
      %v2400 = vrot.slane %v1567, 2
      %v2401 = vsel %vm2388, %v2398, %v2400
      %v2402 = vrot.slane %v1568, 2
      %v2403 = vsel %vm2388, %v2400, %v2402
      %v2404 = vrot.slane %v1569, 2
      %v2405 = vsel %vm2388, %v2402, %v2404
      %v2406 = vrot.slane %v1570, 2
      %v2407 = vsel %vm2388, %v2404, %v2406
      %v2408 = vrot.slane %v1571, 2
      %v2409 = vsel %vm2388, %v2406, %v2408
      %v2410 = vrot.slane %v1572, 2
      %v2411 = vsel %vm2388, %v2408, %v2410
      %v2412 = vrot.slane %v1573, 2
      %v2413 = vsel %vm2388, %v2410, %v2412
      %v2414 = vrot.slane %v1574, 2
      %v2415 = vsel %vm2388, %v2412, %v2414
      %v2416 = vrot.slane %v1575, 2
      %v2417 = vsel %vm2388, %v2414, %v2416
      %v2418 = vrot.slane %v1576, 2
      %v2419 = vsel %vm2388, %v2416, %v2418
      %v2420 = vrot.slane %v1577, 2
      %v2421 = vsel %vm2388, %v2418, %v2420
      %v2422 = vrot.slane %v1578, 2
      %v2423 = vsel %vm2388, %v2420, %v2422
      %v2424 = vrot.slane %v1916, 2
      %v2425 = vsel %vm2388, %v2422, %v2424
      %v2460 = vunpack.c.l.b16 %v2369
      %v2461 = vunpack.c.l.b16 %v2370
      %v2462 = vunpack.c.l.b16 %v2371
      %v2463 = vunpack.c.l.b16 %v2372
      %v2464 = vunpack.c.l.b16 %v2373
      %v2465 = vunpack.c.l.b16 %v2374
      %v2466 = vunpack.c.l.b16 %v2375
      %v2467 = vunpack.c.l.b16 %v2376
      %v2468 = vunpack.c.l.b16 %v2377
      %v2469 = vunpack.c.l.b16 %v2378
      %v2470 = vunpack.c.l.b16 %v2379
      %v2471 = vunpack.c.l.b16 %v2380
      %v2472 = vunpack.c.l.b16 %v2381
      %v2473 = vunpack.c.l.b16 %v2382
      %v2474 = vunpack.c.l.b16 %v2383
      %v2475 = vunpack.c.l.b16 %v2384
      %v2476 = vpack.c.b16 %v2461, %v2460
      %v2477 = vpack.c.b16 %v2463, %v2462
      %v2478 = vpack.c.b16 %v2465, %v2464
      %v2479 = vpack.c.b16 %v2467, %v2466
      %v2480 = vpack.c.b16 %v2469, %v2468
      %v2481 = vpack.c.b16 %v2471, %v2470
      %v2482 = vpack.c.b16 %v2473, %v2472
      %v2483 = vpack.c.b16 %v2475, %v2474
      %2492 = vmatprep.subr.bf16.mxu0 0
      %2493 = vmatpush1.bf16.msra.mxu0 %v2476
      %2494 = vmatprep.subr.bf16.mxu0 0
      %2495 = vmatpush1.bf16.msra.mxu0 %v2477
      %2496 = vmatprep.subr.bf16.mxu0 0
      %2497 = vmatpush1.bf16.msra.mxu0 %v2478
      %2498 = vmatprep.subr.bf16.mxu0 0
      %2499 = vmatpush1.bf16.msra.mxu0 %v2479
      %2500 = vmatprep.subr.bf16.mxu0 0
      %2501 = vmatpush1.bf16.msra.mxu0 %v2480
      %2502 = vmatprep.subr.bf16.mxu0 0
      %2503 = vmatpush1.bf16.msra.mxu0 %v2481
      %2504 = vmatprep.subr.bf16.mxu0 0
      %2505 = vmatpush1.bf16.msra.mxu0 %v2482
      %2506 = vmatprep.subr.bf16.mxu0 0
      %2507 = vmatpush1.bf16.msra.mxu0 %v2483
      %2508 = vmatprep.subr.bf16.mxu0 0
      %2509 = vmatpush1.bf16.msra.mxu0 0
      %2510 = vmatprep.subr.bf16.mxu0 0
      %2511 = vmatpush1.bf16.msra.mxu0 0
      %2512 = vmatprep.subr.bf16.mxu0 0
      %2513 = vmatpush1.bf16.msra.mxu0 0
      %2514 = vmatprep.subr.bf16.mxu0 0
      %2515 = vmatpush1.bf16.msra.mxu0 0
      %2516 = vmatprep.subr.bf16.mxu0 0
      %2517 = vmatpush1.bf16.msra.mxu0 0
      %2518 = vmatprep.subr.bf16.mxu0 0
      %2519 = vmatpush1.bf16.msra.mxu0 0
      %2520 = vmatprep.subr.bf16.mxu0 0
      %2521 = vmatpush1.bf16.msra.mxu0 0
      %2522 = vmatprep.subr.bf16.mxu0 0
      %2523 = vmatpush1.bf16.msra.mxu0 0
      %2524 = vmatprep.mubr.bf16.mxu0 0
      %2525 = vmatmul.mubr.bf16.gmra.mrb[0].mxu0 %v2391
      %v2526 = vpop.f32.mrb[0].mxu0
      %v2527 = vadd.f32 0.0, %v2526
      %v2528 = vpop.f32.mrb[0].mxu0
      %v2529 = vpop.f32.mrb[0].mxu0
      %v2530 = vadd.f32 0.0, %v2529
      %v2531 = vpop.f32.mrb[0].mxu0
      %2532 = vmatprep.mubr.bf16.mxu0 0
      %2533 = vmatmul.mubr.bf16.gmra.mrb[0].mxu0 %v2393
      %v2534 = vpop.f32.mrb[0].mxu0
      %v2535 = vadd.f32 0.0, %v2534
      %v2536 = vpop.f32.mrb[0].mxu0
      %v2537 = vpop.f32.mrb[0].mxu0
      %v2538 = vadd.f32 0.0, %v2537
      %v2539 = vpop.f32.mrb[0].mxu0
      %2540 = vmatprep.mubr.bf16.mxu0 0
      %2541 = vmatmul.mubr.bf16.gmra.mrb[0].mxu0 %v2395
      %v2542 = vpop.f32.mrb[0].mxu0
      %v2543 = vadd.f32 0.0, %v2542
      %v2544 = vpop.f32.mrb[0].mxu0
      %v2545 = vpop.f32.mrb[0].mxu0
      %v2546 = vadd.f32 0.0, %v2545
      %v2547 = vpop.f32.mrb[0].mxu0
      %2548 = vmatprep.mubr.bf16.mxu0 0
      %2549 = vmatmul.mubr.bf16.gmra.mrb[0].mxu0 %v2397
      %v2550 = vpop.f32.mrb[0].mxu0
      %v2551 = vadd.f32 0.0, %v2550
      %v2552 = vpop.f32.mrb[0].mxu0
      %v2553 = vpop.f32.mrb[0].mxu0
      %v2554 = vadd.f32 0.0, %v2553
      %v2555 = vpop.f32.mrb[0].mxu0
      %2556 = vmatprep.mubr.bf16.mxu0 0
      %2557 = vmatmul.mubr.bf16.gmra.mrb[0].mxu0 %v2399
      %v2558 = vpop.f32.mrb[0].mxu0
      %v2559 = vadd.f32 0.0, %v2558
      %v2560 = vpop.f32.mrb[0].mxu0
      %v2561 = vpop.f32.mrb[0].mxu0
      %v2562 = vadd.f32 0.0, %v2561
      %v2563 = vpop.f32.mrb[0].mxu0
      %2564 = vmatprep.mubr.bf16.mxu0 0
      %2565 = vmatmul.mubr.bf16.gmra.mrb[0].mxu0 %v2401
      %v2566 = vpop.f32.mrb[0].mxu0
      %v2567 = vadd.f32 0.0, %v2566
      %v2568 = vpop.f32.mrb[0].mxu0
      %v2569 = vpop.f32.mrb[0].mxu0
      %v2570 = vadd.f32 0.0, %v2569
      %v2571 = vpop.f32.mrb[0].mxu0
      %2572 = vmatprep.mubr.bf16.mxu0 0
      %2573 = vmatmul.mubr.bf16.gmra.mrb[0].mxu0 %v2403
      %v2574 = vpop.f32.mrb[0].mxu0
      %v2575 = vadd.f32 0.0, %v2574
      %v2576 = vpop.f32.mrb[0].mxu0
      %v2577 = vpop.f32.mrb[0].mxu0
      %v2578 = vadd.f32 0.0, %v2577
      %v2579 = vpop.f32.mrb[0].mxu0
      %2580 = vmatprep.mubr.bf16.mxu0 0
      %2581 = vmatmul.mubr.bf16.gmra.mrb[0].mxu0 %v2405
      %v2582 = vpop.f32.mrb[0].mxu0
      %v2583 = vadd.f32 0.0, %v2582
      %v2584 = vpop.f32.mrb[0].mxu0
      %v2585 = vpop.f32.mrb[0].mxu0
      %v2586 = vadd.f32 0.0, %v2585
      %v2587 = vpop.f32.mrb[0].mxu0
      %2588 = vmatprep.mubr.bf16.mxu0 0
      %2589 = vmatmul.mubr.bf16.gmra.mrb[0].mxu0 %v2407
      %v2590 = vpop.f32.mrb[0].mxu0
      %v2591 = vadd.f32 0.0, %v2590
      %v2592 = vpop.f32.mrb[0].mxu0
      %v2593 = vpop.f32.mrb[0].mxu0
      %v2594 = vadd.f32 0.0, %v2593
      %v2595 = vpop.f32.mrb[0].mxu0
      %2596 = vmatprep.mubr.bf16.mxu0 0
      %2597 = vmatmul.mubr.bf16.gmra.mrb[0].mxu0 %v2409
      %v2598 = vpop.f32.mrb[0].mxu0
      %v2599 = vadd.f32 0.0, %v2598
      %v2600 = vpop.f32.mrb[0].mxu0
      %v2601 = vpop.f32.mrb[0].mxu0
      %v2602 = vadd.f32 0.0, %v2601
      %v2603 = vpop.f32.mrb[0].mxu0
      %2604 = vmatprep.mubr.bf16.mxu0 0
      %2605 = vmatmul.mubr.bf16.gmra.mrb[0].mxu0 %v2411
      %v2606 = vpop.f32.mrb[0].mxu0
      %v2607 = vadd.f32 0.0, %v2606
      %v2608 = vpop.f32.mrb[0].mxu0
      %v2609 = vpop.f32.mrb[0].mxu0
      %v2610 = vadd.f32 0.0, %v2609
      %v2611 = vpop.f32.mrb[0].mxu0
      %2612 = vmatprep.mubr.bf16.mxu0 0
      %2613 = vmatmul.mubr.bf16.gmra.mrb[0].mxu0 %v2413
      %v2614 = vpop.f32.mrb[0].mxu0
      %v2615 = vadd.f32 0.0, %v2614
      %v2616 = vpop.f32.mrb[0].mxu0
      %v2617 = vpop.f32.mrb[0].mxu0
      %v2618 = vadd.f32 0.0, %v2617
      %v2619 = vpop.f32.mrb[0].mxu0
      %2620 = vmatprep.mubr.bf16.mxu0 0
      %2621 = vmatmul.mubr.bf16.gmra.mrb[0].mxu0 %v2415
      %v2622 = vpop.f32.mrb[0].mxu0
      %v2623 = vadd.f32 0.0, %v2622
      %v2624 = vpop.f32.mrb[0].mxu0
      %v2625 = vpop.f32.mrb[0].mxu0
      %v2626 = vadd.f32 0.0, %v2625
      %v2627 = vpop.f32.mrb[0].mxu0
      %2628 = vmatprep.mubr.bf16.mxu0 0
      %2629 = vmatmul.mubr.bf16.gmra.mrb[0].mxu0 %v2417
      %v2630 = vpop.f32.mrb[0].mxu0
      %v2631 = vadd.f32 0.0, %v2630
      %v2632 = vpop.f32.mrb[0].mxu0
      %v2633 = vpop.f32.mrb[0].mxu0
      %v2634 = vadd.f32 0.0, %v2633
      %v2635 = vpop.f32.mrb[0].mxu0
      %2636 = vmatprep.mubr.bf16.mxu0 0
      %2637 = vmatmul.mubr.bf16.gmra.mrb[0].mxu0 %v2419
      %v2638 = vpop.f32.mrb[0].mxu0
      %v2639 = vadd.f32 0.0, %v2638
      %v2640 = vpop.f32.mrb[0].mxu0
      %v2641 = vpop.f32.mrb[0].mxu0
      %v2642 = vadd.f32 0.0, %v2641
      %v2643 = vpop.f32.mrb[0].mxu0
      %2644 = vmatprep.mubr.bf16.mxu0 0
      %2645 = vmatmul.mubr.bf16.gmra.mrb[0].mxu0 %v2421
      %v2646 = vpop.f32.mrb[0].mxu0
      %v2647 = vadd.f32 0.0, %v2646
      %v2648 = vpop.f32.mrb[0].mxu0
      %v2649 = vpop.f32.mrb[0].mxu0
      %v2650 = vadd.f32 0.0, %v2649
      %v2651 = vpop.f32.mrb[0].mxu0
      %2652 = vmatprep.mubr.bf16.mxu0 0
      %2653 = vmatmul.mubr.bf16.gmra.mrb[0].mxu0 %v2423
      %v2654 = vpop.f32.mrb[0].mxu0
      %v2655 = vadd.f32 0.0, %v2654
      %v2656 = vpop.f32.mrb[0].mxu0
      %v2657 = vpop.f32.mrb[0].mxu0
      %v2658 = vadd.f32 0.0, %v2657
      %v2659 = vpop.f32.mrb[0].mxu0
      %2660 = vmatprep.mubr.bf16.mxu0 0
      %2661 = vmatmul.mubr.bf16.gmra.mrb[0].mxu0 %v2425
      %v2662 = vpop.f32.mrb[0].mxu0
      %v2663 = vadd.f32 0.0, %v2662
      %v2664 = vpop.f32.mrb[0].mxu0
      %v2665 = vpop.f32.mrb[0].mxu0
      %v2666 = vadd.f32 0.0, %v2665
      %v2667 = vpop.f32.mrb[0].mxu0
      %2668 = vdwg.mxu0
      %v2669 = vadd.f32 %v2331, %v2527
      %v2670 = vadd.f32 %v2332, %v2530
      %v2671 = vadd.f32 %v2333, %v2535
      %v2672 = vadd.f32 %v2334, %v2538
      %v2673 = vadd.f32 %v2335, %v2543
      %v2674 = vadd.f32 %v2336, %v2546
      %v2675 = vadd.f32 %v2337, %v2551
      %v2676 = vadd.f32 %v2338, %v2554
      %v2677 = vadd.f32 %v2339, %v2559
      %v2678 = vadd.f32 %v2340, %v2562
      %v2679 = vadd.f32 %v2341, %v2567
      %v2680 = vadd.f32 %v2342, %v2570
      %v2681 = vadd.f32 %v2343, %v2575
      %v2682 = vadd.f32 %v2344, %v2578
      %v2683 = vadd.f32 %v2345, %v2583
      %v2684 = vadd.f32 %v2346, %v2586
      %v2685 = vadd.f32 %v2347, %v2591
      %v2686 = vadd.f32 %v2348, %v2594
      %v2687 = vadd.f32 %v2349, %v2599
      %v2688 = vadd.f32 %v2350, %v2602
      %v2689 = vadd.f32 %v2351, %v2607
      %v2690 = vadd.f32 %v2352, %v2610
      %v2691 = vadd.f32 %v2353, %v2615
      %v2692 = vadd.f32 %v2354, %v2618
      %v2693 = vadd.f32 %v2355, %v2623
      %v2694 = vadd.f32 %v2356, %v2626
      %v2695 = vadd.f32 %v2357, %v2631
      %v2696 = vadd.f32 %v2358, %v2634
      %v2697 = vadd.f32 %v2359, %v2639
      %v2698 = vadd.f32 %v2360, %v2642
      %v2699 = vadd.f32 %v2361, %v2647
      %v2700 = vadd.f32 %v2362, %v2650
      %v2701 = vadd.f32 %v2363, %v2655
      %v2702 = vadd.f32 %v2364, %v2658
      %v2703 = vadd.f32 %v2365, %v2663
      %v2704 = vadd.f32 %v2366, %v2666
      %v2705 = vld [vmem:[%s284 + $0x10] sm:$0xc]
      %v2706 = vld [vmem:[%s284 + $0x14] sm:$0xf]
      %v2707 = vld [vmem:[%s284 + $0x18] sm:$0xf]
      %v2708 = vld [vmem:[%s284 + $0x1c] sm:$0xf]
      %v2709 = vld [vmem:[%s284 + $0x20] sm:$0xf]
      %v2710 = vld [vmem:[%s284 + $0x24] sm:$0xf]
      %v2711 = vld [vmem:[%s284 + $0x28] sm:$0xf]
      %v2712 = vld [vmem:[%s284 + $0x2c] sm:$0xf]
      %v2713 = vld [vmem:[%s284 + $0x30] sm:$0xf]
      %v2714 = vld [vmem:[%s284 + $0x34] sm:$0xf]
      %v2715 = vld [vmem:[%s284 + $0x38] sm:$0xf]
      %v2716 = vld [vmem:[%s284 + $0x3c] sm:$0xf]
      %v2717 = vld [vmem:[%s284 + $0x40] sm:$0xf]
      %v2718 = vld [vmem:[%s284 + $0x44] sm:$0xf]
      %v2719 = vld [vmem:[%s284 + $0x48] sm:$0xf]
      %v2720 = vld [vmem:[%s284 + $0x4c] sm:$0xf]
      %v2721 = vld [vmem:[%s284 + $0x50] sm:$0xf]
      %v2722 = vld [vmem:[%s284 + $0x54] sm:$0xf]
      %v2723 = vld [vmem:[%s284 + $0x58] sm:$0xf]
      %v2724 = vld [vmem:[%s284 + $0x5c] sm:$0xf]
      %v2725 = vld [vmem:[%s284 + $0x60] sm:$0xf]
      %v2726 = vld [vmem:[%s284 + $0x64] sm:$0xf]
      %v2727 = vld [vmem:[%s284 + $0x68] sm:$0xf]
      %v2728 = vld [vmem:[%s284 + $0x6c] sm:$0xf]
      %v2729 = vld [vmem:[%s284 + $0x70] sm:$0xf]
      %v2730 = vld [vmem:[%s284 + $0x74] sm:$0xf]
      %v2731 = vld [vmem:[%s284 + $0x78] sm:$0xf]
      %v2732 = vld [vmem:[%s284 + $0x7c] sm:$0xf]
      %v2733 = vld [vmem:[%s284 + $0x80] sm:$0xf]
      %v2734 = vld [vmem:[%s284 + $0x84] sm:$0xf]
      %v2735 = vld [vmem:[%s284 + $0x88] sm:$0xf]
      %v2736 = vld [vmem:[%s284 + $0x8c] sm:$0xf]
      %v2737 = vld [vmem:[%s284 + $0x90] sm:$0xf]
      %v2738 = vld [vmem:[%s284 + $0x94] sm:$0xf]
      %v2739 = vld [vmem:[%s284 + $0x98] sm:$0xf]
      %v2740 = vld [vmem:[%s284 + $0x9c] sm:$0xf]
      %v2741 = vld [vmem:[%s284 + $0xa0] sm:$0x3]
      %s2742 = scalar_lea.vmem %s1, 384
      %v2743 = vld [vmem:[%s2742] sm:$0xf]
      %v2744 = vld [vmem:[%s2742 + $0x4] sm:$0xf]
      %v2745 = vld [vmem:[%s2742 + $0x8] sm:$0xf]
      %v2746 = vld [vmem:[%s2742 + $0xc] sm:$0xf]
      %v2747 = vld [vmem:[%s2742 + $0x10] sm:$0xf]
      %v2748 = vld [vmem:[%s2742 + $0x14] sm:$0xf]
      %v2749 = vld [vmem:[%s2742 + $0x18] sm:$0xf]
      %v2750 = vld [vmem:[%s2742 + $0x1c] sm:$0xf]
      %v2751 = vld [vmem:[%s2742 + $0x20] sm:$0xf]
      %v2752 = vld [vmem:[%s2742 + $0x24] sm:$0xf]
      %v2753 = vld [vmem:[%s2742 + $0x28] sm:$0xf]
      %v2754 = vld [vmem:[%s2742 + $0x2c] sm:$0xf]
      %v2755 = vld [vmem:[%s2742 + $0x30] sm:$0xf]
      %v2756 = vld [vmem:[%s2742 + $0x34] sm:$0xf]
      %v2757 = vld [vmem:[%s2742 + $0x38] sm:$0xf]
      %v2758 = vld [vmem:[%s2742 + $0x3c] sm:$0xf]
      %v2796 = vunpack.c.l.b16 %v2705
      %v2797 = vunpack.c.l.b16 %v2706
      %v2798 = vunpack.c.l.b16 %v2707
      %v2799 = vunpack.c.l.b16 %v2708
      %v2800 = vunpack.c.l.b16 %v2709
      %v2801 = vunpack.c.l.b16 %v2710
      %v2802 = vunpack.c.l.b16 %v2711
      %v2803 = vunpack.c.l.b16 %v2712
      %v2804 = vunpack.c.l.b16 %v2713
      %v2805 = vunpack.c.l.b16 %v2714
      %v2806 = vunpack.c.l.b16 %v2715
      %v2807 = vunpack.c.l.b16 %v2716
      %v2808 = vunpack.c.l.b16 %v2717
      %v2809 = vunpack.c.l.b16 %v2718
      %v2810 = vunpack.c.l.b16 %v2719
      %v2811 = vunpack.c.l.b16 %v2720
      %v2812 = vunpack.c.l.b16 %v2721
      %v2813 = vunpack.c.l.b16 %v2722
      %v2814 = vunpack.c.l.b16 %v2723
      %v2815 = vunpack.c.l.b16 %v2724
      %v2816 = vunpack.c.l.b16 %v2725
      %v2817 = vunpack.c.l.b16 %v2726
      %v2818 = vunpack.c.l.b16 %v2727
      %v2819 = vunpack.c.l.b16 %v2728
      %v2820 = vunpack.c.l.b16 %v2729
      %v2821 = vunpack.c.l.b16 %v2730
      %v2822 = vunpack.c.l.b16 %v2731
      %v2823 = vunpack.c.l.b16 %v2732
      %v2824 = vunpack.c.l.b16 %v2733
      %v2825 = vunpack.c.l.b16 %v2734
      %v2826 = vunpack.c.l.b16 %v2735
      %v2827 = vunpack.c.l.b16 %v2736
      %v2828 = vunpack.c.l.b16 %v2737
      %v2829 = vunpack.c.l.b16 %v2738
      %v2830 = vunpack.c.l.b16 %v2739
      %v2831 = vunpack.c.l.b16 %v2740
      %v2832 = vunpack.c.l.b16 %v2741
      %v2833 = vpack.c.b16 %v2797, %v2796
      %v2834 = vpack.c.b16 %v2799, %v2798
      %v2835 = vpack.c.b16 %v2801, %v2800
      %v2836 = vpack.c.b16 %v2803, %v2802
      %v2837 = vpack.c.b16 %v2805, %v2804
      %v2838 = vpack.c.b16 %v2807, %v2806
      %v2839 = vpack.c.b16 %v2809, %v2808
      %v2840 = vpack.c.b16 %v2811, %v2810
      %v2841 = vpack.c.b16 %v2813, %v2812
      %v2842 = vpack.c.b16 %v2815, %v2814
      %v2843 = vpack.c.b16 %v2817, %v2816
      %v2844 = vpack.c.b16 %v2819, %v2818
      %v2845 = vpack.c.b16 %v2821, %v2820
      %v2846 = vpack.c.b16 %v2823, %v2822
      %v2847 = vpack.c.b16 %v2825, %v2824
      %v2848 = vpack.c.b16 %v2827, %v2826
      %v2849 = vpack.c.b16 %v2829, %v2828
      %v2850 = vpack.c.b16 %v2831, %v2830
      %v2851 = vpack.c.b16 %v2832, %v2832
      %v2852 = vrot.slane %v2833, 2
      %v2853 = vrot.slane %v2834, 2
      %v2854 = vsel %vm2388, %v2852, %v2853
      %v2855 = vrot.slane %v2835, 2
      %v2856 = vsel %vm2388, %v2853, %v2855
      %v2857 = vrot.slane %v2836, 2
      %v2858 = vsel %vm2388, %v2855, %v2857
      %v2859 = vrot.slane %v2837, 2
      %v2860 = vsel %vm2388, %v2857, %v2859
      %v2861 = vrot.slane %v2838, 2
      %v2862 = vsel %vm2388, %v2859, %v2861
      %v2863 = vrot.slane %v2839, 2
      %v2864 = vsel %vm2388, %v2861, %v2863
      %v2865 = vrot.slane %v2840, 2
      %v2866 = vsel %vm2388, %v2863, %v2865
      %v2867 = vrot.slane %v2841, 2
      %v2868 = vsel %vm2388, %v2865, %v2867
      %v2869 = vrot.slane %v2842, 2
      %v2870 = vsel %vm2388, %v2867, %v2869
      %v2871 = vrot.slane %v2843, 2
      %v2872 = vsel %vm2388, %v2869, %v2871
      %v2873 = vrot.slane %v2844, 2
      %v2874 = vsel %vm2388, %v2871, %v2873
      %v2875 = vrot.slane %v2845, 2
      %v2876 = vsel %vm2388, %v2873, %v2875
      %v2877 = vrot.slane %v2846, 2
      %v2878 = vsel %vm2388, %v2875, %v2877
      %v2879 = vrot.slane %v2847, 2
      %v2880 = vsel %vm2388, %v2877, %v2879
      %v2881 = vrot.slane %v2848, 2
      %v2882 = vsel %vm2388, %v2879, %v2881
      %v2883 = vrot.slane %v2849, 2
      %v2884 = vsel %vm2388, %v2881, %v2883
      %v2885 = vrot.slane %v2850, 2
      %v2886 = vsel %vm2388, %v2883, %v2885
      %v2887 = vrot.slane %v2851, 2
      %v2888 = vsel %vm2388, %v2885, %v2887
      %v2923 = vunpack.c.l.b16 %v2743
      %v2924 = vunpack.c.l.b16 %v2744
      %v2925 = vunpack.c.l.b16 %v2745
      %v2926 = vunpack.c.l.b16 %v2746
      %v2927 = vunpack.c.l.b16 %v2747
      %v2928 = vunpack.c.l.b16 %v2748
      %v2929 = vunpack.c.l.b16 %v2749
      %v2930 = vunpack.c.l.b16 %v2750
      %v2931 = vunpack.c.l.b16 %v2751
      %v2932 = vunpack.c.l.b16 %v2752
      %v2933 = vunpack.c.l.b16 %v2753
      %v2934 = vunpack.c.l.b16 %v2754
      %v2935 = vunpack.c.l.b16 %v2755
      %v2936 = vunpack.c.l.b16 %v2756
      %v2937 = vunpack.c.l.b16 %v2757
      %v2938 = vunpack.c.l.b16 %v2758
      %v2939 = vpack.c.b16 %v2924, %v2923
      %v2940 = vpack.c.b16 %v2926, %v2925
      %v2941 = vpack.c.b16 %v2928, %v2927
      %v2942 = vpack.c.b16 %v2930, %v2929
      %v2943 = vpack.c.b16 %v2932, %v2931
      %v2944 = vpack.c.b16 %v2934, %v2933
      %v2945 = vpack.c.b16 %v2936, %v2935
      %v2946 = vpack.c.b16 %v2938, %v2937
      %2955 = vmatprep.subr.bf16.mxu0 0
      %2956 = vmatpush1.bf16.msra.mxu0 %v2939
      %2957 = vmatprep.subr.bf16.mxu0 0
      %2958 = vmatpush1.bf16.msra.mxu0 %v2940
      %2959 = vmatprep.subr.bf16.mxu0 0
      %2960 = vmatpush1.bf16.msra.mxu0 %v2941
      %2961 = vmatprep.subr.bf16.mxu0 0
      %2962 = vmatpush1.bf16.msra.mxu0 %v2942
      %2963 = vmatprep.subr.bf16.mxu0 0
      %2964 = vmatpush1.bf16.msra.mxu0 %v2943
      %2965 = vmatprep.subr.bf16.mxu0 0
      %2966 = vmatpush1.bf16.msra.mxu0 %v2944
      %2967 = vmatprep.subr.bf16.mxu0 0
      %2968 = vmatpush1.bf16.msra.mxu0 %v2945
      %2969 = vmatprep.subr.bf16.mxu0 0
      %2970 = vmatpush1.bf16.msra.mxu0 %v2946
      %2971 = vmatprep.subr.bf16.mxu0 0
      %2972 = vmatpush1.bf16.msra.mxu0 0
      %2973 = vmatprep.subr.bf16.mxu0 0
      %2974 = vmatpush1.bf16.msra.mxu0 0
      %2975 = vmatprep.subr.bf16.mxu0 0
      %2976 = vmatpush1.bf16.msra.mxu0 0
      %2977 = vmatprep.subr.bf16.mxu0 0
      %2978 = vmatpush1.bf16.msra.mxu0 0
      %2979 = vmatprep.subr.bf16.mxu0 0
      %2980 = vmatpush1.bf16.msra.mxu0 0
      %2981 = vmatprep.subr.bf16.mxu0 0
      %2982 = vmatpush1.bf16.msra.mxu0 0
      %2983 = vmatprep.subr.bf16.mxu0 0
      %2984 = vmatpush1.bf16.msra.mxu0 0
      %2985 = vmatprep.subr.bf16.mxu0 0
      %2986 = vmatpush1.bf16.msra.mxu0 0
      %2987 = vmatprep.mubr.bf16.mxu0 0
      %2988 = vmatmul.mubr.bf16.gmra.mrb[0].mxu0 %v2854
      %v2989 = vpop.f32.mrb[0].mxu0
      %v2990 = vadd.f32 0.0, %v2989
      %v2991 = vpop.f32.mrb[0].mxu0
      %v2992 = vpop.f32.mrb[0].mxu0
      %v2993 = vadd.f32 0.0, %v2992
      %v2994 = vpop.f32.mrb[0].mxu0
      %2995 = vmatprep.mubr.bf16.mxu0 0
      %2996 = vmatmul.mubr.bf16.gmra.mrb[0].mxu0 %v2856
      %v2997 = vpop.f32.mrb[0].mxu0
      %v2998 = vadd.f32 0.0, %v2997
      %v2999 = vpop.f32.mrb[0].mxu0
      %v3000 = vpop.f32.mrb[0].mxu0
      %v3001 = vadd.f32 0.0, %v3000
      %v3002 = vpop.f32.mrb[0].mxu0
      %3003 = vmatprep.mubr.bf16.mxu0 0
      %3004 = vmatmul.mubr.bf16.gmra.mrb[0].mxu0 %v2858
      %v3005 = vpop.f32.mrb[0].mxu0
      %v3006 = vadd.f32 0.0, %v3005
      %v3007 = vpop.f32.mrb[0].mxu0
      %v3008 = vpop.f32.mrb[0].mxu0
      %v3009 = vadd.f32 0.0, %v3008
      %v3010 = vpop.f32.mrb[0].mxu0
      %3011 = vmatprep.mubr.bf16.mxu0 0
      %3012 = vmatmul.mubr.bf16.gmra.mrb[0].mxu0 %v2860
      %v3013 = vpop.f32.mrb[0].mxu0
      %v3014 = vadd.f32 0.0, %v3013
      %v3015 = vpop.f32.mrb[0].mxu0
      %v3016 = vpop.f32.mrb[0].mxu0
      %v3017 = vadd.f32 0.0, %v3016
      %v3018 = vpop.f32.mrb[0].mxu0
      %3019 = vmatprep.mubr.bf16.mxu0 0
      %3020 = vmatmul.mubr.bf16.gmra.mrb[0].mxu0 %v2862
      %v3021 = vpop.f32.mrb[0].mxu0
      %v3022 = vadd.f32 0.0, %v3021
      %v3023 = vpop.f32.mrb[0].mxu0
      %v3024 = vpop.f32.mrb[0].mxu0
      %v3025 = vadd.f32 0.0, %v3024
      %v3026 = vpop.f32.mrb[0].mxu0
      %3027 = vmatprep.mubr.bf16.mxu0 0
      %3028 = vmatmul.mubr.bf16.gmra.mrb[0].mxu0 %v2864
      %v3029 = vpop.f32.mrb[0].mxu0
      %v3030 = vadd.f32 0.0, %v3029
      %v3031 = vpop.f32.mrb[0].mxu0
      %v3032 = vpop.f32.mrb[0].mxu0
      %v3033 = vadd.f32 0.0, %v3032
      %v3034 = vpop.f32.mrb[0].mxu0
      %3035 = vmatprep.mubr.bf16.mxu0 0
      %3036 = vmatmul.mubr.bf16.gmra.mrb[0].mxu0 %v2866
      %v3037 = vpop.f32.mrb[0].mxu0
      %v3038 = vadd.f32 0.0, %v3037
      %v3039 = vpop.f32.mrb[0].mxu0
      %v3040 = vpop.f32.mrb[0].mxu0
      %v3041 = vadd.f32 0.0, %v3040
      %v3042 = vpop.f32.mrb[0].mxu0
      %3043 = vmatprep.mubr.bf16.mxu0 0
      %3044 = vmatmul.mubr.bf16.gmra.mrb[0].mxu0 %v2868
      %v3045 = vpop.f32.mrb[0].mxu0
      %v3046 = vadd.f32 0.0, %v3045
      %v3047 = vpop.f32.mrb[0].mxu0
      %v3048 = vpop.f32.mrb[0].mxu0
      %v3049 = vadd.f32 0.0, %v3048
      %v3050 = vpop.f32.mrb[0].mxu0
      %3051 = vmatprep.mubr.bf16.mxu0 0
      %3052 = vmatmul.mubr.bf16.gmra.mrb[0].mxu0 %v2870
      %v3053 = vpop.f32.mrb[0].mxu0
      %v3054 = vadd.f32 0.0, %v3053
      %v3055 = vpop.f32.mrb[0].mxu0
      %v3056 = vpop.f32.mrb[0].mxu0
      %v3057 = vadd.f32 0.0, %v3056
      %v3058 = vpop.f32.mrb[0].mxu0
      %3059 = vmatprep.mubr.bf16.mxu0 0
      %3060 = vmatmul.mubr.bf16.gmra.mrb[0].mxu0 %v2872
      %v3061 = vpop.f32.mrb[0].mxu0
      %v3062 = vadd.f32 0.0, %v3061
      %v3063 = vpop.f32.mrb[0].mxu0
      %v3064 = vpop.f32.mrb[0].mxu0
      %v3065 = vadd.f32 0.0, %v3064
      %v3066 = vpop.f32.mrb[0].mxu0
      %3067 = vmatprep.mubr.bf16.mxu0 0
      %3068 = vmatmul.mubr.bf16.gmra.mrb[0].mxu0 %v2874
      %v3069 = vpop.f32.mrb[0].mxu0
      %v3070 = vadd.f32 0.0, %v3069
      %v3071 = vpop.f32.mrb[0].mxu0
      %v3072 = vpop.f32.mrb[0].mxu0
      %v3073 = vadd.f32 0.0, %v3072
      %v3074 = vpop.f32.mrb[0].mxu0
      %3075 = vmatprep.mubr.bf16.mxu0 0
      %3076 = vmatmul.mubr.bf16.gmra.mrb[0].mxu0 %v2876
      %v3077 = vpop.f32.mrb[0].mxu0
      %v3078 = vadd.f32 0.0, %v3077
      %v3079 = vpop.f32.mrb[0].mxu0
      %v3080 = vpop.f32.mrb[0].mxu0
      %v3081 = vadd.f32 0.0, %v3080
      %v3082 = vpop.f32.mrb[0].mxu0
      %3083 = vmatprep.mubr.bf16.mxu0 0
      %3084 = vmatmul.mubr.bf16.gmra.mrb[0].mxu0 %v2878
      %v3085 = vpop.f32.mrb[0].mxu0
      %v3086 = vadd.f32 0.0, %v3085
      %v3087 = vpop.f32.mrb[0].mxu0
      %v3088 = vpop.f32.mrb[0].mxu0
      %v3089 = vadd.f32 0.0, %v3088
      %v3090 = vpop.f32.mrb[0].mxu0
      %3091 = vmatprep.mubr.bf16.mxu0 0
      %3092 = vmatmul.mubr.bf16.gmra.mrb[0].mxu0 %v2880
      %v3093 = vpop.f32.mrb[0].mxu0
      %v3094 = vadd.f32 0.0, %v3093
      %v3095 = vpop.f32.mrb[0].mxu0
      %v3096 = vpop.f32.mrb[0].mxu0
      %v3097 = vadd.f32 0.0, %v3096
      %v3098 = vpop.f32.mrb[0].mxu0
      %3099 = vmatprep.mubr.bf16.mxu0 0
      %3100 = vmatmul.mubr.bf16.gmra.mrb[0].mxu0 %v2882
      %v3101 = vpop.f32.mrb[0].mxu0
      %v3102 = vadd.f32 0.0, %v3101
      %v3103 = vpop.f32.mrb[0].mxu0
      %v3104 = vpop.f32.mrb[0].mxu0
      %v3105 = vadd.f32 0.0, %v3104
      %v3106 = vpop.f32.mrb[0].mxu0
      %3107 = vmatprep.mubr.bf16.mxu0 0
      %3108 = vmatmul.mubr.bf16.gmra.mrb[0].mxu0 %v2884
      %v3109 = vpop.f32.mrb[0].mxu0
      %v3110 = vadd.f32 0.0, %v3109
      %v3111 = vpop.f32.mrb[0].mxu0
      %v3112 = vpop.f32.mrb[0].mxu0
      %v3113 = vadd.f32 0.0, %v3112
      %v3114 = vpop.f32.mrb[0].mxu0
      %3115 = vmatprep.mubr.bf16.mxu0 0
      %3116 = vmatmul.mubr.bf16.gmra.mrb[0].mxu0 %v2886
      %v3117 = vpop.f32.mrb[0].mxu0
      %v3118 = vadd.f32 0.0, %v3117
      %v3119 = vpop.f32.mrb[0].mxu0
      %v3120 = vpop.f32.mrb[0].mxu0
      %v3121 = vadd.f32 0.0, %v3120
      %v3122 = vpop.f32.mrb[0].mxu0
      %3123 = vmatprep.mubr.bf16.mxu0 0
      %3124 = vmatmul.mubr.bf16.gmra.mrb[0].mxu0 %v2888
      %v3125 = vpop.f32.mrb[0].mxu0
      %v3126 = vadd.f32 0.0, %v3125
      %v3127 = vpop.f32.mrb[0].mxu0
      %v3128 = vpop.f32.mrb[0].mxu0
      %v3129 = vadd.f32 0.0, %v3128
      %v3130 = vpop.f32.mrb[0].mxu0
      %3131 = vdwg.mxu0
      %v3132 = vadd.f32 %v2669, %v2990
      %v3133 = vadd.f32 %v2670, %v2993
      %v3134 = vadd.f32 %v2671, %v2998
      %v3135 = vadd.f32 %v2672, %v3001
      %v3136 = vadd.f32 %v2673, %v3006
      %v3137 = vadd.f32 %v2674, %v3009
      %v3138 = vadd.f32 %v2675, %v3014
      %v3139 = vadd.f32 %v2676, %v3017
      %v3140 = vadd.f32 %v2677, %v3022
      %v3141 = vadd.f32 %v2678, %v3025
      %v3142 = vadd.f32 %v2679, %v3030
      %v3143 = vadd.f32 %v2680, %v3033
      %v3144 = vadd.f32 %v2681, %v3038
      %v3145 = vadd.f32 %v2682, %v3041
      %v3146 = vadd.f32 %v2683, %v3046
      %v3147 = vadd.f32 %v2684, %v3049
      %v3148 = vadd.f32 %v2685, %v3054
      %v3149 = vadd.f32 %v2686, %v3057
      %v3150 = vadd.f32 %v2687, %v3062
      %v3151 = vadd.f32 %v2688, %v3065
      %v3152 = vadd.f32 %v2689, %v3070
      %v3153 = vadd.f32 %v2690, %v3073
      %v3154 = vadd.f32 %v2691, %v3078
      %v3155 = vadd.f32 %v2692, %v3081
      %v3156 = vadd.f32 %v2693, %v3086
      %v3157 = vadd.f32 %v2694, %v3089
      %v3158 = vadd.f32 %v2695, %v3094
      %v3159 = vadd.f32 %v2696, %v3097
      %v3160 = vadd.f32 %v2697, %v3102
      %v3161 = vadd.f32 %v2698, %v3105
      %v3162 = vadd.f32 %v2699, %v3110
      %v3163 = vadd.f32 %v2700, %v3113
      %v3164 = vadd.f32 %v2701, %v3118
      %v3165 = vadd.f32 %v2702, %v3121
      %v3166 = vadd.f32 %v2703, %v3126
      %v3167 = vadd.f32 %v2704, %v3129
      %v3168 = vld [vmem:[%s284 + $0xa0] sm:$0x7]
      %s3169 = scalar_lea.vmem %s1, 448
      %v3170 = vld [vmem:[%s3169] sm:$0xf]
      %v3171 = vld [vmem:[%s3169 + $0x4] sm:$0xf]
      %v3172 = vld [vmem:[%s3169 + $0x8] sm:$0xf]
      %v3173 = vld [vmem:[%s3169 + $0xc] sm:$0xf]
      %v3174 = vld [vmem:[%s3169 + $0x10] sm:$0xf]
      %v3175 = vld [vmem:[%s3169 + $0x14] sm:$0xf]
      %v3176 = vld [vmem:[%s3169 + $0x18] sm:$0xf]
      %v3177 = vld [vmem:[%s3169 + $0x1c] sm:$0xf]
      %v3178 = vld [vmem:[%s3169 + $0x20] sm:$0xf]
      %v3179 = vld [vmem:[%s3169 + $0x24] sm:$0xf]
      %v3180 = vld [vmem:[%s3169 + $0x28] sm:$0xf]
      %v3181 = vld [vmem:[%s3169 + $0x2c] sm:$0xf]
      %v3182 = vld [vmem:[%s3169 + $0x30] sm:$0xf]
      %v3183 = vld [vmem:[%s3169 + $0x34] sm:$0xf]
      %v3184 = vld [vmem:[%s3169 + $0x38] sm:$0xf]
      %v3185 = vld [vmem:[%s3169 + $0x3c] sm:$0xf]
      %v3187 = vunpack.c.l.b16 %v3168
      %v3188 = vpack.c.b16 %v3187, %v3187
      %vm3189 = vsmask.f32 5376
      %v3191 = vshrl.u32 %v2833, 16
      %v3193 = vrot.slane %v3191, 2
      %v3194 = vshll.u32 %v2833, 16
      %v3196 = vrot.slane %v3194, 3
      %v3197 = vor.u32 %v3193, %v3196
      %v3199 = vshrl.u32 %v2834, 16
      %v3201 = vrot.slane %v3199, 2
      %v3202 = vshll.u32 %v2834, 16
      %v3204 = vrot.slane %v3202, 3
      %v3205 = vor.u32 %v3201, %v3204
      %v3206 = vsel %vm3189, %v3197, %v3205
      %v3208 = vshrl.u32 %v2835, 16
      %v3210 = vrot.slane %v3208, 2
      %v3211 = vshll.u32 %v2835, 16
      %v3213 = vrot.slane %v3211, 3
      %v3214 = vor.u32 %v3210, %v3213
      %v3215 = vsel %vm3189, %v3205, %v3214
      %v3217 = vshrl.u32 %v2836, 16
      %v3219 = vrot.slane %v3217, 2
      %v3220 = vshll.u32 %v2836, 16
      %v3222 = vrot.slane %v3220, 3
      %v3223 = vor.u32 %v3219, %v3222
      %v3224 = vsel %vm3189, %v3214, %v3223
      %v3226 = vshrl.u32 %v2837, 16
      %v3228 = vrot.slane %v3226, 2
      %v3229 = vshll.u32 %v2837, 16
      %v3231 = vrot.slane %v3229, 3
      %v3232 = vor.u32 %v3228, %v3231
      %v3233 = vsel %vm3189, %v3223, %v3232
      %v3235 = vshrl.u32 %v2838, 16
      %v3237 = vrot.slane %v3235, 2
      %v3238 = vshll.u32 %v2838, 16
      %v3240 = vrot.slane %v3238, 3
      %v3241 = vor.u32 %v3237, %v3240
      %v3242 = vsel %vm3189, %v3232, %v3241
      %v3244 = vshrl.u32 %v2839, 16
      %v3246 = vrot.slane %v3244, 2
      %v3247 = vshll.u32 %v2839, 16
      %v3249 = vrot.slane %v3247, 3
      %v3250 = vor.u32 %v3246, %v3249
      %v3251 = vsel %vm3189, %v3241, %v3250
      %v3253 = vshrl.u32 %v2840, 16
      %v3255 = vrot.slane %v3253, 2
      %v3256 = vshll.u32 %v2840, 16
      %v3258 = vrot.slane %v3256, 3
      %v3259 = vor.u32 %v3255, %v3258
      %v3260 = vsel %vm3189, %v3250, %v3259
      %v3262 = vshrl.u32 %v2841, 16
      %v3264 = vrot.slane %v3262, 2
      %v3265 = vshll.u32 %v2841, 16
      %v3267 = vrot.slane %v3265, 3
      %v3268 = vor.u32 %v3264, %v3267
      %v3269 = vsel %vm3189, %v3259, %v3268
      %v3271 = vshrl.u32 %v2842, 16
      %v3273 = vrot.slane %v3271, 2
      %v3274 = vshll.u32 %v2842, 16
      %v3276 = vrot.slane %v3274, 3
      %v3277 = vor.u32 %v3273, %v3276
      %v3278 = vsel %vm3189, %v3268, %v3277
      %v3280 = vshrl.u32 %v2843, 16
      %v3282 = vrot.slane %v3280, 2
      %v3283 = vshll.u32 %v2843, 16
      %v3285 = vrot.slane %v3283, 3
      %v3286 = vor.u32 %v3282, %v3285
      %v3287 = vsel %vm3189, %v3277, %v3286
      %v3289 = vshrl.u32 %v2844, 16
      %v3291 = vrot.slane %v3289, 2
      %v3292 = vshll.u32 %v2844, 16
      %v3294 = vrot.slane %v3292, 3
      %v3295 = vor.u32 %v3291, %v3294
      %v3296 = vsel %vm3189, %v3286, %v3295
      %v3298 = vshrl.u32 %v2845, 16
      %v3300 = vrot.slane %v3298, 2
      %v3301 = vshll.u32 %v2845, 16
      %v3303 = vrot.slane %v3301, 3
      %v3304 = vor.u32 %v3300, %v3303
      %v3305 = vsel %vm3189, %v3295, %v3304
      %v3307 = vshrl.u32 %v2846, 16
      %v3309 = vrot.slane %v3307, 2
      %v3310 = vshll.u32 %v2846, 16
      %v3312 = vrot.slane %v3310, 3
      %v3313 = vor.u32 %v3309, %v3312
      %v3314 = vsel %vm3189, %v3304, %v3313
      %v3316 = vshrl.u32 %v2847, 16
      %v3318 = vrot.slane %v3316, 2
      %v3319 = vshll.u32 %v2847, 16
      %v3321 = vrot.slane %v3319, 3
      %v3322 = vor.u32 %v3318, %v3321
      %v3323 = vsel %vm3189, %v3313, %v3322
      %v3325 = vshrl.u32 %v2848, 16
      %v3327 = vrot.slane %v3325, 2
      %v3328 = vshll.u32 %v2848, 16
      %v3330 = vrot.slane %v3328, 3
      %v3331 = vor.u32 %v3327, %v3330
      %v3332 = vsel %vm3189, %v3322, %v3331
      %v3334 = vshrl.u32 %v2849, 16
      %v3336 = vrot.slane %v3334, 2
      %v3337 = vshll.u32 %v2849, 16
      %v3339 = vrot.slane %v3337, 3
      %v3340 = vor.u32 %v3336, %v3339
      %v3341 = vsel %vm3189, %v3331, %v3340
      %v3343 = vshrl.u32 %v2850, 16
      %v3345 = vrot.slane %v3343, 2
      %v3346 = vshll.u32 %v2850, 16
      %v3348 = vrot.slane %v3346, 3
      %v3349 = vor.u32 %v3345, %v3348
      %v3350 = vsel %vm3189, %v3340, %v3349
      %v3352 = vshrl.u32 %v3188, 16
      %v3354 = vrot.slane %v3352, 2
      %v3355 = vshll.u32 %v3188, 16
      %v3357 = vrot.slane %v3355, 3
      %v3358 = vor.u32 %v3354, %v3357
      %v3359 = vsel %vm3189, %v3349, %v3358
      %v3394 = vunpack.c.l.b16 %v3170
      %v3395 = vunpack.c.l.b16 %v3171
      %v3396 = vunpack.c.l.b16 %v3172
      %v3397 = vunpack.c.l.b16 %v3173
      %v3398 = vunpack.c.l.b16 %v3174
      %v3399 = vunpack.c.l.b16 %v3175
      %v3400 = vunpack.c.l.b16 %v3176
      %v3401 = vunpack.c.l.b16 %v3177
      %v3402 = vunpack.c.l.b16 %v3178
      %v3403 = vunpack.c.l.b16 %v3179
      %v3404 = vunpack.c.l.b16 %v3180
      %v3405 = vunpack.c.l.b16 %v3181
      %v3406 = vunpack.c.l.b16 %v3182
      %v3407 = vunpack.c.l.b16 %v3183
      %v3408 = vunpack.c.l.b16 %v3184
      %v3409 = vunpack.c.l.b16 %v3185
      %v3410 = vpack.c.b16 %v3395, %v3394
      %v3411 = vpack.c.b16 %v3397, %v3396
      %v3412 = vpack.c.b16 %v3399, %v3398
      %v3413 = vpack.c.b16 %v3401, %v3400
      %v3414 = vpack.c.b16 %v3403, %v3402
      %v3415 = vpack.c.b16 %v3405, %v3404
      %v3416 = vpack.c.b16 %v3407, %v3406
      %v3417 = vpack.c.b16 %v3409, %v3408
      %3426 = vmatprep.subr.bf16.mxu0 0
      %3427 = vmatpush1.bf16.msra.mxu0 %v3410
      %3428 = vmatprep.subr.bf16.mxu0 0
      %3429 = vmatpush1.bf16.msra.mxu0 %v3411
      %3430 = vmatprep.subr.bf16.mxu0 0
      %3431 = vmatpush1.bf16.msra.mxu0 %v3412
      %3432 = vmatprep.subr.bf16.mxu0 0
      %3433 = vmatpush1.bf16.msra.mxu0 %v3413
      %3434 = vmatprep.subr.bf16.mxu0 0
      %3435 = vmatpush1.bf16.msra.mxu0 %v3414
      %3436 = vmatprep.subr.bf16.mxu0 0
      %3437 = vmatpush1.bf16.msra.mxu0 %v3415
      %3438 = vmatprep.subr.bf16.mxu0 0
      %3439 = vmatpush1.bf16.msra.mxu0 %v3416
      %3440 = vmatprep.subr.bf16.mxu0 0
      %3441 = vmatpush1.bf16.msra.mxu0 %v3417
      %3442 = vmatprep.subr.bf16.mxu0 0
      %3443 = vmatpush1.bf16.msra.mxu0 0
      %3444 = vmatprep.subr.bf16.mxu0 0
      %3445 = vmatpush1.bf16.msra.mxu0 0
      %3446 = vmatprep.subr.bf16.mxu0 0
      %3447 = vmatpush1.bf16.msra.mxu0 0
      %3448 = vmatprep.subr.bf16.mxu0 0
      %3449 = vmatpush1.bf16.msra.mxu0 0
      %3450 = vmatprep.subr.bf16.mxu0 0
      %3451 = vmatpush1.bf16.msra.mxu0 0
      %3452 = vmatprep.subr.bf16.mxu0 0
      %3453 = vmatpush1.bf16.msra.mxu0 0
      %3454 = vmatprep.subr.bf16.mxu0 0
      %3455 = vmatpush1.bf16.msra.mxu0 0
      %3456 = vmatprep.subr.bf16.mxu0 0
      %3457 = vmatpush1.bf16.msra.mxu0 0
      %3458 = vmatprep.mubr.bf16.mxu0 0
      %3459 = vmatmul.mubr.bf16.gmra.mrb[0].mxu0 %v3206
      %v3460 = vpop.f32.mrb[0].mxu0
      %v3461 = vadd.f32 0.0, %v3460
      %v3462 = vpop.f32.mrb[0].mxu0
      %v3463 = vpop.f32.mrb[0].mxu0
      %v3464 = vadd.f32 0.0, %v3463
      %v3465 = vpop.f32.mrb[0].mxu0
      %3466 = vmatprep.mubr.bf16.mxu0 0
      %3467 = vmatmul.mubr.bf16.gmra.mrb[0].mxu0 %v3215
      %v3468 = vpop.f32.mrb[0].mxu0
      %v3469 = vadd.f32 0.0, %v3468
      %v3470 = vpop.f32.mrb[0].mxu0
      %v3471 = vpop.f32.mrb[0].mxu0
      %v3472 = vadd.f32 0.0, %v3471
      %v3473 = vpop.f32.mrb[0].mxu0
      %3474 = vmatprep.mubr.bf16.mxu0 0
      %3475 = vmatmul.mubr.bf16.gmra.mrb[0].mxu0 %v3224
      %v3476 = vpop.f32.mrb[0].mxu0
      %v3477 = vadd.f32 0.0, %v3476
      %v3478 = vpop.f32.mrb[0].mxu0
      %v3479 = vpop.f32.mrb[0].mxu0
      %v3480 = vadd.f32 0.0, %v3479
      %v3481 = vpop.f32.mrb[0].mxu0
      %3482 = vmatprep.mubr.bf16.mxu0 0
      %3483 = vmatmul.mubr.bf16.gmra.mrb[0].mxu0 %v3233
      %v3484 = vpop.f32.mrb[0].mxu0
      %v3485 = vadd.f32 0.0, %v3484
      %v3486 = vpop.f32.mrb[0].mxu0
      %v3487 = vpop.f32.mrb[0].mxu0
      %v3488 = vadd.f32 0.0, %v3487
      %v3489 = vpop.f32.mrb[0].mxu0
      %3490 = vmatprep.mubr.bf16.mxu0 0
      %3491 = vmatmul.mubr.bf16.gmra.mrb[0].mxu0 %v3242
      %v3492 = vpop.f32.mrb[0].mxu0
      %v3493 = vadd.f32 0.0, %v3492
      %v3494 = vpop.f32.mrb[0].mxu0
      %v3495 = vpop.f32.mrb[0].mxu0
      %v3496 = vadd.f32 0.0, %v3495
      %v3497 = vpop.f32.mrb[0].mxu0
      %3498 = vmatprep.mubr.bf16.mxu0 0
      %3499 = vmatmul.mubr.bf16.gmra.mrb[0].mxu0 %v3251
      %v3500 = vpop.f32.mrb[0].mxu0
      %v3501 = vadd.f32 0.0, %v3500
      %v3502 = vpop.f32.mrb[0].mxu0
      %v3503 = vpop.f32.mrb[0].mxu0
      %v3504 = vadd.f32 0.0, %v3503
      %v3505 = vpop.f32.mrb[0].mxu0
      %3506 = vmatprep.mubr.bf16.mxu0 0
      %3507 = vmatmul.mubr.bf16.gmra.mrb[0].mxu0 %v3260
      %v3508 = vpop.f32.mrb[0].mxu0
      %v3509 = vadd.f32 0.0, %v3508
      %v3510 = vpop.f32.mrb[0].mxu0
      %v3511 = vpop.f32.mrb[0].mxu0
      %v3512 = vadd.f32 0.0, %v3511
      %v3513 = vpop.f32.mrb[0].mxu0
      %3514 = vmatprep.mubr.bf16.mxu0 0
      %3515 = vmatmul.mubr.bf16.gmra.mrb[0].mxu0 %v3269
      %v3516 = vpop.f32.mrb[0].mxu0
      %v3517 = vadd.f32 0.0, %v3516
      %v3518 = vpop.f32.mrb[0].mxu0
      %v3519 = vpop.f32.mrb[0].mxu0
      %v3520 = vadd.f32 0.0, %v3519
      %v3521 = vpop.f32.mrb[0].mxu0
      %3522 = vmatprep.mubr.bf16.mxu0 0
      %3523 = vmatmul.mubr.bf16.gmra.mrb[0].mxu0 %v3278
      %v3524 = vpop.f32.mrb[0].mxu0
      %v3525 = vadd.f32 0.0, %v3524
      %v3526 = vpop.f32.mrb[0].mxu0
      %v3527 = vpop.f32.mrb[0].mxu0
      %v3528 = vadd.f32 0.0, %v3527
      %v3529 = vpop.f32.mrb[0].mxu0
      %3530 = vmatprep.mubr.bf16.mxu0 0
      %3531 = vmatmul.mubr.bf16.gmra.mrb[0].mxu0 %v3287
      %v3532 = vpop.f32.mrb[0].mxu0
      %v3533 = vadd.f32 0.0, %v3532
      %v3534 = vpop.f32.mrb[0].mxu0
      %v3535 = vpop.f32.mrb[0].mxu0
      %v3536 = vadd.f32 0.0, %v3535
      %v3537 = vpop.f32.mrb[0].mxu0
      %3538 = vmatprep.mubr.bf16.mxu0 0
      %3539 = vmatmul.mubr.bf16.gmra.mrb[0].mxu0 %v3296
      %v3540 = vpop.f32.mrb[0].mxu0
      %v3541 = vadd.f32 0.0, %v3540
      %v3542 = vpop.f32.mrb[0].mxu0
      %v3543 = vpop.f32.mrb[0].mxu0
      %v3544 = vadd.f32 0.0, %v3543
      %v3545 = vpop.f32.mrb[0].mxu0
      %3546 = vmatprep.mubr.bf16.mxu0 0
      %3547 = vmatmul.mubr.bf16.gmra.mrb[0].mxu0 %v3305
      %v3548 = vpop.f32.mrb[0].mxu0
      %v3549 = vadd.f32 0.0, %v3548
      %v3550 = vpop.f32.mrb[0].mxu0
      %v3551 = vpop.f32.mrb[0].mxu0
      %v3552 = vadd.f32 0.0, %v3551
      %v3553 = vpop.f32.mrb[0].mxu0
      %3554 = vmatprep.mubr.bf16.mxu0 0
      %3555 = vmatmul.mubr.bf16.gmra.mrb[0].mxu0 %v3314
      %v3556 = vpop.f32.mrb[0].mxu0
      %v3557 = vadd.f32 0.0, %v3556
      %v3558 = vpop.f32.mrb[0].mxu0
      %v3559 = vpop.f32.mrb[0].mxu0
      %v3560 = vadd.f32 0.0, %v3559
      %v3561 = vpop.f32.mrb[0].mxu0
      %3562 = vmatprep.mubr.bf16.mxu0 0
      %3563 = vmatmul.mubr.bf16.gmra.mrb[0].mxu0 %v3323
      %v3564 = vpop.f32.mrb[0].mxu0
      %v3565 = vadd.f32 0.0, %v3564
      %v3566 = vpop.f32.mrb[0].mxu0
      %v3567 = vpop.f32.mrb[0].mxu0
      %v3568 = vadd.f32 0.0, %v3567
      %v3569 = vpop.f32.mrb[0].mxu0
      %3570 = vmatprep.mubr.bf16.mxu0 0
      %3571 = vmatmul.mubr.bf16.gmra.mrb[0].mxu0 %v3332
      %v3572 = vpop.f32.mrb[0].mxu0
      %v3573 = vadd.f32 0.0, %v3572
      %v3574 = vpop.f32.mrb[0].mxu0
      %v3575 = vpop.f32.mrb[0].mxu0
      %v3576 = vadd.f32 0.0, %v3575
      %v3577 = vpop.f32.mrb[0].mxu0
      %3578 = vmatprep.mubr.bf16.mxu0 0
      %3579 = vmatmul.mubr.bf16.gmra.mrb[0].mxu0 %v3341
      %v3580 = vpop.f32.mrb[0].mxu0
      %v3581 = vadd.f32 0.0, %v3580
      %v3582 = vpop.f32.mrb[0].mxu0
      %v3583 = vpop.f32.mrb[0].mxu0
      %v3584 = vadd.f32 0.0, %v3583
      %v3585 = vpop.f32.mrb[0].mxu0
      %3586 = vmatprep.mubr.bf16.mxu0 0
      %3587 = vmatmul.mubr.bf16.gmra.mrb[0].mxu0 %v3350
      %v3588 = vpop.f32.mrb[0].mxu0
      %v3589 = vadd.f32 0.0, %v3588
      %v3590 = vpop.f32.mrb[0].mxu0
      %v3591 = vpop.f32.mrb[0].mxu0
      %v3592 = vadd.f32 0.0, %v3591
      %v3593 = vpop.f32.mrb[0].mxu0
      %3594 = vmatprep.mubr.bf16.mxu0 0
      %3595 = vmatmul.mubr.bf16.gmra.mrb[0].mxu0 %v3359
      %v3596 = vpop.f32.mrb[0].mxu0
      %v3597 = vadd.f32 0.0, %v3596
      %v3598 = vpop.f32.mrb[0].mxu0
      %v3599 = vpop.f32.mrb[0].mxu0
      %v3600 = vadd.f32 0.0, %v3599
      %v3601 = vpop.f32.mrb[0].mxu0
      %3602 = vdwg.mxu0
      %v3603 = vadd.f32 %v3132, %v3461
      %v3604 = vadd.f32 %v3133, %v3464
      %v3605 = vadd.f32 %v3134, %v3469
      %v3606 = vadd.f32 %v3135, %v3472
      %v3607 = vadd.f32 %v3136, %v3477
      %v3608 = vadd.f32 %v3137, %v3480
      %v3609 = vadd.f32 %v3138, %v3485
      %v3610 = vadd.f32 %v3139, %v3488
      %v3611 = vadd.f32 %v3140, %v3493
      %v3612 = vadd.f32 %v3141, %v3496
      %v3613 = vadd.f32 %v3142, %v3501
      %v3614 = vadd.f32 %v3143, %v3504
      %v3615 = vadd.f32 %v3144, %v3509
      %v3616 = vadd.f32 %v3145, %v3512
      %v3617 = vadd.f32 %v3146, %v3517
      %v3618 = vadd.f32 %v3147, %v3520
      %v3619 = vadd.f32 %v3148, %v3525
      %v3620 = vadd.f32 %v3149, %v3528
      %v3621 = vadd.f32 %v3150, %v3533
      %v3622 = vadd.f32 %v3151, %v3536
      %v3623 = vadd.f32 %v3152, %v3541
      %v3624 = vadd.f32 %v3153, %v3544
      %v3625 = vadd.f32 %v3154, %v3549
      %v3626 = vadd.f32 %v3155, %v3552
      %v3627 = vadd.f32 %v3156, %v3557
      %v3628 = vadd.f32 %v3157, %v3560
      %v3629 = vadd.f32 %v3158, %v3565
      %v3630 = vadd.f32 %v3159, %v3568
      %v3631 = vadd.f32 %v3160, %v3573
      %v3632 = vadd.f32 %v3161, %v3576
      %v3633 = vadd.f32 %v3162, %v3581
      %v3634 = vadd.f32 %v3163, %v3584
      %v3635 = vadd.f32 %v3164, %v3589
      %v3636 = vadd.f32 %v3165, %v3592
      %v3637 = vadd.f32 %v3166, %v3597
      %v3638 = vadd.f32 %v3167, %v3600
      %v3639 = vld [vmem:[%s284 + $0x10] sm:$0x8]
      %s3640 = scalar_lea.vmem %s1, 512
      %v3641 = vld [vmem:[%s3640] sm:$0xf]
      %v3642 = vld [vmem:[%s3640 + $0x4] sm:$0xf]
      %v3643 = vld [vmem:[%s3640 + $0x8] sm:$0xf]
      %v3644 = vld [vmem:[%s3640 + $0xc] sm:$0xf]
      %v3645 = vld [vmem:[%s3640 + $0x10] sm:$0xf]
      %v3646 = vld [vmem:[%s3640 + $0x14] sm:$0xf]
      %v3647 = vld [vmem:[%s3640 + $0x18] sm:$0xf]
      %v3648 = vld [vmem:[%s3640 + $0x1c] sm:$0xf]
      %v3649 = vld [vmem:[%s3640 + $0x20] sm:$0xf]
      %v3650 = vld [vmem:[%s3640 + $0x24] sm:$0xf]
      %v3651 = vld [vmem:[%s3640 + $0x28] sm:$0xf]
      %v3652 = vld [vmem:[%s3640 + $0x2c] sm:$0xf]
      %v3653 = vld [vmem:[%s3640 + $0x30] sm:$0xf]
      %v3654 = vld [vmem:[%s3640 + $0x34] sm:$0xf]
      %v3655 = vld [vmem:[%s3640 + $0x38] sm:$0xf]
      %v3656 = vld [vmem:[%s3640 + $0x3c] sm:$0xf]
      %v3658 = vunpack.c.l.b16 %v3639
      %v3659 = vpack.c.b16 %v2797, %v3658
      %vm3660 = vcmask 1044480
      %v3661 = vrot.slane %v3659, 3
      %v3662 = vrot.slane %v2834, 3
      %v3663 = vsel %vm3660, %v3661, %v3662
      %v3664 = vrot.slane %v2835, 3
      %v3665 = vsel %vm3660, %v3662, %v3664
      %v3666 = vrot.slane %v2836, 3
      %v3667 = vsel %vm3660, %v3664, %v3666
      %v3668 = vrot.slane %v2837, 3
      %v3669 = vsel %vm3660, %v3666, %v3668
      %v3670 = vrot.slane %v2838, 3
      %v3671 = vsel %vm3660, %v3668, %v3670
      %v3672 = vrot.slane %v2839, 3
      %v3673 = vsel %vm3660, %v3670, %v3672
      %v3674 = vrot.slane %v2840, 3
      %v3675 = vsel %vm3660, %v3672, %v3674
      %v3676 = vrot.slane %v2841, 3
      %v3677 = vsel %vm3660, %v3674, %v3676
      %v3678 = vrot.slane %v2842, 3
      %v3679 = vsel %vm3660, %v3676, %v3678
      %v3680 = vrot.slane %v2843, 3
      %v3681 = vsel %vm3660, %v3678, %v3680
      %v3682 = vrot.slane %v2844, 3
      %v3683 = vsel %vm3660, %v3680, %v3682
      %v3684 = vrot.slane %v2845, 3
      %v3685 = vsel %vm3660, %v3682, %v3684
      %v3686 = vrot.slane %v2846, 3
      %v3687 = vsel %vm3660, %v3684, %v3686
      %v3688 = vrot.slane %v2847, 3
      %v3689 = vsel %vm3660, %v3686, %v3688
      %v3690 = vrot.slane %v2848, 3
      %v3691 = vsel %vm3660, %v3688, %v3690
      %v3692 = vrot.slane %v2849, 3
      %v3693 = vsel %vm3660, %v3690, %v3692
      %v3694 = vrot.slane %v2850, 3
      %v3695 = vsel %vm3660, %v3692, %v3694
      %v3696 = vrot.slane %v3188, 3
      %v3697 = vsel %vm3660, %v3694, %v3696
      %v3732 = vunpack.c.l.b16 %v3641
      %v3733 = vunpack.c.l.b16 %v3642
      %v3734 = vunpack.c.l.b16 %v3643
      %v3735 = vunpack.c.l.b16 %v3644
      %v3736 = vunpack.c.l.b16 %v3645
      %v3737 = vunpack.c.l.b16 %v3646
      %v3738 = vunpack.c.l.b16 %v3647
      %v3739 = vunpack.c.l.b16 %v3648
      %v3740 = vunpack.c.l.b16 %v3649
      %v3741 = vunpack.c.l.b16 %v3650
      %v3742 = vunpack.c.l.b16 %v3651
      %v3743 = vunpack.c.l.b16 %v3652
      %v3744 = vunpack.c.l.b16 %v3653
      %v3745 = vunpack.c.l.b16 %v3654
      %v3746 = vunpack.c.l.b16 %v3655
      %v3747 = vunpack.c.l.b16 %v3656
      %v3748 = vpack.c.b16 %v3733, %v3732
      %v3749 = vpack.c.b16 %v3735, %v3734
      %v3750 = vpack.c.b16 %v3737, %v3736
      %v3751 = vpack.c.b16 %v3739, %v3738
      %v3752 = vpack.c.b16 %v3741, %v3740
      %v3753 = vpack.c.b16 %v3743, %v3742
      %v3754 = vpack.c.b16 %v3745, %v3744
      %v3755 = vpack.c.b16 %v3747, %v3746
      %3764 = vmatprep.subr.bf16.mxu0 0
      %3765 = vmatpush1.bf16.msra.mxu0 %v3748
      %3766 = vmatprep.subr.bf16.mxu0 0
      %3767 = vmatpush1.bf16.msra.mxu0 %v3749
      %3768 = vmatprep.subr.bf16.mxu0 0
      %3769 = vmatpush1.bf16.msra.mxu0 %v3750
      %3770 = vmatprep.subr.bf16.mxu0 0
      %3771 = vmatpush1.bf16.msra.mxu0 %v3751
      %3772 = vmatprep.subr.bf16.mxu0 0
      %3773 = vmatpush1.bf16.msra.mxu0 %v3752
      %3774 = vmatprep.subr.bf16.mxu0 0
      %3775 = vmatpush1.bf16.msra.mxu0 %v3753
      %3776 = vmatprep.subr.bf16.mxu0 0
      %3777 = vmatpush1.bf16.msra.mxu0 %v3754
      %3778 = vmatprep.subr.bf16.mxu0 0
      %3779 = vmatpush1.bf16.msra.mxu0 %v3755
      %3780 = vmatprep.subr.bf16.mxu0 0
      %3781 = vmatpush1.bf16.msra.mxu0 0
      %3782 = vmatprep.subr.bf16.mxu0 0
      %3783 = vmatpush1.bf16.msra.mxu0 0
      %3784 = vmatprep.subr.bf16.mxu0 0
      %3785 = vmatpush1.bf16.msra.mxu0 0
      %3786 = vmatprep.subr.bf16.mxu0 0
      %3787 = vmatpush1.bf16.msra.mxu0 0
      %3788 = vmatprep.subr.bf16.mxu0 0
      %3789 = vmatpush1.bf16.msra.mxu0 0
      %3790 = vmatprep.subr.bf16.mxu0 0
      %3791 = vmatpush1.bf16.msra.mxu0 0
      %3792 = vmatprep.subr.bf16.mxu0 0
      %3793 = vmatpush1.bf16.msra.mxu0 0
      %3794 = vmatprep.subr.bf16.mxu0 0
      %3795 = vmatpush1.bf16.msra.mxu0 0
      %3796 = vmatprep.mubr.bf16.mxu0 0
      %3797 = vmatmul.mubr.bf16.gmra.mrb[0].mxu0 %v3663
      %v3798 = vpop.f32.mrb[0].mxu0
      %v3799 = vadd.f32 0.0, %v3798
      %v3800 = vpop.f32.mrb[0].mxu0
      %v3801 = vpop.f32.mrb[0].mxu0
      %v3802 = vadd.f32 0.0, %v3801
      %v3803 = vpop.f32.mrb[0].mxu0
      %3804 = vmatprep.mubr.bf16.mxu0 0
      %3805 = vmatmul.mubr.bf16.gmra.mrb[0].mxu0 %v3665
      %v3806 = vpop.f32.mrb[0].mxu0
      %v3807 = vadd.f32 0.0, %v3806
      %v3808 = vpop.f32.mrb[0].mxu0
      %v3809 = vpop.f32.mrb[0].mxu0
      %v3810 = vadd.f32 0.0, %v3809
      %v3811 = vpop.f32.mrb[0].mxu0
      %3812 = vmatprep.mubr.bf16.mxu0 0
      %3813 = vmatmul.mubr.bf16.gmra.mrb[0].mxu0 %v3667
      %v3814 = vpop.f32.mrb[0].mxu0
      %v3815 = vadd.f32 0.0, %v3814
      %v3816 = vpop.f32.mrb[0].mxu0
      %v3817 = vpop.f32.mrb[0].mxu0
      %v3818 = vadd.f32 0.0, %v3817
      %v3819 = vpop.f32.mrb[0].mxu0
      %3820 = vmatprep.mubr.bf16.mxu0 0
      %3821 = vmatmul.mubr.bf16.gmra.mrb[0].mxu0 %v3669
      %v3822 = vpop.f32.mrb[0].mxu0
      %v3823 = vadd.f32 0.0, %v3822
      %v3824 = vpop.f32.mrb[0].mxu0
      %v3825 = vpop.f32.mrb[0].mxu0
      %v3826 = vadd.f32 0.0, %v3825
      %v3827 = vpop.f32.mrb[0].mxu0
      %3828 = vmatprep.mubr.bf16.mxu0 0
      %3829 = vmatmul.mubr.bf16.gmra.mrb[0].mxu0 %v3671
      %v3830 = vpop.f32.mrb[0].mxu0
      %v3831 = vadd.f32 0.0, %v3830
      %v3832 = vpop.f32.mrb[0].mxu0
      %v3833 = vpop.f32.mrb[0].mxu0
      %v3834 = vadd.f32 0.0, %v3833
      %v3835 = vpop.f32.mrb[0].mxu0
      %3836 = vmatprep.mubr.bf16.mxu0 0
      %3837 = vmatmul.mubr.bf16.gmra.mrb[0].mxu0 %v3673
      %v3838 = vpop.f32.mrb[0].mxu0
      %v3839 = vadd.f32 0.0, %v3838
      %v3840 = vpop.f32.mrb[0].mxu0
      %v3841 = vpop.f32.mrb[0].mxu0
      %v3842 = vadd.f32 0.0, %v3841
      %v3843 = vpop.f32.mrb[0].mxu0
      %3844 = vmatprep.mubr.bf16.mxu0 0
      %3845 = vmatmul.mubr.bf16.gmra.mrb[0].mxu0 %v3675
      %v3846 = vpop.f32.mrb[0].mxu0
      %v3847 = vadd.f32 0.0, %v3846
      %v3848 = vpop.f32.mrb[0].mxu0
      %v3849 = vpop.f32.mrb[0].mxu0
      %v3850 = vadd.f32 0.0, %v3849
      %v3851 = vpop.f32.mrb[0].mxu0
      %3852 = vmatprep.mubr.bf16.mxu0 0
      %3853 = vmatmul.mubr.bf16.gmra.mrb[0].mxu0 %v3677
      %v3854 = vpop.f32.mrb[0].mxu0
      %v3855 = vadd.f32 0.0, %v3854
      %v3856 = vpop.f32.mrb[0].mxu0
      %v3857 = vpop.f32.mrb[0].mxu0
      %v3858 = vadd.f32 0.0, %v3857
      %v3859 = vpop.f32.mrb[0].mxu0
      %3860 = vmatprep.mubr.bf16.mxu0 0
      %3861 = vmatmul.mubr.bf16.gmra.mrb[0].mxu0 %v3679
      %v3862 = vpop.f32.mrb[0].mxu0
      %v3863 = vadd.f32 0.0, %v3862
      %v3864 = vpop.f32.mrb[0].mxu0
      %v3865 = vpop.f32.mrb[0].mxu0
      %v3866 = vadd.f32 0.0, %v3865
      %v3867 = vpop.f32.mrb[0].mxu0
      %3868 = vmatprep.mubr.bf16.mxu0 0
      %3869 = vmatmul.mubr.bf16.gmra.mrb[0].mxu0 %v3681
      %v3870 = vpop.f32.mrb[0].mxu0
      %v3871 = vadd.f32 0.0, %v3870
      %v3872 = vpop.f32.mrb[0].mxu0
      %v3873 = vpop.f32.mrb[0].mxu0
      %v3874 = vadd.f32 0.0, %v3873
      %v3875 = vpop.f32.mrb[0].mxu0
      %3876 = vmatprep.mubr.bf16.mxu0 0
      %3877 = vmatmul.mubr.bf16.gmra.mrb[0].mxu0 %v3683
      %v3878 = vpop.f32.mrb[0].mxu0
      %v3879 = vadd.f32 0.0, %v3878
      %v3880 = vpop.f32.mrb[0].mxu0
      %v3881 = vpop.f32.mrb[0].mxu0
      %v3882 = vadd.f32 0.0, %v3881
      %v3883 = vpop.f32.mrb[0].mxu0
      %3884 = vmatprep.mubr.bf16.mxu0 0
      %3885 = vmatmul.mubr.bf16.gmra.mrb[0].mxu0 %v3685
      %v3886 = vpop.f32.mrb[0].mxu0
      %v3887 = vadd.f32 0.0, %v3886
      %v3888 = vpop.f32.mrb[0].mxu0
      %v3889 = vpop.f32.mrb[0].mxu0
      %v3890 = vadd.f32 0.0, %v3889
      %v3891 = vpop.f32.mrb[0].mxu0
      %3892 = vmatprep.mubr.bf16.mxu0 0
      %3893 = vmatmul.mubr.bf16.gmra.mrb[0].mxu0 %v3687
      %v3894 = vpop.f32.mrb[0].mxu0
      %v3895 = vadd.f32 0.0, %v3894
      %v3896 = vpop.f32.mrb[0].mxu0
      %v3897 = vpop.f32.mrb[0].mxu0
      %v3898 = vadd.f32 0.0, %v3897
      %v3899 = vpop.f32.mrb[0].mxu0
      %3900 = vmatprep.mubr.bf16.mxu0 0
      %3901 = vmatmul.mubr.bf16.gmra.mrb[0].mxu0 %v3689
      %v3902 = vpop.f32.mrb[0].mxu0
      %v3903 = vadd.f32 0.0, %v3902
      %v3904 = vpop.f32.mrb[0].mxu0
      %v3905 = vpop.f32.mrb[0].mxu0
      %v3906 = vadd.f32 0.0, %v3905
      %v3907 = vpop.f32.mrb[0].mxu0
      %3908 = vmatprep.mubr.bf16.mxu0 0
      %3909 = vmatmul.mubr.bf16.gmra.mrb[0].mxu0 %v3691
      %v3910 = vpop.f32.mrb[0].mxu0
      %v3911 = vadd.f32 0.0, %v3910
      %v3912 = vpop.f32.mrb[0].mxu0
      %v3913 = vpop.f32.mrb[0].mxu0
      %v3914 = vadd.f32 0.0, %v3913
      %v3915 = vpop.f32.mrb[0].mxu0
      %3916 = vmatprep.mubr.bf16.mxu0 0
      %3917 = vmatmul.mubr.bf16.gmra.mrb[0].mxu0 %v3693
      %v3918 = vpop.f32.mrb[0].mxu0
      %v3919 = vadd.f32 0.0, %v3918
      %v3920 = vpop.f32.mrb[0].mxu0
      %v3921 = vpop.f32.mrb[0].mxu0
      %v3922 = vadd.f32 0.0, %v3921
      %v3923 = vpop.f32.mrb[0].mxu0
      %3924 = vmatprep.mubr.bf16.mxu0 0
      %3925 = vmatmul.mubr.bf16.gmra.mrb[0].mxu0 %v3695
      %v3926 = vpop.f32.mrb[0].mxu0
      %v3927 = vadd.f32 0.0, %v3926
      %v3928 = vpop.f32.mrb[0].mxu0
      %v3929 = vpop.f32.mrb[0].mxu0
      %v3930 = vadd.f32 0.0, %v3929
      %v3931 = vpop.f32.mrb[0].mxu0
      %3932 = vmatprep.mubr.bf16.mxu0 0
      %3933 = vmatmul.mubr.bf16.gmra.mrb[0].mxu0 %v3697
      %v3934 = vpop.f32.mrb[0].mxu0
      %v3935 = vadd.f32 0.0, %v3934
      %v3936 = vpop.f32.mrb[0].mxu0
      %v3937 = vpop.f32.mrb[0].mxu0
      %v3938 = vadd.f32 0.0, %v3937
      %v3939 = vpop.f32.mrb[0].mxu0
      %3940 = vdwg.mxu0
      %v3941 = vadd.f32 %v3603, %v3799
      %v3942 = vadd.f32 %v3604, %v3802
      %v3943 = vadd.f32 %v3605, %v3807
      %v3944 = vadd.f32 %v3606, %v3810
      %v3945 = vadd.f32 %v3607, %v3815
      %v3946 = vadd.f32 %v3608, %v3818
      %v3947 = vadd.f32 %v3609, %v3823
      %v3948 = vadd.f32 %v3610, %v3826
      %v3949 = vadd.f32 %v3611, %v3831
      %v3950 = vadd.f32 %v3612, %v3834
      %v3951 = vadd.f32 %v3613, %v3839
      %v3952 = vadd.f32 %v3614, %v3842
      %v3953 = vadd.f32 %v3615, %v3847
      %v3954 = vadd.f32 %v3616, %v3850
      %v3955 = vadd.f32 %v3617, %v3855
      %v3956 = vadd.f32 %v3618, %v3858
      %v3957 = vadd.f32 %v3619, %v3863
      %v3958 = vadd.f32 %v3620, %v3866
      %v3959 = vadd.f32 %v3621, %v3871
      %v3960 = vadd.f32 %v3622, %v3874
      %v3961 = vadd.f32 %v3623, %v3879
      %v3962 = vadd.f32 %v3624, %v3882
      %v3963 = vadd.f32 %v3625, %v3887
      %v3964 = vadd.f32 %v3626, %v3890
      %v3965 = vadd.f32 %v3627, %v3895
      %v3966 = vadd.f32 %v3628, %v3898
      %v3967 = vadd.f32 %v3629, %v3903
      %v3968 = vadd.f32 %v3630, %v3906
      %v3969 = vadd.f32 %v3631, %v3911
      %v3970 = vadd.f32 %v3632, %v3914
      %v3971 = vadd.f32 %v3633, %v3919
      %v3972 = vadd.f32 %v3634, %v3922
      %v3973 = vadd.f32 %v3635, %v3927
      %v3974 = vadd.f32 %v3636, %v3930
      %v3975 = vadd.f32 %v3637, %v3935
      %v3976 = vadd.f32 %v3638, %v3938
      %v3977 = vld [vmem:[%s4 + $0x13] sm:$0xff]
      %v3978 = vld [vmem:[%s4 + $0x1b] sm:$0xff]
      %v3979 = vld [vmem:[%s4 + $0x23] sm:$0xff]
      %v3980 = vld [vmem:[%s4 + $0x2b] sm:$0xff]
      %v3981 = vld [vmem:[%s4 + $0x33] sm:$0xff]
      %v3982 = vld [vmem:[%s4 + $0x3b] sm:$0xff]
      %v3983 = vld [vmem:[%s4 + $0x43] sm:$0xff]
      %v3984 = vld [vmem:[%s4 + $0x4b] sm:$0xff]
      %v3985 = vld [vmem:[%s4 + $0x53] sm:$0xff]
      %v3986 = vld [vmem:[%s4 + $0x5b] sm:$0xff]
      %v3987 = vld [vmem:[%s4 + $0x63] sm:$0xff]
      %v3988 = vld [vmem:[%s4 + $0x6b] sm:$0xff]
      %v3989 = vld [vmem:[%s4 + $0x73] sm:$0xff]
      %v3990 = vld [vmem:[%s4 + $0x7b] sm:$0xff]
      %v3991 = vld [vmem:[%s4 + $0x83] sm:$0xff]
      %v3992 = vld [vmem:[%s4 + $0x8b] sm:$0xff]
      %v3993 = vld [vmem:[%s4 + $0x93] sm:$0xff]
      %v3994 = vld [vmem:[%s4 + $0x9b] sm:$0xff]
      %v3995 = vld [vmem:[%s4 + $0xa3] sm:$0xff]
      %v3996 = vld [vmem:[%s4 + $0xab] sm:$0xff]
      %v3997 = vld [vmem:[%s4 + $0xb3] sm:$0xff]
      %v3998 = vld [vmem:[%s4 + $0xbb] sm:$0xff]
      %v3999 = vld [vmem:[%s4 + $0xc3] sm:$0xff]
      %v4000 = vld [vmem:[%s4 + $0xcb] sm:$0xff]
      %v4001 = vld [vmem:[%s4 + $0xd3] sm:$0xff]
      %v4002 = vld [vmem:[%s4 + $0xdb] sm:$0xff]
      %v4003 = vld [vmem:[%s4 + $0xe3] sm:$0xff]
      %v4004 = vld [vmem:[%s4 + $0xeb] sm:$0xff]
      %v4005 = vld [vmem:[%s4 + $0xf3] sm:$0xff]
      %v4006 = vld [vmem:[%s4 + $0xfb] sm:$0xff]
      %v4007 = vld [vmem:[%s4 + $0x103] sm:$0xff]
      %v4008 = vld [vmem:[%s4 + $0x10b] sm:$0xff]
      %v4009 = vld [vmem:[%s4 + $0x113] sm:$0xff]
      %v4010 = vld [vmem:[%s4 + $0x11b] sm:$0xff]
      %v4011 = vld [vmem:[%s4 + $0x123] sm:$0xff]
      %v4012 = vld [vmem:[%s4 + $0x12b] sm:$0xff]
      %4014 = vset.pattern.permute.xlu0 0
      %4015 = vperm.xlu0 %4014, %v3977
      %v4016 = vpop.permute.xlu0 %4015
      %4019 = vset.pattern.permute.xlu0 0
      %4020 = vperm.xlu0 %4019, %v3978
      %v4021 = vpop.permute.xlu0 %4020
      %4024 = vset.pattern.permute.xlu0 0
      %4025 = vperm.xlu0 %4024, %v3979
      %v4026 = vpop.permute.xlu0 %4025
      %4029 = vset.pattern.permute.xlu0 0
      %4030 = vperm.xlu0 %4029, %v3980
      %v4031 = vpop.permute.xlu0 %4030
      %4034 = vset.pattern.permute.xlu0 0
      %4035 = vperm.xlu0 %4034, %v3981
      %v4036 = vpop.permute.xlu0 %4035
      %4039 = vset.pattern.permute.xlu0 0
      %4040 = vperm.xlu0 %4039, %v3982
      %v4041 = vpop.permute.xlu0 %4040
      %4044 = vset.pattern.permute.xlu0 0
      %4045 = vperm.xlu0 %4044, %v3983
      %v4046 = vpop.permute.xlu0 %4045
      %4049 = vset.pattern.permute.xlu0 0
      %4050 = vperm.xlu0 %4049, %v3984
      %v4051 = vpop.permute.xlu0 %4050
      %4054 = vset.pattern.permute.xlu0 0
      %4055 = vperm.xlu0 %4054, %v3985
      %v4056 = vpop.permute.xlu0 %4055
      %4059 = vset.pattern.permute.xlu0 0
      %4060 = vperm.xlu0 %4059, %v3986
      %v4061 = vpop.permute.xlu0 %4060
      %4064 = vset.pattern.permute.xlu0 0
      %4065 = vperm.xlu0 %4064, %v3987
      %v4066 = vpop.permute.xlu0 %4065
      %4069 = vset.pattern.permute.xlu0 0
      %4070 = vperm.xlu0 %4069, %v3988
      %v4071 = vpop.permute.xlu0 %4070
      %4074 = vset.pattern.permute.xlu0 0
      %4075 = vperm.xlu0 %4074, %v3989
      %v4076 = vpop.permute.xlu0 %4075
      %4079 = vset.pattern.permute.xlu0 0
      %4080 = vperm.xlu0 %4079, %v3990
      %v4081 = vpop.permute.xlu0 %4080
      %4084 = vset.pattern.permute.xlu0 0
      %4085 = vperm.xlu0 %4084, %v3991
      %v4086 = vpop.permute.xlu0 %4085
      %4089 = vset.pattern.permute.xlu0 0
      %4090 = vperm.xlu0 %4089, %v3992
      %v4091 = vpop.permute.xlu0 %4090
      %4094 = vset.pattern.permute.xlu0 0
      %4095 = vperm.xlu0 %4094, %v3993
      %v4096 = vpop.permute.xlu0 %4095
      %4099 = vset.pattern.permute.xlu0 0
      %4100 = vperm.xlu0 %4099, %v3994
      %v4101 = vpop.permute.xlu0 %4100
      %4104 = vset.pattern.permute.xlu0 0
      %4105 = vperm.xlu0 %4104, %v3995
      %v4106 = vpop.permute.xlu0 %4105
      %4109 = vset.pattern.permute.xlu0 0
      %4110 = vperm.xlu0 %4109, %v3996
      %v4111 = vpop.permute.xlu0 %4110
      %4114 = vset.pattern.permute.xlu0 0
      %4115 = vperm.xlu0 %4114, %v3997
      %v4116 = vpop.permute.xlu0 %4115
      %4119 = vset.pattern.permute.xlu0 0
      %4120 = vperm.xlu0 %4119, %v3998
      %v4121 = vpop.permute.xlu0 %4120
      %4124 = vset.pattern.permute.xlu0 0
      %4125 = vperm.xlu0 %4124, %v3999
      %v4126 = vpop.permute.xlu0 %4125
      %4129 = vset.pattern.permute.xlu0 0
      %4130 = vperm.xlu0 %4129, %v4000
      %v4131 = vpop.permute.xlu0 %4130
      %4134 = vset.pattern.permute.xlu0 0
      %4135 = vperm.xlu0 %4134, %v4001
      %v4136 = vpop.permute.xlu0 %4135
      %4139 = vset.pattern.permute.xlu0 0
      %4140 = vperm.xlu0 %4139, %v4002
      %v4141 = vpop.permute.xlu0 %4140
      %4144 = vset.pattern.permute.xlu0 0
      %4145 = vperm.xlu0 %4144, %v4003
      %v4146 = vpop.permute.xlu0 %4145
      %4149 = vset.pattern.permute.xlu0 0
      %4150 = vperm.xlu0 %4149, %v4004
      %v4151 = vpop.permute.xlu0 %4150
      %4154 = vset.pattern.permute.xlu0 0
      %4155 = vperm.xlu0 %4154, %v4005
      %v4156 = vpop.permute.xlu0 %4155
      %4159 = vset.pattern.permute.xlu0 0
      %4160 = vperm.xlu0 %4159, %v4006
      %v4161 = vpop.permute.xlu0 %4160
      %4164 = vset.pattern.permute.xlu0 0
      %4165 = vperm.xlu0 %4164, %v4007
      %v4166 = vpop.permute.xlu0 %4165
      %4169 = vset.pattern.permute.xlu0 0
      %4170 = vperm.xlu0 %4169, %v4008
      %v4171 = vpop.permute.xlu0 %4170
      %4174 = vset.pattern.permute.xlu0 0
      %4175 = vperm.xlu0 %4174, %v4009
      %v4176 = vpop.permute.xlu0 %4175
      %4179 = vset.pattern.permute.xlu0 0
      %4180 = vperm.xlu0 %4179, %v4010
      %v4181 = vpop.permute.xlu0 %4180
      %4184 = vset.pattern.permute.xlu0 0
      %4185 = vperm.xlu0 %4184, %v4011
      %v4186 = vpop.permute.xlu0 %4185
      %4189 = vset.pattern.permute.xlu0 0
      %4190 = vperm.xlu0 %4189, %v4012
      %v4191 = vpop.permute.xlu0 %4190
      %v4193 = vmul.f32 %v3941, %v4016
      %v4194 = vmul.f32 %v3942, %v4021
      %v4195 = vmul.f32 %v3943, %v4026
      %v4196 = vmul.f32 %v3944, %v4031
      %v4197 = vmul.f32 %v3945, %v4036
      %v4198 = vmul.f32 %v3946, %v4041
      %v4199 = vmul.f32 %v3947, %v4046
      %v4200 = vmul.f32 %v3948, %v4051
      %v4201 = vmul.f32 %v3949, %v4056
      %v4202 = vmul.f32 %v3950, %v4061
      %v4203 = vmul.f32 %v3951, %v4066
      %v4204 = vmul.f32 %v3952, %v4071
      %v4205 = vmul.f32 %v3953, %v4076
      %v4206 = vmul.f32 %v3954, %v4081
      %v4207 = vmul.f32 %v3955, %v4086
      %v4208 = vmul.f32 %v3956, %v4091
      %v4209 = vmul.f32 %v3957, %v4096
      %v4210 = vmul.f32 %v3958, %v4101
      %v4211 = vmul.f32 %v3959, %v4106
      %v4212 = vmul.f32 %v3960, %v4111
      %v4213 = vmul.f32 %v3961, %v4116
      %v4214 = vmul.f32 %v3962, %v4121
      %v4215 = vmul.f32 %v3963, %v4126
      %v4216 = vmul.f32 %v3964, %v4131
      %v4217 = vmul.f32 %v3965, %v4136
      %v4218 = vmul.f32 %v3966, %v4141
      %v4219 = vmul.f32 %v3967, %v4146
      %v4220 = vmul.f32 %v3968, %v4151
      %v4221 = vmul.f32 %v3969, %v4156
      %v4222 = vmul.f32 %v3970, %v4161
      %v4223 = vmul.f32 %v3971, %v4166
      %v4224 = vmul.f32 %v3972, %v4171
      %v4225 = vmul.f32 %v3973, %v4176
      %v4226 = vmul.f32 %v3974, %v4181
      %v4227 = vmul.f32 %v3975, %v4186
      %v4228 = vmul.f32 %v3976, %v4191
      %v4229 = vpack.c.bf16 %v4194, %v4193
      %v4230 = vpack.c.bf16 %v4196, %v4195
      %v4231 = vpack.c.bf16 %v4198, %v4197
      %v4232 = vpack.c.bf16 %v4200, %v4199
      %v4233 = vpack.c.bf16 %v4202, %v4201
      %v4234 = vpack.c.bf16 %v4204, %v4203
      %v4235 = vpack.c.bf16 %v4206, %v4205
      %v4236 = vpack.c.bf16 %v4208, %v4207
      %v4237 = vpack.c.bf16 %v4210, %v4209
      %v4238 = vpack.c.bf16 %v4212, %v4211
      %v4239 = vpack.c.bf16 %v4214, %v4213
      %v4240 = vpack.c.bf16 %v4216, %v4215
      %v4241 = vpack.c.bf16 %v4218, %v4217
      %v4242 = vpack.c.bf16 %v4220, %v4219
      %v4243 = vpack.c.bf16 %v4222, %v4221
      %v4244 = vpack.c.bf16 %v4224, %v4223
      %v4245 = vpack.c.bf16 %v4226, %v4225
      %v4246 = vpack.c.bf16 %v4228, %v4227
      %v4265 = vunpack.c.l.b16 %v4229
      %v4266 = vunpack.c.h.b16 %v4229
      %v4267 = vunpack.c.l.b16 %v4230
      %v4268 = vunpack.c.h.b16 %v4230
      %v4269 = vunpack.c.l.b16 %v4231
      %v4270 = vunpack.c.h.b16 %v4231
      %v4271 = vunpack.c.l.b16 %v4232
      %v4272 = vunpack.c.h.b16 %v4232
      %v4273 = vunpack.c.l.b16 %v4233
      %v4274 = vunpack.c.h.b16 %v4233
      %v4275 = vunpack.c.l.b16 %v4234
      %v4276 = vunpack.c.h.b16 %v4234
      %v4277 = vunpack.c.l.b16 %v4235
      %v4278 = vunpack.c.h.b16 %v4235
      %v4279 = vunpack.c.l.b16 %v4236
      %v4280 = vunpack.c.h.b16 %v4236
      %v4281 = vunpack.c.l.b16 %v4237
      %v4282 = vunpack.c.h.b16 %v4237
      %v4283 = vunpack.c.l.b16 %v4238
      %v4284 = vunpack.c.h.b16 %v4238
      %v4285 = vunpack.c.l.b16 %v4239
      %v4286 = vunpack.c.h.b16 %v4239
      %v4287 = vunpack.c.l.b16 %v4240
      %v4288 = vunpack.c.h.b16 %v4240
      %v4289 = vunpack.c.l.b16 %v4241
      %v4290 = vunpack.c.h.b16 %v4241
      %v4291 = vunpack.c.l.b16 %v4242
      %v4292 = vunpack.c.h.b16 %v4242
      %v4293 = vunpack.c.l.b16 %v4243
      %v4294 = vunpack.c.h.b16 %v4243
      %v4295 = vunpack.c.l.b16 %v4244
      %v4296 = vunpack.c.h.b16 %v4244
      %v4297 = vunpack.c.l.b16 %v4245
      %v4298 = vunpack.c.h.b16 %v4245
      %v4299 = vunpack.c.l.b16 %v4246
      %v4300 = vunpack.c.h.b16 %v4246
      %v4301 = vpack.c.b16 %v4265, %v4265
      %v4302 = vpack.c.b16 %v4266, %v4266
      %v4303 = vpack.c.b16 %v4267, %v4267
      %v4304 = vpack.c.b16 %v4268, %v4268
      %v4305 = vpack.c.b16 %v4269, %v4269
      %v4306 = vpack.c.b16 %v4270, %v4270
      %v4307 = vpack.c.b16 %v4271, %v4271
      %v4308 = vpack.c.b16 %v4272, %v4272
      %v4309 = vpack.c.b16 %v4273, %v4273
      %v4310 = vpack.c.b16 %v4274, %v4274
      %v4311 = vpack.c.b16 %v4275, %v4275
      %v4312 = vpack.c.b16 %v4276, %v4276
      %v4313 = vpack.c.b16 %v4277, %v4277
      %v4314 = vpack.c.b16 %v4278, %v4278
      %v4315 = vpack.c.b16 %v4279, %v4279
      %v4316 = vpack.c.b16 %v4280, %v4280
      %v4317 = vpack.c.b16 %v4281, %v4281
      %v4318 = vpack.c.b16 %v4282, %v4282
      %v4319 = vpack.c.b16 %v4283, %v4283
      %v4320 = vpack.c.b16 %v4284, %v4284
      %v4321 = vpack.c.b16 %v4285, %v4285
      %v4322 = vpack.c.b16 %v4286, %v4286
      %v4323 = vpack.c.b16 %v4287, %v4287
      %v4324 = vpack.c.b16 %v4288, %v4288
      %v4325 = vpack.c.b16 %v4289, %v4289
      %v4326 = vpack.c.b16 %v4290, %v4290
      %v4327 = vpack.c.b16 %v4291, %v4291
      %v4328 = vpack.c.b16 %v4292, %v4292
      %v4329 = vpack.c.b16 %v4293, %v4293
      %v4330 = vpack.c.b16 %v4294, %v4294
      %v4331 = vpack.c.b16 %v4295, %v4295
      %v4332 = vpack.c.b16 %v4296, %v4296
      %v4333 = vpack.c.b16 %v4297, %v4297
      %v4334 = vpack.c.b16 %v4298, %v4298
      %v4335 = vpack.c.b16 %v4299, %v4299
      %v4336 = vpack.c.b16 %v4300, %v4300
      %vm4337 = vsmask.f32 1280
      %vm4338 = vsmask.f32 5392
      %vm4339 = vmor %vm4337, %vm4338
      %v4341 = vshrl.u32 %v4301, 16
      %v4343 = vrot.slane %v4341, 6
      %v4344 = vshll.u32 %v4301, 16
      %v4346 = vrot.slane %v4344, 7
      %v4347 = vor.u32 %v4343, %v4346
      %v4348 = vrot.slane %v4347, 4
      %v4350 = vshrl.u32 %v4302, 16
      %v4352 = vrot.slane %v4350, 6
      %v4353 = vshll.u32 %v4302, 16
      %v4355 = vrot.slane %v4353, 7
      %v4356 = vor.u32 %v4352, %v4355
      %v4357 = vsel %vm4339, %v4348, %v4356
      %v4358 = vrot.slane %v4356, 4
      %v4360 = vshrl.u32 %v4303, 16
      %v4362 = vrot.slane %v4360, 6
      %v4363 = vshll.u32 %v4303, 16
      %v4365 = vrot.slane %v4363, 7
      %v4366 = vor.u32 %v4362, %v4365
      %v4367 = vsel %vm4339, %v4358, %v4366
      %v4368 = vrot.slane %v4366, 4
      %v4370 = vshrl.u32 %v4304, 16
      %v4372 = vrot.slane %v4370, 6
      %v4373 = vshll.u32 %v4304, 16
      %v4375 = vrot.slane %v4373, 7
      %v4376 = vor.u32 %v4372, %v4375
      %v4377 = vsel %vm4339, %v4368, %v4376
      %v4378 = vrot.slane %v4376, 4
      %v4380 = vshrl.u32 %v4305, 16
      %v4382 = vrot.slane %v4380, 6
      %v4383 = vshll.u32 %v4305, 16
      %v4385 = vrot.slane %v4383, 7
      %v4386 = vor.u32 %v4382, %v4385
      %v4387 = vsel %vm4339, %v4378, %v4386
      %v4388 = vrot.slane %v4386, 4
      %v4390 = vshrl.u32 %v4306, 16
      %v4392 = vrot.slane %v4390, 6
      %v4393 = vshll.u32 %v4306, 16
      %v4395 = vrot.slane %v4393, 7
      %v4396 = vor.u32 %v4392, %v4395
      %v4397 = vsel %vm4339, %v4388, %v4396
      %v4398 = vrot.slane %v4396, 4
      %v4400 = vshrl.u32 %v4307, 16
      %v4402 = vrot.slane %v4400, 6
      %v4403 = vshll.u32 %v4307, 16
      %v4405 = vrot.slane %v4403, 7
      %v4406 = vor.u32 %v4402, %v4405
      %v4407 = vsel %vm4339, %v4398, %v4406
      %v4408 = vrot.slane %v4406, 4
      %v4410 = vshrl.u32 %v4308, 16
      %v4412 = vrot.slane %v4410, 6
      %v4413 = vshll.u32 %v4308, 16
      %v4415 = vrot.slane %v4413, 7
      %v4416 = vor.u32 %v4412, %v4415
      %v4417 = vsel %vm4339, %v4408, %v4416
      %v4418 = vrot.slane %v4416, 4
      %v4420 = vshrl.u32 %v4309, 16
      %v4422 = vrot.slane %v4420, 6
      %v4423 = vshll.u32 %v4309, 16
      %v4425 = vrot.slane %v4423, 7
      %v4426 = vor.u32 %v4422, %v4425
      %v4427 = vsel %vm4339, %v4418, %v4426
      %v4428 = vrot.slane %v4426, 4
      %v4430 = vshrl.u32 %v4310, 16
      %v4432 = vrot.slane %v4430, 6
      %v4433 = vshll.u32 %v4310, 16
      %v4435 = vrot.slane %v4433, 7
      %v4436 = vor.u32 %v4432, %v4435
      %v4437 = vsel %vm4339, %v4428, %v4436
      %v4438 = vrot.slane %v4436, 4
      %v4440 = vshrl.u32 %v4311, 16
      %v4442 = vrot.slane %v4440, 6
      %v4443 = vshll.u32 %v4311, 16
      %v4445 = vrot.slane %v4443, 7
      %v4446 = vor.u32 %v4442, %v4445
      %v4447 = vsel %vm4339, %v4438, %v4446
      %v4448 = vrot.slane %v4446, 4
      %v4450 = vshrl.u32 %v4312, 16
      %v4452 = vrot.slane %v4450, 6
      %v4453 = vshll.u32 %v4312, 16
      %v4455 = vrot.slane %v4453, 7
      %v4456 = vor.u32 %v4452, %v4455
      %v4457 = vsel %vm4339, %v4448, %v4456
      %v4458 = vrot.slane %v4456, 4
      %v4460 = vshrl.u32 %v4313, 16
      %v4462 = vrot.slane %v4460, 6
      %v4463 = vshll.u32 %v4313, 16
      %v4465 = vrot.slane %v4463, 7
      %v4466 = vor.u32 %v4462, %v4465
      %v4467 = vsel %vm4339, %v4458, %v4466
      %v4468 = vrot.slane %v4466, 4
      %v4470 = vshrl.u32 %v4314, 16
      %v4472 = vrot.slane %v4470, 6
      %v4473 = vshll.u32 %v4314, 16
      %v4475 = vrot.slane %v4473, 7
      %v4476 = vor.u32 %v4472, %v4475
      %v4477 = vsel %vm4339, %v4468, %v4476
      %v4478 = vrot.slane %v4476, 4
      %v4480 = vshrl.u32 %v4315, 16
      %v4482 = vrot.slane %v4480, 6
      %v4483 = vshll.u32 %v4315, 16
      %v4485 = vrot.slane %v4483, 7
      %v4486 = vor.u32 %v4482, %v4485
      %v4487 = vsel %vm4339, %v4478, %v4486
      %v4488 = vrot.slane %v4486, 4
      %v4490 = vshrl.u32 %v4316, 16
      %v4492 = vrot.slane %v4490, 6
      %v4493 = vshll.u32 %v4316, 16
      %v4495 = vrot.slane %v4493, 7
      %v4496 = vor.u32 %v4492, %v4495
      %v4497 = vsel %vm4339, %v4488, %v4496
      %v4498 = vrot.slane %v4496, 4
      %v4500 = vshrl.u32 %v4317, 16
      %v4502 = vrot.slane %v4500, 6
      %v4503 = vshll.u32 %v4317, 16
      %v4505 = vrot.slane %v4503, 7
      %v4506 = vor.u32 %v4502, %v4505
      %v4507 = vsel %vm4339, %v4498, %v4506
      %v4508 = vrot.slane %v4506, 4
      %v4510 = vshrl.u32 %v4318, 16
      %v4512 = vrot.slane %v4510, 6
      %v4513 = vshll.u32 %v4318, 16
      %v4515 = vrot.slane %v4513, 7
      %v4516 = vor.u32 %v4512, %v4515
      %v4517 = vsel %vm4339, %v4508, %v4516
      %v4518 = vrot.slane %v4516, 4
      %v4520 = vshrl.u32 %v4319, 16
      %v4522 = vrot.slane %v4520, 6
      %v4523 = vshll.u32 %v4319, 16
      %v4525 = vrot.slane %v4523, 7
      %v4526 = vor.u32 %v4522, %v4525
      %v4527 = vsel %vm4339, %v4518, %v4526
      %v4528 = vrot.slane %v4526, 4
      %v4530 = vshrl.u32 %v4320, 16
      %v4532 = vrot.slane %v4530, 6
      %v4533 = vshll.u32 %v4320, 16
      %v4535 = vrot.slane %v4533, 7
      %v4536 = vor.u32 %v4532, %v4535
      %v4537 = vsel %vm4339, %v4528, %v4536
      %v4538 = vrot.slane %v4536, 4
      %v4540 = vshrl.u32 %v4321, 16
      %v4542 = vrot.slane %v4540, 6
      %v4543 = vshll.u32 %v4321, 16
      %v4545 = vrot.slane %v4543, 7
      %v4546 = vor.u32 %v4542, %v4545
      %v4547 = vsel %vm4339, %v4538, %v4546
      %v4548 = vrot.slane %v4546, 4
      %v4550 = vshrl.u32 %v4322, 16
      %v4552 = vrot.slane %v4550, 6
      %v4553 = vshll.u32 %v4322, 16
      %v4555 = vrot.slane %v4553, 7
      %v4556 = vor.u32 %v4552, %v4555
      %v4557 = vsel %vm4339, %v4548, %v4556
      %v4558 = vrot.slane %v4556, 4
      %v4560 = vshrl.u32 %v4323, 16
      %v4562 = vrot.slane %v4560, 6
      %v4563 = vshll.u32 %v4323, 16
      %v4565 = vrot.slane %v4563, 7
      %v4566 = vor.u32 %v4562, %v4565
      %v4567 = vsel %vm4339, %v4558, %v4566
      %v4568 = vrot.slane %v4566, 4
      %v4570 = vshrl.u32 %v4324, 16
      %v4572 = vrot.slane %v4570, 6
      %v4573 = vshll.u32 %v4324, 16
      %v4575 = vrot.slane %v4573, 7
      %v4576 = vor.u32 %v4572, %v4575
      %v4577 = vsel %vm4339, %v4568, %v4576
      %v4578 = vrot.slane %v4576, 4
      %v4580 = vshrl.u32 %v4325, 16
      %v4582 = vrot.slane %v4580, 6
      %v4583 = vshll.u32 %v4325, 16
      %v4585 = vrot.slane %v4583, 7
      %v4586 = vor.u32 %v4582, %v4585
      %v4587 = vsel %vm4339, %v4578, %v4586
      %v4588 = vrot.slane %v4586, 4
      %v4590 = vshrl.u32 %v4326, 16
      %v4592 = vrot.slane %v4590, 6
      %v4593 = vshll.u32 %v4326, 16
      %v4595 = vrot.slane %v4593, 7
      %v4596 = vor.u32 %v4592, %v4595
      %v4597 = vsel %vm4339, %v4588, %v4596
      %v4598 = vrot.slane %v4596, 4
      %v4600 = vshrl.u32 %v4327, 16
      %v4602 = vrot.slane %v4600, 6
      %v4603 = vshll.u32 %v4327, 16
      %v4605 = vrot.slane %v4603, 7
      %v4606 = vor.u32 %v4602, %v4605
      %v4607 = vsel %vm4339, %v4598, %v4606
      %v4608 = vrot.slane %v4606, 4
      %v4610 = vshrl.u32 %v4328, 16
      %v4612 = vrot.slane %v4610, 6
      %v4613 = vshll.u32 %v4328, 16
      %v4615 = vrot.slane %v4613, 7
      %v4616 = vor.u32 %v4612, %v4615
      %v4617 = vsel %vm4339, %v4608, %v4616
      %v4618 = vrot.slane %v4616, 4
      %v4620 = vshrl.u32 %v4329, 16
      %v4622 = vrot.slane %v4620, 6
      %v4623 = vshll.u32 %v4329, 16
      %v4625 = vrot.slane %v4623, 7
      %v4626 = vor.u32 %v4622, %v4625
      %v4627 = vsel %vm4339, %v4618, %v4626
      %v4628 = vrot.slane %v4626, 4
      %v4630 = vshrl.u32 %v4330, 16
      %v4632 = vrot.slane %v4630, 6
      %v4633 = vshll.u32 %v4330, 16
      %v4635 = vrot.slane %v4633, 7
      %v4636 = vor.u32 %v4632, %v4635
      %v4637 = vsel %vm4339, %v4628, %v4636
      %v4638 = vrot.slane %v4636, 4
      %v4640 = vshrl.u32 %v4331, 16
      %v4642 = vrot.slane %v4640, 6
      %v4643 = vshll.u32 %v4331, 16
      %v4645 = vrot.slane %v4643, 7
      %v4646 = vor.u32 %v4642, %v4645
      %v4647 = vsel %vm4339, %v4638, %v4646
      %v4648 = vrot.slane %v4646, 4
      %v4650 = vshrl.u32 %v4332, 16
      %v4652 = vrot.slane %v4650, 6
      %v4653 = vshll.u32 %v4332, 16
      %v4655 = vrot.slane %v4653, 7
      %v4656 = vor.u32 %v4652, %v4655
      %v4657 = vsel %vm4339, %v4648, %v4656
      %v4658 = vrot.slane %v4656, 4
      %v4660 = vshrl.u32 %v4333, 16
      %v4662 = vrot.slane %v4660, 6
      %v4663 = vshll.u32 %v4333, 16
      %v4665 = vrot.slane %v4663, 7
      %v4666 = vor.u32 %v4662, %v4665
      %v4667 = vsel %vm4339, %v4658, %v4666
      %v4668 = vrot.slane %v4666, 4
      %v4670 = vshrl.u32 %v4334, 16
      %v4672 = vrot.slane %v4670, 6
      %v4673 = vshll.u32 %v4334, 16
      %v4675 = vrot.slane %v4673, 7
      %v4676 = vor.u32 %v4672, %v4675
      %v4677 = vsel %vm4339, %v4668, %v4676
      %v4678 = vrot.slane %v4676, 4
      %v4680 = vshrl.u32 %v4335, 16
      %v4682 = vrot.slane %v4680, 6
      %v4683 = vshll.u32 %v4335, 16
      %v4685 = vrot.slane %v4683, 7
      %v4686 = vor.u32 %v4682, %v4685
      %v4687 = vsel %vm4339, %v4678, %v4686
      %v4688 = vrot.slane %v4686, 4
      %v4690 = vshrl.u32 %v4336, 16
      %v4692 = vrot.slane %v4690, 6
      %v4693 = vshll.u32 %v4336, 16
      %v4695 = vrot.slane %v4693, 7
      %v4696 = vor.u32 %v4692, %v4695
      %v4697 = vsel %vm4339, %v4688, %v4696
      %v4698 = vrot.slane %v4696, 4
      %vm4736 = vcmask 1043457
      %vm4737 = vsmask.f32 7942
      %vm4738 = vmand %vm4736, %vm4737
      %v4739 = vld [vmem:[%s289 + $0x8] sm:$0xe]
      %v4740 = vsel %vm4738, %v4347, %v4739
      %4741 = vst [vmem:[%s289 + $0x8] sm:$0xe] %v4740
      %4742 = vst [vmem:[%s289 + $0xc] sm:$0xf] %v4357
      %4743 = vst [vmem:[%s289 + $0x10] sm:$0xf] %v4367
      %4744 = vst [vmem:[%s289 + $0x14] sm:$0xf] %v4377
      %4745 = vst [vmem:[%s289 + $0x18] sm:$0xf] %v4387
      %4746 = vst [vmem:[%s289 + $0x1c] sm:$0xf] %v4397
      %4747 = vst [vmem:[%s289 + $0x20] sm:$0xf] %v4407
      %4748 = vst [vmem:[%s289 + $0x24] sm:$0xf] %v4417
      %4749 = vst [vmem:[%s289 + $0x28] sm:$0xf] %v4427
      %4750 = vst [vmem:[%s289 + $0x2c] sm:$0xf] %v4437
      %4751 = vst [vmem:[%s289 + $0x30] sm:$0xf] %v4447
      %4752 = vst [vmem:[%s289 + $0x34] sm:$0xf] %v4457
      %4753 = vst [vmem:[%s289 + $0x38] sm:$0xf] %v4467
      %4754 = vst [vmem:[%s289 + $0x3c] sm:$0xf] %v4477
      %4755 = vst [vmem:[%s289 + $0x40] sm:$0xf] %v4487
      %4756 = vst [vmem:[%s289 + $0x44] sm:$0xf] %v4497
      %4757 = vst [vmem:[%s289 + $0x48] sm:$0xf] %v4507
      %4758 = vst [vmem:[%s289 + $0x4c] sm:$0xf] %v4517
      %4759 = vst [vmem:[%s289 + $0x50] sm:$0xf] %v4527
      %4760 = vst [vmem:[%s289 + $0x54] sm:$0xf] %v4537
      %4761 = vst [vmem:[%s289 + $0x58] sm:$0xf] %v4547
      %4762 = vst [vmem:[%s289 + $0x5c] sm:$0xf] %v4557
      %4763 = vst [vmem:[%s289 + $0x60] sm:$0xf] %v4567
      %4764 = vst [vmem:[%s289 + $0x64] sm:$0xf] %v4577
      %4765 = vst [vmem:[%s289 + $0x68] sm:$0xf] %v4587
      %4766 = vst [vmem:[%s289 + $0x6c] sm:$0xf] %v4597
      %4767 = vst [vmem:[%s289 + $0x70] sm:$0xf] %v4607
      %4768 = vst [vmem:[%s289 + $0x74] sm:$0xf] %v4617
      %4769 = vst [vmem:[%s289 + $0x78] sm:$0xf] %v4627
      %4770 = vst [vmem:[%s289 + $0x7c] sm:$0xf] %v4637
      %4771 = vst [vmem:[%s289 + $0x80] sm:$0xf] %v4647
      %4772 = vst [vmem:[%s289 + $0x84] sm:$0xf] %v4657
      %4773 = vst [vmem:[%s289 + $0x88] sm:$0xf] %v4667
      %4774 = vst [vmem:[%s289 + $0x8c] sm:$0xf] %v4677
      %4775 = vst [vmem:[%s289 + $0x90] sm:$0xf] %v4687
      %4776 = vst [vmem:[%s289 + $0x94] sm:$0xf] %v4697
      %vm4777 = vcmask 1041408
      %vm4778 = vmand %vm4777, %vm4337
      %v4779 = vld [vmem:[%s289 + $0x98] sm:$0x3]
      %v4780 = vsel %vm4778, %v4698, %v4779
      %4781 = vst [vmem:[%s289 + $0x98] sm:$0x3] %v4780
      %4782 = vst [vmem:[%s289] sm:$0xf] 0
      %4783 = vst [vmem:[%s289 + $0x4] sm:$0xf] 0
      %v4784 = vld [vmem:[%s289 + $0x8] sm:$0x3]
      %v4785 = vsel %vm4778, 0, %v4784
      %4786 = vst [vmem:[%s289 + $0x8] sm:$0x3] %v4785
      %v4787 = vld [vmem:[%s289 + $0x98] sm:$0xe]
      %v4788 = vsel %vm4738, 0, %v4787
      %4789 = vst [vmem:[%s289 + $0x98] sm:$0xe] %v4788
      %4790 = vst [vmem:[%s289 + $0x9c] sm:$0xf] 0
      %4791 = vst [vmem:[%s289 + $0xa0] sm:$0xf] 0
      %v4792 = vadd.f32 %v4193, %v4194
      %v4793 = vadd.f32 %v4792, %v4195
      %v4794 = vadd.f32 %v4793, %v4196
      %v4795 = vadd.f32 %v4794, %v4197
      %v4796 = vadd.f32 %v4795, %v4198
      %v4797 = vadd.f32 %v4796, %v4199
      %v4798 = vadd.f32 %v4797, %v4200
      %v4799 = vadd.f32 %v4798, %v4201
      %v4800 = vadd.f32 %v4799, %v4202
      %v4801 = vadd.f32 %v4800, %v4203
      %v4802 = vadd.f32 %v4801, %v4204
      %v4803 = vadd.f32 %v4802, %v4205
      %v4804 = vadd.f32 %v4803, %v4206
      %v4805 = vadd.f32 %v4804, %v4207
      %v4806 = vadd.f32 %v4805, %v4208
      %v4807 = vadd.f32 %v4806, %v4209
      %v4808 = vadd.f32 %v4807, %v4210
      %v4809 = vadd.f32 %v4808, %v4211
      %v4810 = vadd.f32 %v4809, %v4212
      %v4811 = vadd.f32 %v4810, %v4213
      %v4812 = vadd.f32 %v4811, %v4214
      %v4813 = vadd.f32 %v4812, %v4215
      %v4814 = vadd.f32 %v4813, %v4216
      %v4815 = vadd.f32 %v4814, %v4217
      %v4816 = vadd.f32 %v4815, %v4218
      %v4817 = vadd.f32 %v4816, %v4219
      %v4818 = vadd.f32 %v4817, %v4220
      %v4819 = vadd.f32 %v4818, %v4221
      %v4820 = vadd.f32 %v4819, %v4222
      %v4821 = vadd.f32 %v4820, %v4223
      %v4822 = vadd.f32 %v4821, %v4224
      %v4823 = vadd.f32 %v4822, %v4225
      %v4824 = vadd.f32 %v4823, %v4226
      %v4825 = vadd.f32 %v4824, %v4227
      %v4826 = vadd.f32 %v4825, %v4228
      %v4827 = vrot.slane %v4826, 4
      %v4828 = vadd.f32 %v4826, %v4827
      %v4829 = vrot.slane %v4828, 2
      %v4830 = vadd.f32 %v4828, %v4829
      %v4831 = vrot.slane %v4830, 1
      %v4832 = vadd.f32 %v4830, %v4831
      %4833 = vst [vmem:[%s292] sm:$0x1] %v4832
      %v4834 = vmul.f32 %v4193, %v4193
      %v4835 = vmul.f32 %v4194, %v4194
      %v4836 = vmul.f32 %v4195, %v4195
      %v4837 = vmul.f32 %v4196, %v4196
      %v4838 = vmul.f32 %v4197, %v4197
      %v4839 = vmul.f32 %v4198, %v4198
      %v4840 = vmul.f32 %v4199, %v4199
      %v4841 = vmul.f32 %v4200, %v4200
      %v4842 = vmul.f32 %v4201, %v4201
      %v4843 = vmul.f32 %v4202, %v4202
      %v4844 = vmul.f32 %v4203, %v4203
      %v4845 = vmul.f32 %v4204, %v4204
      %v4846 = vmul.f32 %v4205, %v4205
      %v4847 = vmul.f32 %v4206, %v4206
      %v4848 = vmul.f32 %v4207, %v4207
      %v4849 = vmul.f32 %v4208, %v4208
      %v4850 = vmul.f32 %v4209, %v4209
      %v4851 = vmul.f32 %v4210, %v4210
      %v4852 = vmul.f32 %v4211, %v4211
      %v4853 = vmul.f32 %v4212, %v4212
      %v4854 = vmul.f32 %v4213, %v4213
      %v4855 = vmul.f32 %v4214, %v4214
      %v4856 = vmul.f32 %v4215, %v4215
      %v4857 = vmul.f32 %v4216, %v4216
      %v4858 = vmul.f32 %v4217, %v4217
      %v4859 = vmul.f32 %v4218, %v4218
      %v4860 = vmul.f32 %v4219, %v4219
      %v4861 = vmul.f32 %v4220, %v4220
      %v4862 = vmul.f32 %v4221, %v4221
      %v4863 = vmul.f32 %v4222, %v4222
      %v4864 = vmul.f32 %v4223, %v4223
      %v4865 = vmul.f32 %v4224, %v4224
      %v4866 = vmul.f32 %v4225, %v4225
      %v4867 = vmul.f32 %v4226, %v4226
      %v4868 = vmul.f32 %v4227, %v4227
      %v4869 = vmul.f32 %v4228, %v4228
      %v4870 = vadd.f32 %v4834, %v4835
      %v4871 = vadd.f32 %v4870, %v4836
      %v4872 = vadd.f32 %v4871, %v4837
      %v4873 = vadd.f32 %v4872, %v4838
      %v4874 = vadd.f32 %v4873, %v4839
      %v4875 = vadd.f32 %v4874, %v4840
      %v4876 = vadd.f32 %v4875, %v4841
      %v4877 = vadd.f32 %v4876, %v4842
      %v4878 = vadd.f32 %v4877, %v4843
      %v4879 = vadd.f32 %v4878, %v4844
      %v4880 = vadd.f32 %v4879, %v4845
      %v4881 = vadd.f32 %v4880, %v4846
      %v4882 = vadd.f32 %v4881, %v4847
      %v4883 = vadd.f32 %v4882, %v4848
      %v4884 = vadd.f32 %v4883, %v4849
      %v4885 = vadd.f32 %v4884, %v4850
      %v4886 = vadd.f32 %v4885, %v4851
      %v4887 = vadd.f32 %v4886, %v4852
      %v4888 = vadd.f32 %v4887, %v4853
      %v4889 = vadd.f32 %v4888, %v4854
      %v4890 = vadd.f32 %v4889, %v4855
      %v4891 = vadd.f32 %v4890, %v4856
      %v4892 = vadd.f32 %v4891, %v4857
      %v4893 = vadd.f32 %v4892, %v4858
      %v4894 = vadd.f32 %v4893, %v4859
      %v4895 = vadd.f32 %v4894, %v4860
      %v4896 = vadd.f32 %v4895, %v4861
      %v4897 = vadd.f32 %v4896, %v4862
      %v4898 = vadd.f32 %v4897, %v4863
      %v4899 = vadd.f32 %v4898, %v4864
      %v4900 = vadd.f32 %v4899, %v4865
      %v4901 = vadd.f32 %v4900, %v4866
      %v4902 = vadd.f32 %v4901, %v4867
      %v4903 = vadd.f32 %v4902, %v4868
      %v4904 = vadd.f32 %v4903, %v4869
      %v4905 = vrot.slane %v4904, 4
      %v4906 = vadd.f32 %v4904, %v4905
      %v4907 = vrot.slane %v4906, 2
      %v4908 = vadd.f32 %v4906, %v4907
      %v4909 = vrot.slane %v4908, 1
      %v4910 = vadd.f32 %v4908, %v4909
      %4911 = vst [vmem:[%s295] sm:$0x1] %v4910
      %p4912 = scmp.lt.s32.totalorder %s19, 1
      %s4913 = scalar_select %p4912, %s19, 1
      %s4914 = smul.addr %s4913, 41
      %s4915 = smul.addr %s4914, 4
      %s4916 = scalar_lea.vmem %s5, %s4915
      %p4917 = scmp.lt.s32.totalorder %s19, 1
      %s4918 = scalar_select %p4917, %s19, 1
      %s4919 = scalar_lea.vmem %s6, %s4918
      %p4920 = scmp.lt.s32.totalorder %s19, 1
      %s4921 = scalar_select %p4920, %s19, 1
      %s4922 = scalar_lea.vmem %s7, %s4921
      // Predicated region
      $region41: #{double_conv.3} parent=39 // pred_check
        %p4923 = pneg %p147
      $region42: #{double_conv.3} parent=39 // pred_check_branch
        %4925 = sbr.rel (%p4923) target = $region44
      $region43: #{double_conv.3} parent=39 // pred_region
        _
      $region44: #{double_conv.3} parent=39 // pred_fallthru
        _
      // Predicated region
      $region45: #{double_conv.3} parent=39 // pred_check
        %p4926 = pneg %p173
      $region46: #{double_conv.3} parent=39 // pred_check_branch
        %4928 = sbr.rel (%p4926) target = $region48
      $region47: #{double_conv.3} parent=39 // pred_region
        _
      $region48: #{double_conv.3} parent=39 // pred_fallthru
        _
      // Predicated region
      $region49: #{double_conv.3} parent=39 // pred_check
        %p4929 = pneg %p199
      $region50: #{double_conv.3} parent=39 // pred_check_branch
        %4931 = sbr.rel (%p4929) target = $region52
      $region51: #{double_conv.3} parent=39 // pred_region
        _
      $region52: #{double_conv.3} parent=39 // pred_fallthru
        _
    $region40: #{double_conv.3} parent=5 // pred_fallthru
      _
    %p4932 = scmp.le.s32.totalorder 2, %s14
    // Predicated region
    $region53: #{double_conv.3} parent=5 // pred_check
      %p4933 = pneg %p4932
    $region54: #{double_conv.3} parent=5 // pred_check_branch
      %4935 = sbr.rel (%p4933) target = $region56
    $region55: #{double_conv.3} parent=5 // pred_region
      %s4936 = ssub.s32 %s14, 2
      // Predicated region
      $region57: #{double_conv.3} parent=55 // pred_check
        %p4937 = pneg %p153
      $region58: #{double_conv.3} parent=55 // pred_check_branch
        %4939 = sbr.rel (%p4937) target = $region60
      $region59: #{double_conv.3} parent=55 // pred_region
        %p4940 = scmp.lt.s32.totalorder %s20, 1
        %s4941 = scalar_select %p4940, %s20, 1
        %s4942 = smul.addr %s4941, 41
        %s4943 = smul.addr %s4942, 4
        %s4944 = scalar_lea.vmem %s5, %s4943
      $region60: #{double_conv.3} parent=55 // pred_fallthru
        _
      // Predicated region
      $region61: #{double_conv.3} parent=55 // pred_check
        %p4945 = pneg %p179
      $region62: #{double_conv.3} parent=55 // pred_check_branch
        %4947 = sbr.rel (%p4945) target = $region64
      $region63: #{double_conv.3} parent=55 // pred_region
        %p4948 = scmp.lt.s32.totalorder %s20, 1
        %s4949 = scalar_select %p4948, %s20, 1
        %s4950 = scalar_lea.vmem %s6, %s4949
      $region64: #{double_conv.3} parent=55 // pred_fallthru
        _
      // Predicated region
      $region65: #{double_conv.3} parent=55 // pred_check
        %p4951 = pneg %p205
      $region66: #{double_conv.3} parent=55 // pred_check_branch
        %4953 = sbr.rel (%p4951) target = $region68
      $region67: #{double_conv.3} parent=55 // pred_region
        %p4954 = scmp.lt.s32.totalorder %s20, 1
        %s4955 = scalar_select %p4954, %s20, 1
        %s4956 = scalar_lea.vmem %s7, %s4955
      $region68: #{double_conv.3} parent=55 // pred_fallthru
        _
    $region56: #{double_conv.3} parent=5 // pred_fallthru
      _
  $region6: #{double_conv.3} parent=0 // loop_footer
    %s18 = sadd.s32 1, %s14
  $region7: #{double_conv.3} parent=0 // loop_footer_branch
    %13 = sbr.rel target = $region3
  $region8: #{double_conv.3} parent=0 // loop_exit
    _

// kernel: double_conv.4
$region0: #{double_conv.4}
  #allocation0 [shape = 'u32[]', space=smem, size = 0x4, offset = 0x4, fixed_abs, tag = 'smem constant byte address 0x4 - core index']
  #allocation1 [shape = 'u32[144,128]{1,0:T(1,128)}', space=vmem, size = 0x12000, scoped, tag = 'internal scratch']
  #allocation2 [shape = 'bf16[328,128]{1,0:T(8,128)(2,1)}', space=vmem, size = 0x14800, scoped, tag = 'scratch operand']
  %s0 = inlined_call_operand.vmem [shape: bf16[2,328,128], index: 0, kind: input, shape index: {}]
  %s1 = inlined_call_operand.vmem [shape: bf16[9,128,128], index: 1, kind: input, shape index: {}]
  %s2 = inlined_call_operand.vmem [shape: f32[1,128], index: 2, kind: input, shape index: {}]
  %s3 = inlined_call_operand.vmem [shape: f32[1,128], index: 3, kind: input, shape index: {}]
  %s4 = inlined_call_operand.vmem [shape: f32[328,1], index: 4, kind: input, shape index: {}]
  %s5 = inlined_call_operand.vmem [shape: bf16[2,328,128], index: 5, kind: output, shape index: {0}]
  %s6 = inlined_call_operand.vmem [shape: f32[2,1,128], index: 6, kind: output, shape index: {1}]
  %s7 = inlined_call_operand.vmem [shape: f32[2,1,128], index: 7, kind: output, shape index: {2}]
  %8 = xla_tuple %s5, %s6, %s7
  %s9 = sld [smem:[#allocation0]]
  $region69: #{double_conv.4} parent=0
    _
  %s11 = ssub.s32 1, %s9
  %s12 = scalar_select 0, %s11, %s9
  loop: start=0, step=1, limit=4
  $region2: #{double_conv.4} parent=0 // loop_pre_header
    _
  $region3: #{double_conv.4} parent=0 // loop_header
    %s14 = sphi 0, %s18
    %p15 = scmp.ge.s32.totalorder %s14, 4
    %s24 = sphi 0, %s26
    %s27 = sphi 0, %s24
    %s28 = sphi 0, %s27
    %s44 = sphi 0, %s28
    %s48 = sphi 0, %s48
    %s50 = sphi 0, %s48
    %s51 = sphi 0, %s50
    %s65 = sphi 0, %s51
    %s69 = sphi 0, %s69
    %s71 = sphi 0, %s69
    %s72 = sphi 0, %s71
    %s86 = sphi 0, %s72
    %s90 = sphi 0, %s90
    %s92 = sphi 0, %s90
    %s93 = sphi 0, %s92
    %s107 = sphi 0, %s93
    %s111 = sphi 0, %s111
    %s113 = sphi 0, %s111
    %s114 = sphi 0, %s113
    %s128 = sphi 0, %s114
    %s134 = sphi 0, %s136
    %s137 = sphi 0, %s134
    %s138 = sphi 0, %s137
    %s154 = sphi 0, %s138
    %s160 = sphi 0, %s162
    %s163 = sphi 0, %s160
    %s164 = sphi 0, %s163
    %s180 = sphi 0, %s164
    %s186 = sphi 0, %s188
    %s189 = sphi 0, %s186
    %s190 = sphi 0, %s189
    %s206 = sphi 0, %s190
  $region4: #{double_conv.4} parent=0 // loop_header_branch
    %17 = sbr.rel (%p15) target = $region8
  $region5: #{double_conv.4} parent=0 // loop_body
    %s19 = ssub.s32 %s14, 1
    %s20 = ssub.s32 %s14, 2
    %s21 = sadd.s32 %s14, 1
    %s22 = ssub.s32 %s14, %s21
    %p23 = scmp.eq.s32.totalorder %s22, 0
    %s25 = sadd.s32 %s24, 1
    %s26 = scalar_select %p23, %s24, %s25
    %p29 = pneg %p23
    %p30 = scmp.eq.s32.totalorder %s14, 1
    %p31 = por %p29, %p30
    %p32 = scmp.ne.s32.totalorder %s24, %s27
    %p33 = scmp.eq.s32.totalorder %s14, 0
    %p34 = por %p32, %p33
    %p35 = scmp.ne.s32.totalorder %s24, %s27
    %p36 = scmp.eq.s32.totalorder %s19, 1
    %p37 = por %p35, %p36
    %p38 = scmp.ne.s32.totalorder %s27, %s28
    %p39 = scmp.eq.s32.totalorder %s19, 0
    %p40 = por %p38, %p39
    %p41 = scmp.ne.s32.totalorder %s27, %s28
    %p42 = scmp.eq.s32.totalorder %s20, 1
    %p43 = por %p41, %p42
    %p45 = scmp.ne.s32.totalorder %s28, %s44
    %p46 = scmp.eq.s32.totalorder %s20, 0
    %p47 = por %p45, %p46
    %s49 = sadd.s32 %s48, 1
    %p52 = scmp.eq.s32.totalorder %s14, 1
    %p53 = scmp.ne.s32.totalorder %s48, %s50
    %p54 = scmp.eq.s32.totalorder %s14, 0
    %p55 = por %p53, %p54
    %p56 = scmp.ne.s32.totalorder %s48, %s50
    %p57 = scmp.eq.s32.totalorder %s19, 1
    %p58 = por %p56, %p57
    %p59 = scmp.ne.s32.totalorder %s50, %s51
    %p60 = scmp.eq.s32.totalorder %s19, 0
    %p61 = por %p59, %p60
    %p62 = scmp.ne.s32.totalorder %s50, %s51
    %p63 = scmp.eq.s32.totalorder %s20, 1
    %p64 = por %p62, %p63
    %p66 = scmp.ne.s32.totalorder %s51, %s65
    %p67 = scmp.eq.s32.totalorder %s20, 0
    %p68 = por %p66, %p67
    %s70 = sadd.s32 %s69, 1
    %p73 = scmp.eq.s32.totalorder %s14, 1
    %p74 = scmp.ne.s32.totalorder %s69, %s71
    %p75 = scmp.eq.s32.totalorder %s14, 0
    %p76 = por %p74, %p75
    %p77 = scmp.ne.s32.totalorder %s69, %s71
    %p78 = scmp.eq.s32.totalorder %s19, 1
    %p79 = por %p77, %p78
    %p80 = scmp.ne.s32.totalorder %s71, %s72
    %p81 = scmp.eq.s32.totalorder %s19, 0
    %p82 = por %p80, %p81
    %p83 = scmp.ne.s32.totalorder %s71, %s72
    %p84 = scmp.eq.s32.totalorder %s20, 1
    %p85 = por %p83, %p84
    %p87 = scmp.ne.s32.totalorder %s72, %s86
    %p88 = scmp.eq.s32.totalorder %s20, 0
    %p89 = por %p87, %p88
    %s91 = sadd.s32 %s90, 1
    %p94 = scmp.eq.s32.totalorder %s14, 1
    %p95 = scmp.ne.s32.totalorder %s90, %s92
    %p96 = scmp.eq.s32.totalorder %s14, 0
    %p97 = por %p95, %p96
    %p98 = scmp.ne.s32.totalorder %s90, %s92
    %p99 = scmp.eq.s32.totalorder %s19, 1
    %p100 = por %p98, %p99
    %p101 = scmp.ne.s32.totalorder %s92, %s93
    %p102 = scmp.eq.s32.totalorder %s19, 0
    %p103 = por %p101, %p102
    %p104 = scmp.ne.s32.totalorder %s92, %s93
    %p105 = scmp.eq.s32.totalorder %s20, 1
    %p106 = por %p104, %p105
    %p108 = scmp.ne.s32.totalorder %s93, %s107
    %p109 = scmp.eq.s32.totalorder %s20, 0
    %p110 = por %p108, %p109
    %s112 = sadd.s32 %s111, 1
    %p115 = scmp.eq.s32.totalorder %s14, 1
    %p116 = scmp.ne.s32.totalorder %s111, %s113
    %p117 = scmp.eq.s32.totalorder %s14, 0
    %p118 = por %p116, %p117
    %p119 = scmp.ne.s32.totalorder %s111, %s113
    %p120 = scmp.eq.s32.totalorder %s19, 1
    %p121 = por %p119, %p120
    %p122 = scmp.ne.s32.totalorder %s113, %s114
    %p123 = scmp.eq.s32.totalorder %s19, 0
    %p124 = por %p122, %p123
    %p125 = scmp.ne.s32.totalorder %s113, %s114
    %p126 = scmp.eq.s32.totalorder %s20, 1
    %p127 = por %p125, %p126
    %p129 = scmp.ne.s32.totalorder %s114, %s128
    %p130 = scmp.eq.s32.totalorder %s20, 0
    %p131 = por %p129, %p130
    %s132 = ssub.s32 %s14, %s21
    %p133 = scmp.eq.s32.totalorder %s132, 0
    %s135 = sadd.s32 %s134, 1
    %s136 = scalar_select %p133, %s134, %s135
    %p139 = pneg %p133
    %p140 = scmp.eq.s32.totalorder %s14, 1
    %p141 = por %p139, %p140
    %p142 = scmp.ne.s32.totalorder %s134, %s137
    %p143 = scmp.eq.s32.totalorder %s14, 0
    %p144 = por %p142, %p143
    %p145 = scmp.ne.s32.totalorder %s134, %s137
    %p146 = scmp.eq.s32.totalorder %s19, 1
    %p147 = por %p145, %p146
    %p148 = scmp.ne.s32.totalorder %s137, %s138
    %p149 = scmp.eq.s32.totalorder %s19, 0
    %p150 = por %p148, %p149
    %p151 = scmp.ne.s32.totalorder %s137, %s138
    %p152 = scmp.eq.s32.totalorder %s20, 1
    %p153 = por %p151, %p152
    %p155 = scmp.ne.s32.totalorder %s138, %s154
    %p156 = scmp.eq.s32.totalorder %s20, 0
    %p157 = por %p155, %p156
    %s158 = ssub.s32 %s14, %s21
    %p159 = scmp.eq.s32.totalorder %s158, 0
    %s161 = sadd.s32 %s160, 1
    %s162 = scalar_select %p159, %s160, %s161
    %p165 = pneg %p159
    %p166 = scmp.eq.s32.totalorder %s14, 1
    %p167 = por %p165, %p166
    %p168 = scmp.ne.s32.totalorder %s160, %s163
    %p169 = scmp.eq.s32.totalorder %s14, 0
    %p170 = por %p168, %p169
    %p171 = scmp.ne.s32.totalorder %s160, %s163
    %p172 = scmp.eq.s32.totalorder %s19, 1
    %p173 = por %p171, %p172
    %p174 = scmp.ne.s32.totalorder %s163, %s164
    %p175 = scmp.eq.s32.totalorder %s19, 0
    %p176 = por %p174, %p175
    %p177 = scmp.ne.s32.totalorder %s163, %s164
    %p178 = scmp.eq.s32.totalorder %s20, 1
    %p179 = por %p177, %p178
    %p181 = scmp.ne.s32.totalorder %s164, %s180
    %p182 = scmp.eq.s32.totalorder %s20, 0
    %p183 = por %p181, %p182
    %s184 = ssub.s32 %s14, %s21
    %p185 = scmp.eq.s32.totalorder %s184, 0
    %s187 = sadd.s32 %s186, 1
    %s188 = scalar_select %p185, %s186, %s187
    %p191 = pneg %p185
    %p192 = scmp.eq.s32.totalorder %s14, 1
    %p193 = por %p191, %p192
    %p194 = scmp.ne.s32.totalorder %s186, %s189
    %p195 = scmp.eq.s32.totalorder %s14, 0
    %p196 = por %p194, %p195
    %p197 = scmp.ne.s32.totalorder %s186, %s189
    %p198 = scmp.eq.s32.totalorder %s19, 1
    %p199 = por %p197, %p198
    %p200 = scmp.ne.s32.totalorder %s189, %s190
    %p201 = scmp.eq.s32.totalorder %s19, 0
    %p202 = por %p200, %p201
    %p203 = scmp.ne.s32.totalorder %s189, %s190
    %p204 = scmp.eq.s32.totalorder %s20, 1
    %p205 = por %p203, %p204
    %p207 = scmp.ne.s32.totalorder %s190, %s206
    %p208 = scmp.eq.s32.totalorder %s20, 0
    %p209 = por %p207, %p208
    %p210 = scmp.le.s32.totalorder 1, %s14
    %p211 = scmp.lt.s32.totalorder %s14, 3
    %p212 = pnand %p210, %p211
    %p213 = pneg %p212
    // Predicated region
    $region9: #{double_conv.4} parent=5 // pred_check
      _
    $region10: #{double_conv.4} parent=5 // pred_check_branch
      %215 = sbr.rel (%p212) target = $region12
    $region11: #{double_conv.4} parent=5 // pred_region
      %s216 = ssub.s32 %s14, 1
      // Predicated region
      $region13: #{double_conv.4} parent=11 // pred_check
        %p217 = pneg %p61
      $region14: #{double_conv.4} parent=11 // pred_check_branch
        %219 = sbr.rel (%p217) target = $region16
      $region15: #{double_conv.4} parent=11 // pred_region
        _
      $region16: #{double_conv.4} parent=11 // pred_fallthru
        _
      // Predicated region
      $region17: #{double_conv.4} parent=11 // pred_check
        %p220 = pneg %p82
      $region18: #{double_conv.4} parent=11 // pred_check_branch
        %222 = sbr.rel (%p220) target = $region20
      $region19: #{double_conv.4} parent=11 // pred_region
        _
      $region20: #{double_conv.4} parent=11 // pred_fallthru
        _
      // Predicated region
      $region21: #{double_conv.4} parent=11 // pred_check
        %p223 = pneg %p103
      $region22: #{double_conv.4} parent=11 // pred_check_branch
        %225 = sbr.rel (%p223) target = $region24
      $region23: #{double_conv.4} parent=11 // pred_region
        _
      $region24: #{double_conv.4} parent=11 // pred_fallthru
        _
      // Predicated region
      $region25: #{double_conv.4} parent=11 // pred_check
        %p226 = pneg %p124
      $region26: #{double_conv.4} parent=11 // pred_check_branch
        %228 = sbr.rel (%p226) target = $region28
      $region27: #{double_conv.4} parent=11 // pred_region
        _
      $region28: #{double_conv.4} parent=11 // pred_fallthru
        _
    $region12: #{double_conv.4} parent=5 // pred_fallthru
      _
    %p229 = scmp.lt.s32.totalorder %s14, 2
    // Predicated region
    $region29: #{double_conv.4} parent=5 // pred_check
      %p230 = pneg %p229
    $region30: #{double_conv.4} parent=5 // pred_check_branch
      %232 = sbr.rel (%p230) target = $region32
    $region31: #{double_conv.4} parent=5 // pred_region
      // Predicated region
      $region33: #{double_conv.4} parent=31 // pred_check
        %p233 = pneg %p34
      $region34: #{double_conv.4} parent=31 // pred_check_branch
        %235 = sbr.rel (%p233) target = $region36
      $region35: #{double_conv.4} parent=31 // pred_region
        %p236 = scmp.lt.s32.totalorder %s14, 1
        %s237 = scalar_select %p236, %s14, 1
        %s238 = smul.addr %s237, 41
        %s239 = smul.addr %s238, 4
        %s240 = scalar_lea.vmem %s0, %s239
      $region36: #{double_conv.4} parent=31 // pred_fallthru
        _
    $region32: #{double_conv.4} parent=5 // pred_fallthru
      _
    %p241 = scmp.le.s32.totalorder 1, %s14
    %p242 = scmp.lt.s32.totalorder %s14, 3
    %p243 = pnand %p241, %p242
    %p244 = pneg %p243
    // Predicated region
    $region37: #{double_conv.4} parent=5 // pred_check
      _
    $region38: #{double_conv.4} parent=5 // pred_check_branch
      %246 = sbr.rel (%p243) target = $region40
    $region39: #{double_conv.4} parent=5 // pred_region
      %s247 = ssub.s32 %s14, 1
      %p248 = scmp.lt.s32.totalorder %s19, 1
      %s249 = scalar_select %p248, %s19, 1
      %s250 = smul.addr %s249, 41
      %s251 = smul.addr %s250, 4
      %s252 = scalar_lea.vmem %s0, %s251
      %p253 = pneg %p40
      %p254 = pneg %p37
      %p255 = pneg %p61
      %p256 = pneg %p58
      %p257 = pneg %p82
      %p258 = pneg %p79
      %p259 = pneg %p103
      %p260 = pneg %p100
      %p261 = pneg %p124
      %p262 = pneg %p121
      %p263 = pneg %p150
      %p264 = pneg %p147
      %p265 = scmp.lt.s32.totalorder %s19, 1
      %s266 = scalar_select %p265, %s19, 1
      %s267 = smul.addr %s266, 41
      %s268 = smul.addr %s267, 4
      %s269 = scalar_lea.vmem %s5, %s268
      %p270 = pneg %p176
      %p271 = pneg %p173
      %p272 = scmp.lt.s32.totalorder %s19, 1
      %s273 = scalar_select %p272, %s19, 1
      %s274 = scalar_lea.vmem %s6, %s273
      %p275 = pneg %p202
      %p276 = pneg %p199
      %p277 = scmp.lt.s32.totalorder %s19, 1
      %s278 = scalar_select %p277, %s19, 1
      %s279 = scalar_lea.vmem %s7, %s278
      %p280 = scmp.lt.s32.totalorder %s19, 1
      %s281 = scalar_select %p280, %s19, 1
      %s282 = smul.addr %s281, 41
      %s283 = smul.addr %s282, 4
      %s284 = scalar_lea.vmem %s0, %s283
      %p285 = scmp.lt.s32.totalorder %s19, 1
      %s286 = scalar_select %p285, %s19, 1
      %s287 = smul.addr %s286, 41
      %s288 = smul.addr %s287, 4
      %s289 = scalar_lea.vmem %s5, %s288
      %p290 = scmp.lt.s32.totalorder %s19, 1
      %s291 = scalar_select %p290, %s19, 1
      %s292 = scalar_lea.vmem %s6, %s291
      %p293 = scmp.lt.s32.totalorder %s19, 1
      %s294 = scalar_select %p293, %s19, 1
      %s295 = scalar_lea.vmem %s7, %s294
      %v297 = vld [vmem:[%s284] sm:$0xf]
      %v298 = vld [vmem:[%s284 + $0x4] sm:$0xf]
      %v299 = vld [vmem:[%s284 + $0x8] sm:$0xf]
      %v300 = vld [vmem:[%s284 + $0xc] sm:$0xf]
      %v301 = vld [vmem:[%s284 + $0x10] sm:$0xf]
      %v302 = vld [vmem:[%s284 + $0x14] sm:$0xf]
      %v303 = vld [vmem:[%s284 + $0x18] sm:$0xf]
      %v304 = vld [vmem:[%s284 + $0x1c] sm:$0xf]
      %v305 = vld [vmem:[%s284 + $0x20] sm:$0xf]
      %v306 = vld [vmem:[%s284 + $0x24] sm:$0xf]
      %v307 = vld [vmem:[%s284 + $0x28] sm:$0xf]
      %v308 = vld [vmem:[%s284 + $0x2c] sm:$0xf]
      %v309 = vld [vmem:[%s284 + $0x30] sm:$0xf]
      %v310 = vld [vmem:[%s284 + $0x34] sm:$0xf]
      %v311 = vld [vmem:[%s284 + $0x38] sm:$0xf]
      %v312 = vld [vmem:[%s284 + $0x3c] sm:$0xf]
      %v313 = vld [vmem:[%s284 + $0x40] sm:$0xf]
      %v314 = vld [vmem:[%s284 + $0x44] sm:$0xf]
      %v315 = vld [vmem:[%s284 + $0x48] sm:$0xf]
      %v316 = vld [vmem:[%s284 + $0x4c] sm:$0xf]
      %v317 = vld [vmem:[%s284 + $0x50] sm:$0xf]
      %v318 = vld [vmem:[%s284 + $0x54] sm:$0xf]
      %v319 = vld [vmem:[%s284 + $0x58] sm:$0xf]
      %v320 = vld [vmem:[%s284 + $0x5c] sm:$0xf]
      %v321 = vld [vmem:[%s284 + $0x60] sm:$0xf]
      %v322 = vld [vmem:[%s284 + $0x64] sm:$0xf]
      %v323 = vld [vmem:[%s284 + $0x68] sm:$0xf]
      %v324 = vld [vmem:[%s284 + $0x6c] sm:$0xf]
      %v325 = vld [vmem:[%s284 + $0x70] sm:$0xf]
      %v326 = vld [vmem:[%s284 + $0x74] sm:$0xf]
      %v327 = vld [vmem:[%s284 + $0x78] sm:$0xf]
      %v328 = vld [vmem:[%s284 + $0x7c] sm:$0xf]
      %v329 = vld [vmem:[%s284 + $0x80] sm:$0xf]
      %v330 = vld [vmem:[%s284 + $0x84] sm:$0xf]
      %v331 = vld [vmem:[%s284 + $0x88] sm:$0xf]
      %v332 = vld [vmem:[%s284 + $0x8c] sm:$0xf]
      %v333 = vld [vmem:[%s284 + $0x90] sm:$0xf]
      %v334 = vld [vmem:[%s284 + $0x94] sm:$0xf]
      %v335 = vld [vmem:[%s284 + $0x98] sm:$0xf]
      %v336 = vld [vmem:[%s284 + $0x9c] sm:$0xf]
      %v337 = vld [vmem:[%s284 + $0xa0] sm:$0xf]
      %v338 = vunpack.c.l.bf16 %v297
      %v339 = vunpack.c.l.bf16 %v298
      %v340 = vunpack.c.l.bf16 %v299
      %v341 = vunpack.c.l.bf16 %v300
      %v342 = vunpack.c.l.bf16 %v301
      %v343 = vunpack.c.l.bf16 %v302
      %v344 = vunpack.c.l.bf16 %v303
      %v345 = vunpack.c.l.bf16 %v304
      %v346 = vunpack.c.l.bf16 %v305
      %v347 = vunpack.c.l.bf16 %v306
      %v348 = vunpack.c.l.bf16 %v307
      %v349 = vunpack.c.l.bf16 %v308
      %v350 = vunpack.c.l.bf16 %v309
      %v351 = vunpack.c.l.bf16 %v310
      %v352 = vunpack.c.l.bf16 %v311
      %v353 = vunpack.c.l.bf16 %v312
      %v354 = vunpack.c.l.bf16 %v313
      %v355 = vunpack.c.l.bf16 %v314
      %v356 = vunpack.c.l.bf16 %v315
      %v357 = vunpack.c.l.bf16 %v316
      %v358 = vunpack.c.l.bf16 %v317
      %v359 = vunpack.c.l.bf16 %v318
      %v360 = vunpack.c.l.bf16 %v319
      %v361 = vunpack.c.l.bf16 %v320
      %v362 = vunpack.c.l.bf16 %v321
      %v363 = vunpack.c.l.bf16 %v322
      %v364 = vunpack.c.l.bf16 %v323
      %v365 = vunpack.c.l.bf16 %v324
      %v366 = vunpack.c.l.bf16 %v325
      %v367 = vunpack.c.l.bf16 %v326
      %v368 = vunpack.c.l.bf16 %v327
      %v369 = vunpack.c.l.bf16 %v328
      %v370 = vunpack.c.l.bf16 %v329
      %v371 = vunpack.c.l.bf16 %v330
      %v372 = vunpack.c.l.bf16 %v331
      %v373 = vunpack.c.l.bf16 %v332
      %v374 = vunpack.c.l.bf16 %v333
      %v375 = vunpack.c.l.bf16 %v334
      %v376 = vunpack.c.l.bf16 %v335
      %v377 = vunpack.c.l.bf16 %v336
      %v378 = vunpack.c.l.bf16 %v337
      %v379 = vld [vmem:[%s2] sm:$0x1]
      %v381 = vlaneseq
      %v382 = vshrl.u32 %v381, 7
      %v383 = vsub.s32 0, %v382
      %v384 = vrot.slane %v379, %v383
      %v386 = vmul.f32 %v338, %v384
      %v387 = vmul.f32 %v339, %v384
      %v388 = vmul.f32 %v340, %v384
      %v389 = vmul.f32 %v341, %v384
      %v390 = vmul.f32 %v342, %v384
      %v391 = vmul.f32 %v343, %v384
      %v392 = vmul.f32 %v344, %v384
      %v393 = vmul.f32 %v345, %v384
      %v394 = vmul.f32 %v346, %v384
      %v395 = vmul.f32 %v347, %v384
      %v396 = vmul.f32 %v348, %v384
      %v397 = vmul.f32 %v349, %v384
      %v398 = vmul.f32 %v350, %v384
      %v399 = vmul.f32 %v351, %v384
      %v400 = vmul.f32 %v352, %v384
      %v401 = vmul.f32 %v353, %v384
      %v402 = vmul.f32 %v354, %v384
      %v403 = vmul.f32 %v355, %v384
      %v404 = vmul.f32 %v356, %v384
      %v405 = vmul.f32 %v357, %v384
      %v406 = vmul.f32 %v358, %v384
      %v407 = vmul.f32 %v359, %v384
      %v408 = vmul.f32 %v360, %v384
      %v409 = vmul.f32 %v361, %v384
      %v410 = vmul.f32 %v362, %v384
      %v411 = vmul.f32 %v363, %v384
      %v412 = vmul.f32 %v364, %v384
      %v413 = vmul.f32 %v365, %v384
      %v414 = vmul.f32 %v366, %v384
      %v415 = vmul.f32 %v367, %v384
      %v416 = vmul.f32 %v368, %v384
      %v417 = vmul.f32 %v369, %v384
      %v418 = vmul.f32 %v370, %v384
      %v419 = vmul.f32 %v371, %v384
      %v420 = vmul.f32 %v372, %v384
      %v421 = vmul.f32 %v373, %v384
      %v422 = vmul.f32 %v374, %v384
      %v423 = vmul.f32 %v375, %v384
      %v424 = vmul.f32 %v376, %v384
      %v425 = vmul.f32 %v377, %v384
      %v426 = vmul.f32 %v378, %v384
      %v427 = vld [vmem:[%s3] sm:$0x1]
      %v429 = vlaneseq
      %v430 = vshrl.u32 %v429, 7
      %v431 = vsub.s32 0, %v430
      %v432 = vrot.slane %v427, %v431
      %v434 = vadd.f32 %v386, %v432
      %v435 = vadd.f32 %v387, %v432
      %v436 = vadd.f32 %v388, %v432
      %v437 = vadd.f32 %v389, %v432
      %v438 = vadd.f32 %v390, %v432
      %v439 = vadd.f32 %v391, %v432
      %v440 = vadd.f32 %v392, %v432
      %v441 = vadd.f32 %v393, %v432
      %v442 = vadd.f32 %v394, %v432
      %v443 = vadd.f32 %v395, %v432
      %v444 = vadd.f32 %v396, %v432
      %v445 = vadd.f32 %v397, %v432
      %v446 = vadd.f32 %v398, %v432
      %v447 = vadd.f32 %v399, %v432
      %v448 = vadd.f32 %v400, %v432
      %v449 = vadd.f32 %v401, %v432
      %v450 = vadd.f32 %v402, %v432
      %v451 = vadd.f32 %v403, %v432
      %v452 = vadd.f32 %v404, %v432
      %v453 = vadd.f32 %v405, %v432
      %v454 = vadd.f32 %v406, %v432
      %v455 = vadd.f32 %v407, %v432
      %v456 = vadd.f32 %v408, %v432
      %v457 = vadd.f32 %v409, %v432
      %v458 = vadd.f32 %v410, %v432
      %v459 = vadd.f32 %v411, %v432
      %v460 = vadd.f32 %v412, %v432
      %v461 = vadd.f32 %v413, %v432
      %v462 = vadd.f32 %v414, %v432
      %v463 = vadd.f32 %v415, %v432
      %v464 = vadd.f32 %v416, %v432
      %v465 = vadd.f32 %v417, %v432
      %v466 = vadd.f32 %v418, %v432
      %v467 = vadd.f32 %v419, %v432
      %v468 = vadd.f32 %v420, %v432
      %v469 = vadd.f32 %v421, %v432
      %v470 = vadd.f32 %v422, %v432
      %v471 = vadd.f32 %v423, %v432
      %v472 = vadd.f32 %v424, %v432
      %v473 = vadd.f32 %v425, %v432
      %v474 = vadd.f32 %v426, %v432
      %v475 = vmax.f32 %v434, 0.0
      %v476 = vmax.f32 %v435, 0.0
      %v477 = vmax.f32 %v436, 0.0
      %v478 = vmax.f32 %v437, 0.0
      %v479 = vmax.f32 %v438, 0.0
      %v480 = vmax.f32 %v439, 0.0
      %v481 = vmax.f32 %v440, 0.0
      %v482 = vmax.f32 %v441, 0.0
      %v483 = vmax.f32 %v442, 0.0
      %v484 = vmax.f32 %v443, 0.0
      %v485 = vmax.f32 %v444, 0.0
      %v486 = vmax.f32 %v445, 0.0
      %v487 = vmax.f32 %v446, 0.0
      %v488 = vmax.f32 %v447, 0.0
      %v489 = vmax.f32 %v448, 0.0
      %v490 = vmax.f32 %v449, 0.0
      %v491 = vmax.f32 %v450, 0.0
      %v492 = vmax.f32 %v451, 0.0
      %v493 = vmax.f32 %v452, 0.0
      %v494 = vmax.f32 %v453, 0.0
      %v495 = vmax.f32 %v454, 0.0
      %v496 = vmax.f32 %v455, 0.0
      %v497 = vmax.f32 %v456, 0.0
      %v498 = vmax.f32 %v457, 0.0
      %v499 = vmax.f32 %v458, 0.0
      %v500 = vmax.f32 %v459, 0.0
      %v501 = vmax.f32 %v460, 0.0
      %v502 = vmax.f32 %v461, 0.0
      %v503 = vmax.f32 %v462, 0.0
      %v504 = vmax.f32 %v463, 0.0
      %v505 = vmax.f32 %v464, 0.0
      %v506 = vmax.f32 %v465, 0.0
      %v507 = vmax.f32 %v466, 0.0
      %v508 = vmax.f32 %v467, 0.0
      %v509 = vmax.f32 %v468, 0.0
      %v510 = vmax.f32 %v469, 0.0
      %v511 = vmax.f32 %v470, 0.0
      %v512 = vmax.f32 %v471, 0.0
      %v513 = vmax.f32 %v472, 0.0
      %v514 = vmax.f32 %v473, 0.0
      %v515 = vmax.f32 %v474, 0.0
      %v516 = vld [vmem:[%s4] sm:$0xff]
      %v517 = vld [vmem:[%s4 + $0x8] sm:$0xff]
      %v518 = vld [vmem:[%s4 + $0x10] sm:$0xff]
      %v519 = vld [vmem:[%s4 + $0x18] sm:$0xff]
      %v520 = vld [vmem:[%s4 + $0x20] sm:$0xff]
      %v521 = vld [vmem:[%s4 + $0x28] sm:$0xff]
      %v522 = vld [vmem:[%s4 + $0x30] sm:$0xff]
      %v523 = vld [vmem:[%s4 + $0x38] sm:$0xff]
      %v524 = vld [vmem:[%s4 + $0x40] sm:$0xff]
      %v525 = vld [vmem:[%s4 + $0x48] sm:$0xff]
      %v526 = vld [vmem:[%s4 + $0x50] sm:$0xff]
      %v527 = vld [vmem:[%s4 + $0x58] sm:$0xff]
      %v528 = vld [vmem:[%s4 + $0x60] sm:$0xff]
      %v529 = vld [vmem:[%s4 + $0x68] sm:$0xff]
      %v530 = vld [vmem:[%s4 + $0x70] sm:$0xff]
      %v531 = vld [vmem:[%s4 + $0x78] sm:$0xff]
      %v532 = vld [vmem:[%s4 + $0x80] sm:$0xff]
      %v533 = vld [vmem:[%s4 + $0x88] sm:$0xff]
      %v534 = vld [vmem:[%s4 + $0x90] sm:$0xff]
      %v535 = vld [vmem:[%s4 + $0x98] sm:$0xff]
      %v536 = vld [vmem:[%s4 + $0xa0] sm:$0xff]
      %v537 = vld [vmem:[%s4 + $0xa8] sm:$0xff]
      %v538 = vld [vmem:[%s4 + $0xb0] sm:$0xff]
      %v539 = vld [vmem:[%s4 + $0xb8] sm:$0xff]
      %v540 = vld [vmem:[%s4 + $0xc0] sm:$0xff]
      %v541 = vld [vmem:[%s4 + $0xc8] sm:$0xff]
      %v542 = vld [vmem:[%s4 + $0xd0] sm:$0xff]
      %v543 = vld [vmem:[%s4 + $0xd8] sm:$0xff]
      %v544 = vld [vmem:[%s4 + $0xe0] sm:$0xff]
      %v545 = vld [vmem:[%s4 + $0xe8] sm:$0xff]
      %v546 = vld [vmem:[%s4 + $0xf0] sm:$0xff]
      %v547 = vld [vmem:[%s4 + $0xf8] sm:$0xff]
      %v548 = vld [vmem:[%s4 + $0x100] sm:$0xff]
      %v549 = vld [vmem:[%s4 + $0x108] sm:$0xff]
      %v550 = vld [vmem:[%s4 + $0x110] sm:$0xff]
      %v551 = vld [vmem:[%s4 + $0x118] sm:$0xff]
      %v552 = vld [vmem:[%s4 + $0x120] sm:$0xff]
      %v553 = vld [vmem:[%s4 + $0x128] sm:$0xff]
      %v554 = vld [vmem:[%s4 + $0x130] sm:$0xff]
      %v555 = vld [vmem:[%s4 + $0x138] sm:$0xff]
      %v556 = vld [vmem:[%s4 + $0x140] sm:$0xff]
      %558 = vset.pattern.permute.xlu0 0
      %559 = vperm.xlu0 %558, %v516
      %v560 = vpop.permute.xlu0 %559
      %563 = vset.pattern.permute.xlu0 0
      %564 = vperm.xlu0 %563, %v517
      %v565 = vpop.permute.xlu0 %564
      %568 = vset.pattern.permute.xlu0 0
      %569 = vperm.xlu0 %568, %v518
      %v570 = vpop.permute.xlu0 %569
      %573 = vset.pattern.permute.xlu0 0
      %574 = vperm.xlu0 %573, %v519
      %v575 = vpop.permute.xlu0 %574
      %578 = vset.pattern.permute.xlu0 0
      %579 = vperm.xlu0 %578, %v520
      %v580 = vpop.permute.xlu0 %579
      %583 = vset.pattern.permute.xlu0 0
      %584 = vperm.xlu0 %583, %v521
      %v585 = vpop.permute.xlu0 %584
      %588 = vset.pattern.permute.xlu0 0
      %589 = vperm.xlu0 %588, %v522
      %v590 = vpop.permute.xlu0 %589
      %593 = vset.pattern.permute.xlu0 0
      %594 = vperm.xlu0 %593, %v523
      %v595 = vpop.permute.xlu0 %594
      %598 = vset.pattern.permute.xlu0 0
      %599 = vperm.xlu0 %598, %v524
      %v600 = vpop.permute.xlu0 %599
      %603 = vset.pattern.permute.xlu0 0
      %604 = vperm.xlu0 %603, %v525
      %v605 = vpop.permute.xlu0 %604
      %608 = vset.pattern.permute.xlu0 0
      %609 = vperm.xlu0 %608, %v526
      %v610 = vpop.permute.xlu0 %609
      %613 = vset.pattern.permute.xlu0 0
      %614 = vperm.xlu0 %613, %v527
      %v615 = vpop.permute.xlu0 %614
      %618 = vset.pattern.permute.xlu0 0
      %619 = vperm.xlu0 %618, %v528
      %v620 = vpop.permute.xlu0 %619
      %623 = vset.pattern.permute.xlu0 0
      %624 = vperm.xlu0 %623, %v529
      %v625 = vpop.permute.xlu0 %624
      %628 = vset.pattern.permute.xlu0 0
      %629 = vperm.xlu0 %628, %v530
      %v630 = vpop.permute.xlu0 %629
      %633 = vset.pattern.permute.xlu0 0
      %634 = vperm.xlu0 %633, %v531
      %v635 = vpop.permute.xlu0 %634
      %638 = vset.pattern.permute.xlu0 0
      %639 = vperm.xlu0 %638, %v532
      %v640 = vpop.permute.xlu0 %639
      %643 = vset.pattern.permute.xlu0 0
      %644 = vperm.xlu0 %643, %v533
      %v645 = vpop.permute.xlu0 %644
      %648 = vset.pattern.permute.xlu0 0
      %649 = vperm.xlu0 %648, %v534
      %v650 = vpop.permute.xlu0 %649
      %653 = vset.pattern.permute.xlu0 0
      %654 = vperm.xlu0 %653, %v535
      %v655 = vpop.permute.xlu0 %654
      %658 = vset.pattern.permute.xlu0 0
      %659 = vperm.xlu0 %658, %v536
      %v660 = vpop.permute.xlu0 %659
      %663 = vset.pattern.permute.xlu0 0
      %664 = vperm.xlu0 %663, %v537
      %v665 = vpop.permute.xlu0 %664
      %668 = vset.pattern.permute.xlu0 0
      %669 = vperm.xlu0 %668, %v538
      %v670 = vpop.permute.xlu0 %669
      %673 = vset.pattern.permute.xlu0 0
      %674 = vperm.xlu0 %673, %v539
      %v675 = vpop.permute.xlu0 %674
      %678 = vset.pattern.permute.xlu0 0
      %679 = vperm.xlu0 %678, %v540
      %v680 = vpop.permute.xlu0 %679
      %683 = vset.pattern.permute.xlu0 0
      %684 = vperm.xlu0 %683, %v541
      %v685 = vpop.permute.xlu0 %684
      %688 = vset.pattern.permute.xlu0 0
      %689 = vperm.xlu0 %688, %v542
      %v690 = vpop.permute.xlu0 %689
      %693 = vset.pattern.permute.xlu0 0
      %694 = vperm.xlu0 %693, %v543
      %v695 = vpop.permute.xlu0 %694
      %698 = vset.pattern.permute.xlu0 0
      %699 = vperm.xlu0 %698, %v544
      %v700 = vpop.permute.xlu0 %699
      %703 = vset.pattern.permute.xlu0 0
      %704 = vperm.xlu0 %703, %v545
      %v705 = vpop.permute.xlu0 %704
      %708 = vset.pattern.permute.xlu0 0
      %709 = vperm.xlu0 %708, %v546
      %v710 = vpop.permute.xlu0 %709
      %713 = vset.pattern.permute.xlu0 0
      %714 = vperm.xlu0 %713, %v547
      %v715 = vpop.permute.xlu0 %714
      %718 = vset.pattern.permute.xlu0 0
      %719 = vperm.xlu0 %718, %v548
      %v720 = vpop.permute.xlu0 %719
      %723 = vset.pattern.permute.xlu0 0
      %724 = vperm.xlu0 %723, %v549
      %v725 = vpop.permute.xlu0 %724
      %728 = vset.pattern.permute.xlu0 0
      %729 = vperm.xlu0 %728, %v550
      %v730 = vpop.permute.xlu0 %729
      %733 = vset.pattern.permute.xlu0 0
      %734 = vperm.xlu0 %733, %v551
      %v735 = vpop.permute.xlu0 %734
      %738 = vset.pattern.permute.xlu0 0
      %739 = vperm.xlu0 %738, %v552
      %v740 = vpop.permute.xlu0 %739
      %743 = vset.pattern.permute.xlu0 0
      %744 = vperm.xlu0 %743, %v553
      %v745 = vpop.permute.xlu0 %744
      %748 = vset.pattern.permute.xlu0 0
      %749 = vperm.xlu0 %748, %v554
      %v750 = vpop.permute.xlu0 %749
      %753 = vset.pattern.permute.xlu0 0
      %754 = vperm.xlu0 %753, %v555
      %v755 = vpop.permute.xlu0 %754
      %758 = vset.pattern.permute.xlu0 0
      %759 = vperm.xlu0 %758, %v556
      %v760 = vpop.permute.xlu0 %759
      %v762 = vmul.f32 %v475, %v560
      %v763 = vmul.f32 %v476, %v565
      %v764 = vmul.f32 %v477, %v570
      %v765 = vmul.f32 %v478, %v575
      %v766 = vmul.f32 %v479, %v580
      %v767 = vmul.f32 %v480, %v585
      %v768 = vmul.f32 %v481, %v590
      %v769 = vmul.f32 %v482, %v595
      %v770 = vmul.f32 %v483, %v600
      %v771 = vmul.f32 %v484, %v605
      %v772 = vmul.f32 %v485, %v610
      %v773 = vmul.f32 %v486, %v615
      %v774 = vmul.f32 %v487, %v620
      %v775 = vmul.f32 %v488, %v625
      %v776 = vmul.f32 %v489, %v630
      %v777 = vmul.f32 %v490, %v635
      %v778 = vmul.f32 %v491, %v640
      %v779 = vmul.f32 %v492, %v645
      %v780 = vmul.f32 %v493, %v650
      %v781 = vmul.f32 %v494, %v655
      %v782 = vmul.f32 %v495, %v660
      %v783 = vmul.f32 %v496, %v665
      %v784 = vmul.f32 %v497, %v670
      %v785 = vmul.f32 %v498, %v675
      %v786 = vmul.f32 %v499, %v680
      %v787 = vmul.f32 %v500, %v685
      %v788 = vmul.f32 %v501, %v690
      %v789 = vmul.f32 %v502, %v695
      %v790 = vmul.f32 %v503, %v700
      %v791 = vmul.f32 %v504, %v705
      %v792 = vmul.f32 %v505, %v710
      %v793 = vmul.f32 %v506, %v715
      %v794 = vmul.f32 %v507, %v720
      %v795 = vmul.f32 %v508, %v725
      %v796 = vmul.f32 %v509, %v730
      %v797 = vmul.f32 %v510, %v735
      %v798 = vmul.f32 %v511, %v740
      %v799 = vmul.f32 %v512, %v745
      %v800 = vmul.f32 %v513, %v750
      %v801 = vmul.f32 %v514, %v755
      %v802 = vmul.f32 %v515, %v760
      %v803 = vpack.c.bf16 %v763, %v762
      %v804 = vpack.c.bf16 %v765, %v764
      %v805 = vpack.c.bf16 %v767, %v766
      %v806 = vpack.c.bf16 %v769, %v768
      %v807 = vpack.c.bf16 %v771, %v770
      %v808 = vpack.c.bf16 %v773, %v772
      %v809 = vpack.c.bf16 %v775, %v774
      %v810 = vpack.c.bf16 %v777, %v776
      %v811 = vpack.c.bf16 %v779, %v778
      %v812 = vpack.c.bf16 %v781, %v780
      %v813 = vpack.c.bf16 %v783, %v782
      %v814 = vpack.c.bf16 %v785, %v784
      %v815 = vpack.c.bf16 %v787, %v786
      %v816 = vpack.c.bf16 %v789, %v788
      %v817 = vpack.c.bf16 %v791, %v790
      %v818 = vpack.c.bf16 %v793, %v792
      %v819 = vpack.c.bf16 %v795, %v794
      %v820 = vpack.c.bf16 %v797, %v796
      %v821 = vpack.c.bf16 %v799, %v798
      %v822 = vpack.c.bf16 %v801, %v800
      %v823 = vpack.c.bf16 %v802, %v802
      %v845 = vunpack.c.l.b16 %v803
      %v846 = vunpack.c.h.b16 %v803
      %v847 = vunpack.c.l.b16 %v804
      %v848 = vunpack.c.h.b16 %v804
      %v849 = vunpack.c.l.b16 %v805
      %v850 = vunpack.c.h.b16 %v805
      %v851 = vunpack.c.l.b16 %v806
      %v852 = vunpack.c.h.b16 %v806
      %v853 = vunpack.c.l.b16 %v807
      %v854 = vunpack.c.h.b16 %v807
      %v855 = vunpack.c.l.b16 %v808
      %v856 = vunpack.c.h.b16 %v808
      %v857 = vunpack.c.l.b16 %v809
      %v858 = vunpack.c.h.b16 %v809
      %v859 = vunpack.c.l.b16 %v810
      %v860 = vunpack.c.h.b16 %v810
      %v861 = vunpack.c.l.b16 %v811
      %v862 = vunpack.c.h.b16 %v811
      %v863 = vunpack.c.l.b16 %v812
      %v864 = vunpack.c.h.b16 %v812
      %v865 = vunpack.c.l.b16 %v813
      %v866 = vunpack.c.h.b16 %v813
      %v867 = vunpack.c.l.b16 %v814
      %v868 = vunpack.c.h.b16 %v814
      %v869 = vunpack.c.l.b16 %v815
      %v870 = vunpack.c.h.b16 %v815
      %v871 = vunpack.c.l.b16 %v816
      %v872 = vunpack.c.h.b16 %v816
      %v873 = vunpack.c.l.b16 %v817
      %v874 = vunpack.c.h.b16 %v817
      %v875 = vunpack.c.l.b16 %v818
      %v876 = vunpack.c.h.b16 %v818
      %v877 = vunpack.c.l.b16 %v819
      %v878 = vunpack.c.h.b16 %v819
      %v879 = vunpack.c.l.b16 %v820
      %v880 = vunpack.c.h.b16 %v820
      %v881 = vunpack.c.l.b16 %v821
      %v882 = vunpack.c.h.b16 %v821
      %v883 = vunpack.c.l.b16 %v822
      %v884 = vunpack.c.h.b16 %v822
      %v885 = vunpack.c.l.b16 %v823
      %v886 = vpack.c.b16 %v845, %v845
      %v887 = vpack.c.b16 %v846, %v846
      %v888 = vpack.c.b16 %v847, %v847
      %v889 = vpack.c.b16 %v848, %v848
      %v890 = vpack.c.b16 %v849, %v849
      %v891 = vpack.c.b16 %v850, %v850
      %v892 = vpack.c.b16 %v851, %v851
      %v893 = vpack.c.b16 %v852, %v852
      %v894 = vpack.c.b16 %v853, %v853
      %v895 = vpack.c.b16 %v854, %v854
      %v896 = vpack.c.b16 %v855, %v855
      %v897 = vpack.c.b16 %v856, %v856
      %v898 = vpack.c.b16 %v857, %v857
      %v899 = vpack.c.b16 %v858, %v858
      %v900 = vpack.c.b16 %v859, %v859
      %v901 = vpack.c.b16 %v860, %v860
      %v902 = vpack.c.b16 %v861, %v861
      %v903 = vpack.c.b16 %v862, %v862
      %v904 = vpack.c.b16 %v863, %v863
      %v905 = vpack.c.b16 %v864, %v864
      %v906 = vpack.c.b16 %v865, %v865
      %v907 = vpack.c.b16 %v866, %v866
      %v908 = vpack.c.b16 %v867, %v867
      %v909 = vpack.c.b16 %v868, %v868
      %v910 = vpack.c.b16 %v869, %v869
      %v911 = vpack.c.b16 %v870, %v870
      %v912 = vpack.c.b16 %v871, %v871
      %v913 = vpack.c.b16 %v872, %v872
      %v914 = vpack.c.b16 %v873, %v873
      %v915 = vpack.c.b16 %v874, %v874
      %v916 = vpack.c.b16 %v875, %v875
      %v917 = vpack.c.b16 %v876, %v876
      %v918 = vpack.c.b16 %v877, %v877
      %v919 = vpack.c.b16 %v878, %v878
      %v920 = vpack.c.b16 %v879, %v879
      %v921 = vpack.c.b16 %v880, %v880
      %v922 = vpack.c.b16 %v881, %v881
      %v923 = vpack.c.b16 %v882, %v882
      %v924 = vpack.c.b16 %v883, %v883
      %v925 = vpack.c.b16 %v884, %v884
      %v926 = vpack.c.b16 %v885, %v885
      %968 = vst [vmem:[#allocation2] sm:$0xf] %v886
      %969 = vst [vmem:[#allocation2 + $0x4] sm:$0xf] %v887
      %970 = vst [vmem:[#allocation2 + $0x8] sm:$0xf] %v888
      %971 = vst [vmem:[#allocation2 + $0xc] sm:$0xf] %v889
      %972 = vst [vmem:[#allocation2 + $0x10] sm:$0xf] %v890
      %973 = vst [vmem:[#allocation2 + $0x14] sm:$0xf] %v891
      %974 = vst [vmem:[#allocation2 + $0x18] sm:$0xf] %v892
      %975 = vst [vmem:[#allocation2 + $0x1c] sm:$0xf] %v893
      %976 = vst [vmem:[#allocation2 + $0x20] sm:$0xf] %v894
      %977 = vst [vmem:[#allocation2 + $0x24] sm:$0xf] %v895
      %978 = vst [vmem:[#allocation2 + $0x28] sm:$0xf] %v896
      %979 = vst [vmem:[#allocation2 + $0x2c] sm:$0xf] %v897
      %980 = vst [vmem:[#allocation2 + $0x30] sm:$0xf] %v898
      %981 = vst [vmem:[#allocation2 + $0x34] sm:$0xf] %v899
      %982 = vst [vmem:[#allocation2 + $0x38] sm:$0xf] %v900
      %983 = vst [vmem:[#allocation2 + $0x3c] sm:$0xf] %v901
      %984 = vst [vmem:[#allocation2 + $0x40] sm:$0xf] %v902
      %985 = vst [vmem:[#allocation2 + $0x44] sm:$0xf] %v903
      %986 = vst [vmem:[#allocation2 + $0x48] sm:$0xf] %v904
      %987 = vst [vmem:[#allocation2 + $0x4c] sm:$0xf] %v905
      %988 = vst [vmem:[#allocation2 + $0x50] sm:$0xf] %v906
      %989 = vst [vmem:[#allocation2 + $0x54] sm:$0xf] %v907
      %990 = vst [vmem:[#allocation2 + $0x58] sm:$0xf] %v908
      %991 = vst [vmem:[#allocation2 + $0x5c] sm:$0xf] %v909
      %992 = vst [vmem:[#allocation2 + $0x60] sm:$0xf] %v910
      %993 = vst [vmem:[#allocation2 + $0x64] sm:$0xf] %v911
      %994 = vst [vmem:[#allocation2 + $0x68] sm:$0xf] %v912
      %995 = vst [vmem:[#allocation2 + $0x6c] sm:$0xf] %v913
      %996 = vst [vmem:[#allocation2 + $0x70] sm:$0xf] %v914
      %997 = vst [vmem:[#allocation2 + $0x74] sm:$0xf] %v915
      %998 = vst [vmem:[#allocation2 + $0x78] sm:$0xf] %v916
      %999 = vst [vmem:[#allocation2 + $0x7c] sm:$0xf] %v917
      %1000 = vst [vmem:[#allocation2 + $0x80] sm:$0xf] %v918
      %1001 = vst [vmem:[#allocation2 + $0x84] sm:$0xf] %v919
      %1002 = vst [vmem:[#allocation2 + $0x88] sm:$0xf] %v920
      %1003 = vst [vmem:[#allocation2 + $0x8c] sm:$0xf] %v921
      %1004 = vst [vmem:[#allocation2 + $0x90] sm:$0xf] %v922
      %1005 = vst [vmem:[#allocation2 + $0x94] sm:$0xf] %v923
      %1006 = vst [vmem:[#allocation2 + $0x98] sm:$0xf] %v924
      %1007 = vst [vmem:[#allocation2 + $0x9c] sm:$0xf] %v925
      %1008 = vst [vmem:[#allocation2 + $0xa0] sm:$0xf] %v926
      %v1009 = vld [vmem:[#allocation2] sm:$0xf]
      %v1010 = vld [vmem:[#allocation2 + $0x4] sm:$0xf]
      %v1011 = vld [vmem:[#allocation2 + $0x8] sm:$0xf]
      %v1012 = vld [vmem:[#allocation2 + $0xc] sm:$0xf]
      %v1013 = vld [vmem:[#allocation2 + $0x10] sm:$0xf]
      %v1014 = vld [vmem:[#allocation2 + $0x14] sm:$0xf]
      %v1015 = vld [vmem:[#allocation2 + $0x18] sm:$0xf]
      %v1016 = vld [vmem:[#allocation2 + $0x1c] sm:$0xf]
      %v1017 = vld [vmem:[#allocation2 + $0x20] sm:$0xf]
      %v1018 = vld [vmem:[#allocation2 + $0x24] sm:$0xf]
      %v1019 = vld [vmem:[#allocation2 + $0x28] sm:$0xf]
      %v1020 = vld [vmem:[#allocation2 + $0x2c] sm:$0xf]
      %v1021 = vld [vmem:[#allocation2 + $0x30] sm:$0xf]
      %v1022 = vld [vmem:[#allocation2 + $0x34] sm:$0xf]
      %v1023 = vld [vmem:[#allocation2 + $0x38] sm:$0xf]
      %v1024 = vld [vmem:[#allocation2 + $0x3c] sm:$0xf]
      %v1025 = vld [vmem:[#allocation2 + $0x40] sm:$0xf]
      %v1026 = vld [vmem:[#allocation2 + $0x44] sm:$0xf]
      %v1027 = vld [vmem:[#allocation2 + $0x48] sm:$0xf]
      %v1028 = vld [vmem:[#allocation2 + $0x4c] sm:$0xf]
      %v1029 = vld [vmem:[#allocation2 + $0x50] sm:$0xf]
      %v1030 = vld [vmem:[#allocation2 + $0x54] sm:$0xf]
      %v1031 = vld [vmem:[#allocation2 + $0x58] sm:$0xf]
      %v1032 = vld [vmem:[#allocation2 + $0x5c] sm:$0xf]
      %v1033 = vld [vmem:[#allocation2 + $0x60] sm:$0xf]
      %v1034 = vld [vmem:[#allocation2 + $0x64] sm:$0xf]
      %v1035 = vld [vmem:[#allocation2 + $0x68] sm:$0xf]
      %v1036 = vld [vmem:[#allocation2 + $0x6c] sm:$0xf]
      %v1037 = vld [vmem:[#allocation2 + $0x70] sm:$0xf]
      %v1038 = vld [vmem:[#allocation2 + $0x74] sm:$0xf]
      %v1039 = vld [vmem:[#allocation2 + $0x78] sm:$0xf]
      %v1040 = vld [vmem:[#allocation2 + $0x7c] sm:$0xf]
      %v1041 = vld [vmem:[#allocation2 + $0x80] sm:$0xf]
      %v1042 = vld [vmem:[#allocation2 + $0x84] sm:$0xf]
      %v1043 = vld [vmem:[#allocation2 + $0x88] sm:$0xf]
      %v1044 = vld [vmem:[#allocation2 + $0x8c] sm:$0xf]
      %v1045 = vld [vmem:[%s1] sm:$0xf]
      %v1046 = vld [vmem:[%s1 + $0x4] sm:$0xf]
      %v1047 = vld [vmem:[%s1 + $0x8] sm:$0xf]
      %v1048 = vld [vmem:[%s1 + $0xc] sm:$0xf]
      %v1049 = vld [vmem:[%s1 + $0x10] sm:$0xf]
      %v1050 = vld [vmem:[%s1 + $0x14] sm:$0xf]
      %v1051 = vld [vmem:[%s1 + $0x18] sm:$0xf]
      %v1052 = vld [vmem:[%s1 + $0x1c] sm:$0xf]
      %v1053 = vld [vmem:[%s1 + $0x20] sm:$0xf]
      %v1054 = vld [vmem:[%s1 + $0x24] sm:$0xf]
      %v1055 = vld [vmem:[%s1 + $0x28] sm:$0xf]
      %v1056 = vld [vmem:[%s1 + $0x2c] sm:$0xf]
      %v1057 = vld [vmem:[%s1 + $0x30] sm:$0xf]
      %v1058 = vld [vmem:[%s1 + $0x34] sm:$0xf]
      %v1059 = vld [vmem:[%s1 + $0x38] sm:$0xf]
      %v1060 = vld [vmem:[%s1 + $0x3c] sm:$0xf]
      %v1061 = vld [vmem:[#allocation2 + $0x90] sm:$0x1]
      %s1062 = scalar_lea.vmem %s1, 64
      %v1063 = vld [vmem:[%s1062] sm:$0xf]
      %v1064 = vld [vmem:[%s1062 + $0x4] sm:$0xf]
      %v1065 = vld [vmem:[%s1062 + $0x8] sm:$0xf]
      %v1066 = vld [vmem:[%s1062 + $0xc] sm:$0xf]
      %v1067 = vld [vmem:[%s1062 + $0x10] sm:$0xf]
      %v1068 = vld [vmem:[%s1062 + $0x14] sm:$0xf]
      %v1069 = vld [vmem:[%s1062 + $0x18] sm:$0xf]
      %v1070 = vld [vmem:[%s1062 + $0x1c] sm:$0xf]
      %v1071 = vld [vmem:[%s1062 + $0x20] sm:$0xf]
      %v1072 = vld [vmem:[%s1062 + $0x24] sm:$0xf]
      %v1073 = vld [vmem:[%s1062 + $0x28] sm:$0xf]
      %v1074 = vld [vmem:[%s1062 + $0x2c] sm:$0xf]
      %v1075 = vld [vmem:[%s1062 + $0x30] sm:$0xf]
      %v1076 = vld [vmem:[%s1062 + $0x34] sm:$0xf]
      %v1077 = vld [vmem:[%s1062 + $0x38] sm:$0xf]
      %v1078 = vld [vmem:[%s1062 + $0x3c] sm:$0xf]
      %v1116 = vunpack.c.l.b16 %v1009
      %v1117 = vunpack.c.l.b16 %v1010
      %v1118 = vunpack.c.l.b16 %v1011
      %v1119 = vunpack.c.l.b16 %v1012
      %v1120 = vunpack.c.l.b16 %v1013
      %v1121 = vunpack.c.l.b16 %v1014
      %v1122 = vunpack.c.l.b16 %v1015
      %v1123 = vunpack.c.l.b16 %v1016
      %v1124 = vunpack.c.l.b16 %v1017
      %v1125 = vunpack.c.l.b16 %v1018
      %v1126 = vunpack.c.l.b16 %v1019
      %v1127 = vunpack.c.l.b16 %v1020
      %v1128 = vunpack.c.l.b16 %v1021
      %v1129 = vunpack.c.l.b16 %v1022
      %v1130 = vunpack.c.l.b16 %v1023
      %v1131 = vunpack.c.l.b16 %v1024
      %v1132 = vunpack.c.l.b16 %v1025
      %v1133 = vunpack.c.l.b16 %v1026
      %v1134 = vunpack.c.l.b16 %v1027
      %v1135 = vunpack.c.l.b16 %v1028
      %v1136 = vunpack.c.l.b16 %v1029
      %v1137 = vunpack.c.l.b16 %v1030
      %v1138 = vunpack.c.l.b16 %v1031
      %v1139 = vunpack.c.l.b16 %v1032
      %v1140 = vunpack.c.l.b16 %v1033
      %v1141 = vunpack.c.l.b16 %v1034
      %v1142 = vunpack.c.l.b16 %v1035
      %v1143 = vunpack.c.l.b16 %v1036
      %v1144 = vunpack.c.l.b16 %v1037
      %v1145 = vunpack.c.l.b16 %v1038
      %v1146 = vunpack.c.l.b16 %v1039
      %v1147 = vunpack.c.l.b16 %v1040
      %v1148 = vunpack.c.l.b16 %v1041
      %v1149 = vunpack.c.l.b16 %v1042
      %v1150 = vunpack.c.l.b16 %v1043
      %v1151 = vunpack.c.l.b16 %v1044
      %v1152 = vunpack.c.l.b16 %v1061
      %v1153 = vpack.c.b16 %v1117, %v1116
      %v1154 = vpack.c.b16 %v1119, %v1118
      %v1155 = vpack.c.b16 %v1121, %v1120
      %v1156 = vpack.c.b16 %v1123, %v1122
      %v1157 = vpack.c.b16 %v1125, %v1124
      %v1158 = vpack.c.b16 %v1127, %v1126
      %v1159 = vpack.c.b16 %v1129, %v1128
      %v1160 = vpack.c.b16 %v1131, %v1130
      %v1161 = vpack.c.b16 %v1133, %v1132
      %v1162 = vpack.c.b16 %v1135, %v1134
      %v1163 = vpack.c.b16 %v1137, %v1136
      %v1164 = vpack.c.b16 %v1139, %v1138
      %v1165 = vpack.c.b16 %v1141, %v1140
      %v1166 = vpack.c.b16 %v1143, %v1142
      %v1167 = vpack.c.b16 %v1145, %v1144
      %v1168 = vpack.c.b16 %v1147, %v1146
      %v1169 = vpack.c.b16 %v1149, %v1148
      %v1170 = vpack.c.b16 %v1151, %v1150
      %v1171 = vpack.c.b16 %v1152, %v1152
      %vm1172 = vsmask.f32 7424
      %v1174 = vshrl.u32 %v1153, 16
      %v1176 = vshll.u32 %v1153, 16
      %v1178 = vrot.slane %v1176, 1
      %v1179 = vor.u32 %v1174, %v1178
      %v1181 = vshll.u32 %v1154, 16
      %v1183 = vrot.slane %v1181, 1
      %v1184 = vsel %vm1172, %v1179, %v1183
      %v1185 = vshrl.u32 %v1154, 16
      %v1187 = vor.u32 %v1185, %v1183
      %v1189 = vshll.u32 %v1155, 16
      %v1191 = vrot.slane %v1189, 1
      %v1192 = vsel %vm1172, %v1187, %v1191
      %v1193 = vshrl.u32 %v1155, 16
      %v1195 = vor.u32 %v1193, %v1191
      %v1197 = vshll.u32 %v1156, 16
      %v1199 = vrot.slane %v1197, 1
      %v1200 = vsel %vm1172, %v1195, %v1199
      %v1201 = vshrl.u32 %v1156, 16
      %v1203 = vor.u32 %v1201, %v1199
      %v1205 = vshll.u32 %v1157, 16
      %v1207 = vrot.slane %v1205, 1
      %v1208 = vsel %vm1172, %v1203, %v1207
      %v1209 = vshrl.u32 %v1157, 16
      %v1211 = vor.u32 %v1209, %v1207
      %v1213 = vshll.u32 %v1158, 16
      %v1215 = vrot.slane %v1213, 1
      %v1216 = vsel %vm1172, %v1211, %v1215
      %v1217 = vshrl.u32 %v1158, 16
      %v1219 = vor.u32 %v1217, %v1215
      %v1221 = vshll.u32 %v1159, 16
      %v1223 = vrot.slane %v1221, 1
      %v1224 = vsel %vm1172, %v1219, %v1223
      %v1225 = vshrl.u32 %v1159, 16
      %v1227 = vor.u32 %v1225, %v1223
      %v1229 = vshll.u32 %v1160, 16
      %v1231 = vrot.slane %v1229, 1
      %v1232 = vsel %vm1172, %v1227, %v1231
      %v1233 = vshrl.u32 %v1160, 16
      %v1235 = vor.u32 %v1233, %v1231
      %v1237 = vshll.u32 %v1161, 16
      %v1239 = vrot.slane %v1237, 1
      %v1240 = vsel %vm1172, %v1235, %v1239
      %v1241 = vshrl.u32 %v1161, 16
      %v1243 = vor.u32 %v1241, %v1239
      %v1245 = vshll.u32 %v1162, 16
      %v1247 = vrot.slane %v1245, 1
      %v1248 = vsel %vm1172, %v1243, %v1247
      %v1249 = vshrl.u32 %v1162, 16
      %v1251 = vor.u32 %v1249, %v1247
      %v1253 = vshll.u32 %v1163, 16
      %v1255 = vrot.slane %v1253, 1
      %v1256 = vsel %vm1172, %v1251, %v1255
      %v1257 = vshrl.u32 %v1163, 16
      %v1259 = vor.u32 %v1257, %v1255
      %v1261 = vshll.u32 %v1164, 16
      %v1263 = vrot.slane %v1261, 1
      %v1264 = vsel %vm1172, %v1259, %v1263
      %v1265 = vshrl.u32 %v1164, 16
      %v1267 = vor.u32 %v1265, %v1263
      %v1269 = vshll.u32 %v1165, 16
      %v1271 = vrot.slane %v1269, 1
      %v1272 = vsel %vm1172, %v1267, %v1271
      %v1273 = vshrl.u32 %v1165, 16
      %v1275 = vor.u32 %v1273, %v1271
      %v1277 = vshll.u32 %v1166, 16
      %v1279 = vrot.slane %v1277, 1
      %v1280 = vsel %vm1172, %v1275, %v1279
      %v1281 = vshrl.u32 %v1166, 16
      %v1283 = vor.u32 %v1281, %v1279
      %v1285 = vshll.u32 %v1167, 16
      %v1287 = vrot.slane %v1285, 1
      %v1288 = vsel %vm1172, %v1283, %v1287
      %v1289 = vshrl.u32 %v1167, 16
      %v1291 = vor.u32 %v1289, %v1287
      %v1293 = vshll.u32 %v1168, 16
      %v1295 = vrot.slane %v1293, 1
      %v1296 = vsel %vm1172, %v1291, %v1295
      %v1297 = vshrl.u32 %v1168, 16
      %v1299 = vor.u32 %v1297, %v1295
      %v1301 = vshll.u32 %v1169, 16
      %v1303 = vrot.slane %v1301, 1
      %v1304 = vsel %vm1172, %v1299, %v1303
      %v1305 = vshrl.u32 %v1169, 16
      %v1307 = vor.u32 %v1305, %v1303
      %v1309 = vshll.u32 %v1170, 16
      %v1311 = vrot.slane %v1309, 1
      %v1312 = vsel %vm1172, %v1307, %v1311
      %v1313 = vshrl.u32 %v1170, 16
      %v1315 = vor.u32 %v1313, %v1311
      %v1317 = vshll.u32 %v1171, 16
      %v1319 = vrot.slane %v1317, 1
      %v1320 = vsel %vm1172, %v1315, %v1319
      %v1355 = vunpack.c.l.b16 %v1063
      %v1356 = vunpack.c.l.b16 %v1064
      %v1357 = vunpack.c.l.b16 %v1065
      %v1358 = vunpack.c.l.b16 %v1066
      %v1359 = vunpack.c.l.b16 %v1067
      %v1360 = vunpack.c.l.b16 %v1068
      %v1361 = vunpack.c.l.b16 %v1069
      %v1362 = vunpack.c.l.b16 %v1070
      %v1363 = vunpack.c.l.b16 %v1071
      %v1364 = vunpack.c.l.b16 %v1072
      %v1365 = vunpack.c.l.b16 %v1073
      %v1366 = vunpack.c.l.b16 %v1074
      %v1367 = vunpack.c.l.b16 %v1075
      %v1368 = vunpack.c.l.b16 %v1076
      %v1369 = vunpack.c.l.b16 %v1077
      %v1370 = vunpack.c.l.b16 %v1078
      %v1371 = vpack.c.b16 %v1356, %v1355
      %v1372 = vpack.c.b16 %v1358, %v1357
      %v1373 = vpack.c.b16 %v1360, %v1359
      %v1374 = vpack.c.b16 %v1362, %v1361
      %v1375 = vpack.c.b16 %v1364, %v1363
      %v1376 = vpack.c.b16 %v1366, %v1365
      %v1377 = vpack.c.b16 %v1368, %v1367
      %v1378 = vpack.c.b16 %v1370, %v1369
      %1387 = vmatprep.subr.bf16.mxu0 0
      %1388 = vmatpush1.bf16.msra.mxu0 %v1371
      %1389 = vmatprep.subr.bf16.mxu0 0
      %1390 = vmatpush1.bf16.msra.mxu0 %v1372
      %1391 = vmatprep.subr.bf16.mxu0 0
      %1392 = vmatpush1.bf16.msra.mxu0 %v1373
      %1393 = vmatprep.subr.bf16.mxu0 0
      %1394 = vmatpush1.bf16.msra.mxu0 %v1374
      %1395 = vmatprep.subr.bf16.mxu0 0
      %1396 = vmatpush1.bf16.msra.mxu0 %v1375
      %1397 = vmatprep.subr.bf16.mxu0 0
      %1398 = vmatpush1.bf16.msra.mxu0 %v1376
      %1399 = vmatprep.subr.bf16.mxu0 0
      %1400 = vmatpush1.bf16.msra.mxu0 %v1377
      %1401 = vmatprep.subr.bf16.mxu0 0
      %1402 = vmatpush1.bf16.msra.mxu0 %v1378
      %1403 = vmatprep.subr.bf16.mxu0 0
      %1404 = vmatpush1.bf16.msra.mxu0 0
      %1405 = vmatprep.subr.bf16.mxu0 0
      %1406 = vmatpush1.bf16.msra.mxu0 0
      %1407 = vmatprep.subr.bf16.mxu0 0
      %1408 = vmatpush1.bf16.msra.mxu0 0
      %1409 = vmatprep.subr.bf16.mxu0 0
      %1410 = vmatpush1.bf16.msra.mxu0 0
      %1411 = vmatprep.subr.bf16.mxu0 0
      %1412 = vmatpush1.bf16.msra.mxu0 0
      %1413 = vmatprep.subr.bf16.mxu0 0
      %1414 = vmatpush1.bf16.msra.mxu0 0
      %1415 = vmatprep.subr.bf16.mxu0 0
      %1416 = vmatpush1.bf16.msra.mxu0 0
      %1417 = vmatprep.subr.bf16.mxu0 0
      %1418 = vmatpush1.bf16.msra.mxu0 0
      %1419 = vmatprep.mubr.bf16.mxu0 0
      %1420 = vmatmul.mubr.bf16.gmra.mrb[0].mxu0 %v1184
      %v1421 = vpop.f32.mrb[0].mxu0
      %v1422 = vadd.f32 0.0, %v1421
      %v1423 = vpop.f32.mrb[0].mxu0
      %v1424 = vpop.f32.mrb[0].mxu0
      %v1425 = vadd.f32 0.0, %v1424
      %v1426 = vpop.f32.mrb[0].mxu0
      %1427 = vmatprep.mubr.bf16.mxu0 0
      %1428 = vmatmul.mubr.bf16.gmra.mrb[0].mxu0 %v1192
      %v1429 = vpop.f32.mrb[0].mxu0
      %v1430 = vadd.f32 0.0, %v1429
      %v1431 = vpop.f32.mrb[0].mxu0
      %v1432 = vpop.f32.mrb[0].mxu0
      %v1433 = vadd.f32 0.0, %v1432
      %v1434 = vpop.f32.mrb[0].mxu0
      %1435 = vmatprep.mubr.bf16.mxu0 0
      %1436 = vmatmul.mubr.bf16.gmra.mrb[0].mxu0 %v1200
      %v1437 = vpop.f32.mrb[0].mxu0
      %v1438 = vadd.f32 0.0, %v1437
      %v1439 = vpop.f32.mrb[0].mxu0
      %v1440 = vpop.f32.mrb[0].mxu0
      %v1441 = vadd.f32 0.0, %v1440
      %v1442 = vpop.f32.mrb[0].mxu0
      %1443 = vmatprep.mubr.bf16.mxu0 0
      %1444 = vmatmul.mubr.bf16.gmra.mrb[0].mxu0 %v1208
      %v1445 = vpop.f32.mrb[0].mxu0
      %v1446 = vadd.f32 0.0, %v1445
      %v1447 = vpop.f32.mrb[0].mxu0
      %v1448 = vpop.f32.mrb[0].mxu0
      %v1449 = vadd.f32 0.0, %v1448
      %v1450 = vpop.f32.mrb[0].mxu0
      %1451 = vmatprep.mubr.bf16.mxu0 0
      %1452 = vmatmul.mubr.bf16.gmra.mrb[0].mxu0 %v1216
      %v1453 = vpop.f32.mrb[0].mxu0
      %v1454 = vadd.f32 0.0, %v1453
      %v1455 = vpop.f32.mrb[0].mxu0
      %v1456 = vpop.f32.mrb[0].mxu0
      %v1457 = vadd.f32 0.0, %v1456
      %v1458 = vpop.f32.mrb[0].mxu0
      %1459 = vmatprep.mubr.bf16.mxu0 0
      %1460 = vmatmul.mubr.bf16.gmra.mrb[0].mxu0 %v1224
      %v1461 = vpop.f32.mrb[0].mxu0
      %v1462 = vadd.f32 0.0, %v1461
      %v1463 = vpop.f32.mrb[0].mxu0
      %v1464 = vpop.f32.mrb[0].mxu0
      %v1465 = vadd.f32 0.0, %v1464
      %v1466 = vpop.f32.mrb[0].mxu0
      %1467 = vmatprep.mubr.bf16.mxu0 0
      %1468 = vmatmul.mubr.bf16.gmra.mrb[0].mxu0 %v1232
      %v1469 = vpop.f32.mrb[0].mxu0
      %v1470 = vadd.f32 0.0, %v1469
      %v1471 = vpop.f32.mrb[0].mxu0
      %v1472 = vpop.f32.mrb[0].mxu0
      %v1473 = vadd.f32 0.0, %v1472
      %v1474 = vpop.f32.mrb[0].mxu0
      %1475 = vmatprep.mubr.bf16.mxu0 0
      %1476 = vmatmul.mubr.bf16.gmra.mrb[0].mxu0 %v1240
      %v1477 = vpop.f32.mrb[0].mxu0
      %v1478 = vadd.f32 0.0, %v1477
      %v1479 = vpop.f32.mrb[0].mxu0
      %v1480 = vpop.f32.mrb[0].mxu0
      %v1481 = vadd.f32 0.0, %v1480
      %v1482 = vpop.f32.mrb[0].mxu0
      %1483 = vmatprep.mubr.bf16.mxu0 0
      %1484 = vmatmul.mubr.bf16.gmra.mrb[0].mxu0 %v1248
      %v1485 = vpop.f32.mrb[0].mxu0
      %v1486 = vadd.f32 0.0, %v1485
      %v1487 = vpop.f32.mrb[0].mxu0
      %v1488 = vpop.f32.mrb[0].mxu0
      %v1489 = vadd.f32 0.0, %v1488
      %v1490 = vpop.f32.mrb[0].mxu0
      %1491 = vmatprep.mubr.bf16.mxu0 0
      %1492 = vmatmul.mubr.bf16.gmra.mrb[0].mxu0 %v1256
      %v1493 = vpop.f32.mrb[0].mxu0
      %v1494 = vadd.f32 0.0, %v1493
      %v1495 = vpop.f32.mrb[0].mxu0
      %v1496 = vpop.f32.mrb[0].mxu0
      %v1497 = vadd.f32 0.0, %v1496
      %v1498 = vpop.f32.mrb[0].mxu0
      %1499 = vmatprep.mubr.bf16.mxu0 0
      %1500 = vmatmul.mubr.bf16.gmra.mrb[0].mxu0 %v1264
      %v1501 = vpop.f32.mrb[0].mxu0
      %v1502 = vadd.f32 0.0, %v1501
      %v1503 = vpop.f32.mrb[0].mxu0
      %v1504 = vpop.f32.mrb[0].mxu0
      %v1505 = vadd.f32 0.0, %v1504
      %v1506 = vpop.f32.mrb[0].mxu0
      %1507 = vmatprep.mubr.bf16.mxu0 0
      %1508 = vmatmul.mubr.bf16.gmra.mrb[0].mxu0 %v1272
      %v1509 = vpop.f32.mrb[0].mxu0
      %v1510 = vadd.f32 0.0, %v1509
      %v1511 = vpop.f32.mrb[0].mxu0
      %v1512 = vpop.f32.mrb[0].mxu0
      %v1513 = vadd.f32 0.0, %v1512
      %v1514 = vpop.f32.mrb[0].mxu0
      %1515 = vmatprep.mubr.bf16.mxu0 0
      %1516 = vmatmul.mubr.bf16.gmra.mrb[0].mxu0 %v1280
      %v1517 = vpop.f32.mrb[0].mxu0
      %v1518 = vadd.f32 0.0, %v1517
      %v1519 = vpop.f32.mrb[0].mxu0
      %v1520 = vpop.f32.mrb[0].mxu0
      %v1521 = vadd.f32 0.0, %v1520
      %v1522 = vpop.f32.mrb[0].mxu0
      %1523 = vmatprep.mubr.bf16.mxu0 0
      %1524 = vmatmul.mubr.bf16.gmra.mrb[0].mxu0 %v1288
      %v1525 = vpop.f32.mrb[0].mxu0
      %v1526 = vadd.f32 0.0, %v1525
      %v1527 = vpop.f32.mrb[0].mxu0
      %v1528 = vpop.f32.mrb[0].mxu0
      %v1529 = vadd.f32 0.0, %v1528
      %v1530 = vpop.f32.mrb[0].mxu0
      %1531 = vmatprep.mubr.bf16.mxu0 0
      %1532 = vmatmul.mubr.bf16.gmra.mrb[0].mxu0 %v1296
      %v1533 = vpop.f32.mrb[0].mxu0
      %v1534 = vadd.f32 0.0, %v1533
      %v1535 = vpop.f32.mrb[0].mxu0
      %v1536 = vpop.f32.mrb[0].mxu0
      %v1537 = vadd.f32 0.0, %v1536
      %v1538 = vpop.f32.mrb[0].mxu0
      %1539 = vmatprep.mubr.bf16.mxu0 0
      %1540 = vmatmul.mubr.bf16.gmra.mrb[0].mxu0 %v1304
      %v1541 = vpop.f32.mrb[0].mxu0
      %v1542 = vadd.f32 0.0, %v1541
      %v1543 = vpop.f32.mrb[0].mxu0
      %v1544 = vpop.f32.mrb[0].mxu0
      %v1545 = vadd.f32 0.0, %v1544
      %v1546 = vpop.f32.mrb[0].mxu0
      %1547 = vmatprep.mubr.bf16.mxu0 0
      %1548 = vmatmul.mubr.bf16.gmra.mrb[0].mxu0 %v1312
      %v1549 = vpop.f32.mrb[0].mxu0
      %v1550 = vadd.f32 0.0, %v1549
      %v1551 = vpop.f32.mrb[0].mxu0
      %v1552 = vpop.f32.mrb[0].mxu0
      %v1553 = vadd.f32 0.0, %v1552
      %v1554 = vpop.f32.mrb[0].mxu0
      %1555 = vmatprep.mubr.bf16.mxu0 0
      %1556 = vmatmul.mubr.bf16.gmra.mrb[0].mxu0 %v1320
      %v1557 = vpop.f32.mrb[0].mxu0
      %v1558 = vadd.f32 0.0, %v1557
      %v1559 = vpop.f32.mrb[0].mxu0
      %v1560 = vpop.f32.mrb[0].mxu0
      %v1561 = vadd.f32 0.0, %v1560
      %v1562 = vpop.f32.mrb[0].mxu0
      %1563 = vdwg.mxu0
      %v1598 = vunpack.c.l.b16 %v1045
      %v1599 = vunpack.c.l.b16 %v1046
      %v1600 = vunpack.c.l.b16 %v1047
      %v1601 = vunpack.c.l.b16 %v1048
      %v1602 = vunpack.c.l.b16 %v1049
      %v1603 = vunpack.c.l.b16 %v1050
      %v1604 = vunpack.c.l.b16 %v1051
      %v1605 = vunpack.c.l.b16 %v1052
      %v1606 = vunpack.c.l.b16 %v1053
      %v1607 = vunpack.c.l.b16 %v1054
      %v1608 = vunpack.c.l.b16 %v1055
      %v1609 = vunpack.c.l.b16 %v1056
      %v1610 = vunpack.c.l.b16 %v1057
      %v1611 = vunpack.c.l.b16 %v1058
      %v1612 = vunpack.c.l.b16 %v1059
      %v1613 = vunpack.c.l.b16 %v1060
      %v1614 = vpack.c.b16 %v1599, %v1598
      %v1615 = vpack.c.b16 %v1601, %v1600
      %v1616 = vpack.c.b16 %v1603, %v1602
      %v1617 = vpack.c.b16 %v1605, %v1604
      %v1618 = vpack.c.b16 %v1607, %v1606
      %v1619 = vpack.c.b16 %v1609, %v1608
      %v1620 = vpack.c.b16 %v1611, %v1610
      %v1621 = vpack.c.b16 %v1613, %v1612
      %1630 = vmatprep.subr.bf16.mxu0 0
      %1631 = vmatpush1.bf16.msra.mxu0 %v1614
      %1632 = vmatprep.subr.bf16.mxu0 0
      %1633 = vmatpush1.bf16.msra.mxu0 %v1615
      %1634 = vmatprep.subr.bf16.mxu0 0
      %1635 = vmatpush1.bf16.msra.mxu0 %v1616
      %1636 = vmatprep.subr.bf16.mxu0 0
      %1637 = vmatpush1.bf16.msra.mxu0 %v1617
      %1638 = vmatprep.subr.bf16.mxu0 0
      %1639 = vmatpush1.bf16.msra.mxu0 %v1618
      %1640 = vmatprep.subr.bf16.mxu0 0
      %1641 = vmatpush1.bf16.msra.mxu0 %v1619
      %1642 = vmatprep.subr.bf16.mxu0 0
      %1643 = vmatpush1.bf16.msra.mxu0 %v1620
      %1644 = vmatprep.subr.bf16.mxu0 0
      %1645 = vmatpush1.bf16.msra.mxu0 %v1621
      %1646 = vmatprep.subr.bf16.mxu0 0
      %1647 = vmatpush1.bf16.msra.mxu0 0
      %1648 = vmatprep.subr.bf16.mxu0 0
      %1649 = vmatpush1.bf16.msra.mxu0 0
      %1650 = vmatprep.subr.bf16.mxu0 0
      %1651 = vmatpush1.bf16.msra.mxu0 0
      %1652 = vmatprep.subr.bf16.mxu0 0
      %1653 = vmatpush1.bf16.msra.mxu0 0
      %1654 = vmatprep.subr.bf16.mxu0 0
      %1655 = vmatpush1.bf16.msra.mxu0 0
      %1656 = vmatprep.subr.bf16.mxu0 0
      %1657 = vmatpush1.bf16.msra.mxu0 0
      %1658 = vmatprep.subr.bf16.mxu0 0
      %1659 = vmatpush1.bf16.msra.mxu0 0
      %1660 = vmatprep.subr.bf16.mxu0 0
      %1661 = vmatpush1.bf16.msra.mxu0 0
      %1662 = vmatprep.mubr.bf16.mxu0 0
      %1663 = vmatmul.mubr.bf16.gmra.mrb[0].mxu0 %v1153
      %v1664 = vpop.f32.mrb[0].mxu0
      %v1665 = vadd.f32 %v1422, %v1664
      %v1666 = vpop.f32.mrb[0].mxu0
      %v1667 = vpop.f32.mrb[0].mxu0
      %v1668 = vadd.f32 %v1425, %v1667
      %v1669 = vpop.f32.mrb[0].mxu0
      %1670 = vmatprep.mubr.bf16.mxu0 0
      %1671 = vmatmul.mubr.bf16.gmra.mrb[0].mxu0 %v1154
      %v1672 = vpop.f32.mrb[0].mxu0
      %v1673 = vadd.f32 %v1430, %v1672
      %v1674 = vpop.f32.mrb[0].mxu0
      %v1675 = vpop.f32.mrb[0].mxu0
      %v1676 = vadd.f32 %v1433, %v1675
      %v1677 = vpop.f32.mrb[0].mxu0
      %1678 = vmatprep.mubr.bf16.mxu0 0
      %1679 = vmatmul.mubr.bf16.gmra.mrb[0].mxu0 %v1155
      %v1680 = vpop.f32.mrb[0].mxu0
      %v1681 = vadd.f32 %v1438, %v1680
      %v1682 = vpop.f32.mrb[0].mxu0
      %v1683 = vpop.f32.mrb[0].mxu0
      %v1684 = vadd.f32 %v1441, %v1683
      %v1685 = vpop.f32.mrb[0].mxu0
      %1686 = vmatprep.mubr.bf16.mxu0 0
      %1687 = vmatmul.mubr.bf16.gmra.mrb[0].mxu0 %v1156
      %v1688 = vpop.f32.mrb[0].mxu0
      %v1689 = vadd.f32 %v1446, %v1688
      %v1690 = vpop.f32.mrb[0].mxu0
      %v1691 = vpop.f32.mrb[0].mxu0
      %v1692 = vadd.f32 %v1449, %v1691
      %v1693 = vpop.f32.mrb[0].mxu0
      %1694 = vmatprep.mubr.bf16.mxu0 0
      %1695 = vmatmul.mubr.bf16.gmra.mrb[0].mxu0 %v1157
      %v1696 = vpop.f32.mrb[0].mxu0
      %v1697 = vadd.f32 %v1454, %v1696
      %v1698 = vpop.f32.mrb[0].mxu0
      %v1699 = vpop.f32.mrb[0].mxu0
      %v1700 = vadd.f32 %v1457, %v1699
      %v1701 = vpop.f32.mrb[0].mxu0
      %1702 = vmatprep.mubr.bf16.mxu0 0
      %1703 = vmatmul.mubr.bf16.gmra.mrb[0].mxu0 %v1158
      %v1704 = vpop.f32.mrb[0].mxu0
      %v1705 = vadd.f32 %v1462, %v1704
      %v1706 = vpop.f32.mrb[0].mxu0
      %v1707 = vpop.f32.mrb[0].mxu0
      %v1708 = vadd.f32 %v1465, %v1707
      %v1709 = vpop.f32.mrb[0].mxu0
      %1710 = vmatprep.mubr.bf16.mxu0 0
      %1711 = vmatmul.mubr.bf16.gmra.mrb[0].mxu0 %v1159
      %v1712 = vpop.f32.mrb[0].mxu0
      %v1713 = vadd.f32 %v1470, %v1712
      %v1714 = vpop.f32.mrb[0].mxu0
      %v1715 = vpop.f32.mrb[0].mxu0
      %v1716 = vadd.f32 %v1473, %v1715
      %v1717 = vpop.f32.mrb[0].mxu0
      %1718 = vmatprep.mubr.bf16.mxu0 0
      %1719 = vmatmul.mubr.bf16.gmra.mrb[0].mxu0 %v1160
      %v1720 = vpop.f32.mrb[0].mxu0
      %v1721 = vadd.f32 %v1478, %v1720
      %v1722 = vpop.f32.mrb[0].mxu0
      %v1723 = vpop.f32.mrb[0].mxu0
      %v1724 = vadd.f32 %v1481, %v1723
      %v1725 = vpop.f32.mrb[0].mxu0
      %1726 = vmatprep.mubr.bf16.mxu0 0
      %1727 = vmatmul.mubr.bf16.gmra.mrb[0].mxu0 %v1161
      %v1728 = vpop.f32.mrb[0].mxu0
      %v1729 = vadd.f32 %v1486, %v1728
      %v1730 = vpop.f32.mrb[0].mxu0
      %v1731 = vpop.f32.mrb[0].mxu0
      %v1732 = vadd.f32 %v1489, %v1731
      %v1733 = vpop.f32.mrb[0].mxu0
      %1734 = vmatprep.mubr.bf16.mxu0 0
      %1735 = vmatmul.mubr.bf16.gmra.mrb[0].mxu0 %v1162
      %v1736 = vpop.f32.mrb[0].mxu0
      %v1737 = vadd.f32 %v1494, %v1736
      %v1738 = vpop.f32.mrb[0].mxu0
      %v1739 = vpop.f32.mrb[0].mxu0
      %v1740 = vadd.f32 %v1497, %v1739
      %v1741 = vpop.f32.mrb[0].mxu0
      %1742 = vmatprep.mubr.bf16.mxu0 0
      %1743 = vmatmul.mubr.bf16.gmra.mrb[0].mxu0 %v1163
      %v1744 = vpop.f32.mrb[0].mxu0
      %v1745 = vadd.f32 %v1502, %v1744
      %v1746 = vpop.f32.mrb[0].mxu0
      %v1747 = vpop.f32.mrb[0].mxu0
      %v1748 = vadd.f32 %v1505, %v1747
      %v1749 = vpop.f32.mrb[0].mxu0
      %1750 = vmatprep.mubr.bf16.mxu0 0
      %1751 = vmatmul.mubr.bf16.gmra.mrb[0].mxu0 %v1164
      %v1752 = vpop.f32.mrb[0].mxu0
      %v1753 = vadd.f32 %v1510, %v1752
      %v1754 = vpop.f32.mrb[0].mxu0
      %v1755 = vpop.f32.mrb[0].mxu0
      %v1756 = vadd.f32 %v1513, %v1755
      %v1757 = vpop.f32.mrb[0].mxu0
      %1758 = vmatprep.mubr.bf16.mxu0 0
      %1759 = vmatmul.mubr.bf16.gmra.mrb[0].mxu0 %v1165
      %v1760 = vpop.f32.mrb[0].mxu0
      %v1761 = vadd.f32 %v1518, %v1760
      %v1762 = vpop.f32.mrb[0].mxu0
      %v1763 = vpop.f32.mrb[0].mxu0
      %v1764 = vadd.f32 %v1521, %v1763
      %v1765 = vpop.f32.mrb[0].mxu0
      %1766 = vmatprep.mubr.bf16.mxu0 0
      %1767 = vmatmul.mubr.bf16.gmra.mrb[0].mxu0 %v1166
      %v1768 = vpop.f32.mrb[0].mxu0
      %v1769 = vadd.f32 %v1526, %v1768
      %v1770 = vpop.f32.mrb[0].mxu0
      %v1771 = vpop.f32.mrb[0].mxu0
      %v1772 = vadd.f32 %v1529, %v1771
      %v1773 = vpop.f32.mrb[0].mxu0
      %1774 = vmatprep.mubr.bf16.mxu0 0
      %1775 = vmatmul.mubr.bf16.gmra.mrb[0].mxu0 %v1167
      %v1776 = vpop.f32.mrb[0].mxu0
      %v1777 = vadd.f32 %v1534, %v1776
      %v1778 = vpop.f32.mrb[0].mxu0
      %v1779 = vpop.f32.mrb[0].mxu0
      %v1780 = vadd.f32 %v1537, %v1779
      %v1781 = vpop.f32.mrb[0].mxu0
      %1782 = vmatprep.mubr.bf16.mxu0 0
      %1783 = vmatmul.mubr.bf16.gmra.mrb[0].mxu0 %v1168
      %v1784 = vpop.f32.mrb[0].mxu0
      %v1785 = vadd.f32 %v1542, %v1784
      %v1786 = vpop.f32.mrb[0].mxu0
      %v1787 = vpop.f32.mrb[0].mxu0
      %v1788 = vadd.f32 %v1545, %v1787
      %v1789 = vpop.f32.mrb[0].mxu0
      %1790 = vmatprep.mubr.bf16.mxu0 0
      %1791 = vmatmul.mubr.bf16.gmra.mrb[0].mxu0 %v1169
      %v1792 = vpop.f32.mrb[0].mxu0
      %v1793 = vadd.f32 %v1550, %v1792
      %v1794 = vpop.f32.mrb[0].mxu0
      %v1795 = vpop.f32.mrb[0].mxu0
      %v1796 = vadd.f32 %v1553, %v1795
      %v1797 = vpop.f32.mrb[0].mxu0
      %1798 = vmatprep.mubr.bf16.mxu0 0
      %1799 = vmatmul.mubr.bf16.gmra.mrb[0].mxu0 %v1170
      %v1800 = vpop.f32.mrb[0].mxu0
      %v1801 = vadd.f32 %v1558, %v1800
      %v1802 = vpop.f32.mrb[0].mxu0
      %v1803 = vpop.f32.mrb[0].mxu0
      %v1804 = vadd.f32 %v1561, %v1803
      %v1805 = vpop.f32.mrb[0].mxu0
      %1806 = vdwg.mxu0
      %v1807 = vld [vmem:[#allocation2] sm:$0xe]
      %s1808 = scalar_lea.vmem %s1, 128
      %v1809 = vld [vmem:[%s1808] sm:$0xf]
      %v1810 = vld [vmem:[%s1808 + $0x4] sm:$0xf]
      %v1811 = vld [vmem:[%s1808 + $0x8] sm:$0xf]
      %v1812 = vld [vmem:[%s1808 + $0xc] sm:$0xf]
      %v1813 = vld [vmem:[%s1808 + $0x10] sm:$0xf]
      %v1814 = vld [vmem:[%s1808 + $0x14] sm:$0xf]
      %v1815 = vld [vmem:[%s1808 + $0x18] sm:$0xf]
      %v1816 = vld [vmem:[%s1808 + $0x1c] sm:$0xf]
      %v1817 = vld [vmem:[%s1808 + $0x20] sm:$0xf]
      %v1818 = vld [vmem:[%s1808 + $0x24] sm:$0xf]
      %v1819 = vld [vmem:[%s1808 + $0x28] sm:$0xf]
      %v1820 = vld [vmem:[%s1808 + $0x2c] sm:$0xf]
      %v1821 = vld [vmem:[%s1808 + $0x30] sm:$0xf]
      %v1822 = vld [vmem:[%s1808 + $0x34] sm:$0xf]
      %v1823 = vld [vmem:[%s1808 + $0x38] sm:$0xf]
      %v1824 = vld [vmem:[%s1808 + $0x3c] sm:$0xf]
      %v1826 = vunpack.c.l.b16 %v1807
      %v1827 = vpack.c.b16 %v1117, %v1826
      %vm1828 = vcmask 1046528
      %v1829 = vrot.slane %v1827, 1
      %v1830 = vrot.slane %v1154, 1
      %v1831 = vsel %vm1828, %v1829, %v1830
      %v1832 = vrot.slane %v1155, 1
      %v1833 = vsel %vm1828, %v1830, %v1832
      %v1834 = vrot.slane %v1156, 1
      %v1835 = vsel %vm1828, %v1832, %v1834
      %v1836 = vrot.slane %v1157, 1
      %v1837 = vsel %vm1828, %v1834, %v1836
      %v1838 = vrot.slane %v1158, 1
      %v1839 = vsel %vm1828, %v1836, %v1838
      %v1840 = vrot.slane %v1159, 1
      %v1841 = vsel %vm1828, %v1838, %v1840
      %v1842 = vrot.slane %v1160, 1
      %v1843 = vsel %vm1828, %v1840, %v1842
      %v1844 = vrot.slane %v1161, 1
      %v1845 = vsel %vm1828, %v1842, %v1844
      %v1846 = vrot.slane %v1162, 1
      %v1847 = vsel %vm1828, %v1844, %v1846
      %v1848 = vrot.slane %v1163, 1
      %v1849 = vsel %vm1828, %v1846, %v1848
      %v1850 = vrot.slane %v1164, 1
      %v1851 = vsel %vm1828, %v1848, %v1850
      %v1852 = vrot.slane %v1165, 1
      %v1853 = vsel %vm1828, %v1850, %v1852
      %v1854 = vrot.slane %v1166, 1
      %v1855 = vsel %vm1828, %v1852, %v1854
      %v1856 = vrot.slane %v1167, 1
      %v1857 = vsel %vm1828, %v1854, %v1856
      %v1858 = vrot.slane %v1168, 1
      %v1859 = vsel %vm1828, %v1856, %v1858
      %v1860 = vrot.slane %v1169, 1
      %v1861 = vsel %vm1828, %v1858, %v1860
      %v1862 = vrot.slane %v1170, 1
      %v1863 = vsel %vm1828, %v1860, %v1862
      %v1864 = vrot.slane %v1171, 1
      %v1865 = vsel %vm1828, %v1862, %v1864
      %v1900 = vunpack.c.l.b16 %v1809
      %v1901 = vunpack.c.l.b16 %v1810
      %v1902 = vunpack.c.l.b16 %v1811
      %v1903 = vunpack.c.l.b16 %v1812
      %v1904 = vunpack.c.l.b16 %v1813
      %v1905 = vunpack.c.l.b16 %v1814
      %v1906 = vunpack.c.l.b16 %v1815
      %v1907 = vunpack.c.l.b16 %v1816
      %v1908 = vunpack.c.l.b16 %v1817
      %v1909 = vunpack.c.l.b16 %v1818
      %v1910 = vunpack.c.l.b16 %v1819
      %v1911 = vunpack.c.l.b16 %v1820
      %v1912 = vunpack.c.l.b16 %v1821
      %v1913 = vunpack.c.l.b16 %v1822
      %v1914 = vunpack.c.l.b16 %v1823
      %v1915 = vunpack.c.l.b16 %v1824
      %v1916 = vpack.c.b16 %v1901, %v1900
      %v1917 = vpack.c.b16 %v1903, %v1902
      %v1918 = vpack.c.b16 %v1905, %v1904
      %v1919 = vpack.c.b16 %v1907, %v1906
      %v1920 = vpack.c.b16 %v1909, %v1908
      %v1921 = vpack.c.b16 %v1911, %v1910
      %v1922 = vpack.c.b16 %v1913, %v1912
      %v1923 = vpack.c.b16 %v1915, %v1914
      %1932 = vmatprep.subr.bf16.mxu0 0
      %1933 = vmatpush1.bf16.msra.mxu0 %v1916
      %1934 = vmatprep.subr.bf16.mxu0 0
      %1935 = vmatpush1.bf16.msra.mxu0 %v1917
      %1936 = vmatprep.subr.bf16.mxu0 0
      %1937 = vmatpush1.bf16.msra.mxu0 %v1918
      %1938 = vmatprep.subr.bf16.mxu0 0
      %1939 = vmatpush1.bf16.msra.mxu0 %v1919
      %1940 = vmatprep.subr.bf16.mxu0 0
      %1941 = vmatpush1.bf16.msra.mxu0 %v1920
      %1942 = vmatprep.subr.bf16.mxu0 0
      %1943 = vmatpush1.bf16.msra.mxu0 %v1921
      %1944 = vmatprep.subr.bf16.mxu0 0
      %1945 = vmatpush1.bf16.msra.mxu0 %v1922
      %1946 = vmatprep.subr.bf16.mxu0 0
      %1947 = vmatpush1.bf16.msra.mxu0 %v1923
      %1948 = vmatprep.subr.bf16.mxu0 0
      %1949 = vmatpush1.bf16.msra.mxu0 0
      %1950 = vmatprep.subr.bf16.mxu0 0
      %1951 = vmatpush1.bf16.msra.mxu0 0
      %1952 = vmatprep.subr.bf16.mxu0 0
      %1953 = vmatpush1.bf16.msra.mxu0 0
      %1954 = vmatprep.subr.bf16.mxu0 0
      %1955 = vmatpush1.bf16.msra.mxu0 0
      %1956 = vmatprep.subr.bf16.mxu0 0
      %1957 = vmatpush1.bf16.msra.mxu0 0
      %1958 = vmatprep.subr.bf16.mxu0 0
      %1959 = vmatpush1.bf16.msra.mxu0 0
      %1960 = vmatprep.subr.bf16.mxu0 0
      %1961 = vmatpush1.bf16.msra.mxu0 0
      %1962 = vmatprep.subr.bf16.mxu0 0
      %1963 = vmatpush1.bf16.msra.mxu0 0
      %1964 = vmatprep.mubr.bf16.mxu0 0
      %1965 = vmatmul.mubr.bf16.gmra.mrb[0].mxu0 %v1831
      %v1966 = vpop.f32.mrb[0].mxu0
      %v1967 = vadd.f32 0.0, %v1966
      %v1968 = vpop.f32.mrb[0].mxu0
      %v1969 = vpop.f32.mrb[0].mxu0
      %v1970 = vadd.f32 0.0, %v1969
      %v1971 = vpop.f32.mrb[0].mxu0
      %1972 = vmatprep.mubr.bf16.mxu0 0
      %1973 = vmatmul.mubr.bf16.gmra.mrb[0].mxu0 %v1833
      %v1974 = vpop.f32.mrb[0].mxu0
      %v1975 = vadd.f32 0.0, %v1974
      %v1976 = vpop.f32.mrb[0].mxu0
      %v1977 = vpop.f32.mrb[0].mxu0
      %v1978 = vadd.f32 0.0, %v1977
      %v1979 = vpop.f32.mrb[0].mxu0
      %1980 = vmatprep.mubr.bf16.mxu0 0
      %1981 = vmatmul.mubr.bf16.gmra.mrb[0].mxu0 %v1835
      %v1982 = vpop.f32.mrb[0].mxu0
      %v1983 = vadd.f32 0.0, %v1982
      %v1984 = vpop.f32.mrb[0].mxu0
      %v1985 = vpop.f32.mrb[0].mxu0
      %v1986 = vadd.f32 0.0, %v1985
      %v1987 = vpop.f32.mrb[0].mxu0
      %1988 = vmatprep.mubr.bf16.mxu0 0
      %1989 = vmatmul.mubr.bf16.gmra.mrb[0].mxu0 %v1837
      %v1990 = vpop.f32.mrb[0].mxu0
      %v1991 = vadd.f32 0.0, %v1990
      %v1992 = vpop.f32.mrb[0].mxu0
      %v1993 = vpop.f32.mrb[0].mxu0
      %v1994 = vadd.f32 0.0, %v1993
      %v1995 = vpop.f32.mrb[0].mxu0
      %1996 = vmatprep.mubr.bf16.mxu0 0
      %1997 = vmatmul.mubr.bf16.gmra.mrb[0].mxu0 %v1839
      %v1998 = vpop.f32.mrb[0].mxu0
      %v1999 = vadd.f32 0.0, %v1998
      %v2000 = vpop.f32.mrb[0].mxu0
      %v2001 = vpop.f32.mrb[0].mxu0
      %v2002 = vadd.f32 0.0, %v2001
      %v2003 = vpop.f32.mrb[0].mxu0
      %2004 = vmatprep.mubr.bf16.mxu0 0
      %2005 = vmatmul.mubr.bf16.gmra.mrb[0].mxu0 %v1841
      %v2006 = vpop.f32.mrb[0].mxu0
      %v2007 = vadd.f32 0.0, %v2006
      %v2008 = vpop.f32.mrb[0].mxu0
      %v2009 = vpop.f32.mrb[0].mxu0
      %v2010 = vadd.f32 0.0, %v2009
      %v2011 = vpop.f32.mrb[0].mxu0
      %2012 = vmatprep.mubr.bf16.mxu0 0
      %2013 = vmatmul.mubr.bf16.gmra.mrb[0].mxu0 %v1843
      %v2014 = vpop.f32.mrb[0].mxu0
      %v2015 = vadd.f32 0.0, %v2014
      %v2016 = vpop.f32.mrb[0].mxu0
      %v2017 = vpop.f32.mrb[0].mxu0
      %v2018 = vadd.f32 0.0, %v2017
      %v2019 = vpop.f32.mrb[0].mxu0
      %2020 = vmatprep.mubr.bf16.mxu0 0
      %2021 = vmatmul.mubr.bf16.gmra.mrb[0].mxu0 %v1845
      %v2022 = vpop.f32.mrb[0].mxu0
      %v2023 = vadd.f32 0.0, %v2022
      %v2024 = vpop.f32.mrb[0].mxu0
      %v2025 = vpop.f32.mrb[0].mxu0
      %v2026 = vadd.f32 0.0, %v2025
      %v2027 = vpop.f32.mrb[0].mxu0
      %2028 = vmatprep.mubr.bf16.mxu0 0
      %2029 = vmatmul.mubr.bf16.gmra.mrb[0].mxu0 %v1847
      %v2030 = vpop.f32.mrb[0].mxu0
      %v2031 = vadd.f32 0.0, %v2030
      %v2032 = vpop.f32.mrb[0].mxu0
      %v2033 = vpop.f32.mrb[0].mxu0
      %v2034 = vadd.f32 0.0, %v2033
      %v2035 = vpop.f32.mrb[0].mxu0
      %2036 = vmatprep.mubr.bf16.mxu0 0
      %2037 = vmatmul.mubr.bf16.gmra.mrb[0].mxu0 %v1849
      %v2038 = vpop.f32.mrb[0].mxu0
      %v2039 = vadd.f32 0.0, %v2038
      %v2040 = vpop.f32.mrb[0].mxu0
      %v2041 = vpop.f32.mrb[0].mxu0
      %v2042 = vadd.f32 0.0, %v2041
      %v2043 = vpop.f32.mrb[0].mxu0
      %2044 = vmatprep.mubr.bf16.mxu0 0
      %2045 = vmatmul.mubr.bf16.gmra.mrb[0].mxu0 %v1851
      %v2046 = vpop.f32.mrb[0].mxu0
      %v2047 = vadd.f32 0.0, %v2046
      %v2048 = vpop.f32.mrb[0].mxu0
      %v2049 = vpop.f32.mrb[0].mxu0
      %v2050 = vadd.f32 0.0, %v2049
      %v2051 = vpop.f32.mrb[0].mxu0
      %2052 = vmatprep.mubr.bf16.mxu0 0
      %2053 = vmatmul.mubr.bf16.gmra.mrb[0].mxu0 %v1853
      %v2054 = vpop.f32.mrb[0].mxu0
      %v2055 = vadd.f32 0.0, %v2054
      %v2056 = vpop.f32.mrb[0].mxu0
      %v2057 = vpop.f32.mrb[0].mxu0
      %v2058 = vadd.f32 0.0, %v2057
      %v2059 = vpop.f32.mrb[0].mxu0
      %2060 = vmatprep.mubr.bf16.mxu0 0
      %2061 = vmatmul.mubr.bf16.gmra.mrb[0].mxu0 %v1855
      %v2062 = vpop.f32.mrb[0].mxu0
      %v2063 = vadd.f32 0.0, %v2062
      %v2064 = vpop.f32.mrb[0].mxu0
      %v2065 = vpop.f32.mrb[0].mxu0
      %v2066 = vadd.f32 0.0, %v2065
      %v2067 = vpop.f32.mrb[0].mxu0
      %2068 = vmatprep.mubr.bf16.mxu0 0
      %2069 = vmatmul.mubr.bf16.gmra.mrb[0].mxu0 %v1857
      %v2070 = vpop.f32.mrb[0].mxu0
      %v2071 = vadd.f32 0.0, %v2070
      %v2072 = vpop.f32.mrb[0].mxu0
      %v2073 = vpop.f32.mrb[0].mxu0
      %v2074 = vadd.f32 0.0, %v2073
      %v2075 = vpop.f32.mrb[0].mxu0
      %2076 = vmatprep.mubr.bf16.mxu0 0
      %2077 = vmatmul.mubr.bf16.gmra.mrb[0].mxu0 %v1859
      %v2078 = vpop.f32.mrb[0].mxu0
      %v2079 = vadd.f32 0.0, %v2078
      %v2080 = vpop.f32.mrb[0].mxu0
      %v2081 = vpop.f32.mrb[0].mxu0
      %v2082 = vadd.f32 0.0, %v2081
      %v2083 = vpop.f32.mrb[0].mxu0
      %2084 = vmatprep.mubr.bf16.mxu0 0
      %2085 = vmatmul.mubr.bf16.gmra.mrb[0].mxu0 %v1861
      %v2086 = vpop.f32.mrb[0].mxu0
      %v2087 = vadd.f32 0.0, %v2086
      %v2088 = vpop.f32.mrb[0].mxu0
      %v2089 = vpop.f32.mrb[0].mxu0
      %v2090 = vadd.f32 0.0, %v2089
      %v2091 = vpop.f32.mrb[0].mxu0
      %2092 = vmatprep.mubr.bf16.mxu0 0
      %2093 = vmatmul.mubr.bf16.gmra.mrb[0].mxu0 %v1863
      %v2094 = vpop.f32.mrb[0].mxu0
      %v2095 = vadd.f32 0.0, %v2094
      %v2096 = vpop.f32.mrb[0].mxu0
      %v2097 = vpop.f32.mrb[0].mxu0
      %v2098 = vadd.f32 0.0, %v2097
      %v2099 = vpop.f32.mrb[0].mxu0
      %2100 = vmatprep.mubr.bf16.mxu0 0
      %2101 = vmatmul.mubr.bf16.gmra.mrb[0].mxu0 %v1865
      %v2102 = vpop.f32.mrb[0].mxu0
      %v2103 = vadd.f32 0.0, %v2102
      %v2104 = vpop.f32.mrb[0].mxu0
      %v2105 = vpop.f32.mrb[0].mxu0
      %v2106 = vadd.f32 0.0, %v2105
      %v2107 = vpop.f32.mrb[0].mxu0
      %2108 = vdwg.mxu0
      %v2109 = vadd.f32 %v1665, %v1967
      %v2110 = vadd.f32 %v1668, %v1970
      %v2111 = vadd.f32 %v1673, %v1975
      %v2112 = vadd.f32 %v1676, %v1978
      %v2113 = vadd.f32 %v1681, %v1983
      %v2114 = vadd.f32 %v1684, %v1986
      %v2115 = vadd.f32 %v1689, %v1991
      %v2116 = vadd.f32 %v1692, %v1994
      %v2117 = vadd.f32 %v1697, %v1999
      %v2118 = vadd.f32 %v1700, %v2002
      %v2119 = vadd.f32 %v1705, %v2007
      %v2120 = vadd.f32 %v1708, %v2010
      %v2121 = vadd.f32 %v1713, %v2015
      %v2122 = vadd.f32 %v1716, %v2018
      %v2123 = vadd.f32 %v1721, %v2023
      %v2124 = vadd.f32 %v1724, %v2026
      %v2125 = vadd.f32 %v1729, %v2031
      %v2126 = vadd.f32 %v1732, %v2034
      %v2127 = vadd.f32 %v1737, %v2039
      %v2128 = vadd.f32 %v1740, %v2042
      %v2129 = vadd.f32 %v1745, %v2047
      %v2130 = vadd.f32 %v1748, %v2050
      %v2131 = vadd.f32 %v1753, %v2055
      %v2132 = vadd.f32 %v1756, %v2058
      %v2133 = vadd.f32 %v1761, %v2063
      %v2134 = vadd.f32 %v1764, %v2066
      %v2135 = vadd.f32 %v1769, %v2071
      %v2136 = vadd.f32 %v1772, %v2074
      %v2137 = vadd.f32 %v1777, %v2079
      %v2138 = vadd.f32 %v1780, %v2082
      %v2139 = vadd.f32 %v1785, %v2087
      %v2140 = vadd.f32 %v1788, %v2090
      %v2141 = vadd.f32 %v1793, %v2095
      %v2142 = vadd.f32 %v1796, %v2098
      %v2143 = vadd.f32 %v1801, %v2103
      %v2144 = vadd.f32 %v1804, %v2106
      %v2145 = vld [vmem:[#allocation2 + $0x8] sm:$0xe]
      %v2146 = vld [vmem:[#allocation2 + $0xc] sm:$0xf]
      %v2147 = vld [vmem:[#allocation2 + $0x10] sm:$0xf]
      %v2148 = vld [vmem:[#allocation2 + $0x14] sm:$0xf]
      %v2149 = vld [vmem:[#allocation2 + $0x18] sm:$0xf]
      %v2150 = vld [vmem:[#allocation2 + $0x1c] sm:$0xf]
      %v2151 = vld [vmem:[#allocation2 + $0x20] sm:$0xf]
      %v2152 = vld [vmem:[#allocation2 + $0x24] sm:$0xf]
      %v2153 = vld [vmem:[#allocation2 + $0x28] sm:$0xf]
      %v2154 = vld [vmem:[#allocation2 + $0x2c] sm:$0xf]
      %v2155 = vld [vmem:[#allocation2 + $0x30] sm:$0xf]
      %v2156 = vld [vmem:[#allocation2 + $0x34] sm:$0xf]
      %v2157 = vld [vmem:[#allocation2 + $0x38] sm:$0xf]
      %v2158 = vld [vmem:[#allocation2 + $0x3c] sm:$0xf]
      %v2159 = vld [vmem:[#allocation2 + $0x40] sm:$0xf]
      %v2160 = vld [vmem:[#allocation2 + $0x44] sm:$0xf]
      %v2161 = vld [vmem:[#allocation2 + $0x48] sm:$0xf]
      %v2162 = vld [vmem:[#allocation2 + $0x4c] sm:$0xf]
      %v2163 = vld [vmem:[#allocation2 + $0x50] sm:$0xf]
      %v2164 = vld [vmem:[#allocation2 + $0x54] sm:$0xf]
      %v2165 = vld [vmem:[#allocation2 + $0x58] sm:$0xf]
      %v2166 = vld [vmem:[#allocation2 + $0x5c] sm:$0xf]
      %v2167 = vld [vmem:[#allocation2 + $0x60] sm:$0xf]
      %v2168 = vld [vmem:[#allocation2 + $0x64] sm:$0xf]
      %v2169 = vld [vmem:[#allocation2 + $0x68] sm:$0xf]
      %v2170 = vld [vmem:[#allocation2 + $0x6c] sm:$0xf]
      %v2171 = vld [vmem:[#allocation2 + $0x70] sm:$0xf]
      %v2172 = vld [vmem:[#allocation2 + $0x74] sm:$0xf]
      %v2173 = vld [vmem:[#allocation2 + $0x78] sm:$0xf]
      %v2174 = vld [vmem:[#allocation2 + $0x7c] sm:$0xf]
      %v2175 = vld [vmem:[#allocation2 + $0x80] sm:$0xf]
      %v2176 = vld [vmem:[#allocation2 + $0x84] sm:$0xf]
      %v2177 = vld [vmem:[#allocation2 + $0x88] sm:$0xf]
      %v2178 = vld [vmem:[#allocation2 + $0x8c] sm:$0xf]
      %v2179 = vld [vmem:[#allocation2 + $0x90] sm:$0xf]
      %v2180 = vld [vmem:[#allocation2 + $0x94] sm:$0xf]
      %v2181 = vld [vmem:[#allocation2 + $0x98] sm:$0x1]
      %s2182 = scalar_lea.vmem %s1, 192
      %v2183 = vld [vmem:[%s2182] sm:$0xf]
      %v2184 = vld [vmem:[%s2182 + $0x4] sm:$0xf]
      %v2185 = vld [vmem:[%s2182 + $0x8] sm:$0xf]
      %v2186 = vld [vmem:[%s2182 + $0xc] sm:$0xf]
      %v2187 = vld [vmem:[%s2182 + $0x10] sm:$0xf]
      %v2188 = vld [vmem:[%s2182 + $0x14] sm:$0xf]
      %v2189 = vld [vmem:[%s2182 + $0x18] sm:$0xf]
      %v2190 = vld [vmem:[%s2182 + $0x1c] sm:$0xf]
      %v2191 = vld [vmem:[%s2182 + $0x20] sm:$0xf]
      %v2192 = vld [vmem:[%s2182 + $0x24] sm:$0xf]
      %v2193 = vld [vmem:[%s2182 + $0x28] sm:$0xf]
      %v2194 = vld [vmem:[%s2182 + $0x2c] sm:$0xf]
      %v2195 = vld [vmem:[%s2182 + $0x30] sm:$0xf]
      %v2196 = vld [vmem:[%s2182 + $0x34] sm:$0xf]
      %v2197 = vld [vmem:[%s2182 + $0x38] sm:$0xf]
      %v2198 = vld [vmem:[%s2182 + $0x3c] sm:$0xf]
      %v2236 = vunpack.c.l.b16 %v2145
      %v2237 = vunpack.c.l.b16 %v2146
      %v2238 = vunpack.c.l.b16 %v2147
      %v2239 = vunpack.c.l.b16 %v2148
      %v2240 = vunpack.c.l.b16 %v2149
      %v2241 = vunpack.c.l.b16 %v2150
      %v2242 = vunpack.c.l.b16 %v2151
      %v2243 = vunpack.c.l.b16 %v2152
      %v2244 = vunpack.c.l.b16 %v2153
      %v2245 = vunpack.c.l.b16 %v2154
      %v2246 = vunpack.c.l.b16 %v2155
      %v2247 = vunpack.c.l.b16 %v2156
      %v2248 = vunpack.c.l.b16 %v2157
      %v2249 = vunpack.c.l.b16 %v2158
      %v2250 = vunpack.c.l.b16 %v2159
      %v2251 = vunpack.c.l.b16 %v2160
      %v2252 = vunpack.c.l.b16 %v2161
      %v2253 = vunpack.c.l.b16 %v2162
      %v2254 = vunpack.c.l.b16 %v2163
      %v2255 = vunpack.c.l.b16 %v2164
      %v2256 = vunpack.c.l.b16 %v2165
      %v2257 = vunpack.c.l.b16 %v2166
      %v2258 = vunpack.c.l.b16 %v2167
      %v2259 = vunpack.c.l.b16 %v2168
      %v2260 = vunpack.c.l.b16 %v2169
      %v2261 = vunpack.c.l.b16 %v2170
      %v2262 = vunpack.c.l.b16 %v2171
      %v2263 = vunpack.c.l.b16 %v2172
      %v2264 = vunpack.c.l.b16 %v2173
      %v2265 = vunpack.c.l.b16 %v2174
      %v2266 = vunpack.c.l.b16 %v2175
      %v2267 = vunpack.c.l.b16 %v2176
      %v2268 = vunpack.c.l.b16 %v2177
      %v2269 = vunpack.c.l.b16 %v2178
      %v2270 = vunpack.c.l.b16 %v2179
      %v2271 = vunpack.c.l.b16 %v2180
      %v2272 = vunpack.c.l.b16 %v2181
      %v2273 = vpack.c.b16 %v2237, %v2236
      %v2274 = vpack.c.b16 %v2239, %v2238
      %v2275 = vpack.c.b16 %v2241, %v2240
      %v2276 = vpack.c.b16 %v2243, %v2242
      %v2277 = vpack.c.b16 %v2245, %v2244
      %v2278 = vpack.c.b16 %v2247, %v2246
      %v2279 = vpack.c.b16 %v2249, %v2248
      %v2280 = vpack.c.b16 %v2251, %v2250
      %v2281 = vpack.c.b16 %v2253, %v2252
      %v2282 = vpack.c.b16 %v2255, %v2254
      %v2283 = vpack.c.b16 %v2257, %v2256
      %v2284 = vpack.c.b16 %v2259, %v2258
      %v2285 = vpack.c.b16 %v2261, %v2260
      %v2286 = vpack.c.b16 %v2263, %v2262
      %v2287 = vpack.c.b16 %v2265, %v2264
      %v2288 = vpack.c.b16 %v2267, %v2266
      %v2289 = vpack.c.b16 %v2269, %v2268
      %v2290 = vpack.c.b16 %v2271, %v2270
      %v2291 = vpack.c.b16 %v2272, %v2272
      %v2292 = vrot.slane %v2273, 1
      %v2293 = vrot.slane %v2274, 1
      %v2294 = vsel %vm1828, %v2292, %v2293
      %v2295 = vrot.slane %v2275, 1
      %v2296 = vsel %vm1828, %v2293, %v2295
      %v2297 = vrot.slane %v2276, 1
      %v2298 = vsel %vm1828, %v2295, %v2297
      %v2299 = vrot.slane %v2277, 1
      %v2300 = vsel %vm1828, %v2297, %v2299
      %v2301 = vrot.slane %v2278, 1
      %v2302 = vsel %vm1828, %v2299, %v2301
      %v2303 = vrot.slane %v2279, 1
      %v2304 = vsel %vm1828, %v2301, %v2303
      %v2305 = vrot.slane %v2280, 1
      %v2306 = vsel %vm1828, %v2303, %v2305
      %v2307 = vrot.slane %v2281, 1
      %v2308 = vsel %vm1828, %v2305, %v2307
      %v2309 = vrot.slane %v2282, 1
      %v2310 = vsel %vm1828, %v2307, %v2309
      %v2311 = vrot.slane %v2283, 1
      %v2312 = vsel %vm1828, %v2309, %v2311
      %v2313 = vrot.slane %v2284, 1
      %v2314 = vsel %vm1828, %v2311, %v2313
      %v2315 = vrot.slane %v2285, 1
      %v2316 = vsel %vm1828, %v2313, %v2315
      %v2317 = vrot.slane %v2286, 1
      %v2318 = vsel %vm1828, %v2315, %v2317
      %v2319 = vrot.slane %v2287, 1
      %v2320 = vsel %vm1828, %v2317, %v2319
      %v2321 = vrot.slane %v2288, 1
      %v2322 = vsel %vm1828, %v2319, %v2321
      %v2323 = vrot.slane %v2289, 1
      %v2324 = vsel %vm1828, %v2321, %v2323
      %v2325 = vrot.slane %v2290, 1
      %v2326 = vsel %vm1828, %v2323, %v2325
      %v2327 = vrot.slane %v2291, 1
      %v2328 = vsel %vm1828, %v2325, %v2327
      %v2363 = vunpack.c.l.b16 %v2183
      %v2364 = vunpack.c.l.b16 %v2184
      %v2365 = vunpack.c.l.b16 %v2185
      %v2366 = vunpack.c.l.b16 %v2186
      %v2367 = vunpack.c.l.b16 %v2187
      %v2368 = vunpack.c.l.b16 %v2188
      %v2369 = vunpack.c.l.b16 %v2189
      %v2370 = vunpack.c.l.b16 %v2190
      %v2371 = vunpack.c.l.b16 %v2191
      %v2372 = vunpack.c.l.b16 %v2192
      %v2373 = vunpack.c.l.b16 %v2193
      %v2374 = vunpack.c.l.b16 %v2194
      %v2375 = vunpack.c.l.b16 %v2195
      %v2376 = vunpack.c.l.b16 %v2196
      %v2377 = vunpack.c.l.b16 %v2197
      %v2378 = vunpack.c.l.b16 %v2198
      %v2379 = vpack.c.b16 %v2364, %v2363
      %v2380 = vpack.c.b16 %v2366, %v2365
      %v2381 = vpack.c.b16 %v2368, %v2367
      %v2382 = vpack.c.b16 %v2370, %v2369
      %v2383 = vpack.c.b16 %v2372, %v2371
      %v2384 = vpack.c.b16 %v2374, %v2373
      %v2385 = vpack.c.b16 %v2376, %v2375
      %v2386 = vpack.c.b16 %v2378, %v2377
      %2395 = vmatprep.subr.bf16.mxu0 0
      %2396 = vmatpush1.bf16.msra.mxu0 %v2379
      %2397 = vmatprep.subr.bf16.mxu0 0
      %2398 = vmatpush1.bf16.msra.mxu0 %v2380
      %2399 = vmatprep.subr.bf16.mxu0 0
      %2400 = vmatpush1.bf16.msra.mxu0 %v2381
      %2401 = vmatprep.subr.bf16.mxu0 0
      %2402 = vmatpush1.bf16.msra.mxu0 %v2382
      %2403 = vmatprep.subr.bf16.mxu0 0
      %2404 = vmatpush1.bf16.msra.mxu0 %v2383
      %2405 = vmatprep.subr.bf16.mxu0 0
      %2406 = vmatpush1.bf16.msra.mxu0 %v2384
      %2407 = vmatprep.subr.bf16.mxu0 0
      %2408 = vmatpush1.bf16.msra.mxu0 %v2385
      %2409 = vmatprep.subr.bf16.mxu0 0
      %2410 = vmatpush1.bf16.msra.mxu0 %v2386
      %2411 = vmatprep.subr.bf16.mxu0 0
      %2412 = vmatpush1.bf16.msra.mxu0 0
      %2413 = vmatprep.subr.bf16.mxu0 0
      %2414 = vmatpush1.bf16.msra.mxu0 0
      %2415 = vmatprep.subr.bf16.mxu0 0
      %2416 = vmatpush1.bf16.msra.mxu0 0
      %2417 = vmatprep.subr.bf16.mxu0 0
      %2418 = vmatpush1.bf16.msra.mxu0 0
      %2419 = vmatprep.subr.bf16.mxu0 0
      %2420 = vmatpush1.bf16.msra.mxu0 0
      %2421 = vmatprep.subr.bf16.mxu0 0
      %2422 = vmatpush1.bf16.msra.mxu0 0
      %2423 = vmatprep.subr.bf16.mxu0 0
      %2424 = vmatpush1.bf16.msra.mxu0 0
      %2425 = vmatprep.subr.bf16.mxu0 0
      %2426 = vmatpush1.bf16.msra.mxu0 0
      %2427 = vmatprep.mubr.bf16.mxu0 0
      %2428 = vmatmul.mubr.bf16.gmra.mrb[0].mxu0 %v2294
      %v2429 = vpop.f32.mrb[0].mxu0
      %v2430 = vadd.f32 0.0, %v2429
      %v2431 = vpop.f32.mrb[0].mxu0
      %v2432 = vpop.f32.mrb[0].mxu0
      %v2433 = vadd.f32 0.0, %v2432
      %v2434 = vpop.f32.mrb[0].mxu0
      %2435 = vmatprep.mubr.bf16.mxu0 0
      %2436 = vmatmul.mubr.bf16.gmra.mrb[0].mxu0 %v2296
      %v2437 = vpop.f32.mrb[0].mxu0
      %v2438 = vadd.f32 0.0, %v2437
      %v2439 = vpop.f32.mrb[0].mxu0
      %v2440 = vpop.f32.mrb[0].mxu0
      %v2441 = vadd.f32 0.0, %v2440
      %v2442 = vpop.f32.mrb[0].mxu0
      %2443 = vmatprep.mubr.bf16.mxu0 0
      %2444 = vmatmul.mubr.bf16.gmra.mrb[0].mxu0 %v2298
      %v2445 = vpop.f32.mrb[0].mxu0
      %v2446 = vadd.f32 0.0, %v2445
      %v2447 = vpop.f32.mrb[0].mxu0
      %v2448 = vpop.f32.mrb[0].mxu0
      %v2449 = vadd.f32 0.0, %v2448
      %v2450 = vpop.f32.mrb[0].mxu0
      %2451 = vmatprep.mubr.bf16.mxu0 0
      %2452 = vmatmul.mubr.bf16.gmra.mrb[0].mxu0 %v2300
      %v2453 = vpop.f32.mrb[0].mxu0
      %v2454 = vadd.f32 0.0, %v2453
      %v2455 = vpop.f32.mrb[0].mxu0
      %v2456 = vpop.f32.mrb[0].mxu0
      %v2457 = vadd.f32 0.0, %v2456
      %v2458 = vpop.f32.mrb[0].mxu0
      %2459 = vmatprep.mubr.bf16.mxu0 0
      %2460 = vmatmul.mubr.bf16.gmra.mrb[0].mxu0 %v2302
      %v2461 = vpop.f32.mrb[0].mxu0
      %v2462 = vadd.f32 0.0, %v2461
      %v2463 = vpop.f32.mrb[0].mxu0
      %v2464 = vpop.f32.mrb[0].mxu0
      %v2465 = vadd.f32 0.0, %v2464
      %v2466 = vpop.f32.mrb[0].mxu0
      %2467 = vmatprep.mubr.bf16.mxu0 0
      %2468 = vmatmul.mubr.bf16.gmra.mrb[0].mxu0 %v2304
      %v2469 = vpop.f32.mrb[0].mxu0
      %v2470 = vadd.f32 0.0, %v2469
      %v2471 = vpop.f32.mrb[0].mxu0
      %v2472 = vpop.f32.mrb[0].mxu0
      %v2473 = vadd.f32 0.0, %v2472
      %v2474 = vpop.f32.mrb[0].mxu0
      %2475 = vmatprep.mubr.bf16.mxu0 0
      %2476 = vmatmul.mubr.bf16.gmra.mrb[0].mxu0 %v2306
      %v2477 = vpop.f32.mrb[0].mxu0
      %v2478 = vadd.f32 0.0, %v2477
      %v2479 = vpop.f32.mrb[0].mxu0
      %v2480 = vpop.f32.mrb[0].mxu0
      %v2481 = vadd.f32 0.0, %v2480
      %v2482 = vpop.f32.mrb[0].mxu0
      %2483 = vmatprep.mubr.bf16.mxu0 0
      %2484 = vmatmul.mubr.bf16.gmra.mrb[0].mxu0 %v2308
      %v2485 = vpop.f32.mrb[0].mxu0
      %v2486 = vadd.f32 0.0, %v2485
      %v2487 = vpop.f32.mrb[0].mxu0
      %v2488 = vpop.f32.mrb[0].mxu0
      %v2489 = vadd.f32 0.0, %v2488
      %v2490 = vpop.f32.mrb[0].mxu0
      %2491 = vmatprep.mubr.bf16.mxu0 0
      %2492 = vmatmul.mubr.bf16.gmra.mrb[0].mxu0 %v2310
      %v2493 = vpop.f32.mrb[0].mxu0
      %v2494 = vadd.f32 0.0, %v2493
      %v2495 = vpop.f32.mrb[0].mxu0
      %v2496 = vpop.f32.mrb[0].mxu0
      %v2497 = vadd.f32 0.0, %v2496
      %v2498 = vpop.f32.mrb[0].mxu0
      %2499 = vmatprep.mubr.bf16.mxu0 0
      %2500 = vmatmul.mubr.bf16.gmra.mrb[0].mxu0 %v2312
      %v2501 = vpop.f32.mrb[0].mxu0
      %v2502 = vadd.f32 0.0, %v2501
      %v2503 = vpop.f32.mrb[0].mxu0
      %v2504 = vpop.f32.mrb[0].mxu0
      %v2505 = vadd.f32 0.0, %v2504
      %v2506 = vpop.f32.mrb[0].mxu0
      %2507 = vmatprep.mubr.bf16.mxu0 0
      %2508 = vmatmul.mubr.bf16.gmra.mrb[0].mxu0 %v2314
      %v2509 = vpop.f32.mrb[0].mxu0
      %v2510 = vadd.f32 0.0, %v2509
      %v2511 = vpop.f32.mrb[0].mxu0
      %v2512 = vpop.f32.mrb[0].mxu0
      %v2513 = vadd.f32 0.0, %v2512
      %v2514 = vpop.f32.mrb[0].mxu0
      %2515 = vmatprep.mubr.bf16.mxu0 0
      %2516 = vmatmul.mubr.bf16.gmra.mrb[0].mxu0 %v2316
      %v2517 = vpop.f32.mrb[0].mxu0
      %v2518 = vadd.f32 0.0, %v2517
      %v2519 = vpop.f32.mrb[0].mxu0
      %v2520 = vpop.f32.mrb[0].mxu0
      %v2521 = vadd.f32 0.0, %v2520
      %v2522 = vpop.f32.mrb[0].mxu0
      %2523 = vmatprep.mubr.bf16.mxu0 0
      %2524 = vmatmul.mubr.bf16.gmra.mrb[0].mxu0 %v2318
      %v2525 = vpop.f32.mrb[0].mxu0
      %v2526 = vadd.f32 0.0, %v2525
      %v2527 = vpop.f32.mrb[0].mxu0
      %v2528 = vpop.f32.mrb[0].mxu0
      %v2529 = vadd.f32 0.0, %v2528
      %v2530 = vpop.f32.mrb[0].mxu0
      %2531 = vmatprep.mubr.bf16.mxu0 0
      %2532 = vmatmul.mubr.bf16.gmra.mrb[0].mxu0 %v2320
      %v2533 = vpop.f32.mrb[0].mxu0
      %v2534 = vadd.f32 0.0, %v2533
      %v2535 = vpop.f32.mrb[0].mxu0
      %v2536 = vpop.f32.mrb[0].mxu0
      %v2537 = vadd.f32 0.0, %v2536
      %v2538 = vpop.f32.mrb[0].mxu0
      %2539 = vmatprep.mubr.bf16.mxu0 0
      %2540 = vmatmul.mubr.bf16.gmra.mrb[0].mxu0 %v2322
      %v2541 = vpop.f32.mrb[0].mxu0
      %v2542 = vadd.f32 0.0, %v2541
      %v2543 = vpop.f32.mrb[0].mxu0
      %v2544 = vpop.f32.mrb[0].mxu0
      %v2545 = vadd.f32 0.0, %v2544
      %v2546 = vpop.f32.mrb[0].mxu0
      %2547 = vmatprep.mubr.bf16.mxu0 0
      %2548 = vmatmul.mubr.bf16.gmra.mrb[0].mxu0 %v2324
      %v2549 = vpop.f32.mrb[0].mxu0
      %v2550 = vadd.f32 0.0, %v2549
      %v2551 = vpop.f32.mrb[0].mxu0
      %v2552 = vpop.f32.mrb[0].mxu0
      %v2553 = vadd.f32 0.0, %v2552
      %v2554 = vpop.f32.mrb[0].mxu0
      %2555 = vmatprep.mubr.bf16.mxu0 0
      %2556 = vmatmul.mubr.bf16.gmra.mrb[0].mxu0 %v2326
      %v2557 = vpop.f32.mrb[0].mxu0
      %v2558 = vadd.f32 0.0, %v2557
      %v2559 = vpop.f32.mrb[0].mxu0
      %v2560 = vpop.f32.mrb[0].mxu0
      %v2561 = vadd.f32 0.0, %v2560
      %v2562 = vpop.f32.mrb[0].mxu0
      %2563 = vmatprep.mubr.bf16.mxu0 0
      %2564 = vmatmul.mubr.bf16.gmra.mrb[0].mxu0 %v2328
      %v2565 = vpop.f32.mrb[0].mxu0
      %v2566 = vadd.f32 0.0, %v2565
      %v2567 = vpop.f32.mrb[0].mxu0
      %v2568 = vpop.f32.mrb[0].mxu0
      %v2569 = vadd.f32 0.0, %v2568
      %v2570 = vpop.f32.mrb[0].mxu0
      %2571 = vdwg.mxu0
      %v2572 = vadd.f32 %v2109, %v2430
      %v2573 = vadd.f32 %v2110, %v2433
      %v2574 = vadd.f32 %v2111, %v2438
      %v2575 = vadd.f32 %v2112, %v2441
      %v2576 = vadd.f32 %v2113, %v2446
      %v2577 = vadd.f32 %v2114, %v2449
      %v2578 = vadd.f32 %v2115, %v2454
      %v2579 = vadd.f32 %v2116, %v2457
      %v2580 = vadd.f32 %v2117, %v2462
      %v2581 = vadd.f32 %v2118, %v2465
      %v2582 = vadd.f32 %v2119, %v2470
      %v2583 = vadd.f32 %v2120, %v2473
      %v2584 = vadd.f32 %v2121, %v2478
      %v2585 = vadd.f32 %v2122, %v2481
      %v2586 = vadd.f32 %v2123, %v2486
      %v2587 = vadd.f32 %v2124, %v2489
      %v2588 = vadd.f32 %v2125, %v2494
      %v2589 = vadd.f32 %v2126, %v2497
      %v2590 = vadd.f32 %v2127, %v2502
      %v2591 = vadd.f32 %v2128, %v2505
      %v2592 = vadd.f32 %v2129, %v2510
      %v2593 = vadd.f32 %v2130, %v2513
      %v2594 = vadd.f32 %v2131, %v2518
      %v2595 = vadd.f32 %v2132, %v2521
      %v2596 = vadd.f32 %v2133, %v2526
      %v2597 = vadd.f32 %v2134, %v2529
      %v2598 = vadd.f32 %v2135, %v2534
      %v2599 = vadd.f32 %v2136, %v2537
      %v2600 = vadd.f32 %v2137, %v2542
      %v2601 = vadd.f32 %v2138, %v2545
      %v2602 = vadd.f32 %v2139, %v2550
      %v2603 = vadd.f32 %v2140, %v2553
      %v2604 = vadd.f32 %v2141, %v2558
      %v2605 = vadd.f32 %v2142, %v2561
      %v2606 = vadd.f32 %v2143, %v2566
      %v2607 = vadd.f32 %v2144, %v2569
      %v2608 = vld [vmem:[#allocation2 + $0x98] sm:$0x3]
      %s2609 = scalar_lea.vmem %s1, 256
      %v2610 = vld [vmem:[%s2609] sm:$0xf]
      %v2611 = vld [vmem:[%s2609 + $0x4] sm:$0xf]
      %v2612 = vld [vmem:[%s2609 + $0x8] sm:$0xf]
      %v2613 = vld [vmem:[%s2609 + $0xc] sm:$0xf]
      %v2614 = vld [vmem:[%s2609 + $0x10] sm:$0xf]
      %v2615 = vld [vmem:[%s2609 + $0x14] sm:$0xf]
      %v2616 = vld [vmem:[%s2609 + $0x18] sm:$0xf]
      %v2617 = vld [vmem:[%s2609 + $0x1c] sm:$0xf]
      %v2618 = vld [vmem:[%s2609 + $0x20] sm:$0xf]
      %v2619 = vld [vmem:[%s2609 + $0x24] sm:$0xf]
      %v2620 = vld [vmem:[%s2609 + $0x28] sm:$0xf]
      %v2621 = vld [vmem:[%s2609 + $0x2c] sm:$0xf]
      %v2622 = vld [vmem:[%s2609 + $0x30] sm:$0xf]
      %v2623 = vld [vmem:[%s2609 + $0x34] sm:$0xf]
      %v2624 = vld [vmem:[%s2609 + $0x38] sm:$0xf]
      %v2625 = vld [vmem:[%s2609 + $0x3c] sm:$0xf]
      %v2627 = vunpack.c.l.b16 %v2608
      %v2628 = vpack.c.b16 %v2627, %v2627
      %vm2629 = vsmask.f32 6400
      %v2631 = vshrl.u32 %v2273, 16
      %v2633 = vrot.slane %v2631, 1
      %v2634 = vshll.u32 %v2273, 16
      %v2636 = vrot.slane %v2634, 2
      %v2637 = vor.u32 %v2633, %v2636
      %v2639 = vshrl.u32 %v2274, 16
      %v2641 = vrot.slane %v2639, 1
      %v2642 = vshll.u32 %v2274, 16
      %v2644 = vrot.slane %v2642, 2
      %v2645 = vor.u32 %v2641, %v2644
      %v2646 = vsel %vm2629, %v2637, %v2645
      %v2648 = vshrl.u32 %v2275, 16
      %v2650 = vrot.slane %v2648, 1
      %v2651 = vshll.u32 %v2275, 16
      %v2653 = vrot.slane %v2651, 2
      %v2654 = vor.u32 %v2650, %v2653
      %v2655 = vsel %vm2629, %v2645, %v2654
      %v2657 = vshrl.u32 %v2276, 16
      %v2659 = vrot.slane %v2657, 1
      %v2660 = vshll.u32 %v2276, 16
      %v2662 = vrot.slane %v2660, 2
      %v2663 = vor.u32 %v2659, %v2662
      %v2664 = vsel %vm2629, %v2654, %v2663
      %v2666 = vshrl.u32 %v2277, 16
      %v2668 = vrot.slane %v2666, 1
      %v2669 = vshll.u32 %v2277, 16
      %v2671 = vrot.slane %v2669, 2
      %v2672 = vor.u32 %v2668, %v2671
      %v2673 = vsel %vm2629, %v2663, %v2672
      %v2675 = vshrl.u32 %v2278, 16
      %v2677 = vrot.slane %v2675, 1
      %v2678 = vshll.u32 %v2278, 16
      %v2680 = vrot.slane %v2678, 2
      %v2681 = vor.u32 %v2677, %v2680
      %v2682 = vsel %vm2629, %v2672, %v2681
      %v2684 = vshrl.u32 %v2279, 16
      %v2686 = vrot.slane %v2684, 1
      %v2687 = vshll.u32 %v2279, 16
      %v2689 = vrot.slane %v2687, 2
      %v2690 = vor.u32 %v2686, %v2689
      %v2691 = vsel %vm2629, %v2681, %v2690
      %v2693 = vshrl.u32 %v2280, 16
      %v2695 = vrot.slane %v2693, 1
      %v2696 = vshll.u32 %v2280, 16
      %v2698 = vrot.slane %v2696, 2
      %v2699 = vor.u32 %v2695, %v2698
      %v2700 = vsel %vm2629, %v2690, %v2699
      %v2702 = vshrl.u32 %v2281, 16
      %v2704 = vrot.slane %v2702, 1
      %v2705 = vshll.u32 %v2281, 16
      %v2707 = vrot.slane %v2705, 2
      %v2708 = vor.u32 %v2704, %v2707
      %v2709 = vsel %vm2629, %v2699, %v2708
      %v2711 = vshrl.u32 %v2282, 16
      %v2713 = vrot.slane %v2711, 1
      %v2714 = vshll.u32 %v2282, 16
      %v2716 = vrot.slane %v2714, 2
      %v2717 = vor.u32 %v2713, %v2716
      %v2718 = vsel %vm2629, %v2708, %v2717
      %v2720 = vshrl.u32 %v2283, 16
      %v2722 = vrot.slane %v2720, 1
      %v2723 = vshll.u32 %v2283, 16
      %v2725 = vrot.slane %v2723, 2
      %v2726 = vor.u32 %v2722, %v2725
      %v2727 = vsel %vm2629, %v2717, %v2726
      %v2729 = vshrl.u32 %v2284, 16
      %v2731 = vrot.slane %v2729, 1
      %v2732 = vshll.u32 %v2284, 16
      %v2734 = vrot.slane %v2732, 2
      %v2735 = vor.u32 %v2731, %v2734
      %v2736 = vsel %vm2629, %v2726, %v2735
      %v2738 = vshrl.u32 %v2285, 16
      %v2740 = vrot.slane %v2738, 1
      %v2741 = vshll.u32 %v2285, 16
      %v2743 = vrot.slane %v2741, 2
      %v2744 = vor.u32 %v2740, %v2743
      %v2745 = vsel %vm2629, %v2735, %v2744
      %v2747 = vshrl.u32 %v2286, 16
      %v2749 = vrot.slane %v2747, 1
      %v2750 = vshll.u32 %v2286, 16
      %v2752 = vrot.slane %v2750, 2
      %v2753 = vor.u32 %v2749, %v2752
      %v2754 = vsel %vm2629, %v2744, %v2753
      %v2756 = vshrl.u32 %v2287, 16
      %v2758 = vrot.slane %v2756, 1
      %v2759 = vshll.u32 %v2287, 16
      %v2761 = vrot.slane %v2759, 2
      %v2762 = vor.u32 %v2758, %v2761
      %v2763 = vsel %vm2629, %v2753, %v2762
      %v2765 = vshrl.u32 %v2288, 16
      %v2767 = vrot.slane %v2765, 1
      %v2768 = vshll.u32 %v2288, 16
      %v2770 = vrot.slane %v2768, 2
      %v2771 = vor.u32 %v2767, %v2770
      %v2772 = vsel %vm2629, %v2762, %v2771
      %v2774 = vshrl.u32 %v2289, 16
      %v2776 = vrot.slane %v2774, 1
      %v2777 = vshll.u32 %v2289, 16
      %v2779 = vrot.slane %v2777, 2
      %v2780 = vor.u32 %v2776, %v2779
      %v2781 = vsel %vm2629, %v2771, %v2780
      %v2783 = vshrl.u32 %v2290, 16
      %v2785 = vrot.slane %v2783, 1
      %v2786 = vshll.u32 %v2290, 16
      %v2788 = vrot.slane %v2786, 2
      %v2789 = vor.u32 %v2785, %v2788
      %v2790 = vsel %vm2629, %v2780, %v2789
      %v2792 = vshrl.u32 %v2628, 16
      %v2794 = vrot.slane %v2792, 1
      %v2795 = vshll.u32 %v2628, 16
      %v2797 = vrot.slane %v2795, 2
      %v2798 = vor.u32 %v2794, %v2797
      %v2799 = vsel %vm2629, %v2789, %v2798
      %v2834 = vunpack.c.l.b16 %v2610
      %v2835 = vunpack.c.l.b16 %v2611
      %v2836 = vunpack.c.l.b16 %v2612
      %v2837 = vunpack.c.l.b16 %v2613
      %v2838 = vunpack.c.l.b16 %v2614
      %v2839 = vunpack.c.l.b16 %v2615
      %v2840 = vunpack.c.l.b16 %v2616
      %v2841 = vunpack.c.l.b16 %v2617
      %v2842 = vunpack.c.l.b16 %v2618
      %v2843 = vunpack.c.l.b16 %v2619
      %v2844 = vunpack.c.l.b16 %v2620
      %v2845 = vunpack.c.l.b16 %v2621
      %v2846 = vunpack.c.l.b16 %v2622
      %v2847 = vunpack.c.l.b16 %v2623
      %v2848 = vunpack.c.l.b16 %v2624
      %v2849 = vunpack.c.l.b16 %v2625
      %v2850 = vpack.c.b16 %v2835, %v2834
      %v2851 = vpack.c.b16 %v2837, %v2836
      %v2852 = vpack.c.b16 %v2839, %v2838
      %v2853 = vpack.c.b16 %v2841, %v2840
      %v2854 = vpack.c.b16 %v2843, %v2842
      %v2855 = vpack.c.b16 %v2845, %v2844
      %v2856 = vpack.c.b16 %v2847, %v2846
      %v2857 = vpack.c.b16 %v2849, %v2848
      %2866 = vmatprep.subr.bf16.mxu0 0
      %2867 = vmatpush1.bf16.msra.mxu0 %v2850
      %2868 = vmatprep.subr.bf16.mxu0 0
      %2869 = vmatpush1.bf16.msra.mxu0 %v2851
      %2870 = vmatprep.subr.bf16.mxu0 0
      %2871 = vmatpush1.bf16.msra.mxu0 %v2852
      %2872 = vmatprep.subr.bf16.mxu0 0
      %2873 = vmatpush1.bf16.msra.mxu0 %v2853
      %2874 = vmatprep.subr.bf16.mxu0 0
      %2875 = vmatpush1.bf16.msra.mxu0 %v2854
      %2876 = vmatprep.subr.bf16.mxu0 0
      %2877 = vmatpush1.bf16.msra.mxu0 %v2855
      %2878 = vmatprep.subr.bf16.mxu0 0
      %2879 = vmatpush1.bf16.msra.mxu0 %v2856
      %2880 = vmatprep.subr.bf16.mxu0 0
      %2881 = vmatpush1.bf16.msra.mxu0 %v2857
      %2882 = vmatprep.subr.bf16.mxu0 0
      %2883 = vmatpush1.bf16.msra.mxu0 0
      %2884 = vmatprep.subr.bf16.mxu0 0
      %2885 = vmatpush1.bf16.msra.mxu0 0
      %2886 = vmatprep.subr.bf16.mxu0 0
      %2887 = vmatpush1.bf16.msra.mxu0 0
      %2888 = vmatprep.subr.bf16.mxu0 0
      %2889 = vmatpush1.bf16.msra.mxu0 0
      %2890 = vmatprep.subr.bf16.mxu0 0
      %2891 = vmatpush1.bf16.msra.mxu0 0
      %2892 = vmatprep.subr.bf16.mxu0 0
      %2893 = vmatpush1.bf16.msra.mxu0 0
      %2894 = vmatprep.subr.bf16.mxu0 0
      %2895 = vmatpush1.bf16.msra.mxu0 0
      %2896 = vmatprep.subr.bf16.mxu0 0
      %2897 = vmatpush1.bf16.msra.mxu0 0
      %2898 = vmatprep.mubr.bf16.mxu0 0
      %2899 = vmatmul.mubr.bf16.gmra.mrb[0].mxu0 %v2646
      %v2900 = vpop.f32.mrb[0].mxu0
      %v2901 = vadd.f32 0.0, %v2900
      %v2902 = vpop.f32.mrb[0].mxu0
      %v2903 = vpop.f32.mrb[0].mxu0
      %v2904 = vadd.f32 0.0, %v2903
      %v2905 = vpop.f32.mrb[0].mxu0
      %2906 = vmatprep.mubr.bf16.mxu0 0
      %2907 = vmatmul.mubr.bf16.gmra.mrb[0].mxu0 %v2655
      %v2908 = vpop.f32.mrb[0].mxu0
      %v2909 = vadd.f32 0.0, %v2908
      %v2910 = vpop.f32.mrb[0].mxu0
      %v2911 = vpop.f32.mrb[0].mxu0
      %v2912 = vadd.f32 0.0, %v2911
      %v2913 = vpop.f32.mrb[0].mxu0
      %2914 = vmatprep.mubr.bf16.mxu0 0
      %2915 = vmatmul.mubr.bf16.gmra.mrb[0].mxu0 %v2664
      %v2916 = vpop.f32.mrb[0].mxu0
      %v2917 = vadd.f32 0.0, %v2916
      %v2918 = vpop.f32.mrb[0].mxu0
      %v2919 = vpop.f32.mrb[0].mxu0
      %v2920 = vadd.f32 0.0, %v2919
      %v2921 = vpop.f32.mrb[0].mxu0
      %2922 = vmatprep.mubr.bf16.mxu0 0
      %2923 = vmatmul.mubr.bf16.gmra.mrb[0].mxu0 %v2673
      %v2924 = vpop.f32.mrb[0].mxu0
      %v2925 = vadd.f32 0.0, %v2924
      %v2926 = vpop.f32.mrb[0].mxu0
      %v2927 = vpop.f32.mrb[0].mxu0
      %v2928 = vadd.f32 0.0, %v2927
      %v2929 = vpop.f32.mrb[0].mxu0
      %2930 = vmatprep.mubr.bf16.mxu0 0
      %2931 = vmatmul.mubr.bf16.gmra.mrb[0].mxu0 %v2682
      %v2932 = vpop.f32.mrb[0].mxu0
      %v2933 = vadd.f32 0.0, %v2932
      %v2934 = vpop.f32.mrb[0].mxu0
      %v2935 = vpop.f32.mrb[0].mxu0
      %v2936 = vadd.f32 0.0, %v2935
      %v2937 = vpop.f32.mrb[0].mxu0
      %2938 = vmatprep.mubr.bf16.mxu0 0
      %2939 = vmatmul.mubr.bf16.gmra.mrb[0].mxu0 %v2691
      %v2940 = vpop.f32.mrb[0].mxu0
      %v2941 = vadd.f32 0.0, %v2940
      %v2942 = vpop.f32.mrb[0].mxu0
      %v2943 = vpop.f32.mrb[0].mxu0
      %v2944 = vadd.f32 0.0, %v2943
      %v2945 = vpop.f32.mrb[0].mxu0
      %2946 = vmatprep.mubr.bf16.mxu0 0
      %2947 = vmatmul.mubr.bf16.gmra.mrb[0].mxu0 %v2700
      %v2948 = vpop.f32.mrb[0].mxu0
      %v2949 = vadd.f32 0.0, %v2948
      %v2950 = vpop.f32.mrb[0].mxu0
      %v2951 = vpop.f32.mrb[0].mxu0
      %v2952 = vadd.f32 0.0, %v2951
      %v2953 = vpop.f32.mrb[0].mxu0
      %2954 = vmatprep.mubr.bf16.mxu0 0
      %2955 = vmatmul.mubr.bf16.gmra.mrb[0].mxu0 %v2709
      %v2956 = vpop.f32.mrb[0].mxu0
      %v2957 = vadd.f32 0.0, %v2956
      %v2958 = vpop.f32.mrb[0].mxu0
      %v2959 = vpop.f32.mrb[0].mxu0
      %v2960 = vadd.f32 0.0, %v2959
      %v2961 = vpop.f32.mrb[0].mxu0
      %2962 = vmatprep.mubr.bf16.mxu0 0
      %2963 = vmatmul.mubr.bf16.gmra.mrb[0].mxu0 %v2718
      %v2964 = vpop.f32.mrb[0].mxu0
      %v2965 = vadd.f32 0.0, %v2964
      %v2966 = vpop.f32.mrb[0].mxu0
      %v2967 = vpop.f32.mrb[0].mxu0
      %v2968 = vadd.f32 0.0, %v2967
      %v2969 = vpop.f32.mrb[0].mxu0
      %2970 = vmatprep.mubr.bf16.mxu0 0
      %2971 = vmatmul.mubr.bf16.gmra.mrb[0].mxu0 %v2727
      %v2972 = vpop.f32.mrb[0].mxu0
      %v2973 = vadd.f32 0.0, %v2972
      %v2974 = vpop.f32.mrb[0].mxu0
      %v2975 = vpop.f32.mrb[0].mxu0
      %v2976 = vadd.f32 0.0, %v2975
      %v2977 = vpop.f32.mrb[0].mxu0
      %2978 = vmatprep.mubr.bf16.mxu0 0
      %2979 = vmatmul.mubr.bf16.gmra.mrb[0].mxu0 %v2736
      %v2980 = vpop.f32.mrb[0].mxu0
      %v2981 = vadd.f32 0.0, %v2980
      %v2982 = vpop.f32.mrb[0].mxu0
      %v2983 = vpop.f32.mrb[0].mxu0
      %v2984 = vadd.f32 0.0, %v2983
      %v2985 = vpop.f32.mrb[0].mxu0
      %2986 = vmatprep.mubr.bf16.mxu0 0
      %2987 = vmatmul.mubr.bf16.gmra.mrb[0].mxu0 %v2745
      %v2988 = vpop.f32.mrb[0].mxu0
      %v2989 = vadd.f32 0.0, %v2988
      %v2990 = vpop.f32.mrb[0].mxu0
      %v2991 = vpop.f32.mrb[0].mxu0
      %v2992 = vadd.f32 0.0, %v2991
      %v2993 = vpop.f32.mrb[0].mxu0
      %2994 = vmatprep.mubr.bf16.mxu0 0
      %2995 = vmatmul.mubr.bf16.gmra.mrb[0].mxu0 %v2754
      %v2996 = vpop.f32.mrb[0].mxu0
      %v2997 = vadd.f32 0.0, %v2996
      %v2998 = vpop.f32.mrb[0].mxu0
      %v2999 = vpop.f32.mrb[0].mxu0
      %v3000 = vadd.f32 0.0, %v2999
      %v3001 = vpop.f32.mrb[0].mxu0
      %3002 = vmatprep.mubr.bf16.mxu0 0
      %3003 = vmatmul.mubr.bf16.gmra.mrb[0].mxu0 %v2763
      %v3004 = vpop.f32.mrb[0].mxu0
      %v3005 = vadd.f32 0.0, %v3004
      %v3006 = vpop.f32.mrb[0].mxu0
      %v3007 = vpop.f32.mrb[0].mxu0
      %v3008 = vadd.f32 0.0, %v3007
      %v3009 = vpop.f32.mrb[0].mxu0
      %3010 = vmatprep.mubr.bf16.mxu0 0
      %3011 = vmatmul.mubr.bf16.gmra.mrb[0].mxu0 %v2772
      %v3012 = vpop.f32.mrb[0].mxu0
      %v3013 = vadd.f32 0.0, %v3012
      %v3014 = vpop.f32.mrb[0].mxu0
      %v3015 = vpop.f32.mrb[0].mxu0
      %v3016 = vadd.f32 0.0, %v3015
      %v3017 = vpop.f32.mrb[0].mxu0
      %3018 = vmatprep.mubr.bf16.mxu0 0
      %3019 = vmatmul.mubr.bf16.gmra.mrb[0].mxu0 %v2781
      %v3020 = vpop.f32.mrb[0].mxu0
      %v3021 = vadd.f32 0.0, %v3020
      %v3022 = vpop.f32.mrb[0].mxu0
      %v3023 = vpop.f32.mrb[0].mxu0
      %v3024 = vadd.f32 0.0, %v3023
      %v3025 = vpop.f32.mrb[0].mxu0
      %3026 = vmatprep.mubr.bf16.mxu0 0
      %3027 = vmatmul.mubr.bf16.gmra.mrb[0].mxu0 %v2790
      %v3028 = vpop.f32.mrb[0].mxu0
      %v3029 = vadd.f32 0.0, %v3028
      %v3030 = vpop.f32.mrb[0].mxu0
      %v3031 = vpop.f32.mrb[0].mxu0
      %v3032 = vadd.f32 0.0, %v3031
      %v3033 = vpop.f32.mrb[0].mxu0
      %3034 = vmatprep.mubr.bf16.mxu0 0
      %3035 = vmatmul.mubr.bf16.gmra.mrb[0].mxu0 %v2799
      %v3036 = vpop.f32.mrb[0].mxu0
      %v3037 = vadd.f32 0.0, %v3036
      %v3038 = vpop.f32.mrb[0].mxu0
      %v3039 = vpop.f32.mrb[0].mxu0
      %v3040 = vadd.f32 0.0, %v3039
      %v3041 = vpop.f32.mrb[0].mxu0
      %3042 = vdwg.mxu0
      %v3043 = vadd.f32 %v2572, %v2901
      %v3044 = vadd.f32 %v2573, %v2904
      %v3045 = vadd.f32 %v2574, %v2909
      %v3046 = vadd.f32 %v2575, %v2912
      %v3047 = vadd.f32 %v2576, %v2917
      %v3048 = vadd.f32 %v2577, %v2920
      %v3049 = vadd.f32 %v2578, %v2925
      %v3050 = vadd.f32 %v2579, %v2928
      %v3051 = vadd.f32 %v2580, %v2933
      %v3052 = vadd.f32 %v2581, %v2936
      %v3053 = vadd.f32 %v2582, %v2941
      %v3054 = vadd.f32 %v2583, %v2944
      %v3055 = vadd.f32 %v2584, %v2949
      %v3056 = vadd.f32 %v2585, %v2952
      %v3057 = vadd.f32 %v2586, %v2957
      %v3058 = vadd.f32 %v2587, %v2960
      %v3059 = vadd.f32 %v2588, %v2965
      %v3060 = vadd.f32 %v2589, %v2968
      %v3061 = vadd.f32 %v2590, %v2973
      %v3062 = vadd.f32 %v2591, %v2976
      %v3063 = vadd.f32 %v2592, %v2981
      %v3064 = vadd.f32 %v2593, %v2984
      %v3065 = vadd.f32 %v2594, %v2989
      %v3066 = vadd.f32 %v2595, %v2992
      %v3067 = vadd.f32 %v2596, %v2997
      %v3068 = vadd.f32 %v2597, %v3000
      %v3069 = vadd.f32 %v2598, %v3005
      %v3070 = vadd.f32 %v2599, %v3008
      %v3071 = vadd.f32 %v2600, %v3013
      %v3072 = vadd.f32 %v2601, %v3016
      %v3073 = vadd.f32 %v2602, %v3021
      %v3074 = vadd.f32 %v2603, %v3024
      %v3075 = vadd.f32 %v2604, %v3029
      %v3076 = vadd.f32 %v2605, %v3032
      %v3077 = vadd.f32 %v2606, %v3037
      %v3078 = vadd.f32 %v2607, %v3040
      %v3079 = vld [vmem:[#allocation2 + $0x8] sm:$0xc]
      %s3080 = scalar_lea.vmem %s1, 320
      %v3081 = vld [vmem:[%s3080] sm:$0xf]
      %v3082 = vld [vmem:[%s3080 + $0x4] sm:$0xf]
      %v3083 = vld [vmem:[%s3080 + $0x8] sm:$0xf]
      %v3084 = vld [vmem:[%s3080 + $0xc] sm:$0xf]
      %v3085 = vld [vmem:[%s3080 + $0x10] sm:$0xf]
      %v3086 = vld [vmem:[%s3080 + $0x14] sm:$0xf]
      %v3087 = vld [vmem:[%s3080 + $0x18] sm:$0xf]
      %v3088 = vld [vmem:[%s3080 + $0x1c] sm:$0xf]
      %v3089 = vld [vmem:[%s3080 + $0x20] sm:$0xf]
      %v3090 = vld [vmem:[%s3080 + $0x24] sm:$0xf]
      %v3091 = vld [vmem:[%s3080 + $0x28] sm:$0xf]
      %v3092 = vld [vmem:[%s3080 + $0x2c] sm:$0xf]
      %v3093 = vld [vmem:[%s3080 + $0x30] sm:$0xf]
      %v3094 = vld [vmem:[%s3080 + $0x34] sm:$0xf]
      %v3095 = vld [vmem:[%s3080 + $0x38] sm:$0xf]
      %v3096 = vld [vmem:[%s3080 + $0x3c] sm:$0xf]
      %v3098 = vunpack.c.l.b16 %v3079
      %v3099 = vpack.c.b16 %v2237, %v3098
      %vm3100 = vcmask 1045504
      %v3101 = vrot.slane %v3099, 2
      %v3102 = vrot.slane %v2274, 2
      %v3103 = vsel %vm3100, %v3101, %v3102
      %v3104 = vrot.slane %v2275, 2
      %v3105 = vsel %vm3100, %v3102, %v3104
      %v3106 = vrot.slane %v2276, 2
      %v3107 = vsel %vm3100, %v3104, %v3106
      %v3108 = vrot.slane %v2277, 2
      %v3109 = vsel %vm3100, %v3106, %v3108
      %v3110 = vrot.slane %v2278, 2
      %v3111 = vsel %vm3100, %v3108, %v3110
      %v3112 = vrot.slane %v2279, 2
      %v3113 = vsel %vm3100, %v3110, %v3112
      %v3114 = vrot.slane %v2280, 2
      %v3115 = vsel %vm3100, %v3112, %v3114
      %v3116 = vrot.slane %v2281, 2
      %v3117 = vsel %vm3100, %v3114, %v3116
      %v3118 = vrot.slane %v2282, 2
      %v3119 = vsel %vm3100, %v3116, %v3118
      %v3120 = vrot.slane %v2283, 2
      %v3121 = vsel %vm3100, %v3118, %v3120
      %v3122 = vrot.slane %v2284, 2
      %v3123 = vsel %vm3100, %v3120, %v3122
      %v3124 = vrot.slane %v2285, 2
      %v3125 = vsel %vm3100, %v3122, %v3124
      %v3126 = vrot.slane %v2286, 2
      %v3127 = vsel %vm3100, %v3124, %v3126
      %v3128 = vrot.slane %v2287, 2
      %v3129 = vsel %vm3100, %v3126, %v3128
      %v3130 = vrot.slane %v2288, 2
      %v3131 = vsel %vm3100, %v3128, %v3130
      %v3132 = vrot.slane %v2289, 2
      %v3133 = vsel %vm3100, %v3130, %v3132
      %v3134 = vrot.slane %v2290, 2
      %v3135 = vsel %vm3100, %v3132, %v3134
      %v3136 = vrot.slane %v2628, 2
      %v3137 = vsel %vm3100, %v3134, %v3136
      %v3172 = vunpack.c.l.b16 %v3081
      %v3173 = vunpack.c.l.b16 %v3082
      %v3174 = vunpack.c.l.b16 %v3083
      %v3175 = vunpack.c.l.b16 %v3084
      %v3176 = vunpack.c.l.b16 %v3085
      %v3177 = vunpack.c.l.b16 %v3086
      %v3178 = vunpack.c.l.b16 %v3087
      %v3179 = vunpack.c.l.b16 %v3088
      %v3180 = vunpack.c.l.b16 %v3089
      %v3181 = vunpack.c.l.b16 %v3090
      %v3182 = vunpack.c.l.b16 %v3091
      %v3183 = vunpack.c.l.b16 %v3092
      %v3184 = vunpack.c.l.b16 %v3093
      %v3185 = vunpack.c.l.b16 %v3094
      %v3186 = vunpack.c.l.b16 %v3095
      %v3187 = vunpack.c.l.b16 %v3096
      %v3188 = vpack.c.b16 %v3173, %v3172
      %v3189 = vpack.c.b16 %v3175, %v3174
      %v3190 = vpack.c.b16 %v3177, %v3176
      %v3191 = vpack.c.b16 %v3179, %v3178
      %v3192 = vpack.c.b16 %v3181, %v3180
      %v3193 = vpack.c.b16 %v3183, %v3182
      %v3194 = vpack.c.b16 %v3185, %v3184
      %v3195 = vpack.c.b16 %v3187, %v3186
      %3204 = vmatprep.subr.bf16.mxu0 0
      %3205 = vmatpush1.bf16.msra.mxu0 %v3188
      %3206 = vmatprep.subr.bf16.mxu0 0
      %3207 = vmatpush1.bf16.msra.mxu0 %v3189
      %3208 = vmatprep.subr.bf16.mxu0 0
      %3209 = vmatpush1.bf16.msra.mxu0 %v3190
      %3210 = vmatprep.subr.bf16.mxu0 0
      %3211 = vmatpush1.bf16.msra.mxu0 %v3191
      %3212 = vmatprep.subr.bf16.mxu0 0
      %3213 = vmatpush1.bf16.msra.mxu0 %v3192
      %3214 = vmatprep.subr.bf16.mxu0 0
      %3215 = vmatpush1.bf16.msra.mxu0 %v3193
      %3216 = vmatprep.subr.bf16.mxu0 0
      %3217 = vmatpush1.bf16.msra.mxu0 %v3194
      %3218 = vmatprep.subr.bf16.mxu0 0
      %3219 = vmatpush1.bf16.msra.mxu0 %v3195
      %3220 = vmatprep.subr.bf16.mxu0 0
      %3221 = vmatpush1.bf16.msra.mxu0 0
      %3222 = vmatprep.subr.bf16.mxu0 0
      %3223 = vmatpush1.bf16.msra.mxu0 0
      %3224 = vmatprep.subr.bf16.mxu0 0
      %3225 = vmatpush1.bf16.msra.mxu0 0
      %3226 = vmatprep.subr.bf16.mxu0 0
      %3227 = vmatpush1.bf16.msra.mxu0 0
      %3228 = vmatprep.subr.bf16.mxu0 0
      %3229 = vmatpush1.bf16.msra.mxu0 0
      %3230 = vmatprep.subr.bf16.mxu0 0
      %3231 = vmatpush1.bf16.msra.mxu0 0
      %3232 = vmatprep.subr.bf16.mxu0 0
      %3233 = vmatpush1.bf16.msra.mxu0 0
      %3234 = vmatprep.subr.bf16.mxu0 0
      %3235 = vmatpush1.bf16.msra.mxu0 0
      %3236 = vmatprep.mubr.bf16.mxu0 0
      %3237 = vmatmul.mubr.bf16.gmra.mrb[0].mxu0 %v3103
      %v3238 = vpop.f32.mrb[0].mxu0
      %v3239 = vadd.f32 0.0, %v3238
      %v3240 = vpop.f32.mrb[0].mxu0
      %v3241 = vpop.f32.mrb[0].mxu0
      %v3242 = vadd.f32 0.0, %v3241
      %v3243 = vpop.f32.mrb[0].mxu0
      %3244 = vmatprep.mubr.bf16.mxu0 0
      %3245 = vmatmul.mubr.bf16.gmra.mrb[0].mxu0 %v3105
      %v3246 = vpop.f32.mrb[0].mxu0
      %v3247 = vadd.f32 0.0, %v3246
      %v3248 = vpop.f32.mrb[0].mxu0
      %v3249 = vpop.f32.mrb[0].mxu0
      %v3250 = vadd.f32 0.0, %v3249
      %v3251 = vpop.f32.mrb[0].mxu0
      %3252 = vmatprep.mubr.bf16.mxu0 0
      %3253 = vmatmul.mubr.bf16.gmra.mrb[0].mxu0 %v3107
      %v3254 = vpop.f32.mrb[0].mxu0
      %v3255 = vadd.f32 0.0, %v3254
      %v3256 = vpop.f32.mrb[0].mxu0
      %v3257 = vpop.f32.mrb[0].mxu0
      %v3258 = vadd.f32 0.0, %v3257
      %v3259 = vpop.f32.mrb[0].mxu0
      %3260 = vmatprep.mubr.bf16.mxu0 0
      %3261 = vmatmul.mubr.bf16.gmra.mrb[0].mxu0 %v3109
      %v3262 = vpop.f32.mrb[0].mxu0
      %v3263 = vadd.f32 0.0, %v3262
      %v3264 = vpop.f32.mrb[0].mxu0
      %v3265 = vpop.f32.mrb[0].mxu0
      %v3266 = vadd.f32 0.0, %v3265
      %v3267 = vpop.f32.mrb[0].mxu0
      %3268 = vmatprep.mubr.bf16.mxu0 0
      %3269 = vmatmul.mubr.bf16.gmra.mrb[0].mxu0 %v3111
      %v3270 = vpop.f32.mrb[0].mxu0
      %v3271 = vadd.f32 0.0, %v3270
      %v3272 = vpop.f32.mrb[0].mxu0
      %v3273 = vpop.f32.mrb[0].mxu0
      %v3274 = vadd.f32 0.0, %v3273
      %v3275 = vpop.f32.mrb[0].mxu0
      %3276 = vmatprep.mubr.bf16.mxu0 0
      %3277 = vmatmul.mubr.bf16.gmra.mrb[0].mxu0 %v3113
      %v3278 = vpop.f32.mrb[0].mxu0
      %v3279 = vadd.f32 0.0, %v3278
      %v3280 = vpop.f32.mrb[0].mxu0
      %v3281 = vpop.f32.mrb[0].mxu0
      %v3282 = vadd.f32 0.0, %v3281
      %v3283 = vpop.f32.mrb[0].mxu0
      %3284 = vmatprep.mubr.bf16.mxu0 0
      %3285 = vmatmul.mubr.bf16.gmra.mrb[0].mxu0 %v3115
      %v3286 = vpop.f32.mrb[0].mxu0
      %v3287 = vadd.f32 0.0, %v3286
      %v3288 = vpop.f32.mrb[0].mxu0
      %v3289 = vpop.f32.mrb[0].mxu0
      %v3290 = vadd.f32 0.0, %v3289
      %v3291 = vpop.f32.mrb[0].mxu0
      %3292 = vmatprep.mubr.bf16.mxu0 0
      %3293 = vmatmul.mubr.bf16.gmra.mrb[0].mxu0 %v3117
      %v3294 = vpop.f32.mrb[0].mxu0
      %v3295 = vadd.f32 0.0, %v3294
      %v3296 = vpop.f32.mrb[0].mxu0
      %v3297 = vpop.f32.mrb[0].mxu0
      %v3298 = vadd.f32 0.0, %v3297
      %v3299 = vpop.f32.mrb[0].mxu0
      %3300 = vmatprep.mubr.bf16.mxu0 0
      %3301 = vmatmul.mubr.bf16.gmra.mrb[0].mxu0 %v3119
      %v3302 = vpop.f32.mrb[0].mxu0
      %v3303 = vadd.f32 0.0, %v3302
      %v3304 = vpop.f32.mrb[0].mxu0
      %v3305 = vpop.f32.mrb[0].mxu0
      %v3306 = vadd.f32 0.0, %v3305
      %v3307 = vpop.f32.mrb[0].mxu0
      %3308 = vmatprep.mubr.bf16.mxu0 0
      %3309 = vmatmul.mubr.bf16.gmra.mrb[0].mxu0 %v3121
      %v3310 = vpop.f32.mrb[0].mxu0
      %v3311 = vadd.f32 0.0, %v3310
      %v3312 = vpop.f32.mrb[0].mxu0
      %v3313 = vpop.f32.mrb[0].mxu0
      %v3314 = vadd.f32 0.0, %v3313
      %v3315 = vpop.f32.mrb[0].mxu0
      %3316 = vmatprep.mubr.bf16.mxu0 0
      %3317 = vmatmul.mubr.bf16.gmra.mrb[0].mxu0 %v3123
      %v3318 = vpop.f32.mrb[0].mxu0
      %v3319 = vadd.f32 0.0, %v3318
      %v3320 = vpop.f32.mrb[0].mxu0
      %v3321 = vpop.f32.mrb[0].mxu0
      %v3322 = vadd.f32 0.0, %v3321
      %v3323 = vpop.f32.mrb[0].mxu0
      %3324 = vmatprep.mubr.bf16.mxu0 0
      %3325 = vmatmul.mubr.bf16.gmra.mrb[0].mxu0 %v3125
      %v3326 = vpop.f32.mrb[0].mxu0
      %v3327 = vadd.f32 0.0, %v3326
      %v3328 = vpop.f32.mrb[0].mxu0
      %v3329 = vpop.f32.mrb[0].mxu0
      %v3330 = vadd.f32 0.0, %v3329
      %v3331 = vpop.f32.mrb[0].mxu0
      %3332 = vmatprep.mubr.bf16.mxu0 0
      %3333 = vmatmul.mubr.bf16.gmra.mrb[0].mxu0 %v3127
      %v3334 = vpop.f32.mrb[0].mxu0
      %v3335 = vadd.f32 0.0, %v3334
      %v3336 = vpop.f32.mrb[0].mxu0
      %v3337 = vpop.f32.mrb[0].mxu0
      %v3338 = vadd.f32 0.0, %v3337
      %v3339 = vpop.f32.mrb[0].mxu0
      %3340 = vmatprep.mubr.bf16.mxu0 0
      %3341 = vmatmul.mubr.bf16.gmra.mrb[0].mxu0 %v3129
      %v3342 = vpop.f32.mrb[0].mxu0
      %v3343 = vadd.f32 0.0, %v3342
      %v3344 = vpop.f32.mrb[0].mxu0
      %v3345 = vpop.f32.mrb[0].mxu0
      %v3346 = vadd.f32 0.0, %v3345
      %v3347 = vpop.f32.mrb[0].mxu0
      %3348 = vmatprep.mubr.bf16.mxu0 0
      %3349 = vmatmul.mubr.bf16.gmra.mrb[0].mxu0 %v3131
      %v3350 = vpop.f32.mrb[0].mxu0
      %v3351 = vadd.f32 0.0, %v3350
      %v3352 = vpop.f32.mrb[0].mxu0
      %v3353 = vpop.f32.mrb[0].mxu0
      %v3354 = vadd.f32 0.0, %v3353
      %v3355 = vpop.f32.mrb[0].mxu0
      %3356 = vmatprep.mubr.bf16.mxu0 0
      %3357 = vmatmul.mubr.bf16.gmra.mrb[0].mxu0 %v3133
      %v3358 = vpop.f32.mrb[0].mxu0
      %v3359 = vadd.f32 0.0, %v3358
      %v3360 = vpop.f32.mrb[0].mxu0
      %v3361 = vpop.f32.mrb[0].mxu0
      %v3362 = vadd.f32 0.0, %v3361
      %v3363 = vpop.f32.mrb[0].mxu0
      %3364 = vmatprep.mubr.bf16.mxu0 0
      %3365 = vmatmul.mubr.bf16.gmra.mrb[0].mxu0 %v3135
      %v3366 = vpop.f32.mrb[0].mxu0
      %v3367 = vadd.f32 0.0, %v3366
      %v3368 = vpop.f32.mrb[0].mxu0
      %v3369 = vpop.f32.mrb[0].mxu0
      %v3370 = vadd.f32 0.0, %v3369
      %v3371 = vpop.f32.mrb[0].mxu0
      %3372 = vmatprep.mubr.bf16.mxu0 0
      %3373 = vmatmul.mubr.bf16.gmra.mrb[0].mxu0 %v3137
      %v3374 = vpop.f32.mrb[0].mxu0
      %v3375 = vadd.f32 0.0, %v3374
      %v3376 = vpop.f32.mrb[0].mxu0
      %v3377 = vpop.f32.mrb[0].mxu0
      %v3378 = vadd.f32 0.0, %v3377
      %v3379 = vpop.f32.mrb[0].mxu0
      %3380 = vdwg.mxu0
      %v3381 = vadd.f32 %v3043, %v3239
      %v3382 = vadd.f32 %v3044, %v3242
      %v3383 = vadd.f32 %v3045, %v3247
      %v3384 = vadd.f32 %v3046, %v3250
      %v3385 = vadd.f32 %v3047, %v3255
      %v3386 = vadd.f32 %v3048, %v3258
      %v3387 = vadd.f32 %v3049, %v3263
      %v3388 = vadd.f32 %v3050, %v3266
      %v3389 = vadd.f32 %v3051, %v3271
      %v3390 = vadd.f32 %v3052, %v3274
      %v3391 = vadd.f32 %v3053, %v3279
      %v3392 = vadd.f32 %v3054, %v3282
      %v3393 = vadd.f32 %v3055, %v3287
      %v3394 = vadd.f32 %v3056, %v3290
      %v3395 = vadd.f32 %v3057, %v3295
      %v3396 = vadd.f32 %v3058, %v3298
      %v3397 = vadd.f32 %v3059, %v3303
      %v3398 = vadd.f32 %v3060, %v3306
      %v3399 = vadd.f32 %v3061, %v3311
      %v3400 = vadd.f32 %v3062, %v3314
      %v3401 = vadd.f32 %v3063, %v3319
      %v3402 = vadd.f32 %v3064, %v3322
      %v3403 = vadd.f32 %v3065, %v3327
      %v3404 = vadd.f32 %v3066, %v3330
      %v3405 = vadd.f32 %v3067, %v3335
      %v3406 = vadd.f32 %v3068, %v3338
      %v3407 = vadd.f32 %v3069, %v3343
      %v3408 = vadd.f32 %v3070, %v3346
      %v3409 = vadd.f32 %v3071, %v3351
      %v3410 = vadd.f32 %v3072, %v3354
      %v3411 = vadd.f32 %v3073, %v3359
      %v3412 = vadd.f32 %v3074, %v3362
      %v3413 = vadd.f32 %v3075, %v3367
      %v3414 = vadd.f32 %v3076, %v3370
      %v3415 = vadd.f32 %v3077, %v3375
      %v3416 = vadd.f32 %v3078, %v3378
      %v3417 = vld [vmem:[#allocation2 + $0x10] sm:$0xc]
      %v3418 = vld [vmem:[#allocation2 + $0x14] sm:$0xf]
      %v3419 = vld [vmem:[#allocation2 + $0x18] sm:$0xf]
      %v3420 = vld [vmem:[#allocation2 + $0x1c] sm:$0xf]
      %v3421 = vld [vmem:[#allocation2 + $0x20] sm:$0xf]
      %v3422 = vld [vmem:[#allocation2 + $0x24] sm:$0xf]
      %v3423 = vld [vmem:[#allocation2 + $0x28] sm:$0xf]
      %v3424 = vld [vmem:[#allocation2 + $0x2c] sm:$0xf]
      %v3425 = vld [vmem:[#allocation2 + $0x30] sm:$0xf]
      %v3426 = vld [vmem:[#allocation2 + $0x34] sm:$0xf]
      %v3427 = vld [vmem:[#allocation2 + $0x38] sm:$0xf]
      %v3428 = vld [vmem:[#allocation2 + $0x3c] sm:$0xf]
      %v3429 = vld [vmem:[#allocation2 + $0x40] sm:$0xf]
      %v3430 = vld [vmem:[#allocation2 + $0x44] sm:$0xf]
      %v3431 = vld [vmem:[#allocation2 + $0x48] sm:$0xf]
      %v3432 = vld [vmem:[#allocation2 + $0x4c] sm:$0xf]
      %v3433 = vld [vmem:[#allocation2 + $0x50] sm:$0xf]
      %v3434 = vld [vmem:[#allocation2 + $0x54] sm:$0xf]
      %v3435 = vld [vmem:[#allocation2 + $0x58] sm:$0xf]
      %v3436 = vld [vmem:[#allocation2 + $0x5c] sm:$0xf]
      %v3437 = vld [vmem:[#allocation2 + $0x60] sm:$0xf]
      %v3438 = vld [vmem:[#allocation2 + $0x64] sm:$0xf]
      %v3439 = vld [vmem:[#allocation2 + $0x68] sm:$0xf]
      %v3440 = vld [vmem:[#allocation2 + $0x6c] sm:$0xf]
      %v3441 = vld [vmem:[#allocation2 + $0x70] sm:$0xf]
      %v3442 = vld [vmem:[#allocation2 + $0x74] sm:$0xf]
      %v3443 = vld [vmem:[#allocation2 + $0x78] sm:$0xf]
      %v3444 = vld [vmem:[#allocation2 + $0x7c] sm:$0xf]
      %v3445 = vld [vmem:[#allocation2 + $0x80] sm:$0xf]
      %v3446 = vld [vmem:[#allocation2 + $0x84] sm:$0xf]
      %v3447 = vld [vmem:[#allocation2 + $0x88] sm:$0xf]
      %v3448 = vld [vmem:[#allocation2 + $0x8c] sm:$0xf]
      %v3449 = vld [vmem:[#allocation2 + $0x90] sm:$0xf]
      %v3450 = vld [vmem:[#allocation2 + $0x94] sm:$0xf]
      %v3451 = vld [vmem:[#allocation2 + $0x98] sm:$0xf]
      %v3452 = vld [vmem:[#allocation2 + $0x9c] sm:$0xf]
      %v3453 = vld [vmem:[#allocation2 + $0xa0] sm:$0x3]
      %s3454 = scalar_lea.vmem %s1, 384
      %v3455 = vld [vmem:[%s3454] sm:$0xf]
      %v3456 = vld [vmem:[%s3454 + $0x4] sm:$0xf]
      %v3457 = vld [vmem:[%s3454 + $0x8] sm:$0xf]
      %v3458 = vld [vmem:[%s3454 + $0xc] sm:$0xf]
      %v3459 = vld [vmem:[%s3454 + $0x10] sm:$0xf]
      %v3460 = vld [vmem:[%s3454 + $0x14] sm:$0xf]
      %v3461 = vld [vmem:[%s3454 + $0x18] sm:$0xf]
      %v3462 = vld [vmem:[%s3454 + $0x1c] sm:$0xf]
      %v3463 = vld [vmem:[%s3454 + $0x20] sm:$0xf]
      %v3464 = vld [vmem:[%s3454 + $0x24] sm:$0xf]
      %v3465 = vld [vmem:[%s3454 + $0x28] sm:$0xf]
      %v3466 = vld [vmem:[%s3454 + $0x2c] sm:$0xf]
      %v3467 = vld [vmem:[%s3454 + $0x30] sm:$0xf]
      %v3468 = vld [vmem:[%s3454 + $0x34] sm:$0xf]
      %v3469 = vld [vmem:[%s3454 + $0x38] sm:$0xf]
      %v3470 = vld [vmem:[%s3454 + $0x3c] sm:$0xf]
      %v3508 = vunpack.c.l.b16 %v3417
      %v3509 = vunpack.c.l.b16 %v3418
      %v3510 = vunpack.c.l.b16 %v3419
      %v3511 = vunpack.c.l.b16 %v3420
      %v3512 = vunpack.c.l.b16 %v3421
      %v3513 = vunpack.c.l.b16 %v3422
      %v3514 = vunpack.c.l.b16 %v3423
      %v3515 = vunpack.c.l.b16 %v3424
      %v3516 = vunpack.c.l.b16 %v3425
      %v3517 = vunpack.c.l.b16 %v3426
      %v3518 = vunpack.c.l.b16 %v3427
      %v3519 = vunpack.c.l.b16 %v3428
      %v3520 = vunpack.c.l.b16 %v3429
      %v3521 = vunpack.c.l.b16 %v3430
      %v3522 = vunpack.c.l.b16 %v3431
      %v3523 = vunpack.c.l.b16 %v3432
      %v3524 = vunpack.c.l.b16 %v3433
      %v3525 = vunpack.c.l.b16 %v3434
      %v3526 = vunpack.c.l.b16 %v3435
      %v3527 = vunpack.c.l.b16 %v3436
      %v3528 = vunpack.c.l.b16 %v3437
      %v3529 = vunpack.c.l.b16 %v3438
      %v3530 = vunpack.c.l.b16 %v3439
      %v3531 = vunpack.c.l.b16 %v3440
      %v3532 = vunpack.c.l.b16 %v3441
      %v3533 = vunpack.c.l.b16 %v3442
      %v3534 = vunpack.c.l.b16 %v3443
      %v3535 = vunpack.c.l.b16 %v3444
      %v3536 = vunpack.c.l.b16 %v3445
      %v3537 = vunpack.c.l.b16 %v3446
      %v3538 = vunpack.c.l.b16 %v3447
      %v3539 = vunpack.c.l.b16 %v3448
      %v3540 = vunpack.c.l.b16 %v3449
      %v3541 = vunpack.c.l.b16 %v3450
      %v3542 = vunpack.c.l.b16 %v3451
      %v3543 = vunpack.c.l.b16 %v3452
      %v3544 = vunpack.c.l.b16 %v3453
      %v3545 = vpack.c.b16 %v3509, %v3508
      %v3546 = vpack.c.b16 %v3511, %v3510
      %v3547 = vpack.c.b16 %v3513, %v3512
      %v3548 = vpack.c.b16 %v3515, %v3514
      %v3549 = vpack.c.b16 %v3517, %v3516
      %v3550 = vpack.c.b16 %v3519, %v3518
      %v3551 = vpack.c.b16 %v3521, %v3520
      %v3552 = vpack.c.b16 %v3523, %v3522
      %v3553 = vpack.c.b16 %v3525, %v3524
      %v3554 = vpack.c.b16 %v3527, %v3526
      %v3555 = vpack.c.b16 %v3529, %v3528
      %v3556 = vpack.c.b16 %v3531, %v3530
      %v3557 = vpack.c.b16 %v3533, %v3532
      %v3558 = vpack.c.b16 %v3535, %v3534
      %v3559 = vpack.c.b16 %v3537, %v3536
      %v3560 = vpack.c.b16 %v3539, %v3538
      %v3561 = vpack.c.b16 %v3541, %v3540
      %v3562 = vpack.c.b16 %v3543, %v3542
      %v3563 = vpack.c.b16 %v3544, %v3544
      %v3564 = vrot.slane %v3545, 2
      %v3565 = vrot.slane %v3546, 2
      %v3566 = vsel %vm3100, %v3564, %v3565
      %v3567 = vrot.slane %v3547, 2
      %v3568 = vsel %vm3100, %v3565, %v3567
      %v3569 = vrot.slane %v3548, 2
      %v3570 = vsel %vm3100, %v3567, %v3569
      %v3571 = vrot.slane %v3549, 2
      %v3572 = vsel %vm3100, %v3569, %v3571
      %v3573 = vrot.slane %v3550, 2
      %v3574 = vsel %vm3100, %v3571, %v3573
      %v3575 = vrot.slane %v3551, 2
      %v3576 = vsel %vm3100, %v3573, %v3575
      %v3577 = vrot.slane %v3552, 2
      %v3578 = vsel %vm3100, %v3575, %v3577
      %v3579 = vrot.slane %v3553, 2
      %v3580 = vsel %vm3100, %v3577, %v3579
      %v3581 = vrot.slane %v3554, 2
      %v3582 = vsel %vm3100, %v3579, %v3581
      %v3583 = vrot.slane %v3555, 2
      %v3584 = vsel %vm3100, %v3581, %v3583
      %v3585 = vrot.slane %v3556, 2
      %v3586 = vsel %vm3100, %v3583, %v3585
      %v3587 = vrot.slane %v3557, 2
      %v3588 = vsel %vm3100, %v3585, %v3587
      %v3589 = vrot.slane %v3558, 2
      %v3590 = vsel %vm3100, %v3587, %v3589
      %v3591 = vrot.slane %v3559, 2
      %v3592 = vsel %vm3100, %v3589, %v3591
      %v3593 = vrot.slane %v3560, 2
      %v3594 = vsel %vm3100, %v3591, %v3593
      %v3595 = vrot.slane %v3561, 2
      %v3596 = vsel %vm3100, %v3593, %v3595
      %v3597 = vrot.slane %v3562, 2
      %v3598 = vsel %vm3100, %v3595, %v3597
      %v3599 = vrot.slane %v3563, 2
      %v3600 = vsel %vm3100, %v3597, %v3599
      %v3635 = vunpack.c.l.b16 %v3455
      %v3636 = vunpack.c.l.b16 %v3456
      %v3637 = vunpack.c.l.b16 %v3457
      %v3638 = vunpack.c.l.b16 %v3458
      %v3639 = vunpack.c.l.b16 %v3459
      %v3640 = vunpack.c.l.b16 %v3460
      %v3641 = vunpack.c.l.b16 %v3461
      %v3642 = vunpack.c.l.b16 %v3462
      %v3643 = vunpack.c.l.b16 %v3463
      %v3644 = vunpack.c.l.b16 %v3464
      %v3645 = vunpack.c.l.b16 %v3465
      %v3646 = vunpack.c.l.b16 %v3466
      %v3647 = vunpack.c.l.b16 %v3467
      %v3648 = vunpack.c.l.b16 %v3468
      %v3649 = vunpack.c.l.b16 %v3469
      %v3650 = vunpack.c.l.b16 %v3470
      %v3651 = vpack.c.b16 %v3636, %v3635
      %v3652 = vpack.c.b16 %v3638, %v3637
      %v3653 = vpack.c.b16 %v3640, %v3639
      %v3654 = vpack.c.b16 %v3642, %v3641
      %v3655 = vpack.c.b16 %v3644, %v3643
      %v3656 = vpack.c.b16 %v3646, %v3645
      %v3657 = vpack.c.b16 %v3648, %v3647
      %v3658 = vpack.c.b16 %v3650, %v3649
      %3667 = vmatprep.subr.bf16.mxu0 0
      %3668 = vmatpush1.bf16.msra.mxu0 %v3651
      %3669 = vmatprep.subr.bf16.mxu0 0
      %3670 = vmatpush1.bf16.msra.mxu0 %v3652
      %3671 = vmatprep.subr.bf16.mxu0 0
      %3672 = vmatpush1.bf16.msra.mxu0 %v3653
      %3673 = vmatprep.subr.bf16.mxu0 0
      %3674 = vmatpush1.bf16.msra.mxu0 %v3654
      %3675 = vmatprep.subr.bf16.mxu0 0
      %3676 = vmatpush1.bf16.msra.mxu0 %v3655
      %3677 = vmatprep.subr.bf16.mxu0 0
      %3678 = vmatpush1.bf16.msra.mxu0 %v3656
      %3679 = vmatprep.subr.bf16.mxu0 0
      %3680 = vmatpush1.bf16.msra.mxu0 %v3657
      %3681 = vmatprep.subr.bf16.mxu0 0
      %3682 = vmatpush1.bf16.msra.mxu0 %v3658
      %3683 = vmatprep.subr.bf16.mxu0 0
      %3684 = vmatpush1.bf16.msra.mxu0 0
      %3685 = vmatprep.subr.bf16.mxu0 0
      %3686 = vmatpush1.bf16.msra.mxu0 0
      %3687 = vmatprep.subr.bf16.mxu0 0
      %3688 = vmatpush1.bf16.msra.mxu0 0
      %3689 = vmatprep.subr.bf16.mxu0 0
      %3690 = vmatpush1.bf16.msra.mxu0 0
      %3691 = vmatprep.subr.bf16.mxu0 0
      %3692 = vmatpush1.bf16.msra.mxu0 0
      %3693 = vmatprep.subr.bf16.mxu0 0
      %3694 = vmatpush1.bf16.msra.mxu0 0
      %3695 = vmatprep.subr.bf16.mxu0 0
      %3696 = vmatpush1.bf16.msra.mxu0 0
      %3697 = vmatprep.subr.bf16.mxu0 0
      %3698 = vmatpush1.bf16.msra.mxu0 0
      %3699 = vmatprep.mubr.bf16.mxu0 0
      %3700 = vmatmul.mubr.bf16.gmra.mrb[0].mxu0 %v3566
      %v3701 = vpop.f32.mrb[0].mxu0
      %v3702 = vadd.f32 0.0, %v3701
      %v3703 = vpop.f32.mrb[0].mxu0
      %v3704 = vpop.f32.mrb[0].mxu0
      %v3705 = vadd.f32 0.0, %v3704
      %v3706 = vpop.f32.mrb[0].mxu0
      %3707 = vmatprep.mubr.bf16.mxu0 0
      %3708 = vmatmul.mubr.bf16.gmra.mrb[0].mxu0 %v3568
      %v3709 = vpop.f32.mrb[0].mxu0
      %v3710 = vadd.f32 0.0, %v3709
      %v3711 = vpop.f32.mrb[0].mxu0
      %v3712 = vpop.f32.mrb[0].mxu0
      %v3713 = vadd.f32 0.0, %v3712
      %v3714 = vpop.f32.mrb[0].mxu0
      %3715 = vmatprep.mubr.bf16.mxu0 0
      %3716 = vmatmul.mubr.bf16.gmra.mrb[0].mxu0 %v3570
      %v3717 = vpop.f32.mrb[0].mxu0
      %v3718 = vadd.f32 0.0, %v3717
      %v3719 = vpop.f32.mrb[0].mxu0
      %v3720 = vpop.f32.mrb[0].mxu0
      %v3721 = vadd.f32 0.0, %v3720
      %v3722 = vpop.f32.mrb[0].mxu0
      %3723 = vmatprep.mubr.bf16.mxu0 0
      %3724 = vmatmul.mubr.bf16.gmra.mrb[0].mxu0 %v3572
      %v3725 = vpop.f32.mrb[0].mxu0
      %v3726 = vadd.f32 0.0, %v3725
      %v3727 = vpop.f32.mrb[0].mxu0
      %v3728 = vpop.f32.mrb[0].mxu0
      %v3729 = vadd.f32 0.0, %v3728
      %v3730 = vpop.f32.mrb[0].mxu0
      %3731 = vmatprep.mubr.bf16.mxu0 0
      %3732 = vmatmul.mubr.bf16.gmra.mrb[0].mxu0 %v3574
      %v3733 = vpop.f32.mrb[0].mxu0
      %v3734 = vadd.f32 0.0, %v3733
      %v3735 = vpop.f32.mrb[0].mxu0
      %v3736 = vpop.f32.mrb[0].mxu0
      %v3737 = vadd.f32 0.0, %v3736
      %v3738 = vpop.f32.mrb[0].mxu0
      %3739 = vmatprep.mubr.bf16.mxu0 0
      %3740 = vmatmul.mubr.bf16.gmra.mrb[0].mxu0 %v3576
      %v3741 = vpop.f32.mrb[0].mxu0
      %v3742 = vadd.f32 0.0, %v3741
      %v3743 = vpop.f32.mrb[0].mxu0
      %v3744 = vpop.f32.mrb[0].mxu0
      %v3745 = vadd.f32 0.0, %v3744
      %v3746 = vpop.f32.mrb[0].mxu0
      %3747 = vmatprep.mubr.bf16.mxu0 0
      %3748 = vmatmul.mubr.bf16.gmra.mrb[0].mxu0 %v3578
      %v3749 = vpop.f32.mrb[0].mxu0
      %v3750 = vadd.f32 0.0, %v3749
      %v3751 = vpop.f32.mrb[0].mxu0
      %v3752 = vpop.f32.mrb[0].mxu0
      %v3753 = vadd.f32 0.0, %v3752
      %v3754 = vpop.f32.mrb[0].mxu0
      %3755 = vmatprep.mubr.bf16.mxu0 0
      %3756 = vmatmul.mubr.bf16.gmra.mrb[0].mxu0 %v3580
      %v3757 = vpop.f32.mrb[0].mxu0
      %v3758 = vadd.f32 0.0, %v3757
      %v3759 = vpop.f32.mrb[0].mxu0
      %v3760 = vpop.f32.mrb[0].mxu0
      %v3761 = vadd.f32 0.0, %v3760
      %v3762 = vpop.f32.mrb[0].mxu0
      %3763 = vmatprep.mubr.bf16.mxu0 0
      %3764 = vmatmul.mubr.bf16.gmra.mrb[0].mxu0 %v3582
      %v3765 = vpop.f32.mrb[0].mxu0
      %v3766 = vadd.f32 0.0, %v3765
      %v3767 = vpop.f32.mrb[0].mxu0
      %v3768 = vpop.f32.mrb[0].mxu0
      %v3769 = vadd.f32 0.0, %v3768
      %v3770 = vpop.f32.mrb[0].mxu0
      %3771 = vmatprep.mubr.bf16.mxu0 0
      %3772 = vmatmul.mubr.bf16.gmra.mrb[0].mxu0 %v3584
      %v3773 = vpop.f32.mrb[0].mxu0
      %v3774 = vadd.f32 0.0, %v3773
      %v3775 = vpop.f32.mrb[0].mxu0
      %v3776 = vpop.f32.mrb[0].mxu0
      %v3777 = vadd.f32 0.0, %v3776
      %v3778 = vpop.f32.mrb[0].mxu0
      %3779 = vmatprep.mubr.bf16.mxu0 0
      %3780 = vmatmul.mubr.bf16.gmra.mrb[0].mxu0 %v3586
      %v3781 = vpop.f32.mrb[0].mxu0
      %v3782 = vadd.f32 0.0, %v3781
      %v3783 = vpop.f32.mrb[0].mxu0
      %v3784 = vpop.f32.mrb[0].mxu0
      %v3785 = vadd.f32 0.0, %v3784
      %v3786 = vpop.f32.mrb[0].mxu0
      %3787 = vmatprep.mubr.bf16.mxu0 0
      %3788 = vmatmul.mubr.bf16.gmra.mrb[0].mxu0 %v3588
      %v3789 = vpop.f32.mrb[0].mxu0
      %v3790 = vadd.f32 0.0, %v3789
      %v3791 = vpop.f32.mrb[0].mxu0
      %v3792 = vpop.f32.mrb[0].mxu0
      %v3793 = vadd.f32 0.0, %v3792
      %v3794 = vpop.f32.mrb[0].mxu0
      %3795 = vmatprep.mubr.bf16.mxu0 0
      %3796 = vmatmul.mubr.bf16.gmra.mrb[0].mxu0 %v3590
      %v3797 = vpop.f32.mrb[0].mxu0
      %v3798 = vadd.f32 0.0, %v3797
      %v3799 = vpop.f32.mrb[0].mxu0
      %v3800 = vpop.f32.mrb[0].mxu0
      %v3801 = vadd.f32 0.0, %v3800
      %v3802 = vpop.f32.mrb[0].mxu0
      %3803 = vmatprep.mubr.bf16.mxu0 0
      %3804 = vmatmul.mubr.bf16.gmra.mrb[0].mxu0 %v3592
      %v3805 = vpop.f32.mrb[0].mxu0
      %v3806 = vadd.f32 0.0, %v3805
      %v3807 = vpop.f32.mrb[0].mxu0
      %v3808 = vpop.f32.mrb[0].mxu0
      %v3809 = vadd.f32 0.0, %v3808
      %v3810 = vpop.f32.mrb[0].mxu0
      %3811 = vmatprep.mubr.bf16.mxu0 0
      %3812 = vmatmul.mubr.bf16.gmra.mrb[0].mxu0 %v3594
      %v3813 = vpop.f32.mrb[0].mxu0
      %v3814 = vadd.f32 0.0, %v3813
      %v3815 = vpop.f32.mrb[0].mxu0
      %v3816 = vpop.f32.mrb[0].mxu0
      %v3817 = vadd.f32 0.0, %v3816
      %v3818 = vpop.f32.mrb[0].mxu0
      %3819 = vmatprep.mubr.bf16.mxu0 0
      %3820 = vmatmul.mubr.bf16.gmra.mrb[0].mxu0 %v3596
      %v3821 = vpop.f32.mrb[0].mxu0
      %v3822 = vadd.f32 0.0, %v3821
      %v3823 = vpop.f32.mrb[0].mxu0
      %v3824 = vpop.f32.mrb[0].mxu0
      %v3825 = vadd.f32 0.0, %v3824
      %v3826 = vpop.f32.mrb[0].mxu0
      %3827 = vmatprep.mubr.bf16.mxu0 0
      %3828 = vmatmul.mubr.bf16.gmra.mrb[0].mxu0 %v3598
      %v3829 = vpop.f32.mrb[0].mxu0
      %v3830 = vadd.f32 0.0, %v3829
      %v3831 = vpop.f32.mrb[0].mxu0
      %v3832 = vpop.f32.mrb[0].mxu0
      %v3833 = vadd.f32 0.0, %v3832
      %v3834 = vpop.f32.mrb[0].mxu0
      %3835 = vmatprep.mubr.bf16.mxu0 0
      %3836 = vmatmul.mubr.bf16.gmra.mrb[0].mxu0 %v3600
      %v3837 = vpop.f32.mrb[0].mxu0
      %v3838 = vadd.f32 0.0, %v3837
      %v3839 = vpop.f32.mrb[0].mxu0
      %v3840 = vpop.f32.mrb[0].mxu0
      %v3841 = vadd.f32 0.0, %v3840
      %v3842 = vpop.f32.mrb[0].mxu0
      %3843 = vdwg.mxu0
      %v3844 = vadd.f32 %v3381, %v3702
      %v3845 = vadd.f32 %v3382, %v3705
      %v3846 = vadd.f32 %v3383, %v3710
      %v3847 = vadd.f32 %v3384, %v3713
      %v3848 = vadd.f32 %v3385, %v3718
      %v3849 = vadd.f32 %v3386, %v3721
      %v3850 = vadd.f32 %v3387, %v3726
      %v3851 = vadd.f32 %v3388, %v3729
      %v3852 = vadd.f32 %v3389, %v3734
      %v3853 = vadd.f32 %v3390, %v3737
      %v3854 = vadd.f32 %v3391, %v3742
      %v3855 = vadd.f32 %v3392, %v3745
      %v3856 = vadd.f32 %v3393, %v3750
      %v3857 = vadd.f32 %v3394, %v3753
      %v3858 = vadd.f32 %v3395, %v3758
      %v3859 = vadd.f32 %v3396, %v3761
      %v3860 = vadd.f32 %v3397, %v3766
      %v3861 = vadd.f32 %v3398, %v3769
      %v3862 = vadd.f32 %v3399, %v3774
      %v3863 = vadd.f32 %v3400, %v3777
      %v3864 = vadd.f32 %v3401, %v3782
      %v3865 = vadd.f32 %v3402, %v3785
      %v3866 = vadd.f32 %v3403, %v3790
      %v3867 = vadd.f32 %v3404, %v3793
      %v3868 = vadd.f32 %v3405, %v3798
      %v3869 = vadd.f32 %v3406, %v3801
      %v3870 = vadd.f32 %v3407, %v3806
      %v3871 = vadd.f32 %v3408, %v3809
      %v3872 = vadd.f32 %v3409, %v3814
      %v3873 = vadd.f32 %v3410, %v3817
      %v3874 = vadd.f32 %v3411, %v3822
      %v3875 = vadd.f32 %v3412, %v3825
      %v3876 = vadd.f32 %v3413, %v3830
      %v3877 = vadd.f32 %v3414, %v3833
      %v3878 = vadd.f32 %v3415, %v3838
      %v3879 = vadd.f32 %v3416, %v3841
      %v3880 = vld [vmem:[#allocation2 + $0xa0] sm:$0x7]
      %s3881 = scalar_lea.vmem %s1, 448
      %v3882 = vld [vmem:[%s3881] sm:$0xf]
      %v3883 = vld [vmem:[%s3881 + $0x4] sm:$0xf]
      %v3884 = vld [vmem:[%s3881 + $0x8] sm:$0xf]
      %v3885 = vld [vmem:[%s3881 + $0xc] sm:$0xf]
      %v3886 = vld [vmem:[%s3881 + $0x10] sm:$0xf]
      %v3887 = vld [vmem:[%s3881 + $0x14] sm:$0xf]
      %v3888 = vld [vmem:[%s3881 + $0x18] sm:$0xf]
      %v3889 = vld [vmem:[%s3881 + $0x1c] sm:$0xf]
      %v3890 = vld [vmem:[%s3881 + $0x20] sm:$0xf]
      %v3891 = vld [vmem:[%s3881 + $0x24] sm:$0xf]
      %v3892 = vld [vmem:[%s3881 + $0x28] sm:$0xf]
      %v3893 = vld [vmem:[%s3881 + $0x2c] sm:$0xf]
      %v3894 = vld [vmem:[%s3881 + $0x30] sm:$0xf]
      %v3895 = vld [vmem:[%s3881 + $0x34] sm:$0xf]
      %v3896 = vld [vmem:[%s3881 + $0x38] sm:$0xf]
      %v3897 = vld [vmem:[%s3881 + $0x3c] sm:$0xf]
      %v3899 = vunpack.c.l.b16 %v3880
      %v3900 = vpack.c.b16 %v3899, %v3899
      %vm3901 = vsmask.f32 5376
      %v3903 = vshrl.u32 %v3545, 16
      %v3905 = vrot.slane %v3903, 2
      %v3906 = vshll.u32 %v3545, 16
      %v3908 = vrot.slane %v3906, 3
      %v3909 = vor.u32 %v3905, %v3908
      %v3911 = vshrl.u32 %v3546, 16
      %v3913 = vrot.slane %v3911, 2
      %v3914 = vshll.u32 %v3546, 16
      %v3916 = vrot.slane %v3914, 3
      %v3917 = vor.u32 %v3913, %v3916
      %v3918 = vsel %vm3901, %v3909, %v3917
      %v3920 = vshrl.u32 %v3547, 16
      %v3922 = vrot.slane %v3920, 2
      %v3923 = vshll.u32 %v3547, 16
      %v3925 = vrot.slane %v3923, 3
      %v3926 = vor.u32 %v3922, %v3925
      %v3927 = vsel %vm3901, %v3917, %v3926
      %v3929 = vshrl.u32 %v3548, 16
      %v3931 = vrot.slane %v3929, 2
      %v3932 = vshll.u32 %v3548, 16
      %v3934 = vrot.slane %v3932, 3
      %v3935 = vor.u32 %v3931, %v3934
      %v3936 = vsel %vm3901, %v3926, %v3935
      %v3938 = vshrl.u32 %v3549, 16
      %v3940 = vrot.slane %v3938, 2
      %v3941 = vshll.u32 %v3549, 16
      %v3943 = vrot.slane %v3941, 3
      %v3944 = vor.u32 %v3940, %v3943
      %v3945 = vsel %vm3901, %v3935, %v3944
      %v3947 = vshrl.u32 %v3550, 16
      %v3949 = vrot.slane %v3947, 2
      %v3950 = vshll.u32 %v3550, 16
      %v3952 = vrot.slane %v3950, 3
      %v3953 = vor.u32 %v3949, %v3952
      %v3954 = vsel %vm3901, %v3944, %v3953
      %v3956 = vshrl.u32 %v3551, 16
      %v3958 = vrot.slane %v3956, 2
      %v3959 = vshll.u32 %v3551, 16
      %v3961 = vrot.slane %v3959, 3
      %v3962 = vor.u32 %v3958, %v3961
      %v3963 = vsel %vm3901, %v3953, %v3962
      %v3965 = vshrl.u32 %v3552, 16
      %v3967 = vrot.slane %v3965, 2
      %v3968 = vshll.u32 %v3552, 16
      %v3970 = vrot.slane %v3968, 3
      %v3971 = vor.u32 %v3967, %v3970
      %v3972 = vsel %vm3901, %v3962, %v3971
      %v3974 = vshrl.u32 %v3553, 16
      %v3976 = vrot.slane %v3974, 2
      %v3977 = vshll.u32 %v3553, 16
      %v3979 = vrot.slane %v3977, 3
      %v3980 = vor.u32 %v3976, %v3979
      %v3981 = vsel %vm3901, %v3971, %v3980
      %v3983 = vshrl.u32 %v3554, 16
      %v3985 = vrot.slane %v3983, 2
      %v3986 = vshll.u32 %v3554, 16
      %v3988 = vrot.slane %v3986, 3
      %v3989 = vor.u32 %v3985, %v3988
      %v3990 = vsel %vm3901, %v3980, %v3989
      %v3992 = vshrl.u32 %v3555, 16
      %v3994 = vrot.slane %v3992, 2
      %v3995 = vshll.u32 %v3555, 16
      %v3997 = vrot.slane %v3995, 3
      %v3998 = vor.u32 %v3994, %v3997
      %v3999 = vsel %vm3901, %v3989, %v3998
      %v4001 = vshrl.u32 %v3556, 16
      %v4003 = vrot.slane %v4001, 2
      %v4004 = vshll.u32 %v3556, 16
      %v4006 = vrot.slane %v4004, 3
      %v4007 = vor.u32 %v4003, %v4006
      %v4008 = vsel %vm3901, %v3998, %v4007
      %v4010 = vshrl.u32 %v3557, 16
      %v4012 = vrot.slane %v4010, 2
      %v4013 = vshll.u32 %v3557, 16
      %v4015 = vrot.slane %v4013, 3
      %v4016 = vor.u32 %v4012, %v4015
      %v4017 = vsel %vm3901, %v4007, %v4016
      %v4019 = vshrl.u32 %v3558, 16
      %v4021 = vrot.slane %v4019, 2
      %v4022 = vshll.u32 %v3558, 16
      %v4024 = vrot.slane %v4022, 3
      %v4025 = vor.u32 %v4021, %v4024
      %v4026 = vsel %vm3901, %v4016, %v4025
      %v4028 = vshrl.u32 %v3559, 16
      %v4030 = vrot.slane %v4028, 2
      %v4031 = vshll.u32 %v3559, 16
      %v4033 = vrot.slane %v4031, 3
      %v4034 = vor.u32 %v4030, %v4033
      %v4035 = vsel %vm3901, %v4025, %v4034
      %v4037 = vshrl.u32 %v3560, 16
      %v4039 = vrot.slane %v4037, 2
      %v4040 = vshll.u32 %v3560, 16
      %v4042 = vrot.slane %v4040, 3
      %v4043 = vor.u32 %v4039, %v4042
      %v4044 = vsel %vm3901, %v4034, %v4043
      %v4046 = vshrl.u32 %v3561, 16
      %v4048 = vrot.slane %v4046, 2
      %v4049 = vshll.u32 %v3561, 16
      %v4051 = vrot.slane %v4049, 3
      %v4052 = vor.u32 %v4048, %v4051
      %v4053 = vsel %vm3901, %v4043, %v4052
      %v4055 = vshrl.u32 %v3562, 16
      %v4057 = vrot.slane %v4055, 2
      %v4058 = vshll.u32 %v3562, 16
      %v4060 = vrot.slane %v4058, 3
      %v4061 = vor.u32 %v4057, %v4060
      %v4062 = vsel %vm3901, %v4052, %v4061
      %v4064 = vshrl.u32 %v3900, 16
      %v4066 = vrot.slane %v4064, 2
      %v4067 = vshll.u32 %v3900, 16
      %v4069 = vrot.slane %v4067, 3
      %v4070 = vor.u32 %v4066, %v4069
      %v4071 = vsel %vm3901, %v4061, %v4070
      %v4106 = vunpack.c.l.b16 %v3882
      %v4107 = vunpack.c.l.b16 %v3883
      %v4108 = vunpack.c.l.b16 %v3884
      %v4109 = vunpack.c.l.b16 %v3885
      %v4110 = vunpack.c.l.b16 %v3886
      %v4111 = vunpack.c.l.b16 %v3887
      %v4112 = vunpack.c.l.b16 %v3888
      %v4113 = vunpack.c.l.b16 %v3889
      %v4114 = vunpack.c.l.b16 %v3890
      %v4115 = vunpack.c.l.b16 %v3891
      %v4116 = vunpack.c.l.b16 %v3892
      %v4117 = vunpack.c.l.b16 %v3893
      %v4118 = vunpack.c.l.b16 %v3894
      %v4119 = vunpack.c.l.b16 %v3895
      %v4120 = vunpack.c.l.b16 %v3896
      %v4121 = vunpack.c.l.b16 %v3897
      %v4122 = vpack.c.b16 %v4107, %v4106
      %v4123 = vpack.c.b16 %v4109, %v4108
      %v4124 = vpack.c.b16 %v4111, %v4110
      %v4125 = vpack.c.b16 %v4113, %v4112
      %v4126 = vpack.c.b16 %v4115, %v4114
      %v4127 = vpack.c.b16 %v4117, %v4116
      %v4128 = vpack.c.b16 %v4119, %v4118
      %v4129 = vpack.c.b16 %v4121, %v4120
      %4138 = vmatprep.subr.bf16.mxu0 0
      %4139 = vmatpush1.bf16.msra.mxu0 %v4122
      %4140 = vmatprep.subr.bf16.mxu0 0
      %4141 = vmatpush1.bf16.msra.mxu0 %v4123
      %4142 = vmatprep.subr.bf16.mxu0 0
      %4143 = vmatpush1.bf16.msra.mxu0 %v4124
      %4144 = vmatprep.subr.bf16.mxu0 0
      %4145 = vmatpush1.bf16.msra.mxu0 %v4125
      %4146 = vmatprep.subr.bf16.mxu0 0
      %4147 = vmatpush1.bf16.msra.mxu0 %v4126
      %4148 = vmatprep.subr.bf16.mxu0 0
      %4149 = vmatpush1.bf16.msra.mxu0 %v4127
      %4150 = vmatprep.subr.bf16.mxu0 0
      %4151 = vmatpush1.bf16.msra.mxu0 %v4128
      %4152 = vmatprep.subr.bf16.mxu0 0
      %4153 = vmatpush1.bf16.msra.mxu0 %v4129
      %4154 = vmatprep.subr.bf16.mxu0 0
      %4155 = vmatpush1.bf16.msra.mxu0 0
      %4156 = vmatprep.subr.bf16.mxu0 0
      %4157 = vmatpush1.bf16.msra.mxu0 0
      %4158 = vmatprep.subr.bf16.mxu0 0
      %4159 = vmatpush1.bf16.msra.mxu0 0
      %4160 = vmatprep.subr.bf16.mxu0 0
      %4161 = vmatpush1.bf16.msra.mxu0 0
      %4162 = vmatprep.subr.bf16.mxu0 0
      %4163 = vmatpush1.bf16.msra.mxu0 0
      %4164 = vmatprep.subr.bf16.mxu0 0
      %4165 = vmatpush1.bf16.msra.mxu0 0
      %4166 = vmatprep.subr.bf16.mxu0 0
      %4167 = vmatpush1.bf16.msra.mxu0 0
      %4168 = vmatprep.subr.bf16.mxu0 0
      %4169 = vmatpush1.bf16.msra.mxu0 0
      %4170 = vmatprep.mubr.bf16.mxu0 0
      %4171 = vmatmul.mubr.bf16.gmra.mrb[0].mxu0 %v3918
      %v4172 = vpop.f32.mrb[0].mxu0
      %v4173 = vadd.f32 0.0, %v4172
      %v4174 = vpop.f32.mrb[0].mxu0
      %v4175 = vpop.f32.mrb[0].mxu0
      %v4176 = vadd.f32 0.0, %v4175
      %v4177 = vpop.f32.mrb[0].mxu0
      %4178 = vmatprep.mubr.bf16.mxu0 0
      %4179 = vmatmul.mubr.bf16.gmra.mrb[0].mxu0 %v3927
      %v4180 = vpop.f32.mrb[0].mxu0
      %v4181 = vadd.f32 0.0, %v4180
      %v4182 = vpop.f32.mrb[0].mxu0
      %v4183 = vpop.f32.mrb[0].mxu0
      %v4184 = vadd.f32 0.0, %v4183
      %v4185 = vpop.f32.mrb[0].mxu0
      %4186 = vmatprep.mubr.bf16.mxu0 0
      %4187 = vmatmul.mubr.bf16.gmra.mrb[0].mxu0 %v3936
      %v4188 = vpop.f32.mrb[0].mxu0
      %v4189 = vadd.f32 0.0, %v4188
      %v4190 = vpop.f32.mrb[0].mxu0
      %v4191 = vpop.f32.mrb[0].mxu0
      %v4192 = vadd.f32 0.0, %v4191
      %v4193 = vpop.f32.mrb[0].mxu0
      %4194 = vmatprep.mubr.bf16.mxu0 0
      %4195 = vmatmul.mubr.bf16.gmra.mrb[0].mxu0 %v3945
      %v4196 = vpop.f32.mrb[0].mxu0
      %v4197 = vadd.f32 0.0, %v4196
      %v4198 = vpop.f32.mrb[0].mxu0
      %v4199 = vpop.f32.mrb[0].mxu0
      %v4200 = vadd.f32 0.0, %v4199
      %v4201 = vpop.f32.mrb[0].mxu0
      %4202 = vmatprep.mubr.bf16.mxu0 0
      %4203 = vmatmul.mubr.bf16.gmra.mrb[0].mxu0 %v3954
      %v4204 = vpop.f32.mrb[0].mxu0
      %v4205 = vadd.f32 0.0, %v4204
      %v4206 = vpop.f32.mrb[0].mxu0
      %v4207 = vpop.f32.mrb[0].mxu0
      %v4208 = vadd.f32 0.0, %v4207
      %v4209 = vpop.f32.mrb[0].mxu0
      %4210 = vmatprep.mubr.bf16.mxu0 0
      %4211 = vmatmul.mubr.bf16.gmra.mrb[0].mxu0 %v3963
      %v4212 = vpop.f32.mrb[0].mxu0
      %v4213 = vadd.f32 0.0, %v4212
      %v4214 = vpop.f32.mrb[0].mxu0
      %v4215 = vpop.f32.mrb[0].mxu0
      %v4216 = vadd.f32 0.0, %v4215
      %v4217 = vpop.f32.mrb[0].mxu0
      %4218 = vmatprep.mubr.bf16.mxu0 0
      %4219 = vmatmul.mubr.bf16.gmra.mrb[0].mxu0 %v3972
      %v4220 = vpop.f32.mrb[0].mxu0
      %v4221 = vadd.f32 0.0, %v4220
      %v4222 = vpop.f32.mrb[0].mxu0
      %v4223 = vpop.f32.mrb[0].mxu0
      %v4224 = vadd.f32 0.0, %v4223
      %v4225 = vpop.f32.mrb[0].mxu0
      %4226 = vmatprep.mubr.bf16.mxu0 0
      %4227 = vmatmul.mubr.bf16.gmra.mrb[0].mxu0 %v3981
      %v4228 = vpop.f32.mrb[0].mxu0
      %v4229 = vadd.f32 0.0, %v4228
      %v4230 = vpop.f32.mrb[0].mxu0
      %v4231 = vpop.f32.mrb[0].mxu0
      %v4232 = vadd.f32 0.0, %v4231
      %v4233 = vpop.f32.mrb[0].mxu0
      %4234 = vmatprep.mubr.bf16.mxu0 0
      %4235 = vmatmul.mubr.bf16.gmra.mrb[0].mxu0 %v3990
      %v4236 = vpop.f32.mrb[0].mxu0
      %v4237 = vadd.f32 0.0, %v4236
      %v4238 = vpop.f32.mrb[0].mxu0
      %v4239 = vpop.f32.mrb[0].mxu0
      %v4240 = vadd.f32 0.0, %v4239
      %v4241 = vpop.f32.mrb[0].mxu0
      %4242 = vmatprep.mubr.bf16.mxu0 0
      %4243 = vmatmul.mubr.bf16.gmra.mrb[0].mxu0 %v3999
      %v4244 = vpop.f32.mrb[0].mxu0
      %v4245 = vadd.f32 0.0, %v4244
      %v4246 = vpop.f32.mrb[0].mxu0
      %v4247 = vpop.f32.mrb[0].mxu0
      %v4248 = vadd.f32 0.0, %v4247
      %v4249 = vpop.f32.mrb[0].mxu0
      %4250 = vmatprep.mubr.bf16.mxu0 0
      %4251 = vmatmul.mubr.bf16.gmra.mrb[0].mxu0 %v4008
      %v4252 = vpop.f32.mrb[0].mxu0
      %v4253 = vadd.f32 0.0, %v4252
      %v4254 = vpop.f32.mrb[0].mxu0
      %v4255 = vpop.f32.mrb[0].mxu0
      %v4256 = vadd.f32 0.0, %v4255
      %v4257 = vpop.f32.mrb[0].mxu0
      %4258 = vmatprep.mubr.bf16.mxu0 0
      %4259 = vmatmul.mubr.bf16.gmra.mrb[0].mxu0 %v4017
      %v4260 = vpop.f32.mrb[0].mxu0
      %v4261 = vadd.f32 0.0, %v4260
      %v4262 = vpop.f32.mrb[0].mxu0
      %v4263 = vpop.f32.mrb[0].mxu0
      %v4264 = vadd.f32 0.0, %v4263
      %v4265 = vpop.f32.mrb[0].mxu0
      %4266 = vmatprep.mubr.bf16.mxu0 0
      %4267 = vmatmul.mubr.bf16.gmra.mrb[0].mxu0 %v4026
      %v4268 = vpop.f32.mrb[0].mxu0
      %v4269 = vadd.f32 0.0, %v4268
      %v4270 = vpop.f32.mrb[0].mxu0
      %v4271 = vpop.f32.mrb[0].mxu0
      %v4272 = vadd.f32 0.0, %v4271
      %v4273 = vpop.f32.mrb[0].mxu0
      %4274 = vmatprep.mubr.bf16.mxu0 0
      %4275 = vmatmul.mubr.bf16.gmra.mrb[0].mxu0 %v4035
      %v4276 = vpop.f32.mrb[0].mxu0
      %v4277 = vadd.f32 0.0, %v4276
      %v4278 = vpop.f32.mrb[0].mxu0
      %v4279 = vpop.f32.mrb[0].mxu0
      %v4280 = vadd.f32 0.0, %v4279
      %v4281 = vpop.f32.mrb[0].mxu0
      %4282 = vmatprep.mubr.bf16.mxu0 0
      %4283 = vmatmul.mubr.bf16.gmra.mrb[0].mxu0 %v4044
      %v4284 = vpop.f32.mrb[0].mxu0
      %v4285 = vadd.f32 0.0, %v4284
      %v4286 = vpop.f32.mrb[0].mxu0
      %v4287 = vpop.f32.mrb[0].mxu0
      %v4288 = vadd.f32 0.0, %v4287
      %v4289 = vpop.f32.mrb[0].mxu0
      %4290 = vmatprep.mubr.bf16.mxu0 0
      %4291 = vmatmul.mubr.bf16.gmra.mrb[0].mxu0 %v4053
      %v4292 = vpop.f32.mrb[0].mxu0
      %v4293 = vadd.f32 0.0, %v4292
      %v4294 = vpop.f32.mrb[0].mxu0
      %v4295 = vpop.f32.mrb[0].mxu0
      %v4296 = vadd.f32 0.0, %v4295
      %v4297 = vpop.f32.mrb[0].mxu0
      %4298 = vmatprep.mubr.bf16.mxu0 0
      %4299 = vmatmul.mubr.bf16.gmra.mrb[0].mxu0 %v4062
      %v4300 = vpop.f32.mrb[0].mxu0
      %v4301 = vadd.f32 0.0, %v4300
      %v4302 = vpop.f32.mrb[0].mxu0
      %v4303 = vpop.f32.mrb[0].mxu0
      %v4304 = vadd.f32 0.0, %v4303
      %v4305 = vpop.f32.mrb[0].mxu0
      %4306 = vmatprep.mubr.bf16.mxu0 0
      %4307 = vmatmul.mubr.bf16.gmra.mrb[0].mxu0 %v4071
      %v4308 = vpop.f32.mrb[0].mxu0
      %v4309 = vadd.f32 0.0, %v4308
      %v4310 = vpop.f32.mrb[0].mxu0
      %v4311 = vpop.f32.mrb[0].mxu0
      %v4312 = vadd.f32 0.0, %v4311
      %v4313 = vpop.f32.mrb[0].mxu0
      %4314 = vdwg.mxu0
      %v4315 = vadd.f32 %v3844, %v4173
      %v4316 = vadd.f32 %v3845, %v4176
      %v4317 = vadd.f32 %v3846, %v4181
      %v4318 = vadd.f32 %v3847, %v4184
      %v4319 = vadd.f32 %v3848, %v4189
      %v4320 = vadd.f32 %v3849, %v4192
      %v4321 = vadd.f32 %v3850, %v4197
      %v4322 = vadd.f32 %v3851, %v4200
      %v4323 = vadd.f32 %v3852, %v4205
      %v4324 = vadd.f32 %v3853, %v4208
      %v4325 = vadd.f32 %v3854, %v4213
      %v4326 = vadd.f32 %v3855, %v4216
      %v4327 = vadd.f32 %v3856, %v4221
      %v4328 = vadd.f32 %v3857, %v4224
      %v4329 = vadd.f32 %v3858, %v4229
      %v4330 = vadd.f32 %v3859, %v4232
      %v4331 = vadd.f32 %v3860, %v4237
      %v4332 = vadd.f32 %v3861, %v4240
      %v4333 = vadd.f32 %v3862, %v4245
      %v4334 = vadd.f32 %v3863, %v4248
      %v4335 = vadd.f32 %v3864, %v4253
      %v4336 = vadd.f32 %v3865, %v4256
      %v4337 = vadd.f32 %v3866, %v4261
      %v4338 = vadd.f32 %v3867, %v4264
      %v4339 = vadd.f32 %v3868, %v4269
      %v4340 = vadd.f32 %v3869, %v4272
      %v4341 = vadd.f32 %v3870, %v4277
      %v4342 = vadd.f32 %v3871, %v4280
      %v4343 = vadd.f32 %v3872, %v4285
      %v4344 = vadd.f32 %v3873, %v4288
      %v4345 = vadd.f32 %v3874, %v4293
      %v4346 = vadd.f32 %v3875, %v4296
      %v4347 = vadd.f32 %v3876, %v4301
      %v4348 = vadd.f32 %v3877, %v4304
      %v4349 = vadd.f32 %v3878, %v4309
      %v4350 = vadd.f32 %v3879, %v4312
      %v4351 = vld [vmem:[#allocation2 + $0x10] sm:$0x8]
      %s4352 = scalar_lea.vmem %s1, 512
      %v4353 = vld [vmem:[%s4352] sm:$0xf]
      %v4354 = vld [vmem:[%s4352 + $0x4] sm:$0xf]
      %v4355 = vld [vmem:[%s4352 + $0x8] sm:$0xf]
      %v4356 = vld [vmem:[%s4352 + $0xc] sm:$0xf]
      %v4357 = vld [vmem:[%s4352 + $0x10] sm:$0xf]
      %v4358 = vld [vmem:[%s4352 + $0x14] sm:$0xf]
      %v4359 = vld [vmem:[%s4352 + $0x18] sm:$0xf]
      %v4360 = vld [vmem:[%s4352 + $0x1c] sm:$0xf]
      %v4361 = vld [vmem:[%s4352 + $0x20] sm:$0xf]
      %v4362 = vld [vmem:[%s4352 + $0x24] sm:$0xf]
      %v4363 = vld [vmem:[%s4352 + $0x28] sm:$0xf]
      %v4364 = vld [vmem:[%s4352 + $0x2c] sm:$0xf]
      %v4365 = vld [vmem:[%s4352 + $0x30] sm:$0xf]
      %v4366 = vld [vmem:[%s4352 + $0x34] sm:$0xf]
      %v4367 = vld [vmem:[%s4352 + $0x38] sm:$0xf]
      %v4368 = vld [vmem:[%s4352 + $0x3c] sm:$0xf]
      %v4370 = vunpack.c.l.b16 %v4351
      %v4371 = vpack.c.b16 %v3509, %v4370
      %vm4372 = vcmask 1044480
      %v4373 = vrot.slane %v4371, 3
      %v4374 = vrot.slane %v3546, 3
      %v4375 = vsel %vm4372, %v4373, %v4374
      %v4376 = vrot.slane %v3547, 3
      %v4377 = vsel %vm4372, %v4374, %v4376
      %v4378 = vrot.slane %v3548, 3
      %v4379 = vsel %vm4372, %v4376, %v4378
      %v4380 = vrot.slane %v3549, 3
      %v4381 = vsel %vm4372, %v4378, %v4380
      %v4382 = vrot.slane %v3550, 3
      %v4383 = vsel %vm4372, %v4380, %v4382
      %v4384 = vrot.slane %v3551, 3
      %v4385 = vsel %vm4372, %v4382, %v4384
      %v4386 = vrot.slane %v3552, 3
      %v4387 = vsel %vm4372, %v4384, %v4386
      %v4388 = vrot.slane %v3553, 3
      %v4389 = vsel %vm4372, %v4386, %v4388
      %v4390 = vrot.slane %v3554, 3
      %v4391 = vsel %vm4372, %v4388, %v4390
      %v4392 = vrot.slane %v3555, 3
      %v4393 = vsel %vm4372, %v4390, %v4392
      %v4394 = vrot.slane %v3556, 3
      %v4395 = vsel %vm4372, %v4392, %v4394
      %v4396 = vrot.slane %v3557, 3
      %v4397 = vsel %vm4372, %v4394, %v4396
      %v4398 = vrot.slane %v3558, 3
      %v4399 = vsel %vm4372, %v4396, %v4398
      %v4400 = vrot.slane %v3559, 3
      %v4401 = vsel %vm4372, %v4398, %v4400
      %v4402 = vrot.slane %v3560, 3
      %v4403 = vsel %vm4372, %v4400, %v4402
      %v4404 = vrot.slane %v3561, 3
      %v4405 = vsel %vm4372, %v4402, %v4404
      %v4406 = vrot.slane %v3562, 3
      %v4407 = vsel %vm4372, %v4404, %v4406
      %v4408 = vrot.slane %v3900, 3
      %v4409 = vsel %vm4372, %v4406, %v4408
      %v4444 = vunpack.c.l.b16 %v4353
      %v4445 = vunpack.c.l.b16 %v4354
      %v4446 = vunpack.c.l.b16 %v4355
      %v4447 = vunpack.c.l.b16 %v4356
      %v4448 = vunpack.c.l.b16 %v4357
      %v4449 = vunpack.c.l.b16 %v4358
      %v4450 = vunpack.c.l.b16 %v4359
      %v4451 = vunpack.c.l.b16 %v4360
      %v4452 = vunpack.c.l.b16 %v4361
      %v4453 = vunpack.c.l.b16 %v4362
      %v4454 = vunpack.c.l.b16 %v4363
      %v4455 = vunpack.c.l.b16 %v4364
      %v4456 = vunpack.c.l.b16 %v4365
      %v4457 = vunpack.c.l.b16 %v4366
      %v4458 = vunpack.c.l.b16 %v4367
      %v4459 = vunpack.c.l.b16 %v4368
      %v4460 = vpack.c.b16 %v4445, %v4444
      %v4461 = vpack.c.b16 %v4447, %v4446
      %v4462 = vpack.c.b16 %v4449, %v4448
      %v4463 = vpack.c.b16 %v4451, %v4450
      %v4464 = vpack.c.b16 %v4453, %v4452
      %v4465 = vpack.c.b16 %v4455, %v4454
      %v4466 = vpack.c.b16 %v4457, %v4456
      %v4467 = vpack.c.b16 %v4459, %v4458
      %4476 = vmatprep.subr.bf16.mxu0 0
      %4477 = vmatpush1.bf16.msra.mxu0 %v4460
      %4478 = vmatprep.subr.bf16.mxu0 0
      %4479 = vmatpush1.bf16.msra.mxu0 %v4461
      %4480 = vmatprep.subr.bf16.mxu0 0
      %4481 = vmatpush1.bf16.msra.mxu0 %v4462
      %4482 = vmatprep.subr.bf16.mxu0 0
      %4483 = vmatpush1.bf16.msra.mxu0 %v4463
      %4484 = vmatprep.subr.bf16.mxu0 0
      %4485 = vmatpush1.bf16.msra.mxu0 %v4464
      %4486 = vmatprep.subr.bf16.mxu0 0
      %4487 = vmatpush1.bf16.msra.mxu0 %v4465
      %4488 = vmatprep.subr.bf16.mxu0 0
      %4489 = vmatpush1.bf16.msra.mxu0 %v4466
      %4490 = vmatprep.subr.bf16.mxu0 0
      %4491 = vmatpush1.bf16.msra.mxu0 %v4467
      %4492 = vmatprep.subr.bf16.mxu0 0
      %4493 = vmatpush1.bf16.msra.mxu0 0
      %4494 = vmatprep.subr.bf16.mxu0 0
      %4495 = vmatpush1.bf16.msra.mxu0 0
      %4496 = vmatprep.subr.bf16.mxu0 0
      %4497 = vmatpush1.bf16.msra.mxu0 0
      %4498 = vmatprep.subr.bf16.mxu0 0
      %4499 = vmatpush1.bf16.msra.mxu0 0
      %4500 = vmatprep.subr.bf16.mxu0 0
      %4501 = vmatpush1.bf16.msra.mxu0 0
      %4502 = vmatprep.subr.bf16.mxu0 0
      %4503 = vmatpush1.bf16.msra.mxu0 0
      %4504 = vmatprep.subr.bf16.mxu0 0
      %4505 = vmatpush1.bf16.msra.mxu0 0
      %4506 = vmatprep.subr.bf16.mxu0 0
      %4507 = vmatpush1.bf16.msra.mxu0 0
      %4508 = vmatprep.mubr.bf16.mxu0 0
      %4509 = vmatmul.mubr.bf16.gmra.mrb[0].mxu0 %v4375
      %v4510 = vpop.f32.mrb[0].mxu0
      %v4511 = vadd.f32 0.0, %v4510
      %v4512 = vpop.f32.mrb[0].mxu0
      %v4513 = vpop.f32.mrb[0].mxu0
      %v4514 = vadd.f32 0.0, %v4513
      %v4515 = vpop.f32.mrb[0].mxu0
      %4516 = vmatprep.mubr.bf16.mxu0 0
      %4517 = vmatmul.mubr.bf16.gmra.mrb[0].mxu0 %v4377
      %v4518 = vpop.f32.mrb[0].mxu0
      %v4519 = vadd.f32 0.0, %v4518
      %v4520 = vpop.f32.mrb[0].mxu0
      %v4521 = vpop.f32.mrb[0].mxu0
      %v4522 = vadd.f32 0.0, %v4521
      %v4523 = vpop.f32.mrb[0].mxu0
      %4524 = vmatprep.mubr.bf16.mxu0 0
      %4525 = vmatmul.mubr.bf16.gmra.mrb[0].mxu0 %v4379
      %v4526 = vpop.f32.mrb[0].mxu0
      %v4527 = vadd.f32 0.0, %v4526
      %v4528 = vpop.f32.mrb[0].mxu0
      %v4529 = vpop.f32.mrb[0].mxu0
      %v4530 = vadd.f32 0.0, %v4529
      %v4531 = vpop.f32.mrb[0].mxu0
      %4532 = vmatprep.mubr.bf16.mxu0 0
      %4533 = vmatmul.mubr.bf16.gmra.mrb[0].mxu0 %v4381
      %v4534 = vpop.f32.mrb[0].mxu0
      %v4535 = vadd.f32 0.0, %v4534
      %v4536 = vpop.f32.mrb[0].mxu0
      %v4537 = vpop.f32.mrb[0].mxu0
      %v4538 = vadd.f32 0.0, %v4537
      %v4539 = vpop.f32.mrb[0].mxu0
      %4540 = vmatprep.mubr.bf16.mxu0 0
      %4541 = vmatmul.mubr.bf16.gmra.mrb[0].mxu0 %v4383
      %v4542 = vpop.f32.mrb[0].mxu0
      %v4543 = vadd.f32 0.0, %v4542
      %v4544 = vpop.f32.mrb[0].mxu0
      %v4545 = vpop.f32.mrb[0].mxu0
      %v4546 = vadd.f32 0.0, %v4545
      %v4547 = vpop.f32.mrb[0].mxu0
      %4548 = vmatprep.mubr.bf16.mxu0 0
      %4549 = vmatmul.mubr.bf16.gmra.mrb[0].mxu0 %v4385
      %v4550 = vpop.f32.mrb[0].mxu0
      %v4551 = vadd.f32 0.0, %v4550
      %v4552 = vpop.f32.mrb[0].mxu0
      %v4553 = vpop.f32.mrb[0].mxu0
      %v4554 = vadd.f32 0.0, %v4553
      %v4555 = vpop.f32.mrb[0].mxu0
      %4556 = vmatprep.mubr.bf16.mxu0 0
      %4557 = vmatmul.mubr.bf16.gmra.mrb[0].mxu0 %v4387
      %v4558 = vpop.f32.mrb[0].mxu0
      %v4559 = vadd.f32 0.0, %v4558
      %v4560 = vpop.f32.mrb[0].mxu0
      %v4561 = vpop.f32.mrb[0].mxu0
      %v4562 = vadd.f32 0.0, %v4561
      %v4563 = vpop.f32.mrb[0].mxu0
      %4564 = vmatprep.mubr.bf16.mxu0 0
      %4565 = vmatmul.mubr.bf16.gmra.mrb[0].mxu0 %v4389
      %v4566 = vpop.f32.mrb[0].mxu0
      %v4567 = vadd.f32 0.0, %v4566
      %v4568 = vpop.f32.mrb[0].mxu0
      %v4569 = vpop.f32.mrb[0].mxu0
      %v4570 = vadd.f32 0.0, %v4569
      %v4571 = vpop.f32.mrb[0].mxu0
      %4572 = vmatprep.mubr.bf16.mxu0 0
      %4573 = vmatmul.mubr.bf16.gmra.mrb[0].mxu0 %v4391
      %v4574 = vpop.f32.mrb[0].mxu0
      %v4575 = vadd.f32 0.0, %v4574
      %v4576 = vpop.f32.mrb[0].mxu0
      %v4577 = vpop.f32.mrb[0].mxu0
      %v4578 = vadd.f32 0.0, %v4577
      %v4579 = vpop.f32.mrb[0].mxu0
      %4580 = vmatprep.mubr.bf16.mxu0 0
      %4581 = vmatmul.mubr.bf16.gmra.mrb[0].mxu0 %v4393
      %v4582 = vpop.f32.mrb[0].mxu0
      %v4583 = vadd.f32 0.0, %v4582
      %v4584 = vpop.f32.mrb[0].mxu0
      %v4585 = vpop.f32.mrb[0].mxu0
      %v4586 = vadd.f32 0.0, %v4585
      %v4587 = vpop.f32.mrb[0].mxu0
      %4588 = vmatprep.mubr.bf16.mxu0 0
      %4589 = vmatmul.mubr.bf16.gmra.mrb[0].mxu0 %v4395
      %v4590 = vpop.f32.mrb[0].mxu0
      %v4591 = vadd.f32 0.0, %v4590
      %v4592 = vpop.f32.mrb[0].mxu0
      %v4593 = vpop.f32.mrb[0].mxu0
      %v4594 = vadd.f32 0.0, %v4593
      %v4595 = vpop.f32.mrb[0].mxu0
      %4596 = vmatprep.mubr.bf16.mxu0 0
      %4597 = vmatmul.mubr.bf16.gmra.mrb[0].mxu0 %v4397
      %v4598 = vpop.f32.mrb[0].mxu0
      %v4599 = vadd.f32 0.0, %v4598
      %v4600 = vpop.f32.mrb[0].mxu0
      %v4601 = vpop.f32.mrb[0].mxu0
      %v4602 = vadd.f32 0.0, %v4601
      %v4603 = vpop.f32.mrb[0].mxu0
      %4604 = vmatprep.mubr.bf16.mxu0 0
      %4605 = vmatmul.mubr.bf16.gmra.mrb[0].mxu0 %v4399
      %v4606 = vpop.f32.mrb[0].mxu0
      %v4607 = vadd.f32 0.0, %v4606
      %v4608 = vpop.f32.mrb[0].mxu0
      %v4609 = vpop.f32.mrb[0].mxu0
      %v4610 = vadd.f32 0.0, %v4609
      %v4611 = vpop.f32.mrb[0].mxu0
      %4612 = vmatprep.mubr.bf16.mxu0 0
      %4613 = vmatmul.mubr.bf16.gmra.mrb[0].mxu0 %v4401
      %v4614 = vpop.f32.mrb[0].mxu0
      %v4615 = vadd.f32 0.0, %v4614
      %v4616 = vpop.f32.mrb[0].mxu0
      %v4617 = vpop.f32.mrb[0].mxu0
      %v4618 = vadd.f32 0.0, %v4617
      %v4619 = vpop.f32.mrb[0].mxu0
      %4620 = vmatprep.mubr.bf16.mxu0 0
      %4621 = vmatmul.mubr.bf16.gmra.mrb[0].mxu0 %v4403
      %v4622 = vpop.f32.mrb[0].mxu0
      %v4623 = vadd.f32 0.0, %v4622
      %v4624 = vpop.f32.mrb[0].mxu0
      %v4625 = vpop.f32.mrb[0].mxu0
      %v4626 = vadd.f32 0.0, %v4625
      %v4627 = vpop.f32.mrb[0].mxu0
      %4628 = vmatprep.mubr.bf16.mxu0 0
      %4629 = vmatmul.mubr.bf16.gmra.mrb[0].mxu0 %v4405
      %v4630 = vpop.f32.mrb[0].mxu0
      %v4631 = vadd.f32 0.0, %v4630
      %v4632 = vpop.f32.mrb[0].mxu0
      %v4633 = vpop.f32.mrb[0].mxu0
      %v4634 = vadd.f32 0.0, %v4633
      %v4635 = vpop.f32.mrb[0].mxu0
      %4636 = vmatprep.mubr.bf16.mxu0 0
      %4637 = vmatmul.mubr.bf16.gmra.mrb[0].mxu0 %v4407
      %v4638 = vpop.f32.mrb[0].mxu0
      %v4639 = vadd.f32 0.0, %v4638
      %v4640 = vpop.f32.mrb[0].mxu0
      %v4641 = vpop.f32.mrb[0].mxu0
      %v4642 = vadd.f32 0.0, %v4641
      %v4643 = vpop.f32.mrb[0].mxu0
      %4644 = vmatprep.mubr.bf16.mxu0 0
      %4645 = vmatmul.mubr.bf16.gmra.mrb[0].mxu0 %v4409
      %v4646 = vpop.f32.mrb[0].mxu0
      %v4647 = vadd.f32 0.0, %v4646
      %v4648 = vpop.f32.mrb[0].mxu0
      %v4649 = vpop.f32.mrb[0].mxu0
      %v4650 = vadd.f32 0.0, %v4649
      %v4651 = vpop.f32.mrb[0].mxu0
      %4652 = vdwg.mxu0
      %v4653 = vadd.f32 %v4315, %v4511
      %v4654 = vadd.f32 %v4316, %v4514
      %v4655 = vadd.f32 %v4317, %v4519
      %v4656 = vadd.f32 %v4318, %v4522
      %v4657 = vadd.f32 %v4319, %v4527
      %v4658 = vadd.f32 %v4320, %v4530
      %v4659 = vadd.f32 %v4321, %v4535
      %v4660 = vadd.f32 %v4322, %v4538
      %v4661 = vadd.f32 %v4323, %v4543
      %v4662 = vadd.f32 %v4324, %v4546
      %v4663 = vadd.f32 %v4325, %v4551
      %v4664 = vadd.f32 %v4326, %v4554
      %v4665 = vadd.f32 %v4327, %v4559
      %v4666 = vadd.f32 %v4328, %v4562
      %v4667 = vadd.f32 %v4329, %v4567
      %v4668 = vadd.f32 %v4330, %v4570
      %v4669 = vadd.f32 %v4331, %v4575
      %v4670 = vadd.f32 %v4332, %v4578
      %v4671 = vadd.f32 %v4333, %v4583
      %v4672 = vadd.f32 %v4334, %v4586
      %v4673 = vadd.f32 %v4335, %v4591
      %v4674 = vadd.f32 %v4336, %v4594
      %v4675 = vadd.f32 %v4337, %v4599
      %v4676 = vadd.f32 %v4338, %v4602
      %v4677 = vadd.f32 %v4339, %v4607
      %v4678 = vadd.f32 %v4340, %v4610
      %v4679 = vadd.f32 %v4341, %v4615
      %v4680 = vadd.f32 %v4342, %v4618
      %v4681 = vadd.f32 %v4343, %v4623
      %v4682 = vadd.f32 %v4344, %v4626
      %v4683 = vadd.f32 %v4345, %v4631
      %v4684 = vadd.f32 %v4346, %v4634
      %v4685 = vadd.f32 %v4347, %v4639
      %v4686 = vadd.f32 %v4348, %v4642
      %v4687 = vadd.f32 %v4349, %v4647
      %v4688 = vadd.f32 %v4350, %v4650
      %v4689 = vld [vmem:[%s4 + $0x13] sm:$0xff]
      %v4690 = vld [vmem:[%s4 + $0x1b] sm:$0xff]
      %v4691 = vld [vmem:[%s4 + $0x23] sm:$0xff]
      %v4692 = vld [vmem:[%s4 + $0x2b] sm:$0xff]
      %v4693 = vld [vmem:[%s4 + $0x33] sm:$0xff]
      %v4694 = vld [vmem:[%s4 + $0x3b] sm:$0xff]
      %v4695 = vld [vmem:[%s4 + $0x43] sm:$0xff]
      %v4696 = vld [vmem:[%s4 + $0x4b] sm:$0xff]
      %v4697 = vld [vmem:[%s4 + $0x53] sm:$0xff]
      %v4698 = vld [vmem:[%s4 + $0x5b] sm:$0xff]
      %v4699 = vld [vmem:[%s4 + $0x63] sm:$0xff]
      %v4700 = vld [vmem:[%s4 + $0x6b] sm:$0xff]
      %v4701 = vld [vmem:[%s4 + $0x73] sm:$0xff]
      %v4702 = vld [vmem:[%s4 + $0x7b] sm:$0xff]
      %v4703 = vld [vmem:[%s4 + $0x83] sm:$0xff]
      %v4704 = vld [vmem:[%s4 + $0x8b] sm:$0xff]
      %v4705 = vld [vmem:[%s4 + $0x93] sm:$0xff]
      %v4706 = vld [vmem:[%s4 + $0x9b] sm:$0xff]
      %v4707 = vld [vmem:[%s4 + $0xa3] sm:$0xff]
      %v4708 = vld [vmem:[%s4 + $0xab] sm:$0xff]
      %v4709 = vld [vmem:[%s4 + $0xb3] sm:$0xff]
      %v4710 = vld [vmem:[%s4 + $0xbb] sm:$0xff]
      %v4711 = vld [vmem:[%s4 + $0xc3] sm:$0xff]
      %v4712 = vld [vmem:[%s4 + $0xcb] sm:$0xff]
      %v4713 = vld [vmem:[%s4 + $0xd3] sm:$0xff]
      %v4714 = vld [vmem:[%s4 + $0xdb] sm:$0xff]
      %v4715 = vld [vmem:[%s4 + $0xe3] sm:$0xff]
      %v4716 = vld [vmem:[%s4 + $0xeb] sm:$0xff]
      %v4717 = vld [vmem:[%s4 + $0xf3] sm:$0xff]
      %v4718 = vld [vmem:[%s4 + $0xfb] sm:$0xff]
      %v4719 = vld [vmem:[%s4 + $0x103] sm:$0xff]
      %v4720 = vld [vmem:[%s4 + $0x10b] sm:$0xff]
      %v4721 = vld [vmem:[%s4 + $0x113] sm:$0xff]
      %v4722 = vld [vmem:[%s4 + $0x11b] sm:$0xff]
      %v4723 = vld [vmem:[%s4 + $0x123] sm:$0xff]
      %v4724 = vld [vmem:[%s4 + $0x12b] sm:$0xff]
      %4726 = vset.pattern.permute.xlu0 0
      %4727 = vperm.xlu0 %4726, %v4689
      %v4728 = vpop.permute.xlu0 %4727
      %4731 = vset.pattern.permute.xlu0 0
      %4732 = vperm.xlu0 %4731, %v4690
      %v4733 = vpop.permute.xlu0 %4732
      %4736 = vset.pattern.permute.xlu0 0
      %4737 = vperm.xlu0 %4736, %v4691
      %v4738 = vpop.permute.xlu0 %4737
      %4741 = vset.pattern.permute.xlu0 0
      %4742 = vperm.xlu0 %4741, %v4692
      %v4743 = vpop.permute.xlu0 %4742
      %4746 = vset.pattern.permute.xlu0 0
      %4747 = vperm.xlu0 %4746, %v4693
      %v4748 = vpop.permute.xlu0 %4747
      %4751 = vset.pattern.permute.xlu0 0
      %4752 = vperm.xlu0 %4751, %v4694
      %v4753 = vpop.permute.xlu0 %4752
      %4756 = vset.pattern.permute.xlu0 0
      %4757 = vperm.xlu0 %4756, %v4695
      %v4758 = vpop.permute.xlu0 %4757
      %4761 = vset.pattern.permute.xlu0 0
      %4762 = vperm.xlu0 %4761, %v4696
      %v4763 = vpop.permute.xlu0 %4762
      %4766 = vset.pattern.permute.xlu0 0
      %4767 = vperm.xlu0 %4766, %v4697
      %v4768 = vpop.permute.xlu0 %4767
      %4771 = vset.pattern.permute.xlu0 0
      %4772 = vperm.xlu0 %4771, %v4698
      %v4773 = vpop.permute.xlu0 %4772
      %4776 = vset.pattern.permute.xlu0 0
      %4777 = vperm.xlu0 %4776, %v4699
      %v4778 = vpop.permute.xlu0 %4777
      %4781 = vset.pattern.permute.xlu0 0
      %4782 = vperm.xlu0 %4781, %v4700
      %v4783 = vpop.permute.xlu0 %4782
      %4786 = vset.pattern.permute.xlu0 0
      %4787 = vperm.xlu0 %4786, %v4701
      %v4788 = vpop.permute.xlu0 %4787
      %4791 = vset.pattern.permute.xlu0 0
      %4792 = vperm.xlu0 %4791, %v4702
      %v4793 = vpop.permute.xlu0 %4792
      %4796 = vset.pattern.permute.xlu0 0
      %4797 = vperm.xlu0 %4796, %v4703
      %v4798 = vpop.permute.xlu0 %4797
      %4801 = vset.pattern.permute.xlu0 0
      %4802 = vperm.xlu0 %4801, %v4704
      %v4803 = vpop.permute.xlu0 %4802
      %4806 = vset.pattern.permute.xlu0 0
      %4807 = vperm.xlu0 %4806, %v4705
      %v4808 = vpop.permute.xlu0 %4807
      %4811 = vset.pattern.permute.xlu0 0
      %4812 = vperm.xlu0 %4811, %v4706
      %v4813 = vpop.permute.xlu0 %4812
      %4816 = vset.pattern.permute.xlu0 0
      %4817 = vperm.xlu0 %4816, %v4707
      %v4818 = vpop.permute.xlu0 %4817
      %4821 = vset.pattern.permute.xlu0 0
      %4822 = vperm.xlu0 %4821, %v4708
      %v4823 = vpop.permute.xlu0 %4822
      %4826 = vset.pattern.permute.xlu0 0
      %4827 = vperm.xlu0 %4826, %v4709
      %v4828 = vpop.permute.xlu0 %4827
      %4831 = vset.pattern.permute.xlu0 0
      %4832 = vperm.xlu0 %4831, %v4710
      %v4833 = vpop.permute.xlu0 %4832
      %4836 = vset.pattern.permute.xlu0 0
      %4837 = vperm.xlu0 %4836, %v4711
      %v4838 = vpop.permute.xlu0 %4837
      %4841 = vset.pattern.permute.xlu0 0
      %4842 = vperm.xlu0 %4841, %v4712
      %v4843 = vpop.permute.xlu0 %4842
      %4846 = vset.pattern.permute.xlu0 0
      %4847 = vperm.xlu0 %4846, %v4713
      %v4848 = vpop.permute.xlu0 %4847
      %4851 = vset.pattern.permute.xlu0 0
      %4852 = vperm.xlu0 %4851, %v4714
      %v4853 = vpop.permute.xlu0 %4852
      %4856 = vset.pattern.permute.xlu0 0
      %4857 = vperm.xlu0 %4856, %v4715
      %v4858 = vpop.permute.xlu0 %4857
      %4861 = vset.pattern.permute.xlu0 0
      %4862 = vperm.xlu0 %4861, %v4716
      %v4863 = vpop.permute.xlu0 %4862
      %4866 = vset.pattern.permute.xlu0 0
      %4867 = vperm.xlu0 %4866, %v4717
      %v4868 = vpop.permute.xlu0 %4867
      %4871 = vset.pattern.permute.xlu0 0
      %4872 = vperm.xlu0 %4871, %v4718
      %v4873 = vpop.permute.xlu0 %4872
      %4876 = vset.pattern.permute.xlu0 0
      %4877 = vperm.xlu0 %4876, %v4719
      %v4878 = vpop.permute.xlu0 %4877
      %4881 = vset.pattern.permute.xlu0 0
      %4882 = vperm.xlu0 %4881, %v4720
      %v4883 = vpop.permute.xlu0 %4882
      %4886 = vset.pattern.permute.xlu0 0
      %4887 = vperm.xlu0 %4886, %v4721
      %v4888 = vpop.permute.xlu0 %4887
      %4891 = vset.pattern.permute.xlu0 0
      %4892 = vperm.xlu0 %4891, %v4722
      %v4893 = vpop.permute.xlu0 %4892
      %4896 = vset.pattern.permute.xlu0 0
      %4897 = vperm.xlu0 %4896, %v4723
      %v4898 = vpop.permute.xlu0 %4897
      %4901 = vset.pattern.permute.xlu0 0
      %4902 = vperm.xlu0 %4901, %v4724
      %v4903 = vpop.permute.xlu0 %4902
      %v4905 = vmul.f32 %v4653, %v4728
      %v4906 = vmul.f32 %v4654, %v4733
      %v4907 = vmul.f32 %v4655, %v4738
      %v4908 = vmul.f32 %v4656, %v4743
      %v4909 = vmul.f32 %v4657, %v4748
      %v4910 = vmul.f32 %v4658, %v4753
      %v4911 = vmul.f32 %v4659, %v4758
      %v4912 = vmul.f32 %v4660, %v4763
      %v4913 = vmul.f32 %v4661, %v4768
      %v4914 = vmul.f32 %v4662, %v4773
      %v4915 = vmul.f32 %v4663, %v4778
      %v4916 = vmul.f32 %v4664, %v4783
      %v4917 = vmul.f32 %v4665, %v4788
      %v4918 = vmul.f32 %v4666, %v4793
      %v4919 = vmul.f32 %v4667, %v4798
      %v4920 = vmul.f32 %v4668, %v4803
      %v4921 = vmul.f32 %v4669, %v4808
      %v4922 = vmul.f32 %v4670, %v4813
      %v4923 = vmul.f32 %v4671, %v4818
      %v4924 = vmul.f32 %v4672, %v4823
      %v4925 = vmul.f32 %v4673, %v4828
      %v4926 = vmul.f32 %v4674, %v4833
      %v4927 = vmul.f32 %v4675, %v4838
      %v4928 = vmul.f32 %v4676, %v4843
      %v4929 = vmul.f32 %v4677, %v4848
      %v4930 = vmul.f32 %v4678, %v4853
      %v4931 = vmul.f32 %v4679, %v4858
      %v4932 = vmul.f32 %v4680, %v4863
      %v4933 = vmul.f32 %v4681, %v4868
      %v4934 = vmul.f32 %v4682, %v4873
      %v4935 = vmul.f32 %v4683, %v4878
      %v4936 = vmul.f32 %v4684, %v4883
      %v4937 = vmul.f32 %v4685, %v4888
      %v4938 = vmul.f32 %v4686, %v4893
      %v4939 = vmul.f32 %v4687, %v4898
      %v4940 = vmul.f32 %v4688, %v4903
      %v4941 = vpack.c.bf16 %v4906, %v4905
      %v4942 = vpack.c.bf16 %v4908, %v4907
      %v4943 = vpack.c.bf16 %v4910, %v4909
      %v4944 = vpack.c.bf16 %v4912, %v4911
      %v4945 = vpack.c.bf16 %v4914, %v4913
      %v4946 = vpack.c.bf16 %v4916, %v4915
      %v4947 = vpack.c.bf16 %v4918, %v4917
      %v4948 = vpack.c.bf16 %v4920, %v4919
      %v4949 = vpack.c.bf16 %v4922, %v4921
      %v4950 = vpack.c.bf16 %v4924, %v4923
      %v4951 = vpack.c.bf16 %v4926, %v4925
      %v4952 = vpack.c.bf16 %v4928, %v4927
      %v4953 = vpack.c.bf16 %v4930, %v4929
      %v4954 = vpack.c.bf16 %v4932, %v4931
      %v4955 = vpack.c.bf16 %v4934, %v4933
      %v4956 = vpack.c.bf16 %v4936, %v4935
      %v4957 = vpack.c.bf16 %v4938, %v4937
      %v4958 = vpack.c.bf16 %v4940, %v4939
      %v4977 = vunpack.c.l.b16 %v4941
      %v4978 = vunpack.c.h.b16 %v4941
      %v4979 = vunpack.c.l.b16 %v4942
      %v4980 = vunpack.c.h.b16 %v4942
      %v4981 = vunpack.c.l.b16 %v4943
      %v4982 = vunpack.c.h.b16 %v4943
      %v4983 = vunpack.c.l.b16 %v4944
      %v4984 = vunpack.c.h.b16 %v4944
      %v4985 = vunpack.c.l.b16 %v4945
      %v4986 = vunpack.c.h.b16 %v4945
      %v4987 = vunpack.c.l.b16 %v4946
      %v4988 = vunpack.c.h.b16 %v4946
      %v4989 = vunpack.c.l.b16 %v4947
      %v4990 = vunpack.c.h.b16 %v4947
      %v4991 = vunpack.c.l.b16 %v4948
      %v4992 = vunpack.c.h.b16 %v4948
      %v4993 = vunpack.c.l.b16 %v4949
      %v4994 = vunpack.c.h.b16 %v4949
      %v4995 = vunpack.c.l.b16 %v4950
      %v4996 = vunpack.c.h.b16 %v4950
      %v4997 = vunpack.c.l.b16 %v4951
      %v4998 = vunpack.c.h.b16 %v4951
      %v4999 = vunpack.c.l.b16 %v4952
      %v5000 = vunpack.c.h.b16 %v4952
      %v5001 = vunpack.c.l.b16 %v4953
      %v5002 = vunpack.c.h.b16 %v4953
      %v5003 = vunpack.c.l.b16 %v4954
      %v5004 = vunpack.c.h.b16 %v4954
      %v5005 = vunpack.c.l.b16 %v4955
      %v5006 = vunpack.c.h.b16 %v4955
      %v5007 = vunpack.c.l.b16 %v4956
      %v5008 = vunpack.c.h.b16 %v4956
      %v5009 = vunpack.c.l.b16 %v4957
      %v5010 = vunpack.c.h.b16 %v4957
      %v5011 = vunpack.c.l.b16 %v4958
      %v5012 = vunpack.c.h.b16 %v4958
      %v5013 = vpack.c.b16 %v4977, %v4977
      %v5014 = vpack.c.b16 %v4978, %v4978
      %v5015 = vpack.c.b16 %v4979, %v4979
      %v5016 = vpack.c.b16 %v4980, %v4980
      %v5017 = vpack.c.b16 %v4981, %v4981
      %v5018 = vpack.c.b16 %v4982, %v4982
      %v5019 = vpack.c.b16 %v4983, %v4983
      %v5020 = vpack.c.b16 %v4984, %v4984
      %v5021 = vpack.c.b16 %v4985, %v4985
      %v5022 = vpack.c.b16 %v4986, %v4986
      %v5023 = vpack.c.b16 %v4987, %v4987
      %v5024 = vpack.c.b16 %v4988, %v4988
      %v5025 = vpack.c.b16 %v4989, %v4989
      %v5026 = vpack.c.b16 %v4990, %v4990
      %v5027 = vpack.c.b16 %v4991, %v4991
      %v5028 = vpack.c.b16 %v4992, %v4992
      %v5029 = vpack.c.b16 %v4993, %v4993
      %v5030 = vpack.c.b16 %v4994, %v4994
      %v5031 = vpack.c.b16 %v4995, %v4995
      %v5032 = vpack.c.b16 %v4996, %v4996
      %v5033 = vpack.c.b16 %v4997, %v4997
      %v5034 = vpack.c.b16 %v4998, %v4998
      %v5035 = vpack.c.b16 %v4999, %v4999
      %v5036 = vpack.c.b16 %v5000, %v5000
      %v5037 = vpack.c.b16 %v5001, %v5001
      %v5038 = vpack.c.b16 %v5002, %v5002
      %v5039 = vpack.c.b16 %v5003, %v5003
      %v5040 = vpack.c.b16 %v5004, %v5004
      %v5041 = vpack.c.b16 %v5005, %v5005
      %v5042 = vpack.c.b16 %v5006, %v5006
      %v5043 = vpack.c.b16 %v5007, %v5007
      %v5044 = vpack.c.b16 %v5008, %v5008
      %v5045 = vpack.c.b16 %v5009, %v5009
      %v5046 = vpack.c.b16 %v5010, %v5010
      %v5047 = vpack.c.b16 %v5011, %v5011
      %v5048 = vpack.c.b16 %v5012, %v5012
      %vm5049 = vsmask.f32 1280
      %vm5050 = vsmask.f32 5392
      %vm5051 = vmor %vm5049, %vm5050
      %v5053 = vshrl.u32 %v5013, 16
      %v5055 = vrot.slane %v5053, 6
      %v5056 = vshll.u32 %v5013, 16
      %v5058 = vrot.slane %v5056, 7
      %v5059 = vor.u32 %v5055, %v5058
      %v5060 = vrot.slane %v5059, 4
      %v5062 = vshrl.u32 %v5014, 16
      %v5064 = vrot.slane %v5062, 6
      %v5065 = vshll.u32 %v5014, 16
      %v5067 = vrot.slane %v5065, 7
      %v5068 = vor.u32 %v5064, %v5067
      %v5069 = vsel %vm5051, %v5060, %v5068
      %v5070 = vrot.slane %v5068, 4
      %v5072 = vshrl.u32 %v5015, 16
      %v5074 = vrot.slane %v5072, 6
      %v5075 = vshll.u32 %v5015, 16
      %v5077 = vrot.slane %v5075, 7
      %v5078 = vor.u32 %v5074, %v5077
      %v5079 = vsel %vm5051, %v5070, %v5078
      %v5080 = vrot.slane %v5078, 4
      %v5082 = vshrl.u32 %v5016, 16
      %v5084 = vrot.slane %v5082, 6
      %v5085 = vshll.u32 %v5016, 16
      %v5087 = vrot.slane %v5085, 7
      %v5088 = vor.u32 %v5084, %v5087
      %v5089 = vsel %vm5051, %v5080, %v5088
      %v5090 = vrot.slane %v5088, 4
      %v5092 = vshrl.u32 %v5017, 16
      %v5094 = vrot.slane %v5092, 6
      %v5095 = vshll.u32 %v5017, 16
      %v5097 = vrot.slane %v5095, 7
      %v5098 = vor.u32 %v5094, %v5097
      %v5099 = vsel %vm5051, %v5090, %v5098
      %v5100 = vrot.slane %v5098, 4
      %v5102 = vshrl.u32 %v5018, 16
      %v5104 = vrot.slane %v5102, 6
      %v5105 = vshll.u32 %v5018, 16
      %v5107 = vrot.slane %v5105, 7
      %v5108 = vor.u32 %v5104, %v5107
      %v5109 = vsel %vm5051, %v5100, %v5108
      %v5110 = vrot.slane %v5108, 4
      %v5112 = vshrl.u32 %v5019, 16
      %v5114 = vrot.slane %v5112, 6
      %v5115 = vshll.u32 %v5019, 16
      %v5117 = vrot.slane %v5115, 7
      %v5118 = vor.u32 %v5114, %v5117
      %v5119 = vsel %vm5051, %v5110, %v5118
      %v5120 = vrot.slane %v5118, 4
      %v5122 = vshrl.u32 %v5020, 16
      %v5124 = vrot.slane %v5122, 6
      %v5125 = vshll.u32 %v5020, 16
      %v5127 = vrot.slane %v5125, 7
      %v5128 = vor.u32 %v5124, %v5127
      %v5129 = vsel %vm5051, %v5120, %v5128
      %v5130 = vrot.slane %v5128, 4
      %v5132 = vshrl.u32 %v5021, 16
      %v5134 = vrot.slane %v5132, 6
      %v5135 = vshll.u32 %v5021, 16
      %v5137 = vrot.slane %v5135, 7
      %v5138 = vor.u32 %v5134, %v5137
      %v5139 = vsel %vm5051, %v5130, %v5138
      %v5140 = vrot.slane %v5138, 4
      %v5142 = vshrl.u32 %v5022, 16
      %v5144 = vrot.slane %v5142, 6
      %v5145 = vshll.u32 %v5022, 16
      %v5147 = vrot.slane %v5145, 7
      %v5148 = vor.u32 %v5144, %v5147
      %v5149 = vsel %vm5051, %v5140, %v5148
      %v5150 = vrot.slane %v5148, 4
      %v5152 = vshrl.u32 %v5023, 16
      %v5154 = vrot.slane %v5152, 6
      %v5155 = vshll.u32 %v5023, 16
      %v5157 = vrot.slane %v5155, 7
      %v5158 = vor.u32 %v5154, %v5157
      %v5159 = vsel %vm5051, %v5150, %v5158
      %v5160 = vrot.slane %v5158, 4
      %v5162 = vshrl.u32 %v5024, 16
      %v5164 = vrot.slane %v5162, 6
      %v5165 = vshll.u32 %v5024, 16
      %v5167 = vrot.slane %v5165, 7
      %v5168 = vor.u32 %v5164, %v5167
      %v5169 = vsel %vm5051, %v5160, %v5168
      %v5170 = vrot.slane %v5168, 4
      %v5172 = vshrl.u32 %v5025, 16
      %v5174 = vrot.slane %v5172, 6
      %v5175 = vshll.u32 %v5025, 16
      %v5177 = vrot.slane %v5175, 7
      %v5178 = vor.u32 %v5174, %v5177
      %v5179 = vsel %vm5051, %v5170, %v5178
      %v5180 = vrot.slane %v5178, 4
      %v5182 = vshrl.u32 %v5026, 16
      %v5184 = vrot.slane %v5182, 6
      %v5185 = vshll.u32 %v5026, 16
      %v5187 = vrot.slane %v5185, 7
      %v5188 = vor.u32 %v5184, %v5187
      %v5189 = vsel %vm5051, %v5180, %v5188
      %v5190 = vrot.slane %v5188, 4
      %v5192 = vshrl.u32 %v5027, 16
      %v5194 = vrot.slane %v5192, 6
      %v5195 = vshll.u32 %v5027, 16
      %v5197 = vrot.slane %v5195, 7
      %v5198 = vor.u32 %v5194, %v5197
      %v5199 = vsel %vm5051, %v5190, %v5198
      %v5200 = vrot.slane %v5198, 4
      %v5202 = vshrl.u32 %v5028, 16
      %v5204 = vrot.slane %v5202, 6
      %v5205 = vshll.u32 %v5028, 16
      %v5207 = vrot.slane %v5205, 7
      %v5208 = vor.u32 %v5204, %v5207
      %v5209 = vsel %vm5051, %v5200, %v5208
      %v5210 = vrot.slane %v5208, 4
      %v5212 = vshrl.u32 %v5029, 16
      %v5214 = vrot.slane %v5212, 6
      %v5215 = vshll.u32 %v5029, 16
      %v5217 = vrot.slane %v5215, 7
      %v5218 = vor.u32 %v5214, %v5217
      %v5219 = vsel %vm5051, %v5210, %v5218
      %v5220 = vrot.slane %v5218, 4
      %v5222 = vshrl.u32 %v5030, 16
      %v5224 = vrot.slane %v5222, 6
      %v5225 = vshll.u32 %v5030, 16
      %v5227 = vrot.slane %v5225, 7
      %v5228 = vor.u32 %v5224, %v5227
      %v5229 = vsel %vm5051, %v5220, %v5228
      %v5230 = vrot.slane %v5228, 4
      %v5232 = vshrl.u32 %v5031, 16
      %v5234 = vrot.slane %v5232, 6
      %v5235 = vshll.u32 %v5031, 16
      %v5237 = vrot.slane %v5235, 7
      %v5238 = vor.u32 %v5234, %v5237
      %v5239 = vsel %vm5051, %v5230, %v5238
      %v5240 = vrot.slane %v5238, 4
      %v5242 = vshrl.u32 %v5032, 16
      %v5244 = vrot.slane %v5242, 6
      %v5245 = vshll.u32 %v5032, 16
      %v5247 = vrot.slane %v5245, 7
      %v5248 = vor.u32 %v5244, %v5247
      %v5249 = vsel %vm5051, %v5240, %v5248
      %v5250 = vrot.slane %v5248, 4
      %v5252 = vshrl.u32 %v5033, 16
      %v5254 = vrot.slane %v5252, 6
      %v5255 = vshll.u32 %v5033, 16
      %v5257 = vrot.slane %v5255, 7
      %v5258 = vor.u32 %v5254, %v5257
      %v5259 = vsel %vm5051, %v5250, %v5258
      %v5260 = vrot.slane %v5258, 4
      %v5262 = vshrl.u32 %v5034, 16
      %v5264 = vrot.slane %v5262, 6
      %v5265 = vshll.u32 %v5034, 16
      %v5267 = vrot.slane %v5265, 7
      %v5268 = vor.u32 %v5264, %v5267
      %v5269 = vsel %vm5051, %v5260, %v5268
      %v5270 = vrot.slane %v5268, 4
      %v5272 = vshrl.u32 %v5035, 16
      %v5274 = vrot.slane %v5272, 6
      %v5275 = vshll.u32 %v5035, 16
      %v5277 = vrot.slane %v5275, 7
      %v5278 = vor.u32 %v5274, %v5277
      %v5279 = vsel %vm5051, %v5270, %v5278
      %v5280 = vrot.slane %v5278, 4
      %v5282 = vshrl.u32 %v5036, 16
      %v5284 = vrot.slane %v5282, 6
      %v5285 = vshll.u32 %v5036, 16
      %v5287 = vrot.slane %v5285, 7
      %v5288 = vor.u32 %v5284, %v5287
      %v5289 = vsel %vm5051, %v5280, %v5288
      %v5290 = vrot.slane %v5288, 4
      %v5292 = vshrl.u32 %v5037, 16
      %v5294 = vrot.slane %v5292, 6
      %v5295 = vshll.u32 %v5037, 16
      %v5297 = vrot.slane %v5295, 7
      %v5298 = vor.u32 %v5294, %v5297
      %v5299 = vsel %vm5051, %v5290, %v5298
      %v5300 = vrot.slane %v5298, 4
      %v5302 = vshrl.u32 %v5038, 16
      %v5304 = vrot.slane %v5302, 6
      %v5305 = vshll.u32 %v5038, 16
      %v5307 = vrot.slane %v5305, 7
      %v5308 = vor.u32 %v5304, %v5307
      %v5309 = vsel %vm5051, %v5300, %v5308
      %v5310 = vrot.slane %v5308, 4
      %v5312 = vshrl.u32 %v5039, 16
      %v5314 = vrot.slane %v5312, 6
      %v5315 = vshll.u32 %v5039, 16
      %v5317 = vrot.slane %v5315, 7
      %v5318 = vor.u32 %v5314, %v5317
      %v5319 = vsel %vm5051, %v5310, %v5318
      %v5320 = vrot.slane %v5318, 4
      %v5322 = vshrl.u32 %v5040, 16
      %v5324 = vrot.slane %v5322, 6
      %v5325 = vshll.u32 %v5040, 16
      %v5327 = vrot.slane %v5325, 7
      %v5328 = vor.u32 %v5324, %v5327
      %v5329 = vsel %vm5051, %v5320, %v5328
      %v5330 = vrot.slane %v5328, 4
      %v5332 = vshrl.u32 %v5041, 16
      %v5334 = vrot.slane %v5332, 6
      %v5335 = vshll.u32 %v5041, 16
      %v5337 = vrot.slane %v5335, 7
      %v5338 = vor.u32 %v5334, %v5337
      %v5339 = vsel %vm5051, %v5330, %v5338
      %v5340 = vrot.slane %v5338, 4
      %v5342 = vshrl.u32 %v5042, 16
      %v5344 = vrot.slane %v5342, 6
      %v5345 = vshll.u32 %v5042, 16
      %v5347 = vrot.slane %v5345, 7
      %v5348 = vor.u32 %v5344, %v5347
      %v5349 = vsel %vm5051, %v5340, %v5348
      %v5350 = vrot.slane %v5348, 4
      %v5352 = vshrl.u32 %v5043, 16
      %v5354 = vrot.slane %v5352, 6
      %v5355 = vshll.u32 %v5043, 16
      %v5357 = vrot.slane %v5355, 7
      %v5358 = vor.u32 %v5354, %v5357
      %v5359 = vsel %vm5051, %v5350, %v5358
      %v5360 = vrot.slane %v5358, 4
      %v5362 = vshrl.u32 %v5044, 16
      %v5364 = vrot.slane %v5362, 6
      %v5365 = vshll.u32 %v5044, 16
      %v5367 = vrot.slane %v5365, 7
      %v5368 = vor.u32 %v5364, %v5367
      %v5369 = vsel %vm5051, %v5360, %v5368
      %v5370 = vrot.slane %v5368, 4
      %v5372 = vshrl.u32 %v5045, 16
      %v5374 = vrot.slane %v5372, 6
      %v5375 = vshll.u32 %v5045, 16
      %v5377 = vrot.slane %v5375, 7
      %v5378 = vor.u32 %v5374, %v5377
      %v5379 = vsel %vm5051, %v5370, %v5378
      %v5380 = vrot.slane %v5378, 4
      %v5382 = vshrl.u32 %v5046, 16
      %v5384 = vrot.slane %v5382, 6
      %v5385 = vshll.u32 %v5046, 16
      %v5387 = vrot.slane %v5385, 7
      %v5388 = vor.u32 %v5384, %v5387
      %v5389 = vsel %vm5051, %v5380, %v5388
      %v5390 = vrot.slane %v5388, 4
      %v5392 = vshrl.u32 %v5047, 16
      %v5394 = vrot.slane %v5392, 6
      %v5395 = vshll.u32 %v5047, 16
      %v5397 = vrot.slane %v5395, 7
      %v5398 = vor.u32 %v5394, %v5397
      %v5399 = vsel %vm5051, %v5390, %v5398
      %v5400 = vrot.slane %v5398, 4
      %v5402 = vshrl.u32 %v5048, 16
      %v5404 = vrot.slane %v5402, 6
      %v5405 = vshll.u32 %v5048, 16
      %v5407 = vrot.slane %v5405, 7
      %v5408 = vor.u32 %v5404, %v5407
      %v5409 = vsel %vm5051, %v5400, %v5408
      %v5410 = vrot.slane %v5408, 4
      %vm5448 = vcmask 1043457
      %vm5449 = vsmask.f32 7942
      %vm5450 = vmand %vm5448, %vm5449
      %v5451 = vld [vmem:[%s289 + $0x8] sm:$0xe]
      %v5452 = vsel %vm5450, %v5059, %v5451
      %5453 = vst [vmem:[%s289 + $0x8] sm:$0xe] %v5452
      %5454 = vst [vmem:[%s289 + $0xc] sm:$0xf] %v5069
      %5455 = vst [vmem:[%s289 + $0x10] sm:$0xf] %v5079
      %5456 = vst [vmem:[%s289 + $0x14] sm:$0xf] %v5089
      %5457 = vst [vmem:[%s289 + $0x18] sm:$0xf] %v5099
      %5458 = vst [vmem:[%s289 + $0x1c] sm:$0xf] %v5109
      %5459 = vst [vmem:[%s289 + $0x20] sm:$0xf] %v5119
      %5460 = vst [vmem:[%s289 + $0x24] sm:$0xf] %v5129
      %5461 = vst [vmem:[%s289 + $0x28] sm:$0xf] %v5139
      %5462 = vst [vmem:[%s289 + $0x2c] sm:$0xf] %v5149
      %5463 = vst [vmem:[%s289 + $0x30] sm:$0xf] %v5159
      %5464 = vst [vmem:[%s289 + $0x34] sm:$0xf] %v5169
      %5465 = vst [vmem:[%s289 + $0x38] sm:$0xf] %v5179
      %5466 = vst [vmem:[%s289 + $0x3c] sm:$0xf] %v5189
      %5467 = vst [vmem:[%s289 + $0x40] sm:$0xf] %v5199
      %5468 = vst [vmem:[%s289 + $0x44] sm:$0xf] %v5209
      %5469 = vst [vmem:[%s289 + $0x48] sm:$0xf] %v5219
      %5470 = vst [vmem:[%s289 + $0x4c] sm:$0xf] %v5229
      %5471 = vst [vmem:[%s289 + $0x50] sm:$0xf] %v5239
      %5472 = vst [vmem:[%s289 + $0x54] sm:$0xf] %v5249
      %5473 = vst [vmem:[%s289 + $0x58] sm:$0xf] %v5259
      %5474 = vst [vmem:[%s289 + $0x5c] sm:$0xf] %v5269
      %5475 = vst [vmem:[%s289 + $0x60] sm:$0xf] %v5279
      %5476 = vst [vmem:[%s289 + $0x64] sm:$0xf] %v5289
      %5477 = vst [vmem:[%s289 + $0x68] sm:$0xf] %v5299
      %5478 = vst [vmem:[%s289 + $0x6c] sm:$0xf] %v5309
      %5479 = vst [vmem:[%s289 + $0x70] sm:$0xf] %v5319
      %5480 = vst [vmem:[%s289 + $0x74] sm:$0xf] %v5329
      %5481 = vst [vmem:[%s289 + $0x78] sm:$0xf] %v5339
      %5482 = vst [vmem:[%s289 + $0x7c] sm:$0xf] %v5349
      %5483 = vst [vmem:[%s289 + $0x80] sm:$0xf] %v5359
      %5484 = vst [vmem:[%s289 + $0x84] sm:$0xf] %v5369
      %5485 = vst [vmem:[%s289 + $0x88] sm:$0xf] %v5379
      %5486 = vst [vmem:[%s289 + $0x8c] sm:$0xf] %v5389
      %5487 = vst [vmem:[%s289 + $0x90] sm:$0xf] %v5399
      %5488 = vst [vmem:[%s289 + $0x94] sm:$0xf] %v5409
      %vm5489 = vcmask 1041408
      %vm5490 = vmand %vm5489, %vm5049
      %v5491 = vld [vmem:[%s289 + $0x98] sm:$0x3]
      %v5492 = vsel %vm5490, %v5410, %v5491
      %5493 = vst [vmem:[%s289 + $0x98] sm:$0x3] %v5492
      %5494 = vst [vmem:[%s289] sm:$0xf] 0
      %5495 = vst [vmem:[%s289 + $0x4] sm:$0xf] 0
      %v5496 = vld [vmem:[%s289 + $0x8] sm:$0x3]
      %v5497 = vsel %vm5490, 0, %v5496
      %5498 = vst [vmem:[%s289 + $0x8] sm:$0x3] %v5497
      %v5499 = vld [vmem:[%s289 + $0x98] sm:$0xe]
      %v5500 = vsel %vm5450, 0, %v5499
      %5501 = vst [vmem:[%s289 + $0x98] sm:$0xe] %v5500
      %5502 = vst [vmem:[%s289 + $0x9c] sm:$0xf] 0
      %5503 = vst [vmem:[%s289 + $0xa0] sm:$0xf] 0
      %v5504 = vadd.f32 %v4905, %v4906
      %v5505 = vadd.f32 %v5504, %v4907
      %v5506 = vadd.f32 %v5505, %v4908
      %v5507 = vadd.f32 %v5506, %v4909
      %v5508 = vadd.f32 %v5507, %v4910
      %v5509 = vadd.f32 %v5508, %v4911
      %v5510 = vadd.f32 %v5509, %v4912
      %v5511 = vadd.f32 %v5510, %v4913
      %v5512 = vadd.f32 %v5511, %v4914
      %v5513 = vadd.f32 %v5512, %v4915
      %v5514 = vadd.f32 %v5513, %v4916
      %v5515 = vadd.f32 %v5514, %v4917
      %v5516 = vadd.f32 %v5515, %v4918
      %v5517 = vadd.f32 %v5516, %v4919
      %v5518 = vadd.f32 %v5517, %v4920
      %v5519 = vadd.f32 %v5518, %v4921
      %v5520 = vadd.f32 %v5519, %v4922
      %v5521 = vadd.f32 %v5520, %v4923
      %v5522 = vadd.f32 %v5521, %v4924
      %v5523 = vadd.f32 %v5522, %v4925
      %v5524 = vadd.f32 %v5523, %v4926
      %v5525 = vadd.f32 %v5524, %v4927
      %v5526 = vadd.f32 %v5525, %v4928
      %v5527 = vadd.f32 %v5526, %v4929
      %v5528 = vadd.f32 %v5527, %v4930
      %v5529 = vadd.f32 %v5528, %v4931
      %v5530 = vadd.f32 %v5529, %v4932
      %v5531 = vadd.f32 %v5530, %v4933
      %v5532 = vadd.f32 %v5531, %v4934
      %v5533 = vadd.f32 %v5532, %v4935
      %v5534 = vadd.f32 %v5533, %v4936
      %v5535 = vadd.f32 %v5534, %v4937
      %v5536 = vadd.f32 %v5535, %v4938
      %v5537 = vadd.f32 %v5536, %v4939
      %v5538 = vadd.f32 %v5537, %v4940
      %v5539 = vrot.slane %v5538, 4
      %v5540 = vadd.f32 %v5538, %v5539
      %v5541 = vrot.slane %v5540, 2
      %v5542 = vadd.f32 %v5540, %v5541
      %v5543 = vrot.slane %v5542, 1
      %v5544 = vadd.f32 %v5542, %v5543
      %5545 = vst [vmem:[%s292] sm:$0x1] %v5544
      %v5546 = vmul.f32 %v4905, %v4905
      %v5547 = vmul.f32 %v4906, %v4906
      %v5548 = vmul.f32 %v4907, %v4907
      %v5549 = vmul.f32 %v4908, %v4908
      %v5550 = vmul.f32 %v4909, %v4909
      %v5551 = vmul.f32 %v4910, %v4910
      %v5552 = vmul.f32 %v4911, %v4911
      %v5553 = vmul.f32 %v4912, %v4912
      %v5554 = vmul.f32 %v4913, %v4913
      %v5555 = vmul.f32 %v4914, %v4914
      %v5556 = vmul.f32 %v4915, %v4915
      %v5557 = vmul.f32 %v4916, %v4916
      %v5558 = vmul.f32 %v4917, %v4917
      %v5559 = vmul.f32 %v4918, %v4918
      %v5560 = vmul.f32 %v4919, %v4919
      %v5561 = vmul.f32 %v4920, %v4920
      %v5562 = vmul.f32 %v4921, %v4921
      %v5563 = vmul.f32 %v4922, %v4922
      %v5564 = vmul.f32 %v4923, %v4923
      %v5565 = vmul.f32 %v4924, %v4924
      %v5566 = vmul.f32 %v4925, %v4925
      %v5567 = vmul.f32 %v4926, %v4926
      %v5568 = vmul.f32 %v4927, %v4927
      %v5569 = vmul.f32 %v4928, %v4928
      %v5570 = vmul.f32 %v4929, %v4929
      %v5571 = vmul.f32 %v4930, %v4930
      %v5572 = vmul.f32 %v4931, %v4931
      %v5573 = vmul.f32 %v4932, %v4932
      %v5574 = vmul.f32 %v4933, %v4933
      %v5575 = vmul.f32 %v4934, %v4934
      %v5576 = vmul.f32 %v4935, %v4935
      %v5577 = vmul.f32 %v4936, %v4936
      %v5578 = vmul.f32 %v4937, %v4937
      %v5579 = vmul.f32 %v4938, %v4938
      %v5580 = vmul.f32 %v4939, %v4939
      %v5581 = vmul.f32 %v4940, %v4940
      %v5582 = vadd.f32 %v5546, %v5547
      %v5583 = vadd.f32 %v5582, %v5548
      %v5584 = vadd.f32 %v5583, %v5549
      %v5585 = vadd.f32 %v5584, %v5550
      %v5586 = vadd.f32 %v5585, %v5551
      %v5587 = vadd.f32 %v5586, %v5552
      %v5588 = vadd.f32 %v5587, %v5553
      %v5589 = vadd.f32 %v5588, %v5554
      %v5590 = vadd.f32 %v5589, %v5555
      %v5591 = vadd.f32 %v5590, %v5556
      %v5592 = vadd.f32 %v5591, %v5557
      %v5593 = vadd.f32 %v5592, %v5558
      %v5594 = vadd.f32 %v5593, %v5559
      %v5595 = vadd.f32 %v5594, %v5560
      %v5596 = vadd.f32 %v5595, %v5561
      %v5597 = vadd.f32 %v5596, %v5562
      %v5598 = vadd.f32 %v5597, %v5563
      %v5599 = vadd.f32 %v5598, %v5564
      %v5600 = vadd.f32 %v5599, %v5565
      %v5601 = vadd.f32 %v5600, %v5566
      %v5602 = vadd.f32 %v5601, %v5567
      %v5603 = vadd.f32 %v5602, %v5568
      %v5604 = vadd.f32 %v5603, %v5569
      %v5605 = vadd.f32 %v5604, %v5570
      %v5606 = vadd.f32 %v5605, %v5571
      %v5607 = vadd.f32 %v5606, %v5572
      %v5608 = vadd.f32 %v5607, %v5573
      %v5609 = vadd.f32 %v5608, %v5574
      %v5610 = vadd.f32 %v5609, %v5575
      %v5611 = vadd.f32 %v5610, %v5576
      %v5612 = vadd.f32 %v5611, %v5577
      %v5613 = vadd.f32 %v5612, %v5578
      %v5614 = vadd.f32 %v5613, %v5579
      %v5615 = vadd.f32 %v5614, %v5580
      %v5616 = vadd.f32 %v5615, %v5581
      %v5617 = vrot.slane %v5616, 4
      %v5618 = vadd.f32 %v5616, %v5617
      %v5619 = vrot.slane %v5618, 2
      %v5620 = vadd.f32 %v5618, %v5619
      %v5621 = vrot.slane %v5620, 1
      %v5622 = vadd.f32 %v5620, %v5621
      %5623 = vst [vmem:[%s295] sm:$0x1] %v5622
      %p5624 = scmp.lt.s32.totalorder %s19, 1
      %s5625 = scalar_select %p5624, %s19, 1
      %s5626 = smul.addr %s5625, 41
      %s5627 = smul.addr %s5626, 4
      %s5628 = scalar_lea.vmem %s5, %s5627
      %p5629 = scmp.lt.s32.totalorder %s19, 1
      %s5630 = scalar_select %p5629, %s19, 1
      %s5631 = scalar_lea.vmem %s6, %s5630
      %p5632 = scmp.lt.s32.totalorder %s19, 1
      %s5633 = scalar_select %p5632, %s19, 1
      %s5634 = scalar_lea.vmem %s7, %s5633
      // Predicated region
      $region41: #{double_conv.4} parent=39 // pred_check
        %p5635 = pneg %p147
      $region42: #{double_conv.4} parent=39 // pred_check_branch
        %5637 = sbr.rel (%p5635) target = $region44
      $region43: #{double_conv.4} parent=39 // pred_region
        _
      $region44: #{double_conv.4} parent=39 // pred_fallthru
        _
      // Predicated region
      $region45: #{double_conv.4} parent=39 // pred_check
        %p5638 = pneg %p173
      $region46: #{double_conv.4} parent=39 // pred_check_branch
        %5640 = sbr.rel (%p5638) target = $region48
      $region47: #{double_conv.4} parent=39 // pred_region
        _
      $region48: #{double_conv.4} parent=39 // pred_fallthru
        _
      // Predicated region
      $region49: #{double_conv.4} parent=39 // pred_check
        %p5641 = pneg %p199
      $region50: #{double_conv.4} parent=39 // pred_check_branch
        %5643 = sbr.rel (%p5641) target = $region52
      $region51: #{double_conv.4} parent=39 // pred_region
        _
      $region52: #{double_conv.4} parent=39 // pred_fallthru
        _
    $region40: #{double_conv.4} parent=5 // pred_fallthru
      _
    %p5644 = scmp.le.s32.totalorder 2, %s14
    // Predicated region
    $region53: #{double_conv.4} parent=5 // pred_check
      %p5645 = pneg %p5644
    $region54: #{double_conv.4} parent=5 // pred_check_branch
      %5647 = sbr.rel (%p5645) target = $region56
    $region55: #{double_conv.4} parent=5 // pred_region
      %s5648 = ssub.s32 %s14, 2
      // Predicated region
      $region57: #{double_conv.4} parent=55 // pred_check
        %p5649 = pneg %p153
      $region58: #{double_conv.4} parent=55 // pred_check_branch
        %5651 = sbr.rel (%p5649) target = $region60
      $region59: #{double_conv.4} parent=55 // pred_region
        %p5652 = scmp.lt.s32.totalorder %s20, 1
        %s5653 = scalar_select %p5652, %s20, 1
        %s5654 = smul.addr %s5653, 41
        %s5655 = smul.addr %s5654, 4
        %s5656 = scalar_lea.vmem %s5, %s5655
      $region60: #{double_conv.4} parent=55 // pred_fallthru
        _
      // Predicated region
      $region61: #{double_conv.4} parent=55 // pred_check
        %p5657 = pneg %p179
      $region62: #{double_conv.4} parent=55 // pred_check_branch
        %5659 = sbr.rel (%p5657) target = $region64
      $region63: #{double_conv.4} parent=55 // pred_region
        %p5660 = scmp.lt.s32.totalorder %s20, 1
        %s5661 = scalar_select %p5660, %s20, 1
        %s5662 = scalar_lea.vmem %s6, %s5661
      $region64: #{double_conv.4} parent=55 // pred_fallthru
        _
      // Predicated region
      $region65: #{double_conv.4} parent=55 // pred_check
        %p5663 = pneg %p205
      $region66: #{double_conv.4} parent=55 // pred_check_branch
        %5665 = sbr.rel (%p5663) target = $region68
      $region67: #{double_conv.4} parent=55 // pred_region
        %p5666 = scmp.lt.s32.totalorder %s20, 1
        %s5667 = scalar_select %p5666, %s20, 1
        %s5668 = scalar_lea.vmem %s7, %s5667
      $region68: #{double_conv.4} parent=55 // pred_fallthru
        _
    $region56: #{double_conv.4} parent=5 // pred_fallthru
      _
  $region6: #{double_conv.4} parent=0 // loop_footer
    %s18 = sadd.s32 1, %s14
  $region7: #{double_conv.4} parent=0 // loop_footer_branch
    %13 = sbr.rel target = $region3
  $region8: #{double_conv.4} parent=0 // loop_exit
    _

</llo_original>
